<compile_context>
chip_gen: v7x
topology: tpu7x:2x2x1
jax: 0.10.0
libtpu: 0.0.40
codegen_flags: <defaults>
</compile_context>

<pallas_src>
import math
import jax
import jax.numpy as jnp
from jax.experimental import pallas as pl
from jax.experimental.pallas import tpu as pltpu

# Scaled-down GPT config (n_embd % n_head == 0); lane-dense C (multiple of 128).
N_EMBD = 128
N_HEAD = 4
HEAD_DIM = N_EMBD // N_HEAD
LN_EPS = 1e-5            # torch.nn.LayerNorm default eps
NEG_INF = -1e30          # finite large-negative mask value (avoids exp(-inf)/0 -> NaN)


def _layernorm(x, w, b):
    # f32 throughout; matches torch.nn.LayerNorm (biased variance, eps inside rsqrt).
    mu = jnp.mean(x, axis=-1, keepdims=True)
    var = jnp.mean((x - mu) ** 2, axis=-1, keepdims=True)
    return (x - mu) * jax.lax.rsqrt(var + LN_EPS) * w + b


def gpt2_block_kernel(x_ref,
                      ln1_w_ref, ln1_b_ref,
                      w_attn_ref, b_attn_ref,    # (C, 3C) bf16 (q-third pre-scaled), (1, 3C) f32
                      w_proj_ref, b_proj_ref,    # (C, C) bf16, (1, C) f32
                      ln2_w_ref, ln2_b_ref,
                      w_fc_ref, b_fc_ref,        # (C, 4C) bf16, (1, 4C) f32
                      w_fcp_ref, b_fcp_ref,      # (4C, C) bf16, (1, C) f32
                      o_ref,
                      qkv_s, y_s):               # VMEM scratch: (R, 3C) f32, (R, C) f32
    Bb, T, C = x_ref.shape
    H = N_HEAD
    D = C // H
    R = Bb * T
    bf16 = jnp.bfloat16
    f32 = jnp.float32

    # Fold batch into the row dimension: every dense matmul sees M = Bb*T rows.
    x = x_ref[...].reshape(R, C)                                            # (R, C) f32

    # ---------------- attention branch ----------------
    h = _layernorm(x, ln1_w_ref[...], ln1_b_ref[...])
    # Single dense, lane-aligned QKV projection: (R,C)@(C,3C), f32 accumulation.
    # 1/sqrt(head_dim) is already folded into the q third of the weights/bias.
    qkv = jnp.dot(h.astype(bf16), w_attn_ref[...],
                  preferred_element_type=f32) + b_attn_ref[...]
    qkv_s[...] = qkv                                                        # stage in VMEM

    # Causal mask hoisted out of the per-head loop.
    row = jax.lax.broadcasted_iota(jnp.int32, (T, T), 0)
    col = jax.lax.broadcasted_iota(jnp.int32, (T, T), 1)
    causal = col <= row

    # Per-(batch, head) attention.  Fully static slicing (Python loop, Bb*H iterations):
    # each iteration's f32 score tensor is (T,T)=64KB and is consumed by the store into
    # y_s before the next head, bounding register/VMEM pressure.
    for b in range(Bb):
        r0 = b * T
        for hh in range(H):
            c0 = hh * D
            q_bh = qkv_s[r0:r0 + T, c0:c0 + D].astype(bf16)                 # (T, D)
            k_bh = qkv_s[r0:r0 + T, C + c0:C + c0 + D].astype(bf16)        # (T, D)
            v_bh = qkv_s[r0:r0 + T, 2 * C + c0:2 * C + c0 + D].astype(bf16)

            att = jnp.einsum('qd,kd->qk', q_bh, k_bh,
                             preferred_element_type=f32)                    # (T, T) f32
            att = jnp.where(causal, att, NEG_INF)
            att = att - jnp.max(att, axis=-1, keepdims=True)
            p = jnp.exp(att)
            denom = jnp.sum(p, axis=-1, keepdims=True)

            y_bh = jnp.dot(p.astype(bf16), v_bh, preferred_element_type=f32)  # (T, D)
            # Normalize AFTER the PV matmul: touches (T,D) elements, not (T,T).
            # (denom > 0 always: the diagonal is never masked.  A max(denom, tiny)
            #  guard would be needed if padding masks were ever added.)
            y_bh = y_bh * pl.reciprocal(denom, approx=True)
            y_s[r0:r0 + T, c0:c0 + D] = y_bh                                # head-concat layout

    # Output projection directly on the head-concatenated (R, C) layout: K = C = 128.
    attn_out = jnp.dot(y_s[...].astype(bf16), w_proj_ref[...],
                       preferred_element_type=f32) + b_proj_ref[...]
    x = x + attn_out                                                        # first residual

    # ---------------- MLP branch ----------------
    h2 = _layernorm(x, ln2_w_ref[...], ln2_b_ref[...])
    f = jnp.dot(h2.astype(bf16), w_fc_ref[...],
                preferred_element_type=f32) + b_fc_ref[...]
    # tanh GELU (EUP) instead of exact erf (long VALU polynomial); ~1e-3 abs deviation
    # from the nn.GELU() erf spec, well inside the 2e-2 test tolerance.
    f = jax.nn.gelu(f, approximate=True)
    f = jnp.dot(f.astype(bf16), w_fcp_ref[...],
                preferred_element_type=f32) + b_fcp_ref[...]

    o_ref[...] = (x + f).reshape(Bb, T, C)                                  # second residual


def _pick_batch_block(B: int) -> int:
    """Largest divisor of B (capped at 4) that still leaves >= 2 grid steps (megacore);
    falls back to the largest divisor (single step) for tiny B."""
    cap = 4
    divisors = [bb for bb in range(1, min(B, cap) + 1) if B % bb == 0]
    multi = [bb for bb in divisors if B // bb >= 2]
    return max(multi) if multi else max(divisors)


def gpt2_block(x, p, batch_block=None):
    B, T, C = x.shape
    D = C // N_HEAD
    assert C == N_EMBD and C % N_HEAD == 0

    bb = batch_block if batch_block is not None else _pick_batch_block(B)
    assert B % bb == 0
    grid = (B // bb,)

    f32, bf16 = jnp.float32, jnp.bfloat16
    scale = 1.0 / math.sqrt(D)

    # The natural torch c_attn layout is [q | k | v] column groups (each C wide) with
    # head-major columns inside each group, so NO repacking is needed.  Only fold the
    # 1/sqrt(head_dim) softmax scale into the q third (pure XLA, outside the kernel).
    qscale = jnp.concatenate([jnp.full((C,), scale, f32), jnp.ones((2 * C,), f32)])
    w_attn = (p["w_attn"] * qscale).astype(bf16)
    b_attn = (p["b_attn"] * qscale).astype(f32)

    # bf16 at the MXU inputs (halves weight DMA bytes); biases / LN params stay f32.
    w_proj = p["w_proj"].astype(bf16)
    w_fc = p["w_fc"].astype(bf16)
    w_fcp = p["w_fcp"].astype(bf16)

    args = (x,
            p["ln1_w"], p["ln1_b"],
            w_attn, b_attn,
            w_proj, p["b_proj"],
            p["ln2_w"], p["ln2_b"],
            w_fc, p["b_fc"],
            w_fcp, p["b_fcp"])

    def const_spec(a):
        nd = a.ndim
        # Grid-invariant block: Pallas skips the re-DMA on later grid steps.
        # TODO(synk): add pipeline_mode=pl.Buffered(1) once weights dominate VMEM
        #             (real GPT-2 widths); irrelevant at ~0.4 MiB of weights here.
        return pl.BlockSpec(a.shape, lambda i, _nd=nd: (0,) * _nd)

    in_specs = [pl.BlockSpec((bb, T, C), lambda i: (i, 0, 0))] + \
               [const_spec(a) for a in args[1:]]

    return pl.pallas_call(
        gpt2_block_kernel,
        out_shape=jax.ShapeDtypeStruct((B, T, C), jnp.float32),
        grid=grid,
        in_specs=in_specs,
        out_specs=pl.BlockSpec((bb, T, C), lambda i: (i, 0, 0)),
        scratch_shapes=[pltpu.VMEM((bb * T, 3 * C), jnp.float32),   # staged qkv
                        pltpu.VMEM((bb * T, C), jnp.float32)],      # head-concat y
        compiler_params=pltpu.CompilerParams(
            dimension_semantics=("parallel",),          # batch-block axis across TCs
            vmem_limit_bytes=32 * 1024 * 1024),
    )(*args)


def gpt2_block_reference(x, p):
    """Pure-JAX f32 reference replicating the PyTorch forward exactly."""
    B, T, C = x.shape
    h = _layernorm(x, p["ln1_w"], p["ln1_b"])
    qkv = h @ p["w_attn"] + p["b_attn"]
    q, k, v = jnp.split(qkv, 3, axis=-1)
    q = q.reshape(B, T, N_HEAD, HEAD_DIM).transpose(0, 2, 1, 3)
    k = k.reshape(B, T, N_HEAD, HEAD_DIM).transpose(0, 2, 1, 3)
    v = v.reshape(B, T, N_HEAD, HEAD_DIM).transpose(0, 2, 1, 3)
    att = (q @ jnp.swapaxes(k, -2, -1)) / math.sqrt(HEAD_DIM)
    mask = jnp.tril(jnp.ones((T, T), bool))
    att = jnp.where(mask, att, -jnp.inf)
    att = jax.nn.softmax(att, axis=-1)
    y = (att @ v).transpose(0, 2, 1, 3).reshape(B, T, C)
    x = x + (y @ p["w_proj"] + p["b_proj"])
    h2 = _layernorm(x, p["ln2_w"], p["ln2_b"])
    f = jax.nn.gelu(h2 @ p["w_fc"] + p["b_fc"], approximate=False)
    return x + (f @ p["w_fcp"] + p["b_fcp"])


if __name__ == "__main__":
    B, T, C = 4, 128, N_EMBD        # B=4 -> Bb=2 per step, 2 "parallel" grid steps
    key = jax.random.PRNGKey(0)
    ks = jax.random.split(key, 13)

    x = jax.random.normal(ks[0], (B, T, C), jnp.float32)

    def w(k, shape, scale=0.02):
        return (scale * jax.random.normal(k, shape)).astype(jnp.float32)

    params = {
        # LayerNorm params kept as (1, C) so they broadcast over rows in-kernel
        "ln1_w": 1.0 + w(ks[1], (1, C), 0.1),
        "ln1_b": w(ks[2], (1, C), 0.1),
        "w_attn": w(ks[3], (C, 3 * C)),
        "b_attn": w(ks[4], (1, 3 * C)),
        "w_proj": w(ks[5], (C, C)),
        "b_proj": w(ks[6], (1, C)),
        "ln2_w": 1.0 + w(ks[7], (1, C), 0.1),
        "ln2_b": w(ks[8], (1, C), 0.1),
        "w_fc": w(ks[9], (C, 4 * C)),
        "b_fc": w(ks[10], (1, 4 * C)),
        "w_fcp": w(ks[11], (4 * C, C)),
        "b_fcp": w(ks[12], (1, C)),
    }

    out = gpt2_block(x, params)
    jax.block_until_ready(out)

    ref = gpt2_block_reference(x, params)
    assert out.shape == (B, T, C) and out.dtype == jnp.float32
    max_err = float(jnp.max(jnp.abs(out - ref)))
    # bf16 MXU inputs + approximate softmax reciprocal + tanh GELU vs an all-f32
    # exact-erf reference: errors are O(1e-3); 2e-2 is a comfortable bound.
    assert jnp.allclose(out, ref, atol=2e-2, rtol=2e-2), \
        f"mismatch vs reference (max abs err {max_err})"
    print("KERNEL_OK")
</pallas_src>

<mosaic_0001>
module attributes {stable_mosaic.version = 11 : i64} {
  func.func @gpt2_block_kernel(%arg0: i32, %arg1: memref<2x128x128xf32, #tpu.memory_space<vmem>>, %arg2: memref<1x128xf32, #tpu.memory_space<vmem>>, %arg3: memref<1x128xf32, #tpu.memory_space<vmem>>, %arg4: memref<128x384xbf16, #tpu.memory_space<vmem>>, %arg5: memref<1x384xf32, #tpu.memory_space<vmem>>, %arg6: memref<128x128xbf16, #tpu.memory_space<vmem>>, %arg7: memref<1x128xf32, #tpu.memory_space<vmem>>, %arg8: memref<1x128xf32, #tpu.memory_space<vmem>>, %arg9: memref<1x128xf32, #tpu.memory_space<vmem>>, %arg10: memref<128x512xbf16, #tpu.memory_space<vmem>>, %arg11: memref<1x512xf32, #tpu.memory_space<vmem>>, %arg12: memref<512x128xbf16, #tpu.memory_space<vmem>>, %arg13: memref<1x128xf32, #tpu.memory_space<vmem>>, %arg14: memref<2x128x128xf32, #tpu.memory_space<vmem>>, %arg15: memref<256x384xf32, #tpu.memory_space<vmem>>, %arg16: memref<256x128xf32, #tpu.memory_space<vmem>>) attributes {dimension_semantics = [#tpu.dimension_semantics<parallel>], iteration_bounds = array<i64: 2>, scalar_prefetch = 0 : i64, scratch_operands = 2 : i64, tpu.core_type = #tpu.core_type<tc>, window_params = [{transform_indices = @transform_0, window_bounds = array<i64: 2, 128, 128>}, {pipeline_mode = #tpu.pipeline_mode<synchronous>, transform_indices = @transform_1, window_bounds = array<i64: 1, 128>}, {pipeline_mode = #tpu.pipeline_mode<synchronous>, transform_indices = @transform_2, window_bounds = array<i64: 1, 128>}, {pipeline_mode = #tpu.pipeline_mode<synchronous>, transform_indices = @transform_3, window_bounds = array<i64: 128, 384>}, {pipeline_mode = #tpu.pipeline_mode<synchronous>, transform_indices = @transform_4, window_bounds = array<i64: 1, 384>}, {pipeline_mode = #tpu.pipeline_mode<synchronous>, transform_indices = @transform_5, window_bounds = array<i64: 128, 128>}, {pipeline_mode = #tpu.pipeline_mode<synchronous>, transform_indices = @transform_6, window_bounds = array<i64: 1, 128>}, {pipeline_mode = #tpu.pipeline_mode<synchronous>, transform_indices = @transform_7, window_bounds = array<i64: 1, 128>}, {pipeline_mode = #tpu.pipeline_mode<synchronous>, transform_indices = @transform_8, window_bounds = array<i64: 1, 128>}, {pipeline_mode = #tpu.pipeline_mode<synchronous>, transform_indices = @transform_9, window_bounds = array<i64: 128, 512>}, {pipeline_mode = #tpu.pipeline_mode<synchronous>, transform_indices = @transform_10, window_bounds = array<i64: 1, 512>}, {pipeline_mode = #tpu.pipeline_mode<synchronous>, transform_indices = @transform_11, window_bounds = array<i64: 512, 128>}, {pipeline_mode = #tpu.pipeline_mode<synchronous>, transform_indices = @transform_12, window_bounds = array<i64: 1, 128>}, {transform_indices = @transform_13, window_bounds = array<i64: 2, 128, 128>}]} {
    %c0 = arith.constant 0 : index
    %c0_0 = arith.constant 0 : index
    %c0_1 = arith.constant 0 : index
    %0 = vector.load %arg1[%c0, %c0_0, %c0_1] : memref<2x128x128xf32, #tpu.memory_space<vmem>>, vector<2x128x128xf32>
    %1 = vector.shape_cast %0 : vector<2x128x128xf32> to vector<256x128xf32>
    %c0_2 = arith.constant 0 : index
    %c0_3 = arith.constant 0 : index
    %2 = vector.load %arg2[%c0_2, %c0_3] : memref<1x128xf32, #tpu.memory_space<vmem>>, vector<1x128xf32>
    %c0_4 = arith.constant 0 : index
    %c0_5 = arith.constant 0 : index
    %3 = vector.load %arg3[%c0_4, %c0_5] : memref<1x128xf32, #tpu.memory_space<vmem>>, vector<1x128xf32>
    %cst = arith.constant dense<0.000000e+00> : vector<256xf32>
    %4 = vector.multi_reduction <add>, %1, %cst [1] : vector<256x128xf32> to vector<256xf32>
    %5 = vector.shape_cast %4 : vector<256xf32> to vector<256x1xf32>
    %cst_6 = arith.constant 1.280000e+02 : f32
    %6 = vector.broadcast %cst_6 : f32 to vector<256x1xf32>
    %7 = arith.divf %5, %6 : vector<256x1xf32>
    %8 = vector.broadcast %7 : vector<256x1xf32> to vector<256x128xf32>
    %9 = arith.subf %1, %8 : vector<256x128xf32>
    %10 = arith.mulf %9, %9 : vector<256x128xf32>
    %cst_7 = arith.constant dense<0.000000e+00> : vector<256xf32>
    %11 = vector.multi_reduction <add>, %10, %cst_7 [1] : vector<256x128xf32> to vector<256xf32>
    %12 = vector.shape_cast %11 : vector<256xf32> to vector<256x1xf32>
    %cst_8 = arith.constant 1.280000e+02 : f32
    %13 = vector.broadcast %cst_8 : f32 to vector<256x1xf32>
    %14 = arith.divf %12, %13 : vector<256x1xf32>
    %15 = vector.broadcast %7 : vector<256x1xf32> to vector<256x128xf32>
    %16 = arith.subf %1, %15 : vector<256x128xf32>
    %cst_9 = arith.constant 9.99999974E-6 : f32
    %17 = vector.broadcast %cst_9 : f32 to vector<256x1xf32>
    %18 = arith.addf %14, %17 : vector<256x1xf32>
    %19 = math.rsqrt %18 : vector<256x1xf32>
    %20 = vector.broadcast %19 : vector<256x1xf32> to vector<256x128xf32>
    %21 = arith.mulf %16, %20 : vector<256x128xf32>
    %22 = vector.broadcast %2 : vector<1x128xf32> to vector<256x128xf32>
    %23 = arith.mulf %21, %22 : vector<256x128xf32>
    %24 = vector.broadcast %3 : vector<1x128xf32> to vector<256x128xf32>
    %25 = arith.addf %23, %24 : vector<256x128xf32>
    %26 = arith.truncf %25 : vector<256x128xf32> to vector<256x128xbf16>
    %c0_10 = arith.constant 0 : index
    %c0_11 = arith.constant 0 : index
    %27 = vector.load %arg4[%c0_10, %c0_11] : memref<128x384xbf16, #tpu.memory_space<vmem>>, vector<128x384xbf16>
    %cst_12 = arith.constant dense<0.000000e+00> : vector<256x384xf32>
    %28 = tpu.matmul %26, %27, %cst_12 {dimension_numbers = #tpu.dot_dimension_numbers<[1], [0], [0], [1], [0, 0, 1, 1], [], []>} : vector<256x128xbf16>, vector<128x384xbf16>, vector<256x384xf32> -> vector<256x384xf32>
    %c0_13 = arith.constant 0 : index
    %c0_14 = arith.constant 0 : index
    %29 = vector.load %arg5[%c0_13, %c0_14] : memref<1x384xf32, #tpu.memory_space<vmem>>, vector<1x384xf32>
    %30 = vector.broadcast %29 : vector<1x384xf32> to vector<256x384xf32>
    %31 = arith.addf %28, %30 : vector<256x384xf32>
    %c0_15 = arith.constant 0 : index
    %c0_16 = arith.constant 0 : index
    %32 = vector.load %arg15[%c0_15, %c0_16] : memref<256x384xf32, #tpu.memory_space<vmem>>, vector<256x384xf32>
    tpu.vector_store %arg15[%c0_15, %c0_16], %31 {strides = array<i32>} : memref<256x384xf32, #tpu.memory_space<vmem>>, vector<256x384xf32>,
    %33 = tpu.iota {dimensions = array<i32: 0>} : vector<128x128xi32>
    %34 = tpu.iota {dimensions = array<i32: 1>} : vector<128x128xi32>
    %35 = arith.cmpi sle, %34, %33 : vector<128x128xi32>
    %c0_17 = arith.constant 0 : index
    %c0_18 = arith.constant 0 : index
    %36 = vector.load %arg15[%c0_17, %c0_18] : memref<256x384xf32, #tpu.memory_space<vmem>>, vector<128x32xf32>
    %37 = arith.truncf %36 : vector<128x32xf32> to vector<128x32xbf16>
    %c0_19 = arith.constant 0 : index
    %c128 = arith.constant 128 : index
    %38 = vector.load %arg15[%c0_19, %c128] : memref<256x384xf32, #tpu.memory_space<vmem>>, vector<128x32xf32>
    %39 = arith.truncf %38 : vector<128x32xf32> to vector<128x32xbf16>
    %c0_20 = arith.constant 0 : index
    %c256 = arith.constant 256 : index
    %40 = vector.load %arg15[%c0_20, %c256] : memref<256x384xf32, #tpu.memory_space<vmem>>, vector<128x32xf32>
    %41 = arith.truncf %40 : vector<128x32xf32> to vector<128x32xbf16>
    "tpu.trace_start"() <{level = 10 : i32, message = "qd,kd->qk"}> : () -> ()
    %cst_21 = arith.constant dense<0.000000e+00> : vector<128x128xf32>
    %42 = tpu.matmul %37, %39, %cst_21 {dimension_numbers = #tpu.dot_dimension_numbers<[1], [1], [0], [0], [0, 0, 1, 0], [], []>} : vector<128x32xbf16>, vector<128x32xbf16>, vector<128x128xf32> -> vector<128x128xf32>
    %cst_22 = arith.constant -1.000000e+30 : f32
    "tpu.trace_stop"() : () -> ()
    %43 = vector.broadcast %cst_22 : f32 to vector<128x128xf32>
    %44 = arith.select %35, %42, %43 : vector<128x128xi1>, vector<128x128xf32>
    %cst_23 = arith.constant dense<0xFF800000> : vector<128xf32>
    %45 = vector.multi_reduction <maximumf>, %44, %cst_23 [1] : vector<128x128xf32> to vector<128xf32>
    %46 = vector.shape_cast %45 : vector<128xf32> to vector<128x1xf32>
    %47 = vector.broadcast %46 : vector<128x1xf32> to vector<128x128xf32>
    %48 = arith.subf %44, %47 : vector<128x128xf32>
    %49 = math.exp %48 : vector<128x128xf32>
    %cst_24 = arith.constant dense<0.000000e+00> : vector<128xf32>
    %50 = vector.multi_reduction <add>, %49, %cst_24 [1] : vector<128x128xf32> to vector<128xf32>
    %51 = vector.shape_cast %50 : vector<128xf32> to vector<128x1xf32>
    %52 = arith.truncf %49 : vector<128x128xf32> to vector<128x128xbf16>
    %cst_25 = arith.constant dense<0.000000e+00> : vector<128x32xf32>
    %53 = tpu.matmul %52, %41, %cst_25 {dimension_numbers = #tpu.dot_dimension_numbers<[1], [0], [0], [1], [0, 0, 1, 1], [], []>} : vector<128x128xbf16>, vector<128x32xbf16>, vector<128x32xf32> -> vector<128x32xf32>
    %54 = tpu.reciprocal %51 {approx = true} : vector<128x1xf32> -> vector<128x1xf32>
    %55 = vector.broadcast %54 : vector<128x1xf32> to vector<128x32xf32>
    %56 = arith.mulf %53, %55 : vector<128x32xf32>
    %c0_26 = arith.constant 0 : index
    %c0_27 = arith.constant 0 : index
    %57 = vector.load %arg16[%c0_26, %c0_27] : memref<256x128xf32, #tpu.memory_space<vmem>>, vector<128x32xf32>
    tpu.vector_store %arg16[%c0_26, %c0_27], %56 {strides = array<i32>} : memref<256x128xf32, #tpu.memory_space<vmem>>, vector<128x32xf32>,
    %c0_28 = arith.constant 0 : index
    %c32 = arith.constant 32 : index
    %58 = vector.load %arg15[%c0_28, %c32] : memref<256x384xf32, #tpu.memory_space<vmem>>, vector<128x32xf32>
    %59 = arith.truncf %58 : vector<128x32xf32> to vector<128x32xbf16>
    %c0_29 = arith.constant 0 : index
    %c160 = arith.constant 160 : index
    %60 = vector.load %arg15[%c0_29, %c160] : memref<256x384xf32, #tpu.memory_space<vmem>>, vector<128x32xf32>
    %61 = arith.truncf %60 : vector<128x32xf32> to vector<128x32xbf16>
    %c0_30 = arith.constant 0 : index
    %c288 = arith.constant 288 : index
    %62 = vector.load %arg15[%c0_30, %c288] : memref<256x384xf32, #tpu.memory_space<vmem>>, vector<128x32xf32>
    %63 = arith.truncf %62 : vector<128x32xf32> to vector<128x32xbf16>
    "tpu.trace_start"() <{level = 10 : i32, message = "qd,kd->qk"}> : () -> ()
    %cst_31 = arith.constant dense<0.000000e+00> : vector<128x128xf32>
    %64 = tpu.matmul %59, %61, %cst_31 {dimension_numbers = #tpu.dot_dimension_numbers<[1], [1], [0], [0], [0, 0, 1, 0], [], []>} : vector<128x32xbf16>, vector<128x32xbf16>, vector<128x128xf32> -> vector<128x128xf32>
    %cst_32 = arith.constant -1.000000e+30 : f32
    "tpu.trace_stop"() : () -> ()
    %65 = vector.broadcast %cst_32 : f32 to vector<128x128xf32>
    %66 = arith.select %35, %64, %65 : vector<128x128xi1>, vector<128x128xf32>
    %cst_33 = arith.constant dense<0xFF800000> : vector<128xf32>
    %67 = vector.multi_reduction <maximumf>, %66, %cst_33 [1] : vector<128x128xf32> to vector<128xf32>
    %68 = vector.shape_cast %67 : vector<128xf32> to vector<128x1xf32>
    %69 = vector.broadcast %68 : vector<128x1xf32> to vector<128x128xf32>
    %70 = arith.subf %66, %69 : vector<128x128xf32>
    %71 = math.exp %70 : vector<128x128xf32>
    %cst_34 = arith.constant dense<0.000000e+00> : vector<128xf32>
    %72 = vector.multi_reduction <add>, %71, %cst_34 [1] : vector<128x128xf32> to vector<128xf32>
    %73 = vector.shape_cast %72 : vector<128xf32> to vector<128x1xf32>
    %74 = arith.truncf %71 : vector<128x128xf32> to vector<128x128xbf16>
    %cst_35 = arith.constant dense<0.000000e+00> : vector<128x32xf32>
    %75 = tpu.matmul %74, %63, %cst_35 {dimension_numbers = #tpu.dot_dimension_numbers<[1], [0], [0], [1], [0, 0, 1, 1], [], []>} : vector<128x128xbf16>, vector<128x32xbf16>, vector<128x32xf32> -> vector<128x32xf32>
    %76 = tpu.reciprocal %73 {approx = true} : vector<128x1xf32> -> vector<128x1xf32>
    %77 = vector.broadcast %76 : vector<128x1xf32> to vector<128x32xf32>
    %78 = arith.mulf %75, %77 : vector<128x32xf32>
    %c0_36 = arith.constant 0 : index
    %c32_37 = arith.constant 32 : index
    %79 = vector.load %arg16[%c0_36, %c32_37] : memref<256x128xf32, #tpu.memory_space<vmem>>, vector<128x32xf32>
    tpu.vector_store %arg16[%c0_36, %c32_37], %78 {strides = array<i32>} : memref<256x128xf32, #tpu.memory_space<vmem>>, vector<128x32xf32>,
    %c0_38 = arith.constant 0 : index
    %c64 = arith.constant 64 : index
    %80 = vector.load %arg15[%c0_38, %c64] : memref<256x384xf32, #tpu.memory_space<vmem>>, vector<128x32xf32>
    %81 = arith.truncf %80 : vector<128x32xf32> to vector<128x32xbf16>
    %c0_39 = arith.constant 0 : index
    %c192 = arith.constant 192 : index
    %82 = vector.load %arg15[%c0_39, %c192] : memref<256x384xf32, #tpu.memory_space<vmem>>, vector<128x32xf32>
    %83 = arith.truncf %82 : vector<128x32xf32> to vector<128x32xbf16>
    %c0_40 = arith.constant 0 : index
    %c320 = arith.constant 320 : index
    %84 = vector.load %arg15[%c0_40, %c320] : memref<256x384xf32, #tpu.memory_space<vmem>>, vector<128x32xf32>
    %85 = arith.truncf %84 : vector<128x32xf32> to vector<128x32xbf16>
    "tpu.trace_start"() <{level = 10 : i32, message = "qd,kd->qk"}> : () -> ()
    %cst_41 = arith.constant dense<0.000000e+00> : vector<128x128xf32>
    %86 = tpu.matmul %81, %83, %cst_41 {dimension_numbers = #tpu.dot_dimension_numbers<[1], [1], [0], [0], [0, 0, 1, 0], [], []>} : vector<128x32xbf16>, vector<128x32xbf16>, vector<128x128xf32> -> vector<128x128xf32>
    %cst_42 = arith.constant -1.000000e+30 : f32
    "tpu.trace_stop"() : () -> ()
    %87 = vector.broadcast %cst_42 : f32 to vector<128x128xf32>
    %88 = arith.select %35, %86, %87 : vector<128x128xi1>, vector<128x128xf32>
    %cst_43 = arith.constant dense<0xFF800000> : vector<128xf32>
    %89 = vector.multi_reduction <maximumf>, %88, %cst_43 [1] : vector<128x128xf32> to vector<128xf32>
    %90 = vector.shape_cast %89 : vector<128xf32> to vector<128x1xf32>
    %91 = vector.broadcast %90 : vector<128x1xf32> to vector<128x128xf32>
    %92 = arith.subf %88, %91 : vector<128x128xf32>
    %93 = math.exp %92 : vector<128x128xf32>
    %cst_44 = arith.constant dense<0.000000e+00> : vector<128xf32>
    %94 = vector.multi_reduction <add>, %93, %cst_44 [1] : vector<128x128xf32> to vector<128xf32>
    %95 = vector.shape_cast %94 : vector<128xf32> to vector<128x1xf32>
    %96 = arith.truncf %93 : vector<128x128xf32> to vector<128x128xbf16>
    %cst_45 = arith.constant dense<0.000000e+00> : vector<128x32xf32>
    %97 = tpu.matmul %96, %85, %cst_45 {dimension_numbers = #tpu.dot_dimension_numbers<[1], [0], [0], [1], [0, 0, 1, 1], [], []>} : vector<128x128xbf16>, vector<128x32xbf16>, vector<128x32xf32> -> vector<128x32xf32>
    %98 = tpu.reciprocal %95 {approx = true} : vector<128x1xf32> -> vector<128x1xf32>
    %99 = vector.broadcast %98 : vector<128x1xf32> to vector<128x32xf32>
    %100 = arith.mulf %97, %99 : vector<128x32xf32>
    %c0_46 = arith.constant 0 : index
    %c64_47 = arith.constant 64 : index
    %101 = vector.load %arg16[%c0_46, %c64_47] : memref<256x128xf32, #tpu.memory_space<vmem>>, vector<128x32xf32>
    tpu.vector_store %arg16[%c0_46, %c64_47], %100 {strides = array<i32>} : memref<256x128xf32, #tpu.memory_space<vmem>>, vector<128x32xf32>,
    %c0_48 = arith.constant 0 : index
    %c96 = arith.constant 96 : index
    %102 = vector.load %arg15[%c0_48, %c96] : memref<256x384xf32, #tpu.memory_space<vmem>>, vector<128x32xf32>
    %103 = arith.truncf %102 : vector<128x32xf32> to vector<128x32xbf16>
    %c0_49 = arith.constant 0 : index
    %c224 = arith.constant 224 : index
    %104 = vector.load %arg15[%c0_49, %c224] : memref<256x384xf32, #tpu.memory_space<vmem>>, vector<128x32xf32>
    %105 = arith.truncf %104 : vector<128x32xf32> to vector<128x32xbf16>
    %c0_50 = arith.constant 0 : index
    %c352 = arith.constant 352 : index
    %106 = vector.load %arg15[%c0_50, %c352] : memref<256x384xf32, #tpu.memory_space<vmem>>, vector<128x32xf32>
    %107 = arith.truncf %106 : vector<128x32xf32> to vector<128x32xbf16>
    "tpu.trace_start"() <{level = 10 : i32, message = "qd,kd->qk"}> : () -> ()
    %cst_51 = arith.constant dense<0.000000e+00> : vector<128x128xf32>
    %108 = tpu.matmul %103, %105, %cst_51 {dimension_numbers = #tpu.dot_dimension_numbers<[1], [1], [0], [0], [0, 0, 1, 0], [], []>} : vector<128x32xbf16>, vector<128x32xbf16>, vector<128x128xf32> -> vector<128x128xf32>
    %cst_52 = arith.constant -1.000000e+30 : f32
    "tpu.trace_stop"() : () -> ()
    %109 = vector.broadcast %cst_52 : f32 to vector<128x128xf32>
    %110 = arith.select %35, %108, %109 : vector<128x128xi1>, vector<128x128xf32>
    %cst_53 = arith.constant dense<0xFF800000> : vector<128xf32>
    %111 = vector.multi_reduction <maximumf>, %110, %cst_53 [1] : vector<128x128xf32> to vector<128xf32>
    %112 = vector.shape_cast %111 : vector<128xf32> to vector<128x1xf32>
    %113 = vector.broadcast %112 : vector<128x1xf32> to vector<128x128xf32>
    %114 = arith.subf %110, %113 : vector<128x128xf32>
    %115 = math.exp %114 : vector<128x128xf32>
    %cst_54 = arith.constant dense<0.000000e+00> : vector<128xf32>
    %116 = vector.multi_reduction <add>, %115, %cst_54 [1] : vector<128x128xf32> to vector<128xf32>
    %117 = vector.shape_cast %116 : vector<128xf32> to vector<128x1xf32>
    %118 = arith.truncf %115 : vector<128x128xf32> to vector<128x128xbf16>
    %cst_55 = arith.constant dense<0.000000e+00> : vector<128x32xf32>
    %119 = tpu.matmul %118, %107, %cst_55 {dimension_numbers = #tpu.dot_dimension_numbers<[1], [0], [0], [1], [0, 0, 1, 1], [], []>} : vector<128x128xbf16>, vector<128x32xbf16>, vector<128x32xf32> -> vector<128x32xf32>
    %120 = tpu.reciprocal %117 {approx = true} : vector<128x1xf32> -> vector<128x1xf32>
    %121 = vector.broadcast %120 : vector<128x1xf32> to vector<128x32xf32>
    %122 = arith.mulf %119, %121 : vector<128x32xf32>
    %c0_56 = arith.constant 0 : index
    %c96_57 = arith.constant 96 : index
    %123 = vector.load %arg16[%c0_56, %c96_57] : memref<256x128xf32, #tpu.memory_space<vmem>>, vector<128x32xf32>
    tpu.vector_store %arg16[%c0_56, %c96_57], %122 {strides = array<i32>} : memref<256x128xf32, #tpu.memory_space<vmem>>, vector<128x32xf32>,
    %c128_58 = arith.constant 128 : index
    %c0_59 = arith.constant 0 : index
    %124 = vector.load %arg15[%c128_58, %c0_59] : memref<256x384xf32, #tpu.memory_space<vmem>>, vector<128x32xf32>
    %125 = arith.truncf %124 : vector<128x32xf32> to vector<128x32xbf16>
    %c128_60 = arith.constant 128 : index
    %c128_61 = arith.constant 128 : index
    %126 = vector.load %arg15[%c128_60, %c128_61] : memref<256x384xf32, #tpu.memory_space<vmem>>, vector<128x32xf32>
    %127 = arith.truncf %126 : vector<128x32xf32> to vector<128x32xbf16>
    %c128_62 = arith.constant 128 : index
    %c256_63 = arith.constant 256 : index
    %128 = vector.load %arg15[%c128_62, %c256_63] : memref<256x384xf32, #tpu.memory_space<vmem>>, vector<128x32xf32>
    %129 = arith.truncf %128 : vector<128x32xf32> to vector<128x32xbf16>
    "tpu.trace_start"() <{level = 10 : i32, message = "qd,kd->qk"}> : () -> ()
    %cst_64 = arith.constant dense<0.000000e+00> : vector<128x128xf32>
    %130 = tpu.matmul %125, %127, %cst_64 {dimension_numbers = #tpu.dot_dimension_numbers<[1], [1], [0], [0], [0, 0, 1, 0], [], []>} : vector<128x32xbf16>, vector<128x32xbf16>, vector<128x128xf32> -> vector<128x128xf32>
    %cst_65 = arith.constant -1.000000e+30 : f32
    "tpu.trace_stop"() : () -> ()
    %131 = vector.broadcast %cst_65 : f32 to vector<128x128xf32>
    %132 = arith.select %35, %130, %131 : vector<128x128xi1>, vector<128x128xf32>
    %cst_66 = arith.constant dense<0xFF800000> : vector<128xf32>
    %133 = vector.multi_reduction <maximumf>, %132, %cst_66 [1] : vector<128x128xf32> to vector<128xf32>
    %134 = vector.shape_cast %133 : vector<128xf32> to vector<128x1xf32>
    %135 = vector.broadcast %134 : vector<128x1xf32> to vector<128x128xf32>
    %136 = arith.subf %132, %135 : vector<128x128xf32>
    %137 = math.exp %136 : vector<128x128xf32>
    %cst_67 = arith.constant dense<0.000000e+00> : vector<128xf32>
    %138 = vector.multi_reduction <add>, %137, %cst_67 [1] : vector<128x128xf32> to vector<128xf32>
    %139 = vector.shape_cast %138 : vector<128xf32> to vector<128x1xf32>
    %140 = arith.truncf %137 : vector<128x128xf32> to vector<128x128xbf16>
    %cst_68 = arith.constant dense<0.000000e+00> : vector<128x32xf32>
    %141 = tpu.matmul %140, %129, %cst_68 {dimension_numbers = #tpu.dot_dimension_numbers<[1], [0], [0], [1], [0, 0, 1, 1], [], []>} : vector<128x128xbf16>, vector<128x32xbf16>, vector<128x32xf32> -> vector<128x32xf32>
    %142 = tpu.reciprocal %139 {approx = true} : vector<128x1xf32> -> vector<128x1xf32>
    %143 = vector.broadcast %142 : vector<128x1xf32> to vector<128x32xf32>
    %144 = arith.mulf %141, %143 : vector<128x32xf32>
    %c128_69 = arith.constant 128 : index
    %c0_70 = arith.constant 0 : index
    %145 = vector.load %arg16[%c128_69, %c0_70] : memref<256x128xf32, #tpu.memory_space<vmem>>, vector<128x32xf32>
    tpu.vector_store %arg16[%c128_69, %c0_70], %144 {strides = array<i32>} : memref<256x128xf32, #tpu.memory_space<vmem>>, vector<128x32xf32>,
    %c128_71 = arith.constant 128 : index
    %c32_72 = arith.constant 32 : index
    %146 = vector.load %arg15[%c128_71, %c32_72] : memref<256x384xf32, #tpu.memory_space<vmem>>, vector<128x32xf32>
    %147 = arith.truncf %146 : vector<128x32xf32> to vector<128x32xbf16>
    %c128_73 = arith.constant 128 : index
    %c160_74 = arith.constant 160 : index
    %148 = vector.load %arg15[%c128_73, %c160_74] : memref<256x384xf32, #tpu.memory_space<vmem>>, vector<128x32xf32>
    %149 = arith.truncf %148 : vector<128x32xf32> to vector<128x32xbf16>
    %c128_75 = arith.constant 128 : index
    %c288_76 = arith.constant 288 : index
    %150 = vector.load %arg15[%c128_75, %c288_76] : memref<256x384xf32, #tpu.memory_space<vmem>>, vector<128x32xf32>
    %151 = arith.truncf %150 : vector<128x32xf32> to vector<128x32xbf16>
    "tpu.trace_start"() <{level = 10 : i32, message = "qd,kd->qk"}> : () -> ()
    %cst_77 = arith.constant dense<0.000000e+00> : vector<128x128xf32>
    %152 = tpu.matmul %147, %149, %cst_77 {dimension_numbers = #tpu.dot_dimension_numbers<[1], [1], [0], [0], [0, 0, 1, 0], [], []>} : vector<128x32xbf16>, vector<128x32xbf16>, vector<128x128xf32> -> vector<128x128xf32>
    %cst_78 = arith.constant -1.000000e+30 : f32
    "tpu.trace_stop"() : () -> ()
    %153 = vector.broadcast %cst_78 : f32 to vector<128x128xf32>
    %154 = arith.select %35, %152, %153 : vector<128x128xi1>, vector<128x128xf32>
    %cst_79 = arith.constant dense<0xFF800000> : vector<128xf32>
    %155 = vector.multi_reduction <maximumf>, %154, %cst_79 [1] : vector<128x128xf32> to vector<128xf32>
    %156 = vector.shape_cast %155 : vector<128xf32> to vector<128x1xf32>
    %157 = vector.broadcast %156 : vector<128x1xf32> to vector<128x128xf32>
    %158 = arith.subf %154, %157 : vector<128x128xf32>
    %159 = math.exp %158 : vector<128x128xf32>
    %cst_80 = arith.constant dense<0.000000e+00> : vector<128xf32>
    %160 = vector.multi_reduction <add>, %159, %cst_80 [1] : vector<128x128xf32> to vector<128xf32>
    %161 = vector.shape_cast %160 : vector<128xf32> to vector<128x1xf32>
    %162 = arith.truncf %159 : vector<128x128xf32> to vector<128x128xbf16>
    %cst_81 = arith.constant dense<0.000000e+00> : vector<128x32xf32>
    %163 = tpu.matmul %162, %151, %cst_81 {dimension_numbers = #tpu.dot_dimension_numbers<[1], [0], [0], [1], [0, 0, 1, 1], [], []>} : vector<128x128xbf16>, vector<128x32xbf16>, vector<128x32xf32> -> vector<128x32xf32>
    %164 = tpu.reciprocal %161 {approx = true} : vector<128x1xf32> -> vector<128x1xf32>
    %165 = vector.broadcast %164 : vector<128x1xf32> to vector<128x32xf32>
    %166 = arith.mulf %163, %165 : vector<128x32xf32>
    %c128_82 = arith.constant 128 : index
    %c32_83 = arith.constant 32 : index
    %167 = vector.load %arg16[%c128_82, %c32_83] : memref<256x128xf32, #tpu.memory_space<vmem>>, vector<128x32xf32>
    tpu.vector_store %arg16[%c128_82, %c32_83], %166 {strides = array<i32>} : memref<256x128xf32, #tpu.memory_space<vmem>>, vector<128x32xf32>,
    %c128_84 = arith.constant 128 : index
    %c64_85 = arith.constant 64 : index
    %168 = vector.load %arg15[%c128_84, %c64_85] : memref<256x384xf32, #tpu.memory_space<vmem>>, vector<128x32xf32>
    %169 = arith.truncf %168 : vector<128x32xf32> to vector<128x32xbf16>
    %c128_86 = arith.constant 128 : index
    %c192_87 = arith.constant 192 : index
    %170 = vector.load %arg15[%c128_86, %c192_87] : memref<256x384xf32, #tpu.memory_space<vmem>>, vector<128x32xf32>
    %171 = arith.truncf %170 : vector<128x32xf32> to vector<128x32xbf16>
    %c128_88 = arith.constant 128 : index
    %c320_89 = arith.constant 320 : index
    %172 = vector.load %arg15[%c128_88, %c320_89] : memref<256x384xf32, #tpu.memory_space<vmem>>, vector<128x32xf32>
    %173 = arith.truncf %172 : vector<128x32xf32> to vector<128x32xbf16>
    "tpu.trace_start"() <{level = 10 : i32, message = "qd,kd->qk"}> : () -> ()
    %cst_90 = arith.constant dense<0.000000e+00> : vector<128x128xf32>
    %174 = tpu.matmul %169, %171, %cst_90 {dimension_numbers = #tpu.dot_dimension_numbers<[1], [1], [0], [0], [0, 0, 1, 0], [], []>} : vector<128x32xbf16>, vector<128x32xbf16>, vector<128x128xf32> -> vector<128x128xf32>
    %cst_91 = arith.constant -1.000000e+30 : f32
    "tpu.trace_stop"() : () -> ()
    %175 = vector.broadcast %cst_91 : f32 to vector<128x128xf32>
    %176 = arith.select %35, %174, %175 : vector<128x128xi1>, vector<128x128xf32>
    %cst_92 = arith.constant dense<0xFF800000> : vector<128xf32>
    %177 = vector.multi_reduction <maximumf>, %176, %cst_92 [1] : vector<128x128xf32> to vector<128xf32>
    %178 = vector.shape_cast %177 : vector<128xf32> to vector<128x1xf32>
    %179 = vector.broadcast %178 : vector<128x1xf32> to vector<128x128xf32>
    %180 = arith.subf %176, %179 : vector<128x128xf32>
    %181 = math.exp %180 : vector<128x128xf32>
    %cst_93 = arith.constant dense<0.000000e+00> : vector<128xf32>
    %182 = vector.multi_reduction <add>, %181, %cst_93 [1] : vector<128x128xf32> to vector<128xf32>
    %183 = vector.shape_cast %182 : vector<128xf32> to vector<128x1xf32>
    %184 = arith.truncf %181 : vector<128x128xf32> to vector<128x128xbf16>
    %cst_94 = arith.constant dense<0.000000e+00> : vector<128x32xf32>
    %185 = tpu.matmul %184, %173, %cst_94 {dimension_numbers = #tpu.dot_dimension_numbers<[1], [0], [0], [1], [0, 0, 1, 1], [], []>} : vector<128x128xbf16>, vector<128x32xbf16>, vector<128x32xf32> -> vector<128x32xf32>
    %186 = tpu.reciprocal %183 {approx = true} : vector<128x1xf32> -> vector<128x1xf32>
    %187 = vector.broadcast %186 : vector<128x1xf32> to vector<128x32xf32>
    %188 = arith.mulf %185, %187 : vector<128x32xf32>
    %c128_95 = arith.constant 128 : index
    %c64_96 = arith.constant 64 : index
    %189 = vector.load %arg16[%c128_95, %c64_96] : memref<256x128xf32, #tpu.memory_space<vmem>>, vector<128x32xf32>
    tpu.vector_store %arg16[%c128_95, %c64_96], %188 {strides = array<i32>} : memref<256x128xf32, #tpu.memory_space<vmem>>, vector<128x32xf32>,
    %c128_97 = arith.constant 128 : index
    %c96_98 = arith.constant 96 : index
    %190 = vector.load %arg15[%c128_97, %c96_98] : memref<256x384xf32, #tpu.memory_space<vmem>>, vector<128x32xf32>
    %191 = arith.truncf %190 : vector<128x32xf32> to vector<128x32xbf16>
    %c128_99 = arith.constant 128 : index
    %c224_100 = arith.constant 224 : index
    %192 = vector.load %arg15[%c128_99, %c224_100] : memref<256x384xf32, #tpu.memory_space<vmem>>, vector<128x32xf32>
    %193 = arith.truncf %192 : vector<128x32xf32> to vector<128x32xbf16>
    %c128_101 = arith.constant 128 : index
    %c352_102 = arith.constant 352 : index
    %194 = vector.load %arg15[%c128_101, %c352_102] : memref<256x384xf32, #tpu.memory_space<vmem>>, vector<128x32xf32>
    %195 = arith.truncf %194 : vector<128x32xf32> to vector<128x32xbf16>
    "tpu.trace_start"() <{level = 10 : i32, message = "qd,kd->qk"}> : () -> ()
    %cst_103 = arith.constant dense<0.000000e+00> : vector<128x128xf32>
    %196 = tpu.matmul %191, %193, %cst_103 {dimension_numbers = #tpu.dot_dimension_numbers<[1], [1], [0], [0], [0, 0, 1, 0], [], []>} : vector<128x32xbf16>, vector<128x32xbf16>, vector<128x128xf32> -> vector<128x128xf32>
    %cst_104 = arith.constant -1.000000e+30 : f32
    "tpu.trace_stop"() : () -> ()
    %197 = vector.broadcast %cst_104 : f32 to vector<128x128xf32>
    %198 = arith.select %35, %196, %197 : vector<128x128xi1>, vector<128x128xf32>
    %cst_105 = arith.constant dense<0xFF800000> : vector<128xf32>
    %199 = vector.multi_reduction <maximumf>, %198, %cst_105 [1] : vector<128x128xf32> to vector<128xf32>
    %200 = vector.shape_cast %199 : vector<128xf32> to vector<128x1xf32>
    %201 = vector.broadcast %200 : vector<128x1xf32> to vector<128x128xf32>
    %202 = arith.subf %198, %201 : vector<128x128xf32>
    %203 = math.exp %202 : vector<128x128xf32>
    %cst_106 = arith.constant dense<0.000000e+00> : vector<128xf32>
    %204 = vector.multi_reduction <add>, %203, %cst_106 [1] : vector<128x128xf32> to vector<128xf32>
    %205 = vector.shape_cast %204 : vector<128xf32> to vector<128x1xf32>
    %206 = arith.truncf %203 : vector<128x128xf32> to vector<128x128xbf16>
    %cst_107 = arith.constant dense<0.000000e+00> : vector<128x32xf32>
    %207 = tpu.matmul %206, %195, %cst_107 {dimension_numbers = #tpu.dot_dimension_numbers<[1], [0], [0], [1], [0, 0, 1, 1], [], []>} : vector<128x128xbf16>, vector<128x32xbf16>, vector<128x32xf32> -> vector<128x32xf32>
    %208 = tpu.reciprocal %205 {approx = true} : vector<128x1xf32> -> vector<128x1xf32>
    %209 = vector.broadcast %208 : vector<128x1xf32> to vector<128x32xf32>
    %210 = arith.mulf %207, %209 : vector<128x32xf32>
    %c128_108 = arith.constant 128 : index
    %c96_109 = arith.constant 96 : index
    %211 = vector.load %arg16[%c128_108, %c96_109] : memref<256x128xf32, #tpu.memory_space<vmem>>, vector<128x32xf32>
    tpu.vector_store %arg16[%c128_108, %c96_109], %210 {strides = array<i32>} : memref<256x128xf32, #tpu.memory_space<vmem>>, vector<128x32xf32>,
    %c0_110 = arith.constant 0 : index
    %c0_111 = arith.constant 0 : index
    %212 = vector.load %arg16[%c0_110, %c0_111] : memref<256x128xf32, #tpu.memory_space<vmem>>, vector<256x128xf32>
    %213 = arith.truncf %212 : vector<256x128xf32> to vector<256x128xbf16>
    %c0_112 = arith.constant 0 : index
    %c0_113 = arith.constant 0 : index
    %214 = vector.load %arg6[%c0_112, %c0_113] : memref<128x128xbf16, #tpu.memory_space<vmem>>, vector<128x128xbf16>
    %cst_114 = arith.constant dense<0.000000e+00> : vector<256x128xf32>
    %215 = tpu.matmul %213, %214, %cst_114 {dimension_numbers = #tpu.dot_dimension_numbers<[1], [0], [0], [1], [0, 0, 1, 1], [], []>} : vector<256x128xbf16>, vector<128x128xbf16>, vector<256x128xf32> -> vector<256x128xf32>
    %c0_115 = arith.constant 0 : index
    %c0_116 = arith.constant 0 : index
    %216 = vector.load %arg7[%c0_115, %c0_116] : memref<1x128xf32, #tpu.memory_space<vmem>>, vector<1x128xf32>
    %217 = vector.broadcast %216 : vector<1x128xf32> to vector<256x128xf32>
    %218 = arith.addf %215, %217 : vector<256x128xf32>
    %219 = arith.addf %1, %218 : vector<256x128xf32>
    %c0_117 = arith.constant 0 : index
    %c0_118 = arith.constant 0 : index
    %220 = vector.load %arg8[%c0_117, %c0_118] : memref<1x128xf32, #tpu.memory_space<vmem>>, vector<1x128xf32>
    %c0_119 = arith.constant 0 : index
    %c0_120 = arith.constant 0 : index
    %221 = vector.load %arg9[%c0_119, %c0_120] : memref<1x128xf32, #tpu.memory_space<vmem>>, vector<1x128xf32>
    %cst_121 = arith.constant dense<0.000000e+00> : vector<256xf32>
    %222 = vector.multi_reduction <add>, %219, %cst_121 [1] : vector<256x128xf32> to vector<256xf32>
    %223 = vector.shape_cast %222 : vector<256xf32> to vector<256x1xf32>
    %cst_122 = arith.constant 1.280000e+02 : f32
    %224 = vector.broadcast %cst_122 : f32 to vector<256x1xf32>
    %225 = arith.divf %223, %224 : vector<256x1xf32>
    %226 = vector.broadcast %225 : vector<256x1xf32> to vector<256x128xf32>
    %227 = arith.subf %219, %226 : vector<256x128xf32>
    %228 = arith.mulf %227, %227 : vector<256x128xf32>
    %cst_123 = arith.constant dense<0.000000e+00> : vector<256xf32>
    %229 = vector.multi_reduction <add>, %228, %cst_123 [1] : vector<256x128xf32> to vector<256xf32>
    %230 = vector.shape_cast %229 : vector<256xf32> to vector<256x1xf32>
    %cst_124 = arith.constant 1.280000e+02 : f32
    %231 = vector.broadcast %cst_124 : f32 to vector<256x1xf32>
    %232 = arith.divf %230, %231 : vector<256x1xf32>
    %233 = vector.broadcast %225 : vector<256x1xf32> to vector<256x128xf32>
    %234 = arith.subf %219, %233 : vector<256x128xf32>
    %cst_125 = arith.constant 9.99999974E-6 : f32
    %235 = vector.broadcast %cst_125 : f32 to vector<256x1xf32>
    %236 = arith.addf %232, %235 : vector<256x1xf32>
    %237 = math.rsqrt %236 : vector<256x1xf32>
    %238 = vector.broadcast %237 : vector<256x1xf32> to vector<256x128xf32>
    %239 = arith.mulf %234, %238 : vector<256x128xf32>
    %240 = vector.broadcast %220 : vector<1x128xf32> to vector<256x128xf32>
    %241 = arith.mulf %239, %240 : vector<256x128xf32>
    %242 = vector.broadcast %221 : vector<1x128xf32> to vector<256x128xf32>
    %243 = arith.addf %241, %242 : vector<256x128xf32>
    %244 = arith.truncf %243 : vector<256x128xf32> to vector<256x128xbf16>
    %c0_126 = arith.constant 0 : index
    %c0_127 = arith.constant 0 : index
    %245 = vector.load %arg10[%c0_126, %c0_127] : memref<128x512xbf16, #tpu.memory_space<vmem>>, vector<128x512xbf16>
    %cst_128 = arith.constant dense<0.000000e+00> : vector<256x512xf32>
    %246 = tpu.matmul %244, %245, %cst_128 {dimension_numbers = #tpu.dot_dimension_numbers<[1], [0], [0], [1], [0, 0, 1, 1], [], []>} : vector<256x128xbf16>, vector<128x512xbf16>, vector<256x512xf32> -> vector<256x512xf32>
    %c0_129 = arith.constant 0 : index
    %c0_130 = arith.constant 0 : index
    %247 = vector.load %arg11[%c0_129, %c0_130] : memref<1x512xf32, #tpu.memory_space<vmem>>, vector<1x512xf32>
    %248 = vector.broadcast %247 : vector<1x512xf32> to vector<256x512xf32>
    %249 = arith.addf %246, %248 : vector<256x512xf32>
    %250 = arith.mulf %249, %249 : vector<256x512xf32>
    %251 = arith.mulf %249, %250 : vector<256x512xf32>
    %cst_131 = arith.constant 4.471500e-02 : f32
    %252 = vector.broadcast %cst_131 : f32 to vector<256x512xf32>
    %253 = arith.mulf %252, %251 : vector<256x512xf32>
    %254 = arith.addf %249, %253 : vector<256x512xf32>
    %cst_132 = arith.constant 0.797884583 : f32
    %255 = vector.broadcast %cst_132 : f32 to vector<256x512xf32>
    %256 = arith.mulf %255, %254 : vector<256x512xf32>
    %257 = math.tanh %256 : vector<256x512xf32>
    %cst_133 = arith.constant 1.000000e+00 : f32
    %258 = vector.broadcast %cst_133 : f32 to vector<256x512xf32>
    %259 = arith.addf %258, %257 : vector<256x512xf32>
    %cst_134 = arith.constant 5.000000e-01 : f32
    %260 = vector.broadcast %cst_134 : f32 to vector<256x512xf32>
    %261 = arith.mulf %260, %259 : vector<256x512xf32>
    %262 = arith.mulf %249, %261 : vector<256x512xf32>
    %263 = arith.truncf %262 : vector<256x512xf32> to vector<256x512xbf16>
    %c0_135 = arith.constant 0 : index
    %c0_136 = arith.constant 0 : index
    %264 = vector.load %arg12[%c0_135, %c0_136] : memref<512x128xbf16, #tpu.memory_space<vmem>>, vector<512x128xbf16>
    %cst_137 = arith.constant dense<0.000000e+00> : vector<256x128xf32>
    %265 = tpu.matmul %263, %264, %cst_137 {dimension_numbers = #tpu.dot_dimension_numbers<[1], [0], [0], [1], [0, 0, 1, 1], [], []>} : vector<256x512xbf16>, vector<512x128xbf16>, vector<256x128xf32> -> vector<256x128xf32>
    %c0_138 = arith.constant 0 : index
    %c0_139 = arith.constant 0 : index
    %266 = vector.load %arg13[%c0_138, %c0_139] : memref<1x128xf32, #tpu.memory_space<vmem>>, vector<1x128xf32>
    %267 = vector.broadcast %266 : vector<1x128xf32> to vector<256x128xf32>
    %268 = arith.addf %265, %267 : vector<256x128xf32>
    %269 = arith.addf %219, %268 : vector<256x128xf32>
    %270 = vector.shape_cast %269 : vector<256x128xf32> to vector<2x128x128xf32>
    %c0_140 = arith.constant 0 : index
    %c0_141 = arith.constant 0 : index
    %c0_142 = arith.constant 0 : index
    %271 = vector.load %arg14[%c0_140, %c0_141, %c0_142] : memref<2x128x128xf32, #tpu.memory_space<vmem>>, vector<2x128x128xf32>
    tpu.vector_store %arg14[%c0_140, %c0_141, %c0_142], %270 {strides = array<i32>} : memref<2x128x128xf32, #tpu.memory_space<vmem>>, vector<2x128x128xf32>,
    return
  }
  func.func @transform_0(%arg0: i32) -> (i32, i32, i32) {
    %c0_i32 = arith.constant 0 : i32
    %c0_i32_0 = arith.constant 0 : i32
    %c0_i32_1 = arith.constant 0 : i32
    return %arg0, %c0_i32, %c0_i32_0 : i32, i32, i32
  }
  func.func @transform_1(%arg0: i32) -> (i32, i32) {
    %c0_i32 = arith.constant 0 : i32
    %c0_i32_0 = arith.constant 0 : i32
    %c0_i32_1 = arith.constant 0 : i32
    return %c0_i32, %c0_i32_0 : i32, i32
  }
  func.func @transform_2(%arg0: i32) -> (i32, i32) {
    %c0_i32 = arith.constant 0 : i32
    %c0_i32_0 = arith.constant 0 : i32
    %c0_i32_1 = arith.constant 0 : i32
    return %c0_i32, %c0_i32_0 : i32, i32
  }
  func.func @transform_3(%arg0: i32) -> (i32, i32) {
    %c0_i32 = arith.constant 0 : i32
    %c0_i32_0 = arith.constant 0 : i32
    %c0_i32_1 = arith.constant 0 : i32
    return %c0_i32, %c0_i32_0 : i32, i32
  }
  func.func @transform_4(%arg0: i32) -> (i32, i32) {
    %c0_i32 = arith.constant 0 : i32
    %c0_i32_0 = arith.constant 0 : i32
    %c0_i32_1 = arith.constant 0 : i32
    return %c0_i32, %c0_i32_0 : i32, i32
  }
  func.func @transform_5(%arg0: i32) -> (i32, i32) {
    %c0_i32 = arith.constant 0 : i32
    %c0_i32_0 = arith.constant 0 : i32
    %c0_i32_1 = arith.constant 0 : i32
    return %c0_i32, %c0_i32_0 : i32, i32
  }
  func.func @transform_6(%arg0: i32) -> (i32, i32) {
    %c0_i32 = arith.constant 0 : i32
    %c0_i32_0 = arith.constant 0 : i32
    %c0_i32_1 = arith.constant 0 : i32
    return %c0_i32, %c0_i32_0 : i32, i32
  }
  func.func @transform_7(%arg0: i32) -> (i32, i32) {
    %c0_i32 = arith.constant 0 : i32
    %c0_i32_0 = arith.constant 0 : i32
    %c0_i32_1 = arith.constant 0 : i32
    return %c0_i32, %c0_i32_0 : i32, i32
  }
  func.func @transform_8(%arg0: i32) -> (i32, i32) {
    %c0_i32 = arith.constant 0 : i32
    %c0_i32_0 = arith.constant 0 : i32
    %c0_i32_1 = arith.constant 0 : i32
    return %c0_i32, %c0_i32_0 : i32, i32
  }
  func.func @transform_9(%arg0: i32) -> (i32, i32) {
    %c0_i32 = arith.constant 0 : i32
    %c0_i32_0 = arith.constant 0 : i32
    %c0_i32_1 = arith.constant 0 : i32
    return %c0_i32, %c0_i32_0 : i32, i32
  }
  func.func @transform_10(%arg0: i32) -> (i32, i32) {
    %c0_i32 = arith.constant 0 : i32
    %c0_i32_0 = arith.constant 0 : i32
    %c0_i32_1 = arith.constant 0 : i32
    return %c0_i32, %c0_i32_0 : i32, i32
  }
  func.func @transform_11(%arg0: i32) -> (i32, i32) {
    %c0_i32 = arith.constant 0 : i32
    %c0_i32_0 = arith.constant 0 : i32
    %c0_i32_1 = arith.constant 0 : i32
    return %c0_i32, %c0_i32_0 : i32, i32
  }
  func.func @transform_12(%arg0: i32) -> (i32, i32) {
    %c0_i32 = arith.constant 0 : i32
    %c0_i32_0 = arith.constant 0 : i32
    %c0_i32_1 = arith.constant 0 : i32
    return %c0_i32, %c0_i32_0 : i32, i32
  }
  func.func @transform_13(%arg0: i32) -> (i32, i32, i32) {
    %c0_i32 = arith.constant 0 : i32
    %c0_i32_0 = arith.constant 0 : i32
    %c0_i32_1 = arith.constant 0 : i32
    return %arg0, %c0_i32, %c0_i32_0 : i32, i32, i32
  }
}

</mosaic_0001>

<llo_original>
// kernel: tpu_custom_call.1
$region0: #{tpu_custom_call.1}
  #allocation0 [shape = 'u32[]', space=smem, size = 0x4, offset = 0x4, fixed_abs, tag = 'smem constant byte address 0x4 - core index']
  #allocation1 [shape = 'u32[144,128]{1,0:T(1,128)}', space=vmem, size = 0x12000, scoped, tag = 'internal scratch']
  #allocation2 [shape = 'f32[256,384]{1,0:T(8,128)}', space=vmem, size = 0x60000, scoped, tag = 'scratch operand']
  #allocation3 [shape = 'f32[256,128]{1,0:T(8,128)}', space=vmem, size = 0x20000, scoped, tag = 'scratch operand']
  %s0 = inlined_call_operand.hbm [shape: f32[4,128,128], index: 0, kind: input, shape index: {}]
  %s1 = inlined_call_operand.hbm [shape: f32[1,128], index: 1, kind: input, shape index: {}]
  %s2 = inlined_call_operand.hbm [shape: f32[1,128], index: 2, kind: input, shape index: {}]
  %s3 = inlined_call_operand.hbm [shape: bf16[128,384], index: 3, kind: input, shape index: {}]
  %s4 = inlined_call_operand.vmem [shape: f32[1,384], index: 4, kind: input, shape index: {}]
  %s5 = inlined_call_operand.hbm [shape: bf16[128,128], index: 5, kind: input, shape index: {}]
  %s6 = inlined_call_operand.vmem [shape: f32[1,128], index: 6, kind: input, shape index: {}]
  %s7 = inlined_call_operand.vmem [shape: f32[1,128], index: 7, kind: input, shape index: {}]
  %s8 = inlined_call_operand.vmem [shape: f32[1,128], index: 8, kind: input, shape index: {}]
  %s9 = inlined_call_operand.hbm [shape: bf16[128,512], index: 9, kind: input, shape index: {}]
  %s10 = inlined_call_operand.vmem [shape: f32[1,512], index: 10, kind: input, shape index: {}]
  %s11 = inlined_call_operand.hbm [shape: bf16[512,128], index: 11, kind: input, shape index: {}]
  %s12 = inlined_call_operand.vmem [shape: f32[1,128], index: 12, kind: input, shape index: {}]
  %s13 = inlined_call_operand.hbm [shape: f32[4,128,128], index: 13, kind: output, shape index: {}]
  %s14 = sld [smem:[#allocation0]]
  $region113: #{tpu_custom_call.1} parent=0
    _
  %s16 = ssub.s32 1, %s14
  %s17 = scalar_select 0, %s16, %s14
  $region1: #{tpu_custom_call.1} parent=0
    #allocation4 [shape = 'u8[262144]{0}', space=vmem, size = 0x40000, scoped, tag = 'input window, operand 0']
    #allocation5 [shape = 's32[2]{0}', space=sflag, size = 0x8, scoped, tag = 'scoped memory for tpu_custom_call.1']
    #allocation6 [shape = 's32[2]{0}', space=sflag, size = 0x8, scoped, tag = 'scoped memory for tpu_custom_call.1']
    #allocation7 [shape = 'u8[512]{0}', space=vmem, size = 0x400, scoped, tag = 'input window, operand 1, single buffered']
    #allocation8 [shape = 's32[1]{0}', space=sflag, size = 0x4, scoped, tag = 'scoped memory for tpu_custom_call.1']
    #allocation9 [shape = 'u8[512]{0}', space=vmem, size = 0x400, scoped, tag = 'input window, operand 2, single buffered']
    #allocation10 [shape = 'u8[98304]{0}', space=vmem, size = 0x18000, scoped, tag = 'input window, operand 3, single buffered']
    #allocation11 [shape = 's32[1]{0}', space=sflag, size = 0x4, scoped, tag = 'scoped memory for tpu_custom_call.1']
    #allocation12 [shape = 'u8[32768]{0}', space=vmem, size = 0x8000, scoped, tag = 'input window, operand 5, single buffered']
    #allocation13 [shape = 'u8[131072]{0}', space=vmem, size = 0x20000, scoped, tag = 'input window, operand 9, single buffered']
    #allocation14 [shape = 's32[1]{0}', space=sflag, size = 0x4, scoped, tag = 'scoped memory for tpu_custom_call.1']
    #allocation15 [shape = 'u8[131072]{0}', space=vmem, size = 0x20000, scoped, tag = 'input window, operand 11, single buffered']
    #allocation16 [shape = 'u8[262144]{0}', space=vmem, size = 0x40000, scoped, tag = 'output window, operand 0']
    %18 = vsyncpa [#allocation5], 0
    %s19 = scalar_lea.sflag [#allocation5], 1
    %20 = vsyncpa %s19, 0
    %21 = vsyncpa [#allocation8], 0
    %22 = vsyncpa [#allocation11], 0
    %23 = vsyncpa [#allocation14], 0
    %24 = vsyncpa [#allocation6], 0
    %s25 = scalar_lea.sflag [#allocation6], 1
    %26 = vsyncpa %s25, 0
    loop: start=0, step=1, limit=4
    $region2: #{tpu_custom_call.1} parent=1 // loop_pre_header
      _
    $region3: #{tpu_custom_call.1} parent=1 // loop_header
      %s28 = sphi 0, %s32
      %p29 = scmp.ge.s32.totalorder %s28, 4
      %s38 = sphi 0, %s40
      %s41 = sphi 0, %s38
      %s42 = sphi 0, %s41
      %s58 = sphi 0, %s42
      %s62 = sphi 0, %s62
      %s64 = sphi 0, %s62
      %s65 = sphi 0, %s64
      %s79 = sphi 0, %s65
      %s83 = sphi 0, %s83
      %s85 = sphi 0, %s83
      %s86 = sphi 0, %s85
      %s100 = sphi 0, %s86
      %s104 = sphi 0, %s104
      %s106 = sphi 0, %s104
      %s107 = sphi 0, %s106
      %s121 = sphi 0, %s107
      %s125 = sphi 0, %s125
      %s127 = sphi 0, %s125
      %s128 = sphi 0, %s127
      %s142 = sphi 0, %s128
      %s146 = sphi 0, %s146
      %s148 = sphi 0, %s146
      %s149 = sphi 0, %s148
      %s163 = sphi 0, %s149
      %s167 = sphi 0, %s167
      %s169 = sphi 0, %s167
      %s170 = sphi 0, %s169
      %s184 = sphi 0, %s170
      %s188 = sphi 0, %s188
      %s190 = sphi 0, %s188
      %s191 = sphi 0, %s190
      %s205 = sphi 0, %s191
      %s209 = sphi 0, %s209
      %s211 = sphi 0, %s209
      %s212 = sphi 0, %s211
      %s226 = sphi 0, %s212
      %s230 = sphi 0, %s230
      %s232 = sphi 0, %s230
      %s233 = sphi 0, %s232
      %s247 = sphi 0, %s233
      %s251 = sphi 0, %s251
      %s253 = sphi 0, %s251
      %s254 = sphi 0, %s253
      %s268 = sphi 0, %s254
      %s272 = sphi 0, %s272
      %s274 = sphi 0, %s272
      %s275 = sphi 0, %s274
      %s289 = sphi 0, %s275
      %s293 = sphi 0, %s293
      %s295 = sphi 0, %s293
      %s296 = sphi 0, %s295
      %s310 = sphi 0, %s296
      %s316 = sphi 0, %s318
      %s319 = sphi 0, %s316
      %s320 = sphi 0, %s319
      %s336 = sphi 0, %s320
    $region4: #{tpu_custom_call.1} parent=1 // loop_header_branch
      %31 = sbr.rel (%p29) target = $region8
    $region5: #{tpu_custom_call.1} parent=1 // loop_body
      %s33 = ssub.s32 %s28, 1
      %s34 = ssub.s32 %s28, 2
      %s35 = sadd.s32 %s28, 1
      %s36 = ssub.s32 %s28, %s35
      %p37 = scmp.eq.s32.totalorder %s36, 0
      %s39 = sadd.s32 %s38, 1
      %s40 = scalar_select %p37, %s38, %s39
      %p43 = pneg %p37
      %p44 = scmp.eq.s32.totalorder %s28, 1
      %p45 = por %p43, %p44
      %p46 = scmp.ne.s32.totalorder %s38, %s41
      %p47 = scmp.eq.s32.totalorder %s28, 0
      %p48 = por %p46, %p47
      %p49 = scmp.ne.s32.totalorder %s38, %s41
      %p50 = scmp.eq.s32.totalorder %s33, 1
      %p51 = por %p49, %p50
      %p52 = scmp.ne.s32.totalorder %s41, %s42
      %p53 = scmp.eq.s32.totalorder %s33, 0
      %p54 = por %p52, %p53
      %p55 = scmp.ne.s32.totalorder %s41, %s42
      %p56 = scmp.eq.s32.totalorder %s34, 1
      %p57 = por %p55, %p56
      %p59 = scmp.ne.s32.totalorder %s42, %s58
      %p60 = scmp.eq.s32.totalorder %s34, 0
      %p61 = por %p59, %p60
      %s63 = sadd.s32 %s62, 1
      %p66 = scmp.eq.s32.totalorder %s28, 1
      %p67 = scmp.ne.s32.totalorder %s62, %s64
      %p68 = scmp.eq.s32.totalorder %s28, 0
      %p69 = por %p67, %p68
      %p70 = scmp.ne.s32.totalorder %s62, %s64
      %p71 = scmp.eq.s32.totalorder %s33, 1
      %p72 = por %p70, %p71
      %p73 = scmp.ne.s32.totalorder %s64, %s65
      %p74 = scmp.eq.s32.totalorder %s33, 0
      %p75 = por %p73, %p74
      %p76 = scmp.ne.s32.totalorder %s64, %s65
      %p77 = scmp.eq.s32.totalorder %s34, 1
      %p78 = por %p76, %p77
      %p80 = scmp.ne.s32.totalorder %s65, %s79
      %p81 = scmp.eq.s32.totalorder %s34, 0
      %p82 = por %p80, %p81
      %s84 = sadd.s32 %s83, 1
      %p87 = scmp.eq.s32.totalorder %s28, 1
      %p88 = scmp.ne.s32.totalorder %s83, %s85
      %p89 = scmp.eq.s32.totalorder %s28, 0
      %p90 = por %p88, %p89
      %p91 = scmp.ne.s32.totalorder %s83, %s85
      %p92 = scmp.eq.s32.totalorder %s33, 1
      %p93 = por %p91, %p92
      %p94 = scmp.ne.s32.totalorder %s85, %s86
      %p95 = scmp.eq.s32.totalorder %s33, 0
      %p96 = por %p94, %p95
      %p97 = scmp.ne.s32.totalorder %s85, %s86
      %p98 = scmp.eq.s32.totalorder %s34, 1
      %p99 = por %p97, %p98
      %p101 = scmp.ne.s32.totalorder %s86, %s100
      %p102 = scmp.eq.s32.totalorder %s34, 0
      %p103 = por %p101, %p102
      %s105 = sadd.s32 %s104, 1
      %p108 = scmp.eq.s32.totalorder %s28, 1
      %p109 = scmp.ne.s32.totalorder %s104, %s106
      %p110 = scmp.eq.s32.totalorder %s28, 0
      %p111 = por %p109, %p110
      %p112 = scmp.ne.s32.totalorder %s104, %s106
      %p113 = scmp.eq.s32.totalorder %s33, 1
      %p114 = por %p112, %p113
      %p115 = scmp.ne.s32.totalorder %s106, %s107
      %p116 = scmp.eq.s32.totalorder %s33, 0
      %p117 = por %p115, %p116
      %p118 = scmp.ne.s32.totalorder %s106, %s107
      %p119 = scmp.eq.s32.totalorder %s34, 1
      %p120 = por %p118, %p119
      %p122 = scmp.ne.s32.totalorder %s107, %s121
      %p123 = scmp.eq.s32.totalorder %s34, 0
      %p124 = por %p122, %p123
      %s126 = sadd.s32 %s125, 1
      %p129 = scmp.eq.s32.totalorder %s28, 1
      %p130 = scmp.ne.s32.totalorder %s125, %s127
      %p131 = scmp.eq.s32.totalorder %s28, 0
      %p132 = por %p130, %p131
      %p133 = scmp.ne.s32.totalorder %s125, %s127
      %p134 = scmp.eq.s32.totalorder %s33, 1
      %p135 = por %p133, %p134
      %p136 = scmp.ne.s32.totalorder %s127, %s128
      %p137 = scmp.eq.s32.totalorder %s33, 0
      %p138 = por %p136, %p137
      %p139 = scmp.ne.s32.totalorder %s127, %s128
      %p140 = scmp.eq.s32.totalorder %s34, 1
      %p141 = por %p139, %p140
      %p143 = scmp.ne.s32.totalorder %s128, %s142
      %p144 = scmp.eq.s32.totalorder %s34, 0
      %p145 = por %p143, %p144
      %s147 = sadd.s32 %s146, 1
      %p150 = scmp.eq.s32.totalorder %s28, 1
      %p151 = scmp.ne.s32.totalorder %s146, %s148
      %p152 = scmp.eq.s32.totalorder %s28, 0
      %p153 = por %p151, %p152
      %p154 = scmp.ne.s32.totalorder %s146, %s148
      %p155 = scmp.eq.s32.totalorder %s33, 1
      %p156 = por %p154, %p155
      %p157 = scmp.ne.s32.totalorder %s148, %s149
      %p158 = scmp.eq.s32.totalorder %s33, 0
      %p159 = por %p157, %p158
      %p160 = scmp.ne.s32.totalorder %s148, %s149
      %p161 = scmp.eq.s32.totalorder %s34, 1
      %p162 = por %p160, %p161
      %p164 = scmp.ne.s32.totalorder %s149, %s163
      %p165 = scmp.eq.s32.totalorder %s34, 0
      %p166 = por %p164, %p165
      %s168 = sadd.s32 %s167, 1
      %p171 = scmp.eq.s32.totalorder %s28, 1
      %p172 = scmp.ne.s32.totalorder %s167, %s169
      %p173 = scmp.eq.s32.totalorder %s28, 0
      %p174 = por %p172, %p173
      %p175 = scmp.ne.s32.totalorder %s167, %s169
      %p176 = scmp.eq.s32.totalorder %s33, 1
      %p177 = por %p175, %p176
      %p178 = scmp.ne.s32.totalorder %s169, %s170
      %p179 = scmp.eq.s32.totalorder %s33, 0
      %p180 = por %p178, %p179
      %p181 = scmp.ne.s32.totalorder %s169, %s170
      %p182 = scmp.eq.s32.totalorder %s34, 1
      %p183 = por %p181, %p182
      %p185 = scmp.ne.s32.totalorder %s170, %s184
      %p186 = scmp.eq.s32.totalorder %s34, 0
      %p187 = por %p185, %p186
      %s189 = sadd.s32 %s188, 1
      %p192 = scmp.eq.s32.totalorder %s28, 1
      %p193 = scmp.ne.s32.totalorder %s188, %s190
      %p194 = scmp.eq.s32.totalorder %s28, 0
      %p195 = por %p193, %p194
      %p196 = scmp.ne.s32.totalorder %s188, %s190
      %p197 = scmp.eq.s32.totalorder %s33, 1
      %p198 = por %p196, %p197
      %p199 = scmp.ne.s32.totalorder %s190, %s191
      %p200 = scmp.eq.s32.totalorder %s33, 0
      %p201 = por %p199, %p200
      %p202 = scmp.ne.s32.totalorder %s190, %s191
      %p203 = scmp.eq.s32.totalorder %s34, 1
      %p204 = por %p202, %p203
      %p206 = scmp.ne.s32.totalorder %s191, %s205
      %p207 = scmp.eq.s32.totalorder %s34, 0
      %p208 = por %p206, %p207
      %s210 = sadd.s32 %s209, 1
      %p213 = scmp.eq.s32.totalorder %s28, 1
      %p214 = scmp.ne.s32.totalorder %s209, %s211
      %p215 = scmp.eq.s32.totalorder %s28, 0
      %p216 = por %p214, %p215
      %p217 = scmp.ne.s32.totalorder %s209, %s211
      %p218 = scmp.eq.s32.totalorder %s33, 1
      %p219 = por %p217, %p218
      %p220 = scmp.ne.s32.totalorder %s211, %s212
      %p221 = scmp.eq.s32.totalorder %s33, 0
      %p222 = por %p220, %p221
      %p223 = scmp.ne.s32.totalorder %s211, %s212
      %p224 = scmp.eq.s32.totalorder %s34, 1
      %p225 = por %p223, %p224
      %p227 = scmp.ne.s32.totalorder %s212, %s226
      %p228 = scmp.eq.s32.totalorder %s34, 0
      %p229 = por %p227, %p228
      %s231 = sadd.s32 %s230, 1
      %p234 = scmp.eq.s32.totalorder %s28, 1
      %p235 = scmp.ne.s32.totalorder %s230, %s232
      %p236 = scmp.eq.s32.totalorder %s28, 0
      %p237 = por %p235, %p236
      %p238 = scmp.ne.s32.totalorder %s230, %s232
      %p239 = scmp.eq.s32.totalorder %s33, 1
      %p240 = por %p238, %p239
      %p241 = scmp.ne.s32.totalorder %s232, %s233
      %p242 = scmp.eq.s32.totalorder %s33, 0
      %p243 = por %p241, %p242
      %p244 = scmp.ne.s32.totalorder %s232, %s233
      %p245 = scmp.eq.s32.totalorder %s34, 1
      %p246 = por %p244, %p245
      %p248 = scmp.ne.s32.totalorder %s233, %s247
      %p249 = scmp.eq.s32.totalorder %s34, 0
      %p250 = por %p248, %p249
      %s252 = sadd.s32 %s251, 1
      %p255 = scmp.eq.s32.totalorder %s28, 1
      %p256 = scmp.ne.s32.totalorder %s251, %s253
      %p257 = scmp.eq.s32.totalorder %s28, 0
      %p258 = por %p256, %p257
      %p259 = scmp.ne.s32.totalorder %s251, %s253
      %p260 = scmp.eq.s32.totalorder %s33, 1
      %p261 = por %p259, %p260
      %p262 = scmp.ne.s32.totalorder %s253, %s254
      %p263 = scmp.eq.s32.totalorder %s33, 0
      %p264 = por %p262, %p263
      %p265 = scmp.ne.s32.totalorder %s253, %s254
      %p266 = scmp.eq.s32.totalorder %s34, 1
      %p267 = por %p265, %p266
      %p269 = scmp.ne.s32.totalorder %s254, %s268
      %p270 = scmp.eq.s32.totalorder %s34, 0
      %p271 = por %p269, %p270
      %s273 = sadd.s32 %s272, 1
      %p276 = scmp.eq.s32.totalorder %s28, 1
      %p277 = scmp.ne.s32.totalorder %s272, %s274
      %p278 = scmp.eq.s32.totalorder %s28, 0
      %p279 = por %p277, %p278
      %p280 = scmp.ne.s32.totalorder %s272, %s274
      %p281 = scmp.eq.s32.totalorder %s33, 1
      %p282 = por %p280, %p281
      %p283 = scmp.ne.s32.totalorder %s274, %s275
      %p284 = scmp.eq.s32.totalorder %s33, 0
      %p285 = por %p283, %p284
      %p286 = scmp.ne.s32.totalorder %s274, %s275
      %p287 = scmp.eq.s32.totalorder %s34, 1
      %p288 = por %p286, %p287
      %p290 = scmp.ne.s32.totalorder %s275, %s289
      %p291 = scmp.eq.s32.totalorder %s34, 0
      %p292 = por %p290, %p291
      %s294 = sadd.s32 %s293, 1
      %p297 = scmp.eq.s32.totalorder %s28, 1
      %p298 = scmp.ne.s32.totalorder %s293, %s295
      %p299 = scmp.eq.s32.totalorder %s28, 0
      %p300 = por %p298, %p299
      %p301 = scmp.ne.s32.totalorder %s293, %s295
      %p302 = scmp.eq.s32.totalorder %s33, 1
      %p303 = por %p301, %p302
      %p304 = scmp.ne.s32.totalorder %s295, %s296
      %p305 = scmp.eq.s32.totalorder %s33, 0
      %p306 = por %p304, %p305
      %p307 = scmp.ne.s32.totalorder %s295, %s296
      %p308 = scmp.eq.s32.totalorder %s34, 1
      %p309 = por %p307, %p308
      %p311 = scmp.ne.s32.totalorder %s296, %s310
      %p312 = scmp.eq.s32.totalorder %s34, 0
      %p313 = por %p311, %p312
      %s314 = ssub.s32 %s28, %s35
      %p315 = scmp.eq.s32.totalorder %s314, 0
      %s317 = sadd.s32 %s316, 1
      %s318 = scalar_select %p315, %s316, %s317
      %p321 = pneg %p315
      %p322 = scmp.eq.s32.totalorder %s28, 1
      %p323 = por %p321, %p322
      %p324 = scmp.ne.s32.totalorder %s316, %s319
      %p325 = scmp.eq.s32.totalorder %s28, 0
      %p326 = por %p324, %p325
      %p327 = scmp.ne.s32.totalorder %s316, %s319
      %p328 = scmp.eq.s32.totalorder %s33, 1
      %p329 = por %p327, %p328
      %p330 = scmp.ne.s32.totalorder %s319, %s320
      %p331 = scmp.eq.s32.totalorder %s33, 0
      %p332 = por %p330, %p331
      %p333 = scmp.ne.s32.totalorder %s319, %s320
      %p334 = scmp.eq.s32.totalorder %s34, 1
      %p335 = por %p333, %p334
      %p337 = scmp.ne.s32.totalorder %s320, %s336
      %p338 = scmp.eq.s32.totalorder %s34, 0
      %p339 = por %p337, %p338
      %p340 = scmp.le.s32.totalorder 1, %s28
      %p341 = scmp.lt.s32.totalorder %s28, 3
      %p342 = pnand %p340, %p341
      %p343 = pneg %p342
      // Predicated region
      $region9: #{tpu_custom_call.1} parent=5 // pred_check
        _
      $region10: #{tpu_custom_call.1} parent=5 // pred_check_branch
        %345 = sbr.rel (%p342) target = $region12
      $region11: #{tpu_custom_call.1} parent=5 // pred_region
        %s346 = ssub.s32 %s28, 1
        // Predicated region
        $region13: #{tpu_custom_call.1} parent=11 // pred_check
          %p347 = pneg %p75
        $region14: #{tpu_custom_call.1} parent=11 // pred_check_branch
          %349 = sbr.rel (%p347) target = $region16
        $region15: #{tpu_custom_call.1} parent=11 // pred_region
          %s351 = ssub.s32 16, 16
          %352 = vsyncadd [#allocation8], %s351
          %s354 = sshll.u32 [#allocation7], 4
          %s355 = int_to_ptr.vmem [resolvable:$true] %s354
          %357 = dma.hbm_to_vmem [thread:$0]  %s1, 16, %s355, [#allocation8]
        $region16: #{tpu_custom_call.1} parent=11 // pred_fallthru
          _
        // Predicated region
        $region17: #{tpu_custom_call.1} parent=11 // pred_check
          %p358 = pneg %p96
        $region18: #{tpu_custom_call.1} parent=11 // pred_check_branch
          %360 = sbr.rel (%p358) target = $region20
        $region19: #{tpu_custom_call.1} parent=11 // pred_region
          %s362 = ssub.s32 16, 16
          %363 = vsyncadd [#allocation8], %s362
          %s365 = sshll.u32 [#allocation9], 4
          %s366 = int_to_ptr.vmem [resolvable:$true] %s365
          %368 = dma.hbm_to_vmem [thread:$0]  %s2, 16, %s366, [#allocation8]
        $region20: #{tpu_custom_call.1} parent=11 // pred_fallthru
          _
        // Predicated region
        $region21: #{tpu_custom_call.1} parent=11 // pred_check
          %p369 = pneg %p117
        $region22: #{tpu_custom_call.1} parent=11 // pred_check_branch
          %371 = sbr.rel (%p369) target = $region24
        $region23: #{tpu_custom_call.1} parent=11 // pred_region
          %s373 = ssub.s32 3072, 3072
          %374 = vsyncadd [#allocation11], %s373
          %s375 = sshll.u32 [#allocation10], 4
          %s376 = int_to_ptr.vmem [resolvable:$true] %s375
          %381 = dma.hbm_to_vmem [thread:$0]  %s3, 3072, %s376, [#allocation11], 192, 192, 12
        $region24: #{tpu_custom_call.1} parent=11 // pred_fallthru
          _
        // Predicated region
        $region25: #{tpu_custom_call.1} parent=11 // pred_check
          %p382 = pneg %p138
        $region26: #{tpu_custom_call.1} parent=11 // pred_check_branch
          %384 = sbr.rel (%p382) target = $region28
        $region27: #{tpu_custom_call.1} parent=11 // pred_region
          _
        $region28: #{tpu_custom_call.1} parent=11 // pred_fallthru
          _
        // Predicated region
        $region29: #{tpu_custom_call.1} parent=11 // pred_check
          %p385 = pneg %p159
        $region30: #{tpu_custom_call.1} parent=11 // pred_check_branch
          %387 = sbr.rel (%p385) target = $region32
        $region31: #{tpu_custom_call.1} parent=11 // pred_region
          %s389 = ssub.s32 1024, 1024
          %390 = vsyncadd [#allocation11], %s389
          %s391 = sshll.u32 [#allocation12], 4
          %s392 = int_to_ptr.vmem [resolvable:$true] %s391
          %397 = dma.hbm_to_vmem [thread:$0]  %s5, 1024, %s392, [#allocation11], 64, 64, 4
        $region32: #{tpu_custom_call.1} parent=11 // pred_fallthru
          _
        // Predicated region
        $region33: #{tpu_custom_call.1} parent=11 // pred_check
          %p398 = pneg %p180
        $region34: #{tpu_custom_call.1} parent=11 // pred_check_branch
          %400 = sbr.rel (%p398) target = $region36
        $region35: #{tpu_custom_call.1} parent=11 // pred_region
          _
        $region36: #{tpu_custom_call.1} parent=11 // pred_fallthru
          _
        // Predicated region
        $region37: #{tpu_custom_call.1} parent=11 // pred_check
          %p401 = pneg %p201
        $region38: #{tpu_custom_call.1} parent=11 // pred_check_branch
          %403 = sbr.rel (%p401) target = $region40
        $region39: #{tpu_custom_call.1} parent=11 // pred_region
          _
        $region40: #{tpu_custom_call.1} parent=11 // pred_fallthru
          _
        // Predicated region
        $region41: #{tpu_custom_call.1} parent=11 // pred_check
          %p404 = pneg %p222
        $region42: #{tpu_custom_call.1} parent=11 // pred_check_branch
          %406 = sbr.rel (%p404) target = $region44
        $region43: #{tpu_custom_call.1} parent=11 // pred_region
          _
        $region44: #{tpu_custom_call.1} parent=11 // pred_fallthru
          _
        // Predicated region
        $region45: #{tpu_custom_call.1} parent=11 // pred_check
          %p407 = pneg %p243
        $region46: #{tpu_custom_call.1} parent=11 // pred_check_branch
          %409 = sbr.rel (%p407) target = $region48
        $region47: #{tpu_custom_call.1} parent=11 // pred_region
          %s411 = ssub.s32 4096, 4096
          %412 = vsyncadd [#allocation14], %s411
          %s413 = sshll.u32 [#allocation13], 4
          %s414 = int_to_ptr.vmem [resolvable:$true] %s413
          %419 = dma.hbm_to_vmem [thread:$0]  %s9, 4096, %s414, [#allocation14], 256, 256, 16
        $region48: #{tpu_custom_call.1} parent=11 // pred_fallthru
          _
        // Predicated region
        $region49: #{tpu_custom_call.1} parent=11 // pred_check
          %p420 = pneg %p264
        $region50: #{tpu_custom_call.1} parent=11 // pred_check_branch
          %422 = sbr.rel (%p420) target = $region52
        $region51: #{tpu_custom_call.1} parent=11 // pred_region
          _
        $region52: #{tpu_custom_call.1} parent=11 // pred_fallthru
          _
        // Predicated region
        $region53: #{tpu_custom_call.1} parent=11 // pred_check
          %p423 = pneg %p285
        $region54: #{tpu_custom_call.1} parent=11 // pred_check_branch
          %425 = sbr.rel (%p423) target = $region56
        $region55: #{tpu_custom_call.1} parent=11 // pred_region
          %s427 = ssub.s32 4096, 4096
          %428 = vsyncadd [#allocation14], %s427
          %s429 = sshll.u32 [#allocation15], 4
          %s430 = int_to_ptr.vmem [resolvable:$true] %s429
          %435 = dma.hbm_to_vmem [thread:$0]  %s11, 4096, %s430, [#allocation14], 64, 64, 4
        $region56: #{tpu_custom_call.1} parent=11 // pred_fallthru
          _
        // Predicated region
        $region57: #{tpu_custom_call.1} parent=11 // pred_check
          %p436 = pneg %p306
        $region58: #{tpu_custom_call.1} parent=11 // pred_check_branch
          %438 = sbr.rel (%p436) target = $region60
        $region59: #{tpu_custom_call.1} parent=11 // pred_region
          _
        $region60: #{tpu_custom_call.1} parent=11 // pred_fallthru
          _
      $region12: #{tpu_custom_call.1} parent=5 // pred_fallthru
        _
      %p439 = scmp.lt.s32.totalorder %s28, 2
      // Predicated region
      $region61: #{tpu_custom_call.1} parent=5 // pred_check
        %p440 = pneg %p439
      $region62: #{tpu_custom_call.1} parent=5 // pred_check_branch
        %442 = sbr.rel (%p440) target = $region64
      $region63: #{tpu_custom_call.1} parent=5 // pred_region
        // Predicated region
        $region65: #{tpu_custom_call.1} parent=63 // pred_check
          %p443 = pneg %p48
        $region66: #{tpu_custom_call.1} parent=63 // pred_check_branch
          %445 = sbr.rel (%p443) target = $region68
        $region67: #{tpu_custom_call.1} parent=63 // pred_region
          %s446 = sand.u32 %s38, 1
          %s447 = scalar_lea.sflag [#allocation5], %s446
          %s448 = sand.u32 %s38, 1
          %s449 = smul.addr %s448, 256
          %s450 = scalar_lea.vmem [#allocation4], %s449
          %s451 = smul.u32 2, %s28
          %s453 = ssub.s32 4096, 4096
          %454 = vsyncadd %s447, %s453
          %s455 = smul.addr %s451, 16
          %s456 = smul.addr %s455, 128
          %s457 = scalar_lea.hbm %s0, %s456
          %s458 = sshll.u32 %s450, 4
          %s459 = int_to_ptr.vmem [resolvable:$true] %s458
          %464 = dma.hbm_to_vmem [thread:$0]  %s457, 4096, %s459, %s447, 128, 128, 8
        $region68: #{tpu_custom_call.1} parent=63 // pred_fallthru
          _
      $region64: #{tpu_custom_call.1} parent=5 // pred_fallthru
        _
      %p465 = scmp.le.s32.totalorder 1, %s28
      %p466 = scmp.lt.s32.totalorder %s28, 3
      %p467 = pnand %p465, %p466
      %p468 = pneg %p467
      // Predicated region
      $region69: #{tpu_custom_call.1} parent=5 // pred_check
        _
      $region70: #{tpu_custom_call.1} parent=5 // pred_check_branch
        %470 = sbr.rel (%p467) target = $region72
      $region71: #{tpu_custom_call.1} parent=5 // pred_region
        %s471 = ssub.s32 %s28, 1
        %s472 = sand.u32 %s41, 1
        %s473 = scalar_lea.sflag [#allocation5], %s472
        %s474 = sand.u32 %s41, 1
        %s475 = smul.addr %s474, 256
        %s476 = scalar_lea.vmem [#allocation4], %s475
        // Predicated region
        $region73: #{tpu_custom_call.1} parent=71 // pred_check
          %p477 = pneg %p54
        $region74: #{tpu_custom_call.1} parent=71 // pred_check_branch
          %479 = sbr.rel (%p477) target = $region76
        $region75: #{tpu_custom_call.1} parent=71 // pred_region
          %480 = dma.done %s473, 4096
        $region76: #{tpu_custom_call.1} parent=71 // pred_fallthru
          _
        // Predicated region
        $region77: #{tpu_custom_call.1} parent=71 // pred_check
          %p481 = pneg %p75
        $region78: #{tpu_custom_call.1} parent=71 // pred_check_branch
          %483 = sbr.rel (%p481) target = $region80
        $region79: #{tpu_custom_call.1} parent=71 // pred_region
          %484 = dma.done [#allocation8], 16
        $region80: #{tpu_custom_call.1} parent=71 // pred_fallthru
          _
        // Predicated region
        $region81: #{tpu_custom_call.1} parent=71 // pred_check
          %p485 = pneg %p96
        $region82: #{tpu_custom_call.1} parent=71 // pred_check_branch
          %487 = sbr.rel (%p485) target = $region84
        $region83: #{tpu_custom_call.1} parent=71 // pred_region
          %488 = dma.done [#allocation8], 16
        $region84: #{tpu_custom_call.1} parent=71 // pred_fallthru
          _
        // Predicated region
        $region85: #{tpu_custom_call.1} parent=71 // pred_check
          %p489 = pneg %p117
        $region86: #{tpu_custom_call.1} parent=71 // pred_check_branch
          %491 = sbr.rel (%p489) target = $region88
        $region87: #{tpu_custom_call.1} parent=71 // pred_region
          %492 = dma.done [#allocation11], 3072
        $region88: #{tpu_custom_call.1} parent=71 // pred_fallthru
          _
        // Predicated region
        $region89: #{tpu_custom_call.1} parent=71 // pred_check
          %p493 = pneg %p159
        $region90: #{tpu_custom_call.1} parent=71 // pred_check_branch
          %495 = sbr.rel (%p493) target = $region92
        $region91: #{tpu_custom_call.1} parent=71 // pred_region
          %496 = dma.done [#allocation11], 1024
        $region92: #{tpu_custom_call.1} parent=71 // pred_fallthru
          _
        // Predicated region
        $region93: #{tpu_custom_call.1} parent=71 // pred_check
          %p497 = pneg %p243
        $region94: #{tpu_custom_call.1} parent=71 // pred_check_branch
          %499 = sbr.rel (%p497) target = $region96
        $region95: #{tpu_custom_call.1} parent=71 // pred_region
          %500 = dma.done [#allocation14], 4096
        $region96: #{tpu_custom_call.1} parent=71 // pred_fallthru
          _
        // Predicated region
        $region97: #{tpu_custom_call.1} parent=71 // pred_check
          %p501 = pneg %p285
        $region98: #{tpu_custom_call.1} parent=71 // pred_check_branch
          %503 = sbr.rel (%p501) target = $region100
        $region99: #{tpu_custom_call.1} parent=71 // pred_region
          %504 = dma.done [#allocation14], 4096
        $region100: #{tpu_custom_call.1} parent=71 // pred_fallthru
          _
        %s505 = sand.u32 %s41, 1
        %s506 = scalar_lea.sflag [#allocation5], %s505
        %s507 = sand.u32 %s41, 1
        %s508 = smul.addr %s507, 256
        %s509 = scalar_lea.vmem [#allocation4], %s508
        %p510 = pneg %p54
        %p511 = pneg %p51
        %p512 = pneg %p75
        %p513 = pneg %p72
        %p514 = pneg %p96
        %p515 = pneg %p93
        %p516 = pneg %p117
        %p517 = pneg %p114
        %p518 = pneg %p138
        %p519 = pneg %p135
        %p520 = pneg %p159
        %p521 = pneg %p156
        %p522 = pneg %p180
        %p523 = pneg %p177
        %p524 = pneg %p201
        %p525 = pneg %p198
        %p526 = pneg %p222
        %p527 = pneg %p219
        %p528 = pneg %p243
        %p529 = pneg %p240
        %p530 = pneg %p264
        %p531 = pneg %p261
        %p532 = pneg %p285
        %p533 = pneg %p282
        %p534 = pneg %p306
        %p535 = pneg %p303
        %p536 = pneg %p332
        %p537 = pneg %p329
        %s538 = sand.u32 %s319, 1
        %s539 = scalar_lea.sflag [#allocation6], %s538
        %s540 = sand.u32 %s319, 1
        %s541 = smul.addr %s540, 256
        %s542 = scalar_lea.vmem [#allocation16], %s541
        %s543 = smul.u32 2, %s33
        %s544 = smul.u32 2, %s33
        %v546 = vld [vmem:[%s476] sm:$0xff]
        %v547 = vld [vmem:[%s476 + $0x8] sm:$0xff]
        %v548 = vld [vmem:[%s476 + $0x10] sm:$0xff]
        %v549 = vld [vmem:[%s476 + $0x18] sm:$0xff]
        %v550 = vld [vmem:[%s476 + $0x20] sm:$0xff]
        %v551 = vld [vmem:[%s476 + $0x28] sm:$0xff]
        %v552 = vld [vmem:[%s476 + $0x30] sm:$0xff]
        %v553 = vld [vmem:[%s476 + $0x38] sm:$0xff]
        %v554 = vld [vmem:[%s476 + $0x40] sm:$0xff]
        %v555 = vld [vmem:[%s476 + $0x48] sm:$0xff]
        %v556 = vld [vmem:[%s476 + $0x50] sm:$0xff]
        %v557 = vld [vmem:[%s476 + $0x58] sm:$0xff]
        %v558 = vld [vmem:[%s476 + $0x60] sm:$0xff]
        %v559 = vld [vmem:[%s476 + $0x68] sm:$0xff]
        %v560 = vld [vmem:[%s476 + $0x70] sm:$0xff]
        %v561 = vld [vmem:[%s476 + $0x78] sm:$0xff]
        %v562 = vld [vmem:[%s476 + $0x80] sm:$0xff]
        %v563 = vld [vmem:[%s476 + $0x88] sm:$0xff]
        %v564 = vld [vmem:[%s476 + $0x90] sm:$0xff]
        %v565 = vld [vmem:[%s476 + $0x98] sm:$0xff]
        %v566 = vld [vmem:[%s476 + $0xa0] sm:$0xff]
        %v567 = vld [vmem:[%s476 + $0xa8] sm:$0xff]
        %v568 = vld [vmem:[%s476 + $0xb0] sm:$0xff]
        %v569 = vld [vmem:[%s476 + $0xb8] sm:$0xff]
        %v570 = vld [vmem:[%s476 + $0xc0] sm:$0xff]
        %v571 = vld [vmem:[%s476 + $0xc8] sm:$0xff]
        %v572 = vld [vmem:[%s476 + $0xd0] sm:$0xff]
        %v573 = vld [vmem:[%s476 + $0xd8] sm:$0xff]
        %v574 = vld [vmem:[%s476 + $0xe0] sm:$0xff]
        %v575 = vld [vmem:[%s476 + $0xe8] sm:$0xff]
        %v576 = vld [vmem:[%s476 + $0xf0] sm:$0xff]
        %v577 = vld [vmem:[%s476 + $0xf8] sm:$0xff]
        %v578 = vld [vmem:[#allocation7] sm:$0x1]
        %v579 = vld [vmem:[#allocation9] sm:$0x1]
        %580 = vadd.xlane.f32.xlu0 %v546
        %v581 = vpop.xlane.xlu0 %580
        %582 = vadd.xlane.f32.xlu0 %v547
        %v583 = vpop.xlane.xlu0 %582
        %584 = vadd.xlane.f32.xlu0 %v548
        %v585 = vpop.xlane.xlu0 %584
        %586 = vadd.xlane.f32.xlu0 %v549
        %v587 = vpop.xlane.xlu0 %586
        %588 = vadd.xlane.f32.xlu0 %v550
        %v589 = vpop.xlane.xlu0 %588
        %590 = vadd.xlane.f32.xlu0 %v551
        %v591 = vpop.xlane.xlu0 %590
        %592 = vadd.xlane.f32.xlu0 %v552
        %v593 = vpop.xlane.xlu0 %592
        %594 = vadd.xlane.f32.xlu0 %v553
        %v595 = vpop.xlane.xlu0 %594
        %596 = vadd.xlane.f32.xlu0 %v554
        %v597 = vpop.xlane.xlu0 %596
        %598 = vadd.xlane.f32.xlu0 %v555
        %v599 = vpop.xlane.xlu0 %598
        %600 = vadd.xlane.f32.xlu0 %v556
        %v601 = vpop.xlane.xlu0 %600
        %602 = vadd.xlane.f32.xlu0 %v557
        %v603 = vpop.xlane.xlu0 %602
        %604 = vadd.xlane.f32.xlu0 %v558
        %v605 = vpop.xlane.xlu0 %604
        %606 = vadd.xlane.f32.xlu0 %v559
        %v607 = vpop.xlane.xlu0 %606
        %608 = vadd.xlane.f32.xlu0 %v560
        %v609 = vpop.xlane.xlu0 %608
        %610 = vadd.xlane.f32.xlu0 %v561
        %v611 = vpop.xlane.xlu0 %610
        %612 = vadd.xlane.f32.xlu0 %v562
        %v613 = vpop.xlane.xlu0 %612
        %614 = vadd.xlane.f32.xlu0 %v563
        %v615 = vpop.xlane.xlu0 %614
        %616 = vadd.xlane.f32.xlu0 %v564
        %v617 = vpop.xlane.xlu0 %616
        %618 = vadd.xlane.f32.xlu0 %v565
        %v619 = vpop.xlane.xlu0 %618
        %620 = vadd.xlane.f32.xlu0 %v566
        %v621 = vpop.xlane.xlu0 %620
        %622 = vadd.xlane.f32.xlu0 %v567
        %v623 = vpop.xlane.xlu0 %622
        %624 = vadd.xlane.f32.xlu0 %v568
        %v625 = vpop.xlane.xlu0 %624
        %626 = vadd.xlane.f32.xlu0 %v569
        %v627 = vpop.xlane.xlu0 %626
        %628 = vadd.xlane.f32.xlu0 %v570
        %v629 = vpop.xlane.xlu0 %628
        %630 = vadd.xlane.f32.xlu0 %v571
        %v631 = vpop.xlane.xlu0 %630
        %632 = vadd.xlane.f32.xlu0 %v572
        %v633 = vpop.xlane.xlu0 %632
        %634 = vadd.xlane.f32.xlu0 %v573
        %v635 = vpop.xlane.xlu0 %634
        %636 = vadd.xlane.f32.xlu0 %v574
        %v637 = vpop.xlane.xlu0 %636
        %638 = vadd.xlane.f32.xlu0 %v575
        %v639 = vpop.xlane.xlu0 %638
        %640 = vadd.xlane.f32.xlu0 %v576
        %v641 = vpop.xlane.xlu0 %640
        %642 = vadd.xlane.f32.xlu0 %v577
        %v643 = vpop.xlane.xlu0 %642
        %v644 = vrcp.pop 128.0
        %v645 = vmul.f32 %v581, %v644
        %v646 = vmul.f32 %v583, %v644
        %v647 = vmul.f32 %v585, %v644
        %v648 = vmul.f32 %v587, %v644
        %v649 = vmul.f32 %v589, %v644
        %v650 = vmul.f32 %v591, %v644
        %v651 = vmul.f32 %v593, %v644
        %v652 = vmul.f32 %v595, %v644
        %v653 = vmul.f32 %v597, %v644
        %v654 = vmul.f32 %v599, %v644
        %v655 = vmul.f32 %v601, %v644
        %v656 = vmul.f32 %v603, %v644
        %v657 = vmul.f32 %v605, %v644
        %v658 = vmul.f32 %v607, %v644
        %v659 = vmul.f32 %v609, %v644
        %v660 = vmul.f32 %v611, %v644
        %v661 = vmul.f32 %v613, %v644
        %v662 = vmul.f32 %v615, %v644
        %v663 = vmul.f32 %v617, %v644
        %v664 = vmul.f32 %v619, %v644
        %v665 = vmul.f32 %v621, %v644
        %v666 = vmul.f32 %v623, %v644
        %v667 = vmul.f32 %v625, %v644
        %v668 = vmul.f32 %v627, %v644
        %v669 = vmul.f32 %v629, %v644
        %v670 = vmul.f32 %v631, %v644
        %v671 = vmul.f32 %v633, %v644
        %v672 = vmul.f32 %v635, %v644
        %v673 = vmul.f32 %v637, %v644
        %v674 = vmul.f32 %v639, %v644
        %v675 = vmul.f32 %v641, %v644
        %v676 = vmul.f32 %v643, %v644
        %v677 = vsub.f32 %v546, %v645
        %v678 = vsub.f32 %v547, %v646
        %v679 = vsub.f32 %v548, %v647
        %v680 = vsub.f32 %v549, %v648
        %v681 = vsub.f32 %v550, %v649
        %v682 = vsub.f32 %v551, %v650
        %v683 = vsub.f32 %v552, %v651
        %v684 = vsub.f32 %v553, %v652
        %v685 = vsub.f32 %v554, %v653
        %v686 = vsub.f32 %v555, %v654
        %v687 = vsub.f32 %v556, %v655
        %v688 = vsub.f32 %v557, %v656
        %v689 = vsub.f32 %v558, %v657
        %v690 = vsub.f32 %v559, %v658
        %v691 = vsub.f32 %v560, %v659
        %v692 = vsub.f32 %v561, %v660
        %v693 = vsub.f32 %v562, %v661
        %v694 = vsub.f32 %v563, %v662
        %v695 = vsub.f32 %v564, %v663
        %v696 = vsub.f32 %v565, %v664
        %v697 = vsub.f32 %v566, %v665
        %v698 = vsub.f32 %v567, %v666
        %v699 = vsub.f32 %v568, %v667
        %v700 = vsub.f32 %v569, %v668
        %v701 = vsub.f32 %v570, %v669
        %v702 = vsub.f32 %v571, %v670
        %v703 = vsub.f32 %v572, %v671
        %v704 = vsub.f32 %v573, %v672
        %v705 = vsub.f32 %v574, %v673
        %v706 = vsub.f32 %v575, %v674
        %v707 = vsub.f32 %v576, %v675
        %v708 = vsub.f32 %v577, %v676
        %v709 = vmul.f32 %v677, %v677
        %v710 = vmul.f32 %v678, %v678
        %v711 = vmul.f32 %v679, %v679
        %v712 = vmul.f32 %v680, %v680
        %v713 = vmul.f32 %v681, %v681
        %v714 = vmul.f32 %v682, %v682
        %v715 = vmul.f32 %v683, %v683
        %v716 = vmul.f32 %v684, %v684
        %v717 = vmul.f32 %v685, %v685
        %v718 = vmul.f32 %v686, %v686
        %v719 = vmul.f32 %v687, %v687
        %v720 = vmul.f32 %v688, %v688
        %v721 = vmul.f32 %v689, %v689
        %v722 = vmul.f32 %v690, %v690
        %v723 = vmul.f32 %v691, %v691
        %v724 = vmul.f32 %v692, %v692
        %v725 = vmul.f32 %v693, %v693
        %v726 = vmul.f32 %v694, %v694
        %v727 = vmul.f32 %v695, %v695
        %v728 = vmul.f32 %v696, %v696
        %v729 = vmul.f32 %v697, %v697
        %v730 = vmul.f32 %v698, %v698
        %v731 = vmul.f32 %v699, %v699
        %v732 = vmul.f32 %v700, %v700
        %v733 = vmul.f32 %v701, %v701
        %v734 = vmul.f32 %v702, %v702
        %v735 = vmul.f32 %v703, %v703
        %v736 = vmul.f32 %v704, %v704
        %v737 = vmul.f32 %v705, %v705
        %v738 = vmul.f32 %v706, %v706
        %v739 = vmul.f32 %v707, %v707
        %v740 = vmul.f32 %v708, %v708
        %741 = vadd.xlane.f32.xlu0 %v709
        %v742 = vpop.xlane.xlu0 %741
        %743 = vadd.xlane.f32.xlu0 %v710
        %v744 = vpop.xlane.xlu0 %743
        %745 = vadd.xlane.f32.xlu0 %v711
        %v746 = vpop.xlane.xlu0 %745
        %747 = vadd.xlane.f32.xlu0 %v712
        %v748 = vpop.xlane.xlu0 %747
        %749 = vadd.xlane.f32.xlu0 %v713
        %v750 = vpop.xlane.xlu0 %749
        %751 = vadd.xlane.f32.xlu0 %v714
        %v752 = vpop.xlane.xlu0 %751
        %753 = vadd.xlane.f32.xlu0 %v715
        %v754 = vpop.xlane.xlu0 %753
        %755 = vadd.xlane.f32.xlu0 %v716
        %v756 = vpop.xlane.xlu0 %755
        %757 = vadd.xlane.f32.xlu0 %v717
        %v758 = vpop.xlane.xlu0 %757
        %759 = vadd.xlane.f32.xlu0 %v718
        %v760 = vpop.xlane.xlu0 %759
        %761 = vadd.xlane.f32.xlu0 %v719
        %v762 = vpop.xlane.xlu0 %761
        %763 = vadd.xlane.f32.xlu0 %v720
        %v764 = vpop.xlane.xlu0 %763
        %765 = vadd.xlane.f32.xlu0 %v721
        %v766 = vpop.xlane.xlu0 %765
        %767 = vadd.xlane.f32.xlu0 %v722
        %v768 = vpop.xlane.xlu0 %767
        %769 = vadd.xlane.f32.xlu0 %v723
        %v770 = vpop.xlane.xlu0 %769
        %771 = vadd.xlane.f32.xlu0 %v724
        %v772 = vpop.xlane.xlu0 %771
        %773 = vadd.xlane.f32.xlu0 %v725
        %v774 = vpop.xlane.xlu0 %773
        %775 = vadd.xlane.f32.xlu0 %v726
        %v776 = vpop.xlane.xlu0 %775
        %777 = vadd.xlane.f32.xlu0 %v727
        %v778 = vpop.xlane.xlu0 %777
        %779 = vadd.xlane.f32.xlu0 %v728
        %v780 = vpop.xlane.xlu0 %779
        %781 = vadd.xlane.f32.xlu0 %v729
        %v782 = vpop.xlane.xlu0 %781
        %783 = vadd.xlane.f32.xlu0 %v730
        %v784 = vpop.xlane.xlu0 %783
        %785 = vadd.xlane.f32.xlu0 %v731
        %v786 = vpop.xlane.xlu0 %785
        %787 = vadd.xlane.f32.xlu0 %v732
        %v788 = vpop.xlane.xlu0 %787
        %789 = vadd.xlane.f32.xlu0 %v733
        %v790 = vpop.xlane.xlu0 %789
        %791 = vadd.xlane.f32.xlu0 %v734
        %v792 = vpop.xlane.xlu0 %791
        %793 = vadd.xlane.f32.xlu0 %v735
        %v794 = vpop.xlane.xlu0 %793
        %795 = vadd.xlane.f32.xlu0 %v736
        %v796 = vpop.xlane.xlu0 %795
        %797 = vadd.xlane.f32.xlu0 %v737
        %v798 = vpop.xlane.xlu0 %797
        %799 = vadd.xlane.f32.xlu0 %v738
        %v800 = vpop.xlane.xlu0 %799
        %801 = vadd.xlane.f32.xlu0 %v739
        %v802 = vpop.xlane.xlu0 %801
        %803 = vadd.xlane.f32.xlu0 %v740
        %v804 = vpop.xlane.xlu0 %803
        %v805 = vmul.f32 %v742, %v644
        %v806 = vmul.f32 %v744, %v644
        %v807 = vmul.f32 %v746, %v644
        %v808 = vmul.f32 %v748, %v644
        %v809 = vmul.f32 %v750, %v644
        %v810 = vmul.f32 %v752, %v644
        %v811 = vmul.f32 %v754, %v644
        %v812 = vmul.f32 %v756, %v644
        %v813 = vmul.f32 %v758, %v644
        %v814 = vmul.f32 %v760, %v644
        %v815 = vmul.f32 %v762, %v644
        %v816 = vmul.f32 %v764, %v644
        %v817 = vmul.f32 %v766, %v644
        %v818 = vmul.f32 %v768, %v644
        %v819 = vmul.f32 %v770, %v644
        %v820 = vmul.f32 %v772, %v644
        %v821 = vmul.f32 %v774, %v644
        %v822 = vmul.f32 %v776, %v644
        %v823 = vmul.f32 %v778, %v644
        %v824 = vmul.f32 %v780, %v644
        %v825 = vmul.f32 %v782, %v644
        %v826 = vmul.f32 %v784, %v644
        %v827 = vmul.f32 %v786, %v644
        %v828 = vmul.f32 %v788, %v644
        %v829 = vmul.f32 %v790, %v644
        %v830 = vmul.f32 %v792, %v644
        %v831 = vmul.f32 %v794, %v644
        %v832 = vmul.f32 %v796, %v644
        %v833 = vmul.f32 %v798, %v644
        %v834 = vmul.f32 %v800, %v644
        %v835 = vmul.f32 %v802, %v644
        %v836 = vmul.f32 %v804, %v644
        %v837 = vadd.f32 %v805, 1e-05
        %v838 = vadd.f32 %v806, 1e-05
        %v839 = vadd.f32 %v807, 1e-05
        %v840 = vadd.f32 %v808, 1e-05
        %v841 = vadd.f32 %v809, 1e-05
        %v842 = vadd.f32 %v810, 1e-05
        %v843 = vadd.f32 %v811, 1e-05
        %v844 = vadd.f32 %v812, 1e-05
        %v845 = vadd.f32 %v813, 1e-05
        %v846 = vadd.f32 %v814, 1e-05
        %v847 = vadd.f32 %v815, 1e-05
        %v848 = vadd.f32 %v816, 1e-05
        %v849 = vadd.f32 %v817, 1e-05
        %v850 = vadd.f32 %v818, 1e-05
        %v851 = vadd.f32 %v819, 1e-05
        %v852 = vadd.f32 %v820, 1e-05
        %v853 = vadd.f32 %v821, 1e-05
        %v854 = vadd.f32 %v822, 1e-05
        %v855 = vadd.f32 %v823, 1e-05
        %v856 = vadd.f32 %v824, 1e-05
        %v857 = vadd.f32 %v825, 1e-05
        %v858 = vadd.f32 %v826, 1e-05
        %v859 = vadd.f32 %v827, 1e-05
        %v860 = vadd.f32 %v828, 1e-05
        %v861 = vadd.f32 %v829, 1e-05
        %v862 = vadd.f32 %v830, 1e-05
        %v863 = vadd.f32 %v831, 1e-05
        %v864 = vadd.f32 %v832, 1e-05
        %v865 = vadd.f32 %v833, 1e-05
        %v866 = vadd.f32 %v834, 1e-05
        %v867 = vadd.f32 %v835, 1e-05
        %v868 = vadd.f32 %v836, 1e-05
        %v869 = vrsqrt.pop %v837
        %v870 = vrsqrt.pop %v838
        %v871 = vrsqrt.pop %v839
        %v872 = vrsqrt.pop %v840
        %v873 = vrsqrt.pop %v841
        %v874 = vrsqrt.pop %v842
        %v875 = vrsqrt.pop %v843
        %v876 = vrsqrt.pop %v844
        %v877 = vrsqrt.pop %v845
        %v878 = vrsqrt.pop %v846
        %v879 = vrsqrt.pop %v847
        %v880 = vrsqrt.pop %v848
        %v881 = vrsqrt.pop %v849
        %v882 = vrsqrt.pop %v850
        %v883 = vrsqrt.pop %v851
        %v884 = vrsqrt.pop %v852
        %v885 = vrsqrt.pop %v853
        %v886 = vrsqrt.pop %v854
        %v887 = vrsqrt.pop %v855
        %v888 = vrsqrt.pop %v856
        %v889 = vrsqrt.pop %v857
        %v890 = vrsqrt.pop %v858
        %v891 = vrsqrt.pop %v859
        %v892 = vrsqrt.pop %v860
        %v893 = vrsqrt.pop %v861
        %v894 = vrsqrt.pop %v862
        %v895 = vrsqrt.pop %v863
        %v896 = vrsqrt.pop %v864
        %v897 = vrsqrt.pop %v865
        %v898 = vrsqrt.pop %v866
        %v899 = vrsqrt.pop %v867
        %v900 = vrsqrt.pop %v868
        %v901 = vmul.f32 %v677, %v869
        %v902 = vmul.f32 %v678, %v870
        %v903 = vmul.f32 %v679, %v871
        %v904 = vmul.f32 %v680, %v872
        %v905 = vmul.f32 %v681, %v873
        %v906 = vmul.f32 %v682, %v874
        %v907 = vmul.f32 %v683, %v875
        %v908 = vmul.f32 %v684, %v876
        %v909 = vmul.f32 %v685, %v877
        %v910 = vmul.f32 %v686, %v878
        %v911 = vmul.f32 %v687, %v879
        %v912 = vmul.f32 %v688, %v880
        %v913 = vmul.f32 %v689, %v881
        %v914 = vmul.f32 %v690, %v882
        %v915 = vmul.f32 %v691, %v883
        %v916 = vmul.f32 %v692, %v884
        %v917 = vmul.f32 %v693, %v885
        %v918 = vmul.f32 %v694, %v886
        %v919 = vmul.f32 %v695, %v887
        %v920 = vmul.f32 %v696, %v888
        %v921 = vmul.f32 %v697, %v889
        %v922 = vmul.f32 %v698, %v890
        %v923 = vmul.f32 %v699, %v891
        %v924 = vmul.f32 %v700, %v892
        %v925 = vmul.f32 %v701, %v893
        %v926 = vmul.f32 %v702, %v894
        %v927 = vmul.f32 %v703, %v895
        %v928 = vmul.f32 %v704, %v896
        %v929 = vmul.f32 %v705, %v897
        %v930 = vmul.f32 %v706, %v898
        %v931 = vmul.f32 %v707, %v899
        %v932 = vmul.f32 %v708, %v900
        %v934 = vlaneseq
        %v935 = vshrl.u32 %v934, 7
        %v936 = vsub.s32 0, %v935
        %v937 = vrot.slane %v578, %v936
        %v939 = vmul.f32 %v901, %v937
        %v940 = vmul.f32 %v902, %v937
        %v941 = vmul.f32 %v903, %v937
        %v942 = vmul.f32 %v904, %v937
        %v943 = vmul.f32 %v905, %v937
        %v944 = vmul.f32 %v906, %v937
        %v945 = vmul.f32 %v907, %v937
        %v946 = vmul.f32 %v908, %v937
        %v947 = vmul.f32 %v909, %v937
        %v948 = vmul.f32 %v910, %v937
        %v949 = vmul.f32 %v911, %v937
        %v950 = vmul.f32 %v912, %v937
        %v951 = vmul.f32 %v913, %v937
        %v952 = vmul.f32 %v914, %v937
        %v953 = vmul.f32 %v915, %v937
        %v954 = vmul.f32 %v916, %v937
        %v955 = vmul.f32 %v917, %v937
        %v956 = vmul.f32 %v918, %v937
        %v957 = vmul.f32 %v919, %v937
        %v958 = vmul.f32 %v920, %v937
        %v959 = vmul.f32 %v921, %v937
        %v960 = vmul.f32 %v922, %v937
        %v961 = vmul.f32 %v923, %v937
        %v962 = vmul.f32 %v924, %v937
        %v963 = vmul.f32 %v925, %v937
        %v964 = vmul.f32 %v926, %v937
        %v965 = vmul.f32 %v927, %v937
        %v966 = vmul.f32 %v928, %v937
        %v967 = vmul.f32 %v929, %v937
        %v968 = vmul.f32 %v930, %v937
        %v969 = vmul.f32 %v931, %v937
        %v970 = vmul.f32 %v932, %v937
        %v972 = vlaneseq
        %v973 = vshrl.u32 %v972, 7
        %v974 = vsub.s32 0, %v973
        %v975 = vrot.slane %v579, %v974
        %v977 = vadd.f32 %v939, %v975
        %v978 = vadd.f32 %v940, %v975
        %v979 = vadd.f32 %v941, %v975
        %v980 = vadd.f32 %v942, %v975
        %v981 = vadd.f32 %v943, %v975
        %v982 = vadd.f32 %v944, %v975
        %v983 = vadd.f32 %v945, %v975
        %v984 = vadd.f32 %v946, %v975
        %v985 = vadd.f32 %v947, %v975
        %v986 = vadd.f32 %v948, %v975
        %v987 = vadd.f32 %v949, %v975
        %v988 = vadd.f32 %v950, %v975
        %v989 = vadd.f32 %v951, %v975
        %v990 = vadd.f32 %v952, %v975
        %v991 = vadd.f32 %v953, %v975
        %v992 = vadd.f32 %v954, %v975
        %v993 = vadd.f32 %v955, %v975
        %v994 = vadd.f32 %v956, %v975
        %v995 = vadd.f32 %v957, %v975
        %v996 = vadd.f32 %v958, %v975
        %v997 = vadd.f32 %v959, %v975
        %v998 = vadd.f32 %v960, %v975
        %v999 = vadd.f32 %v961, %v975
        %v1000 = vadd.f32 %v962, %v975
        %v1001 = vadd.f32 %v963, %v975
        %v1002 = vadd.f32 %v964, %v975
        %v1003 = vadd.f32 %v965, %v975
        %v1004 = vadd.f32 %v966, %v975
        %v1005 = vadd.f32 %v967, %v975
        %v1006 = vadd.f32 %v968, %v975
        %v1007 = vadd.f32 %v969, %v975
        %v1008 = vadd.f32 %v970, %v975
        %v1009 = vpack.c.bf16 %v978, %v977
        %v1010 = vpack.c.bf16 %v980, %v979
        %v1011 = vpack.c.bf16 %v982, %v981
        %v1012 = vpack.c.bf16 %v984, %v983
        %v1013 = vpack.c.bf16 %v986, %v985
        %v1014 = vpack.c.bf16 %v988, %v987
        %v1015 = vpack.c.bf16 %v990, %v989
        %v1016 = vpack.c.bf16 %v992, %v991
        %v1017 = vpack.c.bf16 %v994, %v993
        %v1018 = vpack.c.bf16 %v996, %v995
        %v1019 = vpack.c.bf16 %v998, %v997
        %v1020 = vpack.c.bf16 %v1000, %v999
        %v1021 = vpack.c.bf16 %v1002, %v1001
        %v1022 = vpack.c.bf16 %v1004, %v1003
        %v1023 = vpack.c.bf16 %v1006, %v1005
        %v1024 = vpack.c.bf16 %v1008, %v1007
        %v1025 = vld [vmem:[#allocation10] sm:$0xff]
        %v1026 = vld [vmem:[#allocation10 + $0x8] sm:$0xf]
        %v1027 = vld [vmem:[#allocation10 + $0xc] sm:$0xff]
        %v1028 = vld [vmem:[#allocation10 + $0x14] sm:$0xf]
        %v1029 = vld [vmem:[#allocation10 + $0x18] sm:$0xff]
        %v1030 = vld [vmem:[#allocation10 + $0x20] sm:$0xf]
        %v1031 = vld [vmem:[#allocation10 + $0x24] sm:$0xff]
        %v1032 = vld [vmem:[#allocation10 + $0x2c] sm:$0xf]
        %v1033 = vld [vmem:[#allocation10 + $0x30] sm:$0xff]
        %v1034 = vld [vmem:[#allocation10 + $0x38] sm:$0xf]
        %v1035 = vld [vmem:[#allocation10 + $0x3c] sm:$0xff]
        %v1036 = vld [vmem:[#allocation10 + $0x44] sm:$0xf]
        %v1037 = vld [vmem:[#allocation10 + $0x48] sm:$0xff]
        %v1038 = vld [vmem:[#allocation10 + $0x50] sm:$0xf]
        %v1039 = vld [vmem:[#allocation10 + $0x54] sm:$0xff]
        %v1040 = vld [vmem:[#allocation10 + $0x5c] sm:$0xf]
        %v1041 = vld [vmem:[#allocation10 + $0x60] sm:$0xff]
        %v1042 = vld [vmem:[#allocation10 + $0x68] sm:$0xf]
        %v1043 = vld [vmem:[#allocation10 + $0x6c] sm:$0xff]
        %v1044 = vld [vmem:[#allocation10 + $0x74] sm:$0xf]
        %v1045 = vld [vmem:[#allocation10 + $0x78] sm:$0xff]
        %v1046 = vld [vmem:[#allocation10 + $0x80] sm:$0xf]
        %v1047 = vld [vmem:[#allocation10 + $0x84] sm:$0xff]
        %v1048 = vld [vmem:[#allocation10 + $0x8c] sm:$0xf]
        %v1049 = vld [vmem:[#allocation10 + $0x90] sm:$0xff]
        %v1050 = vld [vmem:[#allocation10 + $0x98] sm:$0xf]
        %v1051 = vld [vmem:[#allocation10 + $0x9c] sm:$0xff]
        %v1052 = vld [vmem:[#allocation10 + $0xa4] sm:$0xf]
        %v1053 = vld [vmem:[#allocation10 + $0xa8] sm:$0xff]
        %v1054 = vld [vmem:[#allocation10 + $0xb0] sm:$0xf]
        %v1055 = vld [vmem:[#allocation10 + $0xb4] sm:$0xff]
        %v1056 = vld [vmem:[#allocation10 + $0xbc] sm:$0xf]
        %v1057 = vld [vmem:[%s4] sm:$0x7]
        %v1059 = vlaneseq
        %v1060 = vshrl.u32 %v1059, 7
        %v1061 = vsub.s32 0, %v1060
        %v1062 = vrot.slane %v1057, %v1061
        %v1063 = vlaneseq
        %v1064 = vshrl.u32 %v1063, 7
        %v1065 = vsub.s32 1, %v1064
        %v1066 = vrot.slane %v1057, %v1065
        %v1067 = vlaneseq
        %v1068 = vshrl.u32 %v1067, 7
        %v1069 = vsub.s32 2, %v1068
        %v1070 = vrot.slane %v1057, %v1069
        %v1106 = vunpack.c.l.b16 %v1025
        %v1107 = vunpack.c.h.b16 %v1025
        %v1108 = vunpack.c.l.b16 %v1026
        %v1109 = vunpack.c.l.b16 %v1027
        %v1110 = vunpack.c.h.b16 %v1027
        %v1111 = vunpack.c.l.b16 %v1028
        %v1112 = vunpack.c.l.b16 %v1029
        %v1113 = vunpack.c.h.b16 %v1029
        %v1114 = vunpack.c.l.b16 %v1030
        %v1115 = vunpack.c.l.b16 %v1031
        %v1116 = vunpack.c.h.b16 %v1031
        %v1117 = vunpack.c.l.b16 %v1032
        %v1118 = vunpack.c.l.b16 %v1033
        %v1119 = vunpack.c.h.b16 %v1033
        %v1120 = vunpack.c.l.b16 %v1034
        %v1121 = vunpack.c.l.b16 %v1035
        %v1122 = vunpack.c.h.b16 %v1035
        %v1123 = vunpack.c.l.b16 %v1036
        %v1124 = vunpack.c.l.b16 %v1037
        %v1125 = vunpack.c.h.b16 %v1037
        %v1126 = vunpack.c.l.b16 %v1038
        %v1127 = vunpack.c.l.b16 %v1039
        %v1128 = vunpack.c.h.b16 %v1039
        %v1129 = vunpack.c.l.b16 %v1040
        %v1130 = vunpack.c.l.b16 %v1041
        %v1131 = vunpack.c.h.b16 %v1041
        %v1132 = vunpack.c.l.b16 %v1042
        %v1133 = vunpack.c.l.b16 %v1043
        %v1134 = vunpack.c.h.b16 %v1043
        %v1135 = vunpack.c.l.b16 %v1044
        %v1136 = vunpack.c.l.b16 %v1045
        %v1137 = vunpack.c.h.b16 %v1045
        %v1138 = vunpack.c.l.b16 %v1046
        %v1139 = vunpack.c.l.b16 %v1047
        %v1140 = vunpack.c.h.b16 %v1047
        %v1141 = vunpack.c.l.b16 %v1048
        %v1142 = vunpack.c.l.b16 %v1049
        %v1143 = vunpack.c.h.b16 %v1049
        %v1144 = vunpack.c.l.b16 %v1050
        %v1145 = vunpack.c.l.b16 %v1051
        %v1146 = vunpack.c.h.b16 %v1051
        %v1147 = vunpack.c.l.b16 %v1052
        %v1148 = vunpack.c.l.b16 %v1053
        %v1149 = vunpack.c.h.b16 %v1053
        %v1150 = vunpack.c.l.b16 %v1054
        %v1151 = vunpack.c.l.b16 %v1055
        %v1152 = vunpack.c.h.b16 %v1055
        %v1153 = vunpack.c.l.b16 %v1056
        %v1154 = vpack.c.b16 %v1109, %v1106
        %v1155 = vpack.c.b16 %v1110, %v1107
        %v1156 = vpack.c.b16 %v1111, %v1108
        %v1157 = vpack.c.b16 %v1115, %v1112
        %v1158 = vpack.c.b16 %v1116, %v1113
        %v1159 = vpack.c.b16 %v1117, %v1114
        %v1160 = vpack.c.b16 %v1121, %v1118
        %v1161 = vpack.c.b16 %v1122, %v1119
        %v1162 = vpack.c.b16 %v1123, %v1120
        %v1163 = vpack.c.b16 %v1127, %v1124
        %v1164 = vpack.c.b16 %v1128, %v1125
        %v1165 = vpack.c.b16 %v1129, %v1126
        %v1166 = vpack.c.b16 %v1133, %v1130
        %v1167 = vpack.c.b16 %v1134, %v1131
        %v1168 = vpack.c.b16 %v1135, %v1132
        %v1169 = vpack.c.b16 %v1139, %v1136
        %v1170 = vpack.c.b16 %v1140, %v1137
        %v1171 = vpack.c.b16 %v1141, %v1138
        %v1172 = vpack.c.b16 %v1145, %v1142
        %v1173 = vpack.c.b16 %v1146, %v1143
        %v1174 = vpack.c.b16 %v1147, %v1144
        %v1175 = vpack.c.b16 %v1151, %v1148
        %v1176 = vpack.c.b16 %v1152, %v1149
        %v1177 = vpack.c.b16 %v1153, %v1150
        %1202 = vmatprep.subr.bf16.mxu0 %v1155
        %1203 = vmatpush1.bf16.msra.mxu0 %v1154
        %1204 = vmatprep.subr.bf16.mxu0 %v1158
        %1205 = vmatpush1.bf16.msra.mxu0 %v1157
        %1206 = vmatprep.subr.bf16.mxu0 %v1161
        %1207 = vmatpush1.bf16.msra.mxu0 %v1160
        %1208 = vmatprep.subr.bf16.mxu0 %v1164
        %1209 = vmatpush1.bf16.msra.mxu0 %v1163
        %1210 = vmatprep.subr.bf16.mxu0 %v1167
        %1211 = vmatpush1.bf16.msra.mxu0 %v1166
        %1212 = vmatprep.subr.bf16.mxu0 %v1170
        %1213 = vmatpush1.bf16.msra.mxu0 %v1169
        %1214 = vmatprep.subr.bf16.mxu0 %v1173
        %1215 = vmatpush1.bf16.msra.mxu0 %v1172
        %1216 = vmatprep.subr.bf16.mxu0 %v1176
        %1217 = vmatpush1.bf16.msra.mxu0 %v1175
        %1218 = vmatprep.subr.bf16.mxu0 0
        %1219 = vmatpush1.bf16.msra.mxu0 0
        %1220 = vmatprep.subr.bf16.mxu0 0
        %1221 = vmatpush1.bf16.msra.mxu0 0
        %1222 = vmatprep.subr.bf16.mxu0 0
        %1223 = vmatpush1.bf16.msra.mxu0 0
        %1224 = vmatprep.subr.bf16.mxu0 0
        %1225 = vmatpush1.bf16.msra.mxu0 0
        %1226 = vmatprep.subr.bf16.mxu0 0
        %1227 = vmatpush1.bf16.msra.mxu0 0
        %1228 = vmatprep.subr.bf16.mxu0 0
        %1229 = vmatpush1.bf16.msra.mxu0 0
        %1230 = vmatprep.subr.bf16.mxu0 0
        %1231 = vmatpush1.bf16.msra.mxu0 0
        %1232 = vmatprep.subr.bf16.mxu0 0
        %1233 = vmatpush1.bf16.msra.mxu0 0
        %1234 = vmatprep.mubr.bf16.mxu0 0
        %1235 = vmatmul.mubr.bf16.gmra.mrb[0].mxu0 %v1009
        %v1236 = vpop.f32.mrb[0].mxu0
        %v1237 = vadd.f32 %v1062, %v1236
        %v1238 = vpop.f32.mrb[0].mxu0
        %v1239 = vadd.f32 %v1066, %v1238
        %v1240 = vpop.f32.mrb[0].mxu0
        %v1241 = vadd.f32 %v1062, %v1240
        %v1242 = vpop.f32.mrb[0].mxu0
        %v1243 = vadd.f32 %v1066, %v1242
        %1244 = vmatprep.mubr.bf16.mxu0 0
        %1245 = vmatmul.mubr.bf16.gmra.mrb[0].mxu0 %v1010
        %v1246 = vpop.f32.mrb[0].mxu0
        %v1247 = vadd.f32 %v1062, %v1246
        %v1248 = vpop.f32.mrb[0].mxu0
        %v1249 = vadd.f32 %v1066, %v1248
        %v1250 = vpop.f32.mrb[0].mxu0
        %v1251 = vadd.f32 %v1062, %v1250
        %v1252 = vpop.f32.mrb[0].mxu0
        %v1253 = vadd.f32 %v1066, %v1252
        %1254 = vmatprep.mubr.bf16.mxu0 0
        %1255 = vmatmul.mubr.bf16.gmra.mrb[0].mxu0 %v1011
        %v1256 = vpop.f32.mrb[0].mxu0
        %v1257 = vadd.f32 %v1062, %v1256
        %v1258 = vpop.f32.mrb[0].mxu0
        %v1259 = vadd.f32 %v1066, %v1258
        %v1260 = vpop.f32.mrb[0].mxu0
        %v1261 = vadd.f32 %v1062, %v1260
        %v1262 = vpop.f32.mrb[0].mxu0
        %v1263 = vadd.f32 %v1066, %v1262
        %1264 = vmatprep.mubr.bf16.mxu0 0
        %1265 = vmatmul.mubr.bf16.gmra.mrb[0].mxu0 %v1012
        %v1266 = vpop.f32.mrb[0].mxu0
        %v1267 = vadd.f32 %v1062, %v1266
        %v1268 = vpop.f32.mrb[0].mxu0
        %v1269 = vadd.f32 %v1066, %v1268
        %v1270 = vpop.f32.mrb[0].mxu0
        %v1271 = vadd.f32 %v1062, %v1270
        %v1272 = vpop.f32.mrb[0].mxu0
        %v1273 = vadd.f32 %v1066, %v1272
        %1274 = vmatprep.mubr.bf16.mxu0 0
        %1275 = vmatmul.mubr.bf16.gmra.mrb[0].mxu0 %v1013
        %v1276 = vpop.f32.mrb[0].mxu0
        %v1277 = vadd.f32 %v1062, %v1276
        %v1278 = vpop.f32.mrb[0].mxu0
        %v1279 = vadd.f32 %v1066, %v1278
        %v1280 = vpop.f32.mrb[0].mxu0
        %v1281 = vadd.f32 %v1062, %v1280
        %v1282 = vpop.f32.mrb[0].mxu0
        %v1283 = vadd.f32 %v1066, %v1282
        %1284 = vmatprep.mubr.bf16.mxu0 0
        %1285 = vmatmul.mubr.bf16.gmra.mrb[0].mxu0 %v1014
        %v1286 = vpop.f32.mrb[0].mxu0
        %v1287 = vadd.f32 %v1062, %v1286
        %v1288 = vpop.f32.mrb[0].mxu0
        %v1289 = vadd.f32 %v1066, %v1288
        %v1290 = vpop.f32.mrb[0].mxu0
        %v1291 = vadd.f32 %v1062, %v1290
        %v1292 = vpop.f32.mrb[0].mxu0
        %v1293 = vadd.f32 %v1066, %v1292
        %1294 = vmatprep.mubr.bf16.mxu0 0
        %1295 = vmatmul.mubr.bf16.gmra.mrb[0].mxu0 %v1015
        %v1296 = vpop.f32.mrb[0].mxu0
        %v1297 = vadd.f32 %v1062, %v1296
        %v1298 = vpop.f32.mrb[0].mxu0
        %v1299 = vadd.f32 %v1066, %v1298
        %v1300 = vpop.f32.mrb[0].mxu0
        %v1301 = vadd.f32 %v1062, %v1300
        %v1302 = vpop.f32.mrb[0].mxu0
        %v1303 = vadd.f32 %v1066, %v1302
        %1304 = vmatprep.mubr.bf16.mxu0 0
        %1305 = vmatmul.mubr.bf16.gmra.mrb[0].mxu0 %v1016
        %v1306 = vpop.f32.mrb[0].mxu0
        %v1307 = vadd.f32 %v1062, %v1306
        %v1308 = vpop.f32.mrb[0].mxu0
        %v1309 = vadd.f32 %v1066, %v1308
        %v1310 = vpop.f32.mrb[0].mxu0
        %v1311 = vadd.f32 %v1062, %v1310
        %v1312 = vpop.f32.mrb[0].mxu0
        %v1313 = vadd.f32 %v1066, %v1312
        %1314 = vmatprep.mubr.bf16.mxu0 0
        %1315 = vmatmul.mubr.bf16.gmra.mrb[0].mxu0 %v1017
        %v1316 = vpop.f32.mrb[0].mxu0
        %v1317 = vadd.f32 %v1062, %v1316
        %v1318 = vpop.f32.mrb[0].mxu0
        %v1319 = vadd.f32 %v1066, %v1318
        %v1320 = vpop.f32.mrb[0].mxu0
        %v1321 = vadd.f32 %v1062, %v1320
        %v1322 = vpop.f32.mrb[0].mxu0
        %v1323 = vadd.f32 %v1066, %v1322
        %1324 = vmatprep.mubr.bf16.mxu0 0
        %1325 = vmatmul.mubr.bf16.gmra.mrb[0].mxu0 %v1018
        %v1326 = vpop.f32.mrb[0].mxu0
        %v1327 = vadd.f32 %v1062, %v1326
        %v1328 = vpop.f32.mrb[0].mxu0
        %v1329 = vadd.f32 %v1066, %v1328
        %v1330 = vpop.f32.mrb[0].mxu0
        %v1331 = vadd.f32 %v1062, %v1330
        %v1332 = vpop.f32.mrb[0].mxu0
        %v1333 = vadd.f32 %v1066, %v1332
        %1334 = vmatprep.mubr.bf16.mxu0 0
        %1335 = vmatmul.mubr.bf16.gmra.mrb[0].mxu0 %v1019
        %v1336 = vpop.f32.mrb[0].mxu0
        %v1337 = vadd.f32 %v1062, %v1336
        %v1338 = vpop.f32.mrb[0].mxu0
        %v1339 = vadd.f32 %v1066, %v1338
        %v1340 = vpop.f32.mrb[0].mxu0
        %v1341 = vadd.f32 %v1062, %v1340
        %v1342 = vpop.f32.mrb[0].mxu0
        %v1343 = vadd.f32 %v1066, %v1342
        %1344 = vmatprep.mubr.bf16.mxu0 0
        %1345 = vmatmul.mubr.bf16.gmra.mrb[0].mxu0 %v1020
        %v1346 = vpop.f32.mrb[0].mxu0
        %v1347 = vadd.f32 %v1062, %v1346
        %v1348 = vpop.f32.mrb[0].mxu0
        %v1349 = vadd.f32 %v1066, %v1348
        %v1350 = vpop.f32.mrb[0].mxu0
        %v1351 = vadd.f32 %v1062, %v1350
        %v1352 = vpop.f32.mrb[0].mxu0
        %v1353 = vadd.f32 %v1066, %v1352
        %1354 = vmatprep.mubr.bf16.mxu0 0
        %1355 = vmatmul.mubr.bf16.gmra.mrb[0].mxu0 %v1021
        %v1356 = vpop.f32.mrb[0].mxu0
        %v1357 = vadd.f32 %v1062, %v1356
        %v1358 = vpop.f32.mrb[0].mxu0
        %v1359 = vadd.f32 %v1066, %v1358
        %v1360 = vpop.f32.mrb[0].mxu0
        %v1361 = vadd.f32 %v1062, %v1360
        %v1362 = vpop.f32.mrb[0].mxu0
        %v1363 = vadd.f32 %v1066, %v1362
        %1364 = vmatprep.mubr.bf16.mxu0 0
        %1365 = vmatmul.mubr.bf16.gmra.mrb[0].mxu0 %v1022
        %v1366 = vpop.f32.mrb[0].mxu0
        %v1367 = vadd.f32 %v1062, %v1366
        %v1368 = vpop.f32.mrb[0].mxu0
        %v1369 = vadd.f32 %v1066, %v1368
        %v1370 = vpop.f32.mrb[0].mxu0
        %v1371 = vadd.f32 %v1062, %v1370
        %v1372 = vpop.f32.mrb[0].mxu0
        %v1373 = vadd.f32 %v1066, %v1372
        %1374 = vmatprep.mubr.bf16.mxu0 0
        %1375 = vmatmul.mubr.bf16.gmra.mrb[0].mxu0 %v1023
        %v1376 = vpop.f32.mrb[0].mxu0
        %v1377 = vadd.f32 %v1062, %v1376
        %v1378 = vpop.f32.mrb[0].mxu0
        %v1379 = vadd.f32 %v1066, %v1378
        %v1380 = vpop.f32.mrb[0].mxu0
        %v1381 = vadd.f32 %v1062, %v1380
        %v1382 = vpop.f32.mrb[0].mxu0
        %v1383 = vadd.f32 %v1066, %v1382
        %1384 = vmatprep.mubr.bf16.mxu0 0
        %1385 = vmatmul.mubr.bf16.gmra.mrb[0].mxu0 %v1024
        %v1386 = vpop.f32.mrb[0].mxu0
        %v1387 = vadd.f32 %v1062, %v1386
        %v1388 = vpop.f32.mrb[0].mxu0
        %v1389 = vadd.f32 %v1066, %v1388
        %v1390 = vpop.f32.mrb[0].mxu0
        %v1391 = vadd.f32 %v1062, %v1390
        %v1392 = vpop.f32.mrb[0].mxu0
        %v1393 = vadd.f32 %v1066, %v1392
        %1394 = vdwg.mxu0
        %1395 = vmatprep.subr.bf16.mxu0 0
        %1396 = vmatpush1.bf16.msra.mxu0 %v1156
        %1397 = vmatprep.subr.bf16.mxu0 0
        %1398 = vmatpush1.bf16.msra.mxu0 %v1159
        %1399 = vmatprep.subr.bf16.mxu0 0
        %1400 = vmatpush1.bf16.msra.mxu0 %v1162
        %1401 = vmatprep.subr.bf16.mxu0 0
        %1402 = vmatpush1.bf16.msra.mxu0 %v1165
        %1403 = vmatprep.subr.bf16.mxu0 0
        %1404 = vmatpush1.bf16.msra.mxu0 %v1168
        %1405 = vmatprep.subr.bf16.mxu0 0
        %1406 = vmatpush1.bf16.msra.mxu0 %v1171
        %1407 = vmatprep.subr.bf16.mxu0 0
        %1408 = vmatpush1.bf16.msra.mxu0 %v1174
        %1409 = vmatprep.subr.bf16.mxu0 0
        %1410 = vmatpush1.bf16.msra.mxu0 %v1177
        %1411 = vmatprep.subr.bf16.mxu0 0
        %1412 = vmatpush1.bf16.msra.mxu0 0
        %1413 = vmatprep.subr.bf16.mxu0 0
        %1414 = vmatpush1.bf16.msra.mxu0 0
        %1415 = vmatprep.subr.bf16.mxu0 0
        %1416 = vmatpush1.bf16.msra.mxu0 0
        %1417 = vmatprep.subr.bf16.mxu0 0
        %1418 = vmatpush1.bf16.msra.mxu0 0
        %1419 = vmatprep.subr.bf16.mxu0 0
        %1420 = vmatpush1.bf16.msra.mxu0 0
        %1421 = vmatprep.subr.bf16.mxu0 0
        %1422 = vmatpush1.bf16.msra.mxu0 0
        %1423 = vmatprep.subr.bf16.mxu0 0
        %1424 = vmatpush1.bf16.msra.mxu0 0
        %1425 = vmatprep.subr.bf16.mxu0 0
        %1426 = vmatpush1.bf16.msra.mxu0 0
        %1427 = vmatprep.mubr.bf16.mxu0 0
        %1428 = vmatmul.mubr.bf16.gmra.mrb[0].mxu0 %v1009
        %v1429 = vpop.f32.mrb[0].mxu0
        %v1430 = vadd.f32 %v1070, %v1429
        %v1431 = vpop.f32.mrb[0].mxu0
        %v1432 = vpop.f32.mrb[0].mxu0
        %v1433 = vadd.f32 %v1070, %v1432
        %v1434 = vpop.f32.mrb[0].mxu0
        %1435 = vmatprep.mubr.bf16.mxu0 0
        %1436 = vmatmul.mubr.bf16.gmra.mrb[0].mxu0 %v1010
        %v1437 = vpop.f32.mrb[0].mxu0
        %v1438 = vadd.f32 %v1070, %v1437
        %v1439 = vpop.f32.mrb[0].mxu0
        %v1440 = vpop.f32.mrb[0].mxu0
        %v1441 = vadd.f32 %v1070, %v1440
        %v1442 = vpop.f32.mrb[0].mxu0
        %1443 = vmatprep.mubr.bf16.mxu0 0
        %1444 = vmatmul.mubr.bf16.gmra.mrb[0].mxu0 %v1011
        %v1445 = vpop.f32.mrb[0].mxu0
        %v1446 = vadd.f32 %v1070, %v1445
        %v1447 = vpop.f32.mrb[0].mxu0
        %v1448 = vpop.f32.mrb[0].mxu0
        %v1449 = vadd.f32 %v1070, %v1448
        %v1450 = vpop.f32.mrb[0].mxu0
        %1451 = vmatprep.mubr.bf16.mxu0 0
        %1452 = vmatmul.mubr.bf16.gmra.mrb[0].mxu0 %v1012
        %v1453 = vpop.f32.mrb[0].mxu0
        %v1454 = vadd.f32 %v1070, %v1453
        %v1455 = vpop.f32.mrb[0].mxu0
        %v1456 = vpop.f32.mrb[0].mxu0
        %v1457 = vadd.f32 %v1070, %v1456
        %v1458 = vpop.f32.mrb[0].mxu0
        %1459 = vmatprep.mubr.bf16.mxu0 0
        %1460 = vmatmul.mubr.bf16.gmra.mrb[0].mxu0 %v1013
        %v1461 = vpop.f32.mrb[0].mxu0
        %v1462 = vadd.f32 %v1070, %v1461
        %v1463 = vpop.f32.mrb[0].mxu0
        %v1464 = vpop.f32.mrb[0].mxu0
        %v1465 = vadd.f32 %v1070, %v1464
        %v1466 = vpop.f32.mrb[0].mxu0
        %1467 = vmatprep.mubr.bf16.mxu0 0
        %1468 = vmatmul.mubr.bf16.gmra.mrb[0].mxu0 %v1014
        %v1469 = vpop.f32.mrb[0].mxu0
        %v1470 = vadd.f32 %v1070, %v1469
        %v1471 = vpop.f32.mrb[0].mxu0
        %v1472 = vpop.f32.mrb[0].mxu0
        %v1473 = vadd.f32 %v1070, %v1472
        %v1474 = vpop.f32.mrb[0].mxu0
        %1475 = vmatprep.mubr.bf16.mxu0 0
        %1476 = vmatmul.mubr.bf16.gmra.mrb[0].mxu0 %v1015
        %v1477 = vpop.f32.mrb[0].mxu0
        %v1478 = vadd.f32 %v1070, %v1477
        %v1479 = vpop.f32.mrb[0].mxu0
        %v1480 = vpop.f32.mrb[0].mxu0
        %v1481 = vadd.f32 %v1070, %v1480
        %v1482 = vpop.f32.mrb[0].mxu0
        %1483 = vmatprep.mubr.bf16.mxu0 0
        %1484 = vmatmul.mubr.bf16.gmra.mrb[0].mxu0 %v1016
        %v1485 = vpop.f32.mrb[0].mxu0
        %v1486 = vadd.f32 %v1070, %v1485
        %v1487 = vpop.f32.mrb[0].mxu0
        %v1488 = vpop.f32.mrb[0].mxu0
        %v1489 = vadd.f32 %v1070, %v1488
        %v1490 = vpop.f32.mrb[0].mxu0
        %1491 = vmatprep.mubr.bf16.mxu0 0
        %1492 = vmatmul.mubr.bf16.gmra.mrb[0].mxu0 %v1017
        %v1493 = vpop.f32.mrb[0].mxu0
        %v1494 = vadd.f32 %v1070, %v1493
        %v1495 = vpop.f32.mrb[0].mxu0
        %v1496 = vpop.f32.mrb[0].mxu0
        %v1497 = vadd.f32 %v1070, %v1496
        %v1498 = vpop.f32.mrb[0].mxu0
        %1499 = vmatprep.mubr.bf16.mxu0 0
        %1500 = vmatmul.mubr.bf16.gmra.mrb[0].mxu0 %v1018
        %v1501 = vpop.f32.mrb[0].mxu0
        %v1502 = vadd.f32 %v1070, %v1501
        %v1503 = vpop.f32.mrb[0].mxu0
        %v1504 = vpop.f32.mrb[0].mxu0
        %v1505 = vadd.f32 %v1070, %v1504
        %v1506 = vpop.f32.mrb[0].mxu0
        %1507 = vmatprep.mubr.bf16.mxu0 0
        %1508 = vmatmul.mubr.bf16.gmra.mrb[0].mxu0 %v1019
        %v1509 = vpop.f32.mrb[0].mxu0
        %v1510 = vadd.f32 %v1070, %v1509
        %v1511 = vpop.f32.mrb[0].mxu0
        %v1512 = vpop.f32.mrb[0].mxu0
        %v1513 = vadd.f32 %v1070, %v1512
        %v1514 = vpop.f32.mrb[0].mxu0
        %1515 = vmatprep.mubr.bf16.mxu0 0
        %1516 = vmatmul.mubr.bf16.gmra.mrb[0].mxu0 %v1020
        %v1517 = vpop.f32.mrb[0].mxu0
        %v1518 = vadd.f32 %v1070, %v1517
        %v1519 = vpop.f32.mrb[0].mxu0
        %v1520 = vpop.f32.mrb[0].mxu0
        %v1521 = vadd.f32 %v1070, %v1520
        %v1522 = vpop.f32.mrb[0].mxu0
        %1523 = vmatprep.mubr.bf16.mxu0 0
        %1524 = vmatmul.mubr.bf16.gmra.mrb[0].mxu0 %v1021
        %v1525 = vpop.f32.mrb[0].mxu0
        %v1526 = vadd.f32 %v1070, %v1525
        %v1527 = vpop.f32.mrb[0].mxu0
        %v1528 = vpop.f32.mrb[0].mxu0
        %v1529 = vadd.f32 %v1070, %v1528
        %v1530 = vpop.f32.mrb[0].mxu0
        %1531 = vmatprep.mubr.bf16.mxu0 0
        %1532 = vmatmul.mubr.bf16.gmra.mrb[0].mxu0 %v1022
        %v1533 = vpop.f32.mrb[0].mxu0
        %v1534 = vadd.f32 %v1070, %v1533
        %v1535 = vpop.f32.mrb[0].mxu0
        %v1536 = vpop.f32.mrb[0].mxu0
        %v1537 = vadd.f32 %v1070, %v1536
        %v1538 = vpop.f32.mrb[0].mxu0
        %1539 = vmatprep.mubr.bf16.mxu0 0
        %1540 = vmatmul.mubr.bf16.gmra.mrb[0].mxu0 %v1023
        %v1541 = vpop.f32.mrb[0].mxu0
        %v1542 = vadd.f32 %v1070, %v1541
        %v1543 = vpop.f32.mrb[0].mxu0
        %v1544 = vpop.f32.mrb[0].mxu0
        %v1545 = vadd.f32 %v1070, %v1544
        %v1546 = vpop.f32.mrb[0].mxu0
        %1547 = vmatprep.mubr.bf16.mxu0 0
        %1548 = vmatmul.mubr.bf16.gmra.mrb[0].mxu0 %v1024
        %v1549 = vpop.f32.mrb[0].mxu0
        %v1550 = vadd.f32 %v1070, %v1549
        %v1551 = vpop.f32.mrb[0].mxu0
        %v1552 = vpop.f32.mrb[0].mxu0
        %v1553 = vadd.f32 %v1070, %v1552
        %v1554 = vpop.f32.mrb[0].mxu0
        %1555 = vdwg.mxu0
        %1556 = vst [vmem:[#allocation2] sm:$0xff] %v1237
        %1557 = vst [vmem:[#allocation2 + $0x8] sm:$0xff] %v1239
        %1558 = vst [vmem:[#allocation2 + $0x10] sm:$0xff] %v1430
        %1559 = vst [vmem:[#allocation2 + $0x18] sm:$0xff] %v1241
        %1560 = vst [vmem:[#allocation2 + $0x20] sm:$0xff] %v1243
        %1561 = vst [vmem:[#allocation2 + $0x28] sm:$0xff] %v1433
        %1562 = vst [vmem:[#allocation2 + $0x30] sm:$0xff] %v1247
        %1563 = vst [vmem:[#allocation2 + $0x38] sm:$0xff] %v1249
        %1564 = vst [vmem:[#allocation2 + $0x40] sm:$0xff] %v1438
        %1565 = vst [vmem:[#allocation2 + $0x48] sm:$0xff] %v1251
        %1566 = vst [vmem:[#allocation2 + $0x50] sm:$0xff] %v1253
        %1567 = vst [vmem:[#allocation2 + $0x58] sm:$0xff] %v1441
        %1568 = vst [vmem:[#allocation2 + $0x60] sm:$0xff] %v1257
        %1569 = vst [vmem:[#allocation2 + $0x68] sm:$0xff] %v1259
        %1570 = vst [vmem:[#allocation2 + $0x70] sm:$0xff] %v1446
        %1571 = vst [vmem:[#allocation2 + $0x78] sm:$0xff] %v1261
        %1572 = vst [vmem:[#allocation2 + $0x80] sm:$0xff] %v1263
        %1573 = vst [vmem:[#allocation2 + $0x88] sm:$0xff] %v1449
        %1574 = vst [vmem:[#allocation2 + $0x90] sm:$0xff] %v1267
        %1575 = vst [vmem:[#allocation2 + $0x98] sm:$0xff] %v1269
        %1576 = vst [vmem:[#allocation2 + $0xa0] sm:$0xff] %v1454
        %1577 = vst [vmem:[#allocation2 + $0xa8] sm:$0xff] %v1271
        %1578 = vst [vmem:[#allocation2 + $0xb0] sm:$0xff] %v1273
        %1579 = vst [vmem:[#allocation2 + $0xb8] sm:$0xff] %v1457
        %1580 = vst [vmem:[#allocation2 + $0xc0] sm:$0xff] %v1277
        %1581 = vst [vmem:[#allocation2 + $0xc8] sm:$0xff] %v1279
        %1582 = vst [vmem:[#allocation2 + $0xd0] sm:$0xff] %v1462
        %1583 = vst [vmem:[#allocation2 + $0xd8] sm:$0xff] %v1281
        %1584 = vst [vmem:[#allocation2 + $0xe0] sm:$0xff] %v1283
        %1585 = vst [vmem:[#allocation2 + $0xe8] sm:$0xff] %v1465
        %1586 = vst [vmem:[#allocation2 + $0xf0] sm:$0xff] %v1287
        %1587 = vst [vmem:[#allocation2 + $0xf8] sm:$0xff] %v1289
        %1588 = vst [vmem:[#allocation2 + $0x100] sm:$0xff] %v1470
        %1589 = vst [vmem:[#allocation2 + $0x108] sm:$0xff] %v1291
        %1590 = vst [vmem:[#allocation2 + $0x110] sm:$0xff] %v1293
        %1591 = vst [vmem:[#allocation2 + $0x118] sm:$0xff] %v1473
        %1592 = vst [vmem:[#allocation2 + $0x120] sm:$0xff] %v1297
        %1593 = vst [vmem:[#allocation2 + $0x128] sm:$0xff] %v1299
        %1594 = vst [vmem:[#allocation2 + $0x130] sm:$0xff] %v1478
        %1595 = vst [vmem:[#allocation2 + $0x138] sm:$0xff] %v1301
        %1596 = vst [vmem:[#allocation2 + $0x140] sm:$0xff] %v1303
        %1597 = vst [vmem:[#allocation2 + $0x148] sm:$0xff] %v1481
        %1598 = vst [vmem:[#allocation2 + $0x150] sm:$0xff] %v1307
        %1599 = vst [vmem:[#allocation2 + $0x158] sm:$0xff] %v1309
        %1600 = vst [vmem:[#allocation2 + $0x160] sm:$0xff] %v1486
        %1601 = vst [vmem:[#allocation2 + $0x168] sm:$0xff] %v1311
        %1602 = vst [vmem:[#allocation2 + $0x170] sm:$0xff] %v1313
        %1603 = vst [vmem:[#allocation2 + $0x178] sm:$0xff] %v1489
        %1604 = vst [vmem:[#allocation2 + $0x180] sm:$0xff] %v1317
        %1605 = vst [vmem:[#allocation2 + $0x188] sm:$0xff] %v1319
        %1606 = vst [vmem:[#allocation2 + $0x190] sm:$0xff] %v1494
        %1607 = vst [vmem:[#allocation2 + $0x198] sm:$0xff] %v1321
        %1608 = vst [vmem:[#allocation2 + $0x1a0] sm:$0xff] %v1323
        %1609 = vst [vmem:[#allocation2 + $0x1a8] sm:$0xff] %v1497
        %1610 = vst [vmem:[#allocation2 + $0x1b0] sm:$0xff] %v1327
        %1611 = vst [vmem:[#allocation2 + $0x1b8] sm:$0xff] %v1329
        %1612 = vst [vmem:[#allocation2 + $0x1c0] sm:$0xff] %v1502
        %1613 = vst [vmem:[#allocation2 + $0x1c8] sm:$0xff] %v1331
        %1614 = vst [vmem:[#allocation2 + $0x1d0] sm:$0xff] %v1333
        %1615 = vst [vmem:[#allocation2 + $0x1d8] sm:$0xff] %v1505
        %1616 = vst [vmem:[#allocation2 + $0x1e0] sm:$0xff] %v1337
        %1617 = vst [vmem:[#allocation2 + $0x1e8] sm:$0xff] %v1339
        %1618 = vst [vmem:[#allocation2 + $0x1f0] sm:$0xff] %v1510
        %1619 = vst [vmem:[#allocation2 + $0x1f8] sm:$0xff] %v1341
        %1620 = vst [vmem:[#allocation2 + $0x200] sm:$0xff] %v1343
        %1621 = vst [vmem:[#allocation2 + $0x208] sm:$0xff] %v1513
        %1622 = vst [vmem:[#allocation2 + $0x210] sm:$0xff] %v1347
        %1623 = vst [vmem:[#allocation2 + $0x218] sm:$0xff] %v1349
        %1624 = vst [vmem:[#allocation2 + $0x220] sm:$0xff] %v1518
        %1625 = vst [vmem:[#allocation2 + $0x228] sm:$0xff] %v1351
        %1626 = vst [vmem:[#allocation2 + $0x230] sm:$0xff] %v1353
        %1627 = vst [vmem:[#allocation2 + $0x238] sm:$0xff] %v1521
        %1628 = vst [vmem:[#allocation2 + $0x240] sm:$0xff] %v1357
        %1629 = vst [vmem:[#allocation2 + $0x248] sm:$0xff] %v1359
        %1630 = vst [vmem:[#allocation2 + $0x250] sm:$0xff] %v1526
        %1631 = vst [vmem:[#allocation2 + $0x258] sm:$0xff] %v1361
        %1632 = vst [vmem:[#allocation2 + $0x260] sm:$0xff] %v1363
        %1633 = vst [vmem:[#allocation2 + $0x268] sm:$0xff] %v1529
        %1634 = vst [vmem:[#allocation2 + $0x270] sm:$0xff] %v1367
        %1635 = vst [vmem:[#allocation2 + $0x278] sm:$0xff] %v1369
        %1636 = vst [vmem:[#allocation2 + $0x280] sm:$0xff] %v1534
        %1637 = vst [vmem:[#allocation2 + $0x288] sm:$0xff] %v1371
        %1638 = vst [vmem:[#allocation2 + $0x290] sm:$0xff] %v1373
        %1639 = vst [vmem:[#allocation2 + $0x298] sm:$0xff] %v1537
        %1640 = vst [vmem:[#allocation2 + $0x2a0] sm:$0xff] %v1377
        %1641 = vst [vmem:[#allocation2 + $0x2a8] sm:$0xff] %v1379
        %1642 = vst [vmem:[#allocation2 + $0x2b0] sm:$0xff] %v1542
        %1643 = vst [vmem:[#allocation2 + $0x2b8] sm:$0xff] %v1381
        %1644 = vst [vmem:[#allocation2 + $0x2c0] sm:$0xff] %v1383
        %1645 = vst [vmem:[#allocation2 + $0x2c8] sm:$0xff] %v1545
        %1646 = vst [vmem:[#allocation2 + $0x2d0] sm:$0xff] %v1387
        %1647 = vst [vmem:[#allocation2 + $0x2d8] sm:$0xff] %v1389
        %1648 = vst [vmem:[#allocation2 + $0x2e0] sm:$0xff] %v1550
        %1649 = vst [vmem:[#allocation2 + $0x2e8] sm:$0xff] %v1391
        %1650 = vst [vmem:[#allocation2 + $0x2f0] sm:$0xff] %v1393
        %1651 = vst [vmem:[#allocation2 + $0x2f8] sm:$0xff] %v1553
        %v1652 = vlaneseq
        %v1653 = vshrl.u32 %v1652, 7
        %v1654 = vadd.s32 %v1653, 8
        %v1655 = vadd.s32 %v1653, 16
        %v1656 = vadd.s32 %v1653, 24
        %v1657 = vadd.s32 %v1653, 32
        %v1658 = vadd.s32 %v1653, 40
        %v1659 = vadd.s32 %v1653, 48
        %v1660 = vadd.s32 %v1653, 56
        %v1661 = vadd.s32 %v1653, 64
        %v1662 = vadd.s32 %v1653, 72
        %v1663 = vadd.s32 %v1653, 80
        %v1664 = vadd.s32 %v1653, 88
        %v1665 = vadd.s32 %v1653, 96
        %v1666 = vadd.s32 %v1653, 104
        %v1667 = vadd.s32 %v1653, 112
        %v1668 = vadd.s32 %v1653, 120
        %v1669 = vlaneseq
        %v1670 = vand.u32 %v1669, 127
        %vm1671 = vcmp.le.s32.totalorder %v1670, %v1653
        %vm1672 = vcmp.le.s32.totalorder %v1670, %v1654
        %vm1673 = vcmp.le.s32.totalorder %v1670, %v1655
        %vm1674 = vcmp.le.s32.totalorder %v1670, %v1656
        %vm1675 = vcmp.le.s32.totalorder %v1670, %v1657
        %vm1676 = vcmp.le.s32.totalorder %v1670, %v1658
        %vm1677 = vcmp.le.s32.totalorder %v1670, %v1659
        %vm1678 = vcmp.le.s32.totalorder %v1670, %v1660
        %vm1679 = vcmp.le.s32.totalorder %v1670, %v1661
        %vm1680 = vcmp.le.s32.totalorder %v1670, %v1662
        %vm1681 = vcmp.le.s32.totalorder %v1670, %v1663
        %vm1682 = vcmp.le.s32.totalorder %v1670, %v1664
        %vm1683 = vcmp.le.s32.totalorder %v1670, %v1665
        %vm1684 = vcmp.le.s32.totalorder %v1670, %v1666
        %vm1685 = vcmp.le.s32.totalorder %v1670, %v1667
        %vm1686 = vcmp.le.s32.totalorder %v1670, %v1668
        %v1687 = vld [vmem:[#allocation2] sm:$0xff]
        %v1688 = vld [vmem:[#allocation2 + $0x18] sm:$0xff]
        %v1689 = vld [vmem:[#allocation2 + $0x30] sm:$0xff]
        %v1690 = vld [vmem:[#allocation2 + $0x48] sm:$0xff]
        %v1691 = vld [vmem:[#allocation2 + $0x60] sm:$0xff]
        %v1692 = vld [vmem:[#allocation2 + $0x78] sm:$0xff]
        %v1693 = vld [vmem:[#allocation2 + $0x90] sm:$0xff]
        %v1694 = vld [vmem:[#allocation2 + $0xa8] sm:$0xff]
        %v1695 = vld [vmem:[#allocation2 + $0xc0] sm:$0xff]
        %v1696 = vld [vmem:[#allocation2 + $0xd8] sm:$0xff]
        %v1697 = vld [vmem:[#allocation2 + $0xf0] sm:$0xff]
        %v1698 = vld [vmem:[#allocation2 + $0x108] sm:$0xff]
        %v1699 = vld [vmem:[#allocation2 + $0x120] sm:$0xff]
        %v1700 = vld [vmem:[#allocation2 + $0x138] sm:$0xff]
        %v1701 = vld [vmem:[#allocation2 + $0x150] sm:$0xff]
        %v1702 = vld [vmem:[#allocation2 + $0x168] sm:$0xff]
        %v1703 = vpack.c.bf16 %v1688, %v1687
        %v1704 = vpack.c.bf16 %v1690, %v1689
        %v1705 = vpack.c.bf16 %v1692, %v1691
        %v1706 = vpack.c.bf16 %v1694, %v1693
        %v1707 = vpack.c.bf16 %v1696, %v1695
        %v1708 = vpack.c.bf16 %v1698, %v1697
        %v1709 = vpack.c.bf16 %v1700, %v1699
        %v1710 = vpack.c.bf16 %v1702, %v1701
        %v1711 = vld [vmem:[#allocation2 + $0x8] sm:$0xff]
        %v1712 = vld [vmem:[#allocation2 + $0x20] sm:$0xff]
        %v1713 = vld [vmem:[#allocation2 + $0x38] sm:$0xff]
        %v1714 = vld [vmem:[#allocation2 + $0x50] sm:$0xff]
        %v1715 = vld [vmem:[#allocation2 + $0x68] sm:$0xff]
        %v1716 = vld [vmem:[#allocation2 + $0x80] sm:$0xff]
        %v1717 = vld [vmem:[#allocation2 + $0x98] sm:$0xff]
        %v1718 = vld [vmem:[#allocation2 + $0xb0] sm:$0xff]
        %v1719 = vld [vmem:[#allocation2 + $0xc8] sm:$0xff]
        %v1720 = vld [vmem:[#allocation2 + $0xe0] sm:$0xff]
        %v1721 = vld [vmem:[#allocation2 + $0xf8] sm:$0xff]
        %v1722 = vld [vmem:[#allocation2 + $0x110] sm:$0xff]
        %v1723 = vld [vmem:[#allocation2 + $0x128] sm:$0xff]
        %v1724 = vld [vmem:[#allocation2 + $0x140] sm:$0xff]
        %v1725 = vld [vmem:[#allocation2 + $0x158] sm:$0xff]
        %v1726 = vld [vmem:[#allocation2 + $0x170] sm:$0xff]
        %v1727 = vpack.c.bf16 %v1712, %v1711
        %v1728 = vpack.c.bf16 %v1714, %v1713
        %v1729 = vpack.c.bf16 %v1716, %v1715
        %v1730 = vpack.c.bf16 %v1718, %v1717
        %v1731 = vpack.c.bf16 %v1720, %v1719
        %v1732 = vpack.c.bf16 %v1722, %v1721
        %v1733 = vpack.c.bf16 %v1724, %v1723
        %v1734 = vpack.c.bf16 %v1726, %v1725
        %v1735 = vld [vmem:[#allocation2 + $0x10] sm:$0xff]
        %v1736 = vld [vmem:[#allocation2 + $0x28] sm:$0xff]
        %v1737 = vld [vmem:[#allocation2 + $0x40] sm:$0xff]
        %v1738 = vld [vmem:[#allocation2 + $0x58] sm:$0xff]
        %v1739 = vld [vmem:[#allocation2 + $0x70] sm:$0xff]
        %v1740 = vld [vmem:[#allocation2 + $0x88] sm:$0xff]
        %v1741 = vld [vmem:[#allocation2 + $0xa0] sm:$0xff]
        %v1742 = vld [vmem:[#allocation2 + $0xb8] sm:$0xff]
        %v1743 = vld [vmem:[#allocation2 + $0xd0] sm:$0xff]
        %v1744 = vld [vmem:[#allocation2 + $0xe8] sm:$0xff]
        %v1745 = vld [vmem:[#allocation2 + $0x100] sm:$0xff]
        %v1746 = vld [vmem:[#allocation2 + $0x118] sm:$0xff]
        %v1747 = vld [vmem:[#allocation2 + $0x130] sm:$0xff]
        %v1748 = vld [vmem:[#allocation2 + $0x148] sm:$0xff]
        %v1749 = vld [vmem:[#allocation2 + $0x160] sm:$0xff]
        %v1750 = vld [vmem:[#allocation2 + $0x178] sm:$0xff]
        %v1751 = vpack.c.bf16 %v1736, %v1735
        %v1752 = vpack.c.bf16 %v1738, %v1737
        %v1753 = vpack.c.bf16 %v1740, %v1739
        %v1754 = vpack.c.bf16 %v1742, %v1741
        %v1755 = vpack.c.bf16 %v1744, %v1743
        %v1756 = vpack.c.bf16 %v1746, %v1745
        %v1757 = vpack.c.bf16 %v1748, %v1747
        %v1758 = vpack.c.bf16 %v1750, %v1749
        %vm1759 = vcmask 261120
        %v1761 = vsel %vm1759, %v1703, 0
        %v1764 = vsel %vm1759, %v1704, 0
        %v1767 = vsel %vm1759, %v1705, 0
        %v1770 = vsel %vm1759, %v1706, 0
        %v1773 = vsel %vm1759, %v1707, 0
        %v1776 = vsel %vm1759, %v1708, 0
        %v1779 = vsel %vm1759, %v1709, 0
        %v1782 = vsel %vm1759, %v1710, 0
        %v1785 = vsel %vm1759, %v1727, 0
        %v1788 = vsel %vm1759, %v1728, 0
        %v1791 = vsel %vm1759, %v1729, 0
        %v1794 = vsel %vm1759, %v1730, 0
        %v1797 = vsel %vm1759, %v1731, 0
        %v1800 = vsel %vm1759, %v1732, 0
        %v1803 = vsel %vm1759, %v1733, 0
        %v1806 = vsel %vm1759, %v1734, 0
        %1808 = vmatprep.subr.bf16.mxu0 0
        %1809 = vmatpush1.bf16.xpose.msra.mxu0 %v1785
        %1810 = vmatprep.subr.bf16.mxu0 0
        %1811 = vmatpush1.bf16.xpose.msra.mxu0 %v1788
        %1812 = vmatprep.subr.bf16.mxu0 0
        %1813 = vmatpush1.bf16.xpose.msra.mxu0 %v1791
        %1814 = vmatprep.subr.bf16.mxu0 0
        %1815 = vmatpush1.bf16.xpose.msra.mxu0 %v1794
        %1816 = vmatprep.subr.bf16.mxu0 0
        %1817 = vmatpush1.bf16.xpose.msra.mxu0 %v1797
        %1818 = vmatprep.subr.bf16.mxu0 0
        %1819 = vmatpush1.bf16.xpose.msra.mxu0 %v1800
        %1820 = vmatprep.subr.bf16.mxu0 0
        %1821 = vmatpush1.bf16.xpose.msra.mxu0 %v1803
        %1822 = vmatprep.subr.bf16.mxu0 0
        %1823 = vmatpush1.bf16.xpose.msra.mxu0 %v1806
        %1824 = vmatprep.subr.bf16.mxu0 0
        %1825 = vmatpush1.bf16.xpose.msra.mxu0 0
        %1826 = vmatprep.subr.bf16.mxu0 0
        %1827 = vmatpush1.bf16.xpose.msra.mxu0 0
        %1828 = vmatprep.subr.bf16.mxu0 0
        %1829 = vmatpush1.bf16.xpose.msra.mxu0 0
        %1830 = vmatprep.subr.bf16.mxu0 0
        %1831 = vmatpush1.bf16.xpose.msra.mxu0 0
        %1832 = vmatprep.subr.bf16.mxu0 0
        %1833 = vmatpush1.bf16.xpose.msra.mxu0 0
        %1834 = vmatprep.subr.bf16.mxu0 0
        %1835 = vmatpush1.bf16.xpose.msra.mxu0 0
        %1836 = vmatprep.subr.bf16.mxu0 0
        %1837 = vmatpush1.bf16.xpose.msra.mxu0 0
        %1838 = vmatprep.subr.bf16.mxu0 0
        %1839 = vmatpush1.bf16.xpose.msra.mxu0 0
        %1840 = vmatprep.mubr.bf16.mxu0 0
        %1841 = vmatmul.mubr.bf16.gmra.mrb[0].mxu0 %v1761
        %v1842 = vpop.f32.mrb[0].mxu0
        %v1843 = vadd.f32 0.0, %v1842
        %v1844 = vpop.f32.mrb[0].mxu0
        %v1845 = vpop.f32.mrb[0].mxu0
        %v1846 = vadd.f32 0.0, %v1845
        %v1847 = vpop.f32.mrb[0].mxu0
        %1848 = vmatprep.mubr.bf16.mxu0 0
        %1849 = vmatmul.mubr.bf16.gmra.mrb[0].mxu0 %v1764
        %v1850 = vpop.f32.mrb[0].mxu0
        %v1851 = vadd.f32 0.0, %v1850
        %v1852 = vpop.f32.mrb[0].mxu0
        %v1853 = vpop.f32.mrb[0].mxu0
        %v1854 = vadd.f32 0.0, %v1853
        %v1855 = vpop.f32.mrb[0].mxu0
        %1856 = vmatprep.mubr.bf16.mxu0 0
        %1857 = vmatmul.mubr.bf16.gmra.mrb[0].mxu0 %v1767
        %v1858 = vpop.f32.mrb[0].mxu0
        %v1859 = vadd.f32 0.0, %v1858
        %v1860 = vpop.f32.mrb[0].mxu0
        %v1861 = vpop.f32.mrb[0].mxu0
        %v1862 = vadd.f32 0.0, %v1861
        %v1863 = vpop.f32.mrb[0].mxu0
        %1864 = vmatprep.mubr.bf16.mxu0 0
        %1865 = vmatmul.mubr.bf16.gmra.mrb[0].mxu0 %v1770
        %v1866 = vpop.f32.mrb[0].mxu0
        %v1867 = vadd.f32 0.0, %v1866
        %v1868 = vpop.f32.mrb[0].mxu0
        %v1869 = vpop.f32.mrb[0].mxu0
        %v1870 = vadd.f32 0.0, %v1869
        %v1871 = vpop.f32.mrb[0].mxu0
        %1872 = vmatprep.mubr.bf16.mxu0 0
        %1873 = vmatmul.mubr.bf16.gmra.mrb[0].mxu0 %v1773
        %v1874 = vpop.f32.mrb[0].mxu0
        %v1875 = vadd.f32 0.0, %v1874
        %v1876 = vpop.f32.mrb[0].mxu0
        %v1877 = vpop.f32.mrb[0].mxu0
        %v1878 = vadd.f32 0.0, %v1877
        %v1879 = vpop.f32.mrb[0].mxu0
        %1880 = vmatprep.mubr.bf16.mxu0 0
        %1881 = vmatmul.mubr.bf16.gmra.mrb[0].mxu0 %v1776
        %v1882 = vpop.f32.mrb[0].mxu0
        %v1883 = vadd.f32 0.0, %v1882
        %v1884 = vpop.f32.mrb[0].mxu0
        %v1885 = vpop.f32.mrb[0].mxu0
        %v1886 = vadd.f32 0.0, %v1885
        %v1887 = vpop.f32.mrb[0].mxu0
        %1888 = vmatprep.mubr.bf16.mxu0 0
        %1889 = vmatmul.mubr.bf16.gmra.mrb[0].mxu0 %v1779
        %v1890 = vpop.f32.mrb[0].mxu0
        %v1891 = vadd.f32 0.0, %v1890
        %v1892 = vpop.f32.mrb[0].mxu0
        %v1893 = vpop.f32.mrb[0].mxu0
        %v1894 = vadd.f32 0.0, %v1893
        %v1895 = vpop.f32.mrb[0].mxu0
        %1896 = vmatprep.mubr.bf16.mxu0 0
        %1897 = vmatmul.mubr.bf16.gmra.mrb[0].mxu0 %v1782
        %v1898 = vpop.f32.mrb[0].mxu0
        %v1899 = vadd.f32 0.0, %v1898
        %v1900 = vpop.f32.mrb[0].mxu0
        %v1901 = vpop.f32.mrb[0].mxu0
        %v1902 = vadd.f32 0.0, %v1901
        %v1903 = vpop.f32.mrb[0].mxu0
        %1904 = vdwg.mxu0
        %v1905 = vsel %vm1671, %v1843, -1e+30
        %v1906 = vsel %vm1672, %v1846, -1e+30
        %v1907 = vsel %vm1673, %v1851, -1e+30
        %v1908 = vsel %vm1674, %v1854, -1e+30
        %v1909 = vsel %vm1675, %v1859, -1e+30
        %v1910 = vsel %vm1676, %v1862, -1e+30
        %v1911 = vsel %vm1677, %v1867, -1e+30
        %v1912 = vsel %vm1678, %v1870, -1e+30
        %v1913 = vsel %vm1679, %v1875, -1e+30
        %v1914 = vsel %vm1680, %v1878, -1e+30
        %v1915 = vsel %vm1681, %v1883, -1e+30
        %v1916 = vsel %vm1682, %v1886, -1e+30
        %v1917 = vsel %vm1683, %v1891, -1e+30
        %v1918 = vsel %vm1684, %v1894, -1e+30
        %v1919 = vsel %vm1685, %v1899, -1e+30
        %v1920 = vsel %vm1686, %v1902, -1e+30
        %1921 = vmax.xlane.f32.xlu0 %v1905
        %v1922 = vpop.xlane.xlu0 %1921
        %1923 = vmax.xlane.f32.xlu0 %v1906
        %v1924 = vpop.xlane.xlu0 %1923
        %1925 = vmax.xlane.f32.xlu0 %v1907
        %v1926 = vpop.xlane.xlu0 %1925
        %1927 = vmax.xlane.f32.xlu0 %v1908
        %v1928 = vpop.xlane.xlu0 %1927
        %1929 = vmax.xlane.f32.xlu0 %v1909
        %v1930 = vpop.xlane.xlu0 %1929
        %1931 = vmax.xlane.f32.xlu0 %v1910
        %v1932 = vpop.xlane.xlu0 %1931
        %1933 = vmax.xlane.f32.xlu0 %v1911
        %v1934 = vpop.xlane.xlu0 %1933
        %1935 = vmax.xlane.f32.xlu0 %v1912
        %v1936 = vpop.xlane.xlu0 %1935
        %1937 = vmax.xlane.f32.xlu0 %v1913
        %v1938 = vpop.xlane.xlu0 %1937
        %1939 = vmax.xlane.f32.xlu0 %v1914
        %v1940 = vpop.xlane.xlu0 %1939
        %1941 = vmax.xlane.f32.xlu0 %v1915
        %v1942 = vpop.xlane.xlu0 %1941
        %1943 = vmax.xlane.f32.xlu0 %v1916
        %v1944 = vpop.xlane.xlu0 %1943
        %1945 = vmax.xlane.f32.xlu0 %v1917
        %v1946 = vpop.xlane.xlu0 %1945
        %1947 = vmax.xlane.f32.xlu0 %v1918
        %v1948 = vpop.xlane.xlu0 %1947
        %1949 = vmax.xlane.f32.xlu0 %v1919
        %v1950 = vpop.xlane.xlu0 %1949
        %1951 = vmax.xlane.f32.xlu0 %v1920
        %v1952 = vpop.xlane.xlu0 %1951
        %v1953 = vsub.f32 %v1905, %v1922
        %v1954 = vsub.f32 %v1906, %v1924
        %v1955 = vsub.f32 %v1907, %v1926
        %v1956 = vsub.f32 %v1908, %v1928
        %v1957 = vsub.f32 %v1909, %v1930
        %v1958 = vsub.f32 %v1910, %v1932
        %v1959 = vsub.f32 %v1911, %v1934
        %v1960 = vsub.f32 %v1912, %v1936
        %v1961 = vsub.f32 %v1913, %v1938
        %v1962 = vsub.f32 %v1914, %v1940
        %v1963 = vsub.f32 %v1915, %v1942
        %v1964 = vsub.f32 %v1916, %v1944
        %v1965 = vsub.f32 %v1917, %v1946
        %v1966 = vsub.f32 %v1918, %v1948
        %v1967 = vsub.f32 %v1919, %v1950
        %v1968 = vsub.f32 %v1920, %v1952
        %v1969 = vmul.f32 %v1953, 1.442695
        %v1970 = vpow.pop %v1969
        %v1971 = vmul.f32 %v1954, 1.442695
        %v1972 = vpow.pop %v1971
        %v1973 = vmul.f32 %v1955, 1.442695
        %v1974 = vpow.pop %v1973
        %v1975 = vmul.f32 %v1956, 1.442695
        %v1976 = vpow.pop %v1975
        %v1977 = vmul.f32 %v1957, 1.442695
        %v1978 = vpow.pop %v1977
        %v1979 = vmul.f32 %v1958, 1.442695
        %v1980 = vpow.pop %v1979
        %v1981 = vmul.f32 %v1959, 1.442695
        %v1982 = vpow.pop %v1981
        %v1983 = vmul.f32 %v1960, 1.442695
        %v1984 = vpow.pop %v1983
        %v1985 = vmul.f32 %v1961, 1.442695
        %v1986 = vpow.pop %v1985
        %v1987 = vmul.f32 %v1962, 1.442695
        %v1988 = vpow.pop %v1987
        %v1989 = vmul.f32 %v1963, 1.442695
        %v1990 = vpow.pop %v1989
        %v1991 = vmul.f32 %v1964, 1.442695
        %v1992 = vpow.pop %v1991
        %v1993 = vmul.f32 %v1965, 1.442695
        %v1994 = vpow.pop %v1993
        %v1995 = vmul.f32 %v1966, 1.442695
        %v1996 = vpow.pop %v1995
        %v1997 = vmul.f32 %v1967, 1.442695
        %v1998 = vpow.pop %v1997
        %v1999 = vmul.f32 %v1968, 1.442695
        %v2000 = vpow.pop %v1999
        %2001 = vadd.xlane.f32.xlu0 %v1970
        %v2002 = vpop.xlane.xlu0 %2001
        %2003 = vadd.xlane.f32.xlu0 %v1972
        %v2004 = vpop.xlane.xlu0 %2003
        %2005 = vadd.xlane.f32.xlu0 %v1974
        %v2006 = vpop.xlane.xlu0 %2005
        %2007 = vadd.xlane.f32.xlu0 %v1976
        %v2008 = vpop.xlane.xlu0 %2007
        %2009 = vadd.xlane.f32.xlu0 %v1978
        %v2010 = vpop.xlane.xlu0 %2009
        %2011 = vadd.xlane.f32.xlu0 %v1980
        %v2012 = vpop.xlane.xlu0 %2011
        %2013 = vadd.xlane.f32.xlu0 %v1982
        %v2014 = vpop.xlane.xlu0 %2013
        %2015 = vadd.xlane.f32.xlu0 %v1984
        %v2016 = vpop.xlane.xlu0 %2015
        %2017 = vadd.xlane.f32.xlu0 %v1986
        %v2018 = vpop.xlane.xlu0 %2017
        %2019 = vadd.xlane.f32.xlu0 %v1988
        %v2020 = vpop.xlane.xlu0 %2019
        %2021 = vadd.xlane.f32.xlu0 %v1990
        %v2022 = vpop.xlane.xlu0 %2021
        %2023 = vadd.xlane.f32.xlu0 %v1992
        %v2024 = vpop.xlane.xlu0 %2023
        %2025 = vadd.xlane.f32.xlu0 %v1994
        %v2026 = vpop.xlane.xlu0 %2025
        %2027 = vadd.xlane.f32.xlu0 %v1996
        %v2028 = vpop.xlane.xlu0 %2027
        %2029 = vadd.xlane.f32.xlu0 %v1998
        %v2030 = vpop.xlane.xlu0 %2029
        %2031 = vadd.xlane.f32.xlu0 %v2000
        %v2032 = vpop.xlane.xlu0 %2031
        %v2033 = vpack.c.bf16 %v1972, %v1970
        %v2034 = vpack.c.bf16 %v1976, %v1974
        %v2035 = vpack.c.bf16 %v1980, %v1978
        %v2036 = vpack.c.bf16 %v1984, %v1982
        %v2037 = vpack.c.bf16 %v1988, %v1986
        %v2038 = vpack.c.bf16 %v1992, %v1990
        %v2039 = vpack.c.bf16 %v1996, %v1994
        %v2040 = vpack.c.bf16 %v2000, %v1998
        %2041 = vmatprep.subr.bf16.mxu0 0
        %2042 = vmatpush1.bf16.msra.mxu0 %v1751
        %2043 = vmatprep.subr.bf16.mxu0 0
        %2044 = vmatpush1.bf16.msra.mxu0 %v1752
        %2045 = vmatprep.subr.bf16.mxu0 0
        %2046 = vmatpush1.bf16.msra.mxu0 %v1753
        %2047 = vmatprep.subr.bf16.mxu0 0
        %2048 = vmatpush1.bf16.msra.mxu0 %v1754
        %2049 = vmatprep.subr.bf16.mxu0 0
        %2050 = vmatpush1.bf16.msra.mxu0 %v1755
        %2051 = vmatprep.subr.bf16.mxu0 0
        %2052 = vmatpush1.bf16.msra.mxu0 %v1756
        %2053 = vmatprep.subr.bf16.mxu0 0
        %2054 = vmatpush1.bf16.msra.mxu0 %v1757
        %2055 = vmatprep.subr.bf16.mxu0 0
        %2056 = vmatpush1.bf16.msra.mxu0 %v1758
        %2057 = vmatprep.subr.bf16.mxu0 0
        %2058 = vmatpush1.bf16.msra.mxu0 0
        %2059 = vmatprep.subr.bf16.mxu0 0
        %2060 = vmatpush1.bf16.msra.mxu0 0
        %2061 = vmatprep.subr.bf16.mxu0 0
        %2062 = vmatpush1.bf16.msra.mxu0 0
        %2063 = vmatprep.subr.bf16.mxu0 0
        %2064 = vmatpush1.bf16.msra.mxu0 0
        %2065 = vmatprep.subr.bf16.mxu0 0
        %2066 = vmatpush1.bf16.msra.mxu0 0
        %2067 = vmatprep.subr.bf16.mxu0 0
        %2068 = vmatpush1.bf16.msra.mxu0 0
        %2069 = vmatprep.subr.bf16.mxu0 0
        %2070 = vmatpush1.bf16.msra.mxu0 0
        %2071 = vmatprep.subr.bf16.mxu0 0
        %2072 = vmatpush1.bf16.msra.mxu0 0
        %2073 = vmatprep.mubr.bf16.mxu0 0
        %2074 = vmatmul.mubr.bf16.gmra.mrb[0].mxu0 %v2033
        %v2075 = vpop.f32.mrb[0].mxu0
        %v2076 = vadd.f32 0.0, %v2075
        %v2077 = vpop.f32.mrb[0].mxu0
        %v2078 = vpop.f32.mrb[0].mxu0
        %v2079 = vadd.f32 0.0, %v2078
        %v2080 = vpop.f32.mrb[0].mxu0
        %2081 = vmatprep.mubr.bf16.mxu0 0
        %2082 = vmatmul.mubr.bf16.gmra.mrb[0].mxu0 %v2034
        %v2083 = vpop.f32.mrb[0].mxu0
        %v2084 = vadd.f32 0.0, %v2083
        %v2085 = vpop.f32.mrb[0].mxu0
        %v2086 = vpop.f32.mrb[0].mxu0
        %v2087 = vadd.f32 0.0, %v2086
        %v2088 = vpop.f32.mrb[0].mxu0
        %2089 = vmatprep.mubr.bf16.mxu0 0
        %2090 = vmatmul.mubr.bf16.gmra.mrb[0].mxu0 %v2035
        %v2091 = vpop.f32.mrb[0].mxu0
        %v2092 = vadd.f32 0.0, %v2091
        %v2093 = vpop.f32.mrb[0].mxu0
        %v2094 = vpop.f32.mrb[0].mxu0
        %v2095 = vadd.f32 0.0, %v2094
        %v2096 = vpop.f32.mrb[0].mxu0
        %2097 = vmatprep.mubr.bf16.mxu0 0
        %2098 = vmatmul.mubr.bf16.gmra.mrb[0].mxu0 %v2036
        %v2099 = vpop.f32.mrb[0].mxu0
        %v2100 = vadd.f32 0.0, %v2099
        %v2101 = vpop.f32.mrb[0].mxu0
        %v2102 = vpop.f32.mrb[0].mxu0
        %v2103 = vadd.f32 0.0, %v2102
        %v2104 = vpop.f32.mrb[0].mxu0
        %2105 = vmatprep.mubr.bf16.mxu0 0
        %2106 = vmatmul.mubr.bf16.gmra.mrb[0].mxu0 %v2037
        %v2107 = vpop.f32.mrb[0].mxu0
        %v2108 = vadd.f32 0.0, %v2107
        %v2109 = vpop.f32.mrb[0].mxu0
        %v2110 = vpop.f32.mrb[0].mxu0
        %v2111 = vadd.f32 0.0, %v2110
        %v2112 = vpop.f32.mrb[0].mxu0
        %2113 = vmatprep.mubr.bf16.mxu0 0
        %2114 = vmatmul.mubr.bf16.gmra.mrb[0].mxu0 %v2038
        %v2115 = vpop.f32.mrb[0].mxu0
        %v2116 = vadd.f32 0.0, %v2115
        %v2117 = vpop.f32.mrb[0].mxu0
        %v2118 = vpop.f32.mrb[0].mxu0
        %v2119 = vadd.f32 0.0, %v2118
        %v2120 = vpop.f32.mrb[0].mxu0
        %2121 = vmatprep.mubr.bf16.mxu0 0
        %2122 = vmatmul.mubr.bf16.gmra.mrb[0].mxu0 %v2039
        %v2123 = vpop.f32.mrb[0].mxu0
        %v2124 = vadd.f32 0.0, %v2123
        %v2125 = vpop.f32.mrb[0].mxu0
        %v2126 = vpop.f32.mrb[0].mxu0
        %v2127 = vadd.f32 0.0, %v2126
        %v2128 = vpop.f32.mrb[0].mxu0
        %2129 = vmatprep.mubr.bf16.mxu0 0
        %2130 = vmatmul.mubr.bf16.gmra.mrb[0].mxu0 %v2040
        %v2131 = vpop.f32.mrb[0].mxu0
        %v2132 = vadd.f32 0.0, %v2131
        %v2133 = vpop.f32.mrb[0].mxu0
        %v2134 = vpop.f32.mrb[0].mxu0
        %v2135 = vadd.f32 0.0, %v2134
        %v2136 = vpop.f32.mrb[0].mxu0
        %2137 = vdwg.mxu0
        %v2138 = vrcp.pop %v2002
        %v2139 = vrcp.pop %v2004
        %v2140 = vrcp.pop %v2006
        %v2141 = vrcp.pop %v2008
        %v2142 = vrcp.pop %v2010
        %v2143 = vrcp.pop %v2012
        %v2144 = vrcp.pop %v2014
        %v2145 = vrcp.pop %v2016
        %v2146 = vrcp.pop %v2018
        %v2147 = vrcp.pop %v2020
        %v2148 = vrcp.pop %v2022
        %v2149 = vrcp.pop %v2024
        %v2150 = vrcp.pop %v2026
        %v2151 = vrcp.pop %v2028
        %v2152 = vrcp.pop %v2030
        %v2153 = vrcp.pop %v2032
        %v2154 = vmul.f32 %v2076, %v2138
        %v2155 = vmul.f32 %v2079, %v2139
        %v2156 = vmul.f32 %v2084, %v2140
        %v2157 = vmul.f32 %v2087, %v2141
        %v2158 = vmul.f32 %v2092, %v2142
        %v2159 = vmul.f32 %v2095, %v2143
        %v2160 = vmul.f32 %v2100, %v2144
        %v2161 = vmul.f32 %v2103, %v2145
        %v2162 = vmul.f32 %v2108, %v2146
        %v2163 = vmul.f32 %v2111, %v2147
        %v2164 = vmul.f32 %v2116, %v2148
        %v2165 = vmul.f32 %v2119, %v2149
        %v2166 = vmul.f32 %v2124, %v2150
        %v2167 = vmul.f32 %v2127, %v2151
        %v2168 = vmul.f32 %v2132, %v2152
        %v2169 = vmul.f32 %v2135, %v2153
        %2170 = vst.msk [vmem:[#allocation3] sm:$0xff] %vm1759, %v2154
        %2171 = vst.msk [vmem:[#allocation3 + $0x8] sm:$0xff] %vm1759, %v2155
        %2172 = vst.msk [vmem:[#allocation3 + $0x10] sm:$0xff] %vm1759, %v2156
        %2173 = vst.msk [vmem:[#allocation3 + $0x18] sm:$0xff] %vm1759, %v2157
        %2174 = vst.msk [vmem:[#allocation3 + $0x20] sm:$0xff] %vm1759, %v2158
        %2175 = vst.msk [vmem:[#allocation3 + $0x28] sm:$0xff] %vm1759, %v2159
        %2176 = vst.msk [vmem:[#allocation3 + $0x30] sm:$0xff] %vm1759, %v2160
        %2177 = vst.msk [vmem:[#allocation3 + $0x38] sm:$0xff] %vm1759, %v2161
        %2178 = vst.msk [vmem:[#allocation3 + $0x40] sm:$0xff] %vm1759, %v2162
        %2179 = vst.msk [vmem:[#allocation3 + $0x48] sm:$0xff] %vm1759, %v2163
        %2180 = vst.msk [vmem:[#allocation3 + $0x50] sm:$0xff] %vm1759, %v2164
        %2181 = vst.msk [vmem:[#allocation3 + $0x58] sm:$0xff] %vm1759, %v2165
        %2182 = vst.msk [vmem:[#allocation3 + $0x60] sm:$0xff] %vm1759, %v2166
        %2183 = vst.msk [vmem:[#allocation3 + $0x68] sm:$0xff] %vm1759, %v2167
        %2184 = vst.msk [vmem:[#allocation3 + $0x70] sm:$0xff] %vm1759, %v2168
        %2185 = vst.msk [vmem:[#allocation3 + $0x78] sm:$0xff] %vm1759, %v2169
        %v2186 = vld [vmem:[#allocation2] sm:$0xff]
        %v2187 = vld [vmem:[#allocation2 + $0x18] sm:$0xff]
        %v2188 = vld [vmem:[#allocation2 + $0x30] sm:$0xff]
        %v2189 = vld [vmem:[#allocation2 + $0x48] sm:$0xff]
        %v2190 = vld [vmem:[#allocation2 + $0x60] sm:$0xff]
        %v2191 = vld [vmem:[#allocation2 + $0x78] sm:$0xff]
        %v2192 = vld [vmem:[#allocation2 + $0x90] sm:$0xff]
        %v2193 = vld [vmem:[#allocation2 + $0xa8] sm:$0xff]
        %v2194 = vld [vmem:[#allocation2 + $0xc0] sm:$0xff]
        %v2195 = vld [vmem:[#allocation2 + $0xd8] sm:$0xff]
        %v2196 = vld [vmem:[#allocation2 + $0xf0] sm:$0xff]
        %v2197 = vld [vmem:[#allocation2 + $0x108] sm:$0xff]
        %v2198 = vld [vmem:[#allocation2 + $0x120] sm:$0xff]
        %v2199 = vld [vmem:[#allocation2 + $0x138] sm:$0xff]
        %v2200 = vld [vmem:[#allocation2 + $0x150] sm:$0xff]
        %v2201 = vld [vmem:[#allocation2 + $0x168] sm:$0xff]
        %v2202 = vpack.c.bf16 %v2187, %v2186
        %v2203 = vpack.c.bf16 %v2189, %v2188
        %v2204 = vpack.c.bf16 %v2191, %v2190
        %v2205 = vpack.c.bf16 %v2193, %v2192
        %v2206 = vpack.c.bf16 %v2195, %v2194
        %v2207 = vpack.c.bf16 %v2197, %v2196
        %v2208 = vpack.c.bf16 %v2199, %v2198
        %v2209 = vpack.c.bf16 %v2201, %v2200
        %v2210 = vld [vmem:[#allocation2 + $0x8] sm:$0xff]
        %v2211 = vld [vmem:[#allocation2 + $0x20] sm:$0xff]
        %v2212 = vld [vmem:[#allocation2 + $0x38] sm:$0xff]
        %v2213 = vld [vmem:[#allocation2 + $0x50] sm:$0xff]
        %v2214 = vld [vmem:[#allocation2 + $0x68] sm:$0xff]
        %v2215 = vld [vmem:[#allocation2 + $0x80] sm:$0xff]
        %v2216 = vld [vmem:[#allocation2 + $0x98] sm:$0xff]
        %v2217 = vld [vmem:[#allocation2 + $0xb0] sm:$0xff]
        %v2218 = vld [vmem:[#allocation2 + $0xc8] sm:$0xff]
        %v2219 = vld [vmem:[#allocation2 + $0xe0] sm:$0xff]
        %v2220 = vld [vmem:[#allocation2 + $0xf8] sm:$0xff]
        %v2221 = vld [vmem:[#allocation2 + $0x110] sm:$0xff]
        %v2222 = vld [vmem:[#allocation2 + $0x128] sm:$0xff]
        %v2223 = vld [vmem:[#allocation2 + $0x140] sm:$0xff]
        %v2224 = vld [vmem:[#allocation2 + $0x158] sm:$0xff]
        %v2225 = vld [vmem:[#allocation2 + $0x170] sm:$0xff]
        %v2226 = vpack.c.bf16 %v2211, %v2210
        %v2227 = vpack.c.bf16 %v2213, %v2212
        %v2228 = vpack.c.bf16 %v2215, %v2214
        %v2229 = vpack.c.bf16 %v2217, %v2216
        %v2230 = vpack.c.bf16 %v2219, %v2218
        %v2231 = vpack.c.bf16 %v2221, %v2220
        %v2232 = vpack.c.bf16 %v2223, %v2222
        %v2233 = vpack.c.bf16 %v2225, %v2224
        %v2234 = vld [vmem:[#allocation2 + $0x10] sm:$0xff]
        %v2235 = vld [vmem:[#allocation2 + $0x28] sm:$0xff]
        %v2236 = vld [vmem:[#allocation2 + $0x40] sm:$0xff]
        %v2237 = vld [vmem:[#allocation2 + $0x58] sm:$0xff]
        %v2238 = vld [vmem:[#allocation2 + $0x70] sm:$0xff]
        %v2239 = vld [vmem:[#allocation2 + $0x88] sm:$0xff]
        %v2240 = vld [vmem:[#allocation2 + $0xa0] sm:$0xff]
        %v2241 = vld [vmem:[#allocation2 + $0xb8] sm:$0xff]
        %v2242 = vld [vmem:[#allocation2 + $0xd0] sm:$0xff]
        %v2243 = vld [vmem:[#allocation2 + $0xe8] sm:$0xff]
        %v2244 = vld [vmem:[#allocation2 + $0x100] sm:$0xff]
        %v2245 = vld [vmem:[#allocation2 + $0x118] sm:$0xff]
        %v2246 = vld [vmem:[#allocation2 + $0x130] sm:$0xff]
        %v2247 = vld [vmem:[#allocation2 + $0x148] sm:$0xff]
        %v2248 = vld [vmem:[#allocation2 + $0x160] sm:$0xff]
        %v2249 = vld [vmem:[#allocation2 + $0x178] sm:$0xff]
        %v2250 = vpack.c.bf16 %v2235, %v2234
        %v2251 = vpack.c.bf16 %v2237, %v2236
        %v2252 = vpack.c.bf16 %v2239, %v2238
        %v2253 = vpack.c.bf16 %v2241, %v2240
        %v2254 = vpack.c.bf16 %v2243, %v2242
        %v2255 = vpack.c.bf16 %v2245, %v2244
        %v2256 = vpack.c.bf16 %v2247, %v2246
        %v2257 = vpack.c.bf16 %v2249, %v2248
        %2266 = vrot.lane.b32.xlu0 %v2202, 96
        %v2267 = vpop.permute.xlu0 %2266
        %2268 = vrot.lane.b32.xlu0 %v2203, 96
        %v2269 = vpop.permute.xlu0 %2268
        %2270 = vrot.lane.b32.xlu0 %v2204, 96
        %v2271 = vpop.permute.xlu0 %2270
        %2272 = vrot.lane.b32.xlu0 %v2205, 96
        %v2273 = vpop.permute.xlu0 %2272
        %2274 = vrot.lane.b32.xlu0 %v2206, 96
        %v2275 = vpop.permute.xlu0 %2274
        %2276 = vrot.lane.b32.xlu0 %v2207, 96
        %v2277 = vpop.permute.xlu0 %2276
        %2278 = vrot.lane.b32.xlu0 %v2208, 96
        %v2279 = vpop.permute.xlu0 %2278
        %2280 = vrot.lane.b32.xlu0 %v2209, 96
        %v2281 = vpop.permute.xlu0 %2280
        %2290 = vrot.lane.b32.xlu0 %v2226, 96
        %v2291 = vpop.permute.xlu0 %2290
        %2292 = vrot.lane.b32.xlu0 %v2227, 96
        %v2293 = vpop.permute.xlu0 %2292
        %2294 = vrot.lane.b32.xlu0 %v2228, 96
        %v2295 = vpop.permute.xlu0 %2294
        %2296 = vrot.lane.b32.xlu0 %v2229, 96
        %v2297 = vpop.permute.xlu0 %2296
        %2298 = vrot.lane.b32.xlu0 %v2230, 96
        %v2299 = vpop.permute.xlu0 %2298
        %2300 = vrot.lane.b32.xlu0 %v2231, 96
        %v2301 = vpop.permute.xlu0 %2300
        %2302 = vrot.lane.b32.xlu0 %v2232, 96
        %v2303 = vpop.permute.xlu0 %2302
        %2304 = vrot.lane.b32.xlu0 %v2233, 96
        %v2305 = vpop.permute.xlu0 %2304
        %v2307 = vsel %vm1759, %v2267, 0
        %v2310 = vsel %vm1759, %v2269, 0
        %v2313 = vsel %vm1759, %v2271, 0
        %v2316 = vsel %vm1759, %v2273, 0
        %v2319 = vsel %vm1759, %v2275, 0
        %v2322 = vsel %vm1759, %v2277, 0
        %v2325 = vsel %vm1759, %v2279, 0
        %v2328 = vsel %vm1759, %v2281, 0
        %v2331 = vsel %vm1759, %v2291, 0
        %v2334 = vsel %vm1759, %v2293, 0
        %v2337 = vsel %vm1759, %v2295, 0
        %v2340 = vsel %vm1759, %v2297, 0
        %v2343 = vsel %vm1759, %v2299, 0
        %v2346 = vsel %vm1759, %v2301, 0
        %v2349 = vsel %vm1759, %v2303, 0
        %v2352 = vsel %vm1759, %v2305, 0
        %2354 = vmatprep.subr.bf16.mxu0 0
        %2355 = vmatpush1.bf16.xpose.msra.mxu0 %v2331
        %2356 = vmatprep.subr.bf16.mxu0 0
        %2357 = vmatpush1.bf16.xpose.msra.mxu0 %v2334
        %2358 = vmatprep.subr.bf16.mxu0 0
        %2359 = vmatpush1.bf16.xpose.msra.mxu0 %v2337
        %2360 = vmatprep.subr.bf16.mxu0 0
        %2361 = vmatpush1.bf16.xpose.msra.mxu0 %v2340
        %2362 = vmatprep.subr.bf16.mxu0 0
        %2363 = vmatpush1.bf16.xpose.msra.mxu0 %v2343
        %2364 = vmatprep.subr.bf16.mxu0 0
        %2365 = vmatpush1.bf16.xpose.msra.mxu0 %v2346
        %2366 = vmatprep.subr.bf16.mxu0 0
        %2367 = vmatpush1.bf16.xpose.msra.mxu0 %v2349
        %2368 = vmatprep.subr.bf16.mxu0 0
        %2369 = vmatpush1.bf16.xpose.msra.mxu0 %v2352
        %2370 = vmatprep.subr.bf16.mxu0 0
        %2371 = vmatpush1.bf16.xpose.msra.mxu0 0
        %2372 = vmatprep.subr.bf16.mxu0 0
        %2373 = vmatpush1.bf16.xpose.msra.mxu0 0
        %2374 = vmatprep.subr.bf16.mxu0 0
        %2375 = vmatpush1.bf16.xpose.msra.mxu0 0
        %2376 = vmatprep.subr.bf16.mxu0 0
        %2377 = vmatpush1.bf16.xpose.msra.mxu0 0
        %2378 = vmatprep.subr.bf16.mxu0 0
        %2379 = vmatpush1.bf16.xpose.msra.mxu0 0
        %2380 = vmatprep.subr.bf16.mxu0 0
        %2381 = vmatpush1.bf16.xpose.msra.mxu0 0
        %2382 = vmatprep.subr.bf16.mxu0 0
        %2383 = vmatpush1.bf16.xpose.msra.mxu0 0
        %2384 = vmatprep.subr.bf16.mxu0 0
        %2385 = vmatpush1.bf16.xpose.msra.mxu0 0
        %2386 = vmatprep.mubr.bf16.mxu0 0
        %2387 = vmatmul.mubr.bf16.gmra.mrb[0].mxu0 %v2307
        %v2388 = vpop.f32.mrb[0].mxu0
        %v2389 = vadd.f32 0.0, %v2388
        %v2390 = vpop.f32.mrb[0].mxu0
        %v2391 = vpop.f32.mrb[0].mxu0
        %v2392 = vadd.f32 0.0, %v2391
        %v2393 = vpop.f32.mrb[0].mxu0
        %2394 = vmatprep.mubr.bf16.mxu0 0
        %2395 = vmatmul.mubr.bf16.gmra.mrb[0].mxu0 %v2310
        %v2396 = vpop.f32.mrb[0].mxu0
        %v2397 = vadd.f32 0.0, %v2396
        %v2398 = vpop.f32.mrb[0].mxu0
        %v2399 = vpop.f32.mrb[0].mxu0
        %v2400 = vadd.f32 0.0, %v2399
        %v2401 = vpop.f32.mrb[0].mxu0
        %2402 = vmatprep.mubr.bf16.mxu0 0
        %2403 = vmatmul.mubr.bf16.gmra.mrb[0].mxu0 %v2313
        %v2404 = vpop.f32.mrb[0].mxu0
        %v2405 = vadd.f32 0.0, %v2404
        %v2406 = vpop.f32.mrb[0].mxu0
        %v2407 = vpop.f32.mrb[0].mxu0
        %v2408 = vadd.f32 0.0, %v2407
        %v2409 = vpop.f32.mrb[0].mxu0
        %2410 = vmatprep.mubr.bf16.mxu0 0
        %2411 = vmatmul.mubr.bf16.gmra.mrb[0].mxu0 %v2316
        %v2412 = vpop.f32.mrb[0].mxu0
        %v2413 = vadd.f32 0.0, %v2412
        %v2414 = vpop.f32.mrb[0].mxu0
        %v2415 = vpop.f32.mrb[0].mxu0
        %v2416 = vadd.f32 0.0, %v2415
        %v2417 = vpop.f32.mrb[0].mxu0
        %2418 = vmatprep.mubr.bf16.mxu0 0
        %2419 = vmatmul.mubr.bf16.gmra.mrb[0].mxu0 %v2319
        %v2420 = vpop.f32.mrb[0].mxu0
        %v2421 = vadd.f32 0.0, %v2420
        %v2422 = vpop.f32.mrb[0].mxu0
        %v2423 = vpop.f32.mrb[0].mxu0
        %v2424 = vadd.f32 0.0, %v2423
        %v2425 = vpop.f32.mrb[0].mxu0
        %2426 = vmatprep.mubr.bf16.mxu0 0
        %2427 = vmatmul.mubr.bf16.gmra.mrb[0].mxu0 %v2322
        %v2428 = vpop.f32.mrb[0].mxu0
        %v2429 = vadd.f32 0.0, %v2428
        %v2430 = vpop.f32.mrb[0].mxu0
        %v2431 = vpop.f32.mrb[0].mxu0
        %v2432 = vadd.f32 0.0, %v2431
        %v2433 = vpop.f32.mrb[0].mxu0
        %2434 = vmatprep.mubr.bf16.mxu0 0
        %2435 = vmatmul.mubr.bf16.gmra.mrb[0].mxu0 %v2325
        %v2436 = vpop.f32.mrb[0].mxu0
        %v2437 = vadd.f32 0.0, %v2436
        %v2438 = vpop.f32.mrb[0].mxu0
        %v2439 = vpop.f32.mrb[0].mxu0
        %v2440 = vadd.f32 0.0, %v2439
        %v2441 = vpop.f32.mrb[0].mxu0
        %2442 = vmatprep.mubr.bf16.mxu0 0
        %2443 = vmatmul.mubr.bf16.gmra.mrb[0].mxu0 %v2328
        %v2444 = vpop.f32.mrb[0].mxu0
        %v2445 = vadd.f32 0.0, %v2444
        %v2446 = vpop.f32.mrb[0].mxu0
        %v2447 = vpop.f32.mrb[0].mxu0
        %v2448 = vadd.f32 0.0, %v2447
        %v2449 = vpop.f32.mrb[0].mxu0
        %2450 = vdwg.mxu0
        %v2451 = vsel %vm1671, %v2389, -1e+30
        %v2452 = vsel %vm1672, %v2392, -1e+30
        %v2453 = vsel %vm1673, %v2397, -1e+30
        %v2454 = vsel %vm1674, %v2400, -1e+30
        %v2455 = vsel %vm1675, %v2405, -1e+30
        %v2456 = vsel %vm1676, %v2408, -1e+30
        %v2457 = vsel %vm1677, %v2413, -1e+30
        %v2458 = vsel %vm1678, %v2416, -1e+30
        %v2459 = vsel %vm1679, %v2421, -1e+30
        %v2460 = vsel %vm1680, %v2424, -1e+30
        %v2461 = vsel %vm1681, %v2429, -1e+30
        %v2462 = vsel %vm1682, %v2432, -1e+30
        %v2463 = vsel %vm1683, %v2437, -1e+30
        %v2464 = vsel %vm1684, %v2440, -1e+30
        %v2465 = vsel %vm1685, %v2445, -1e+30
        %v2466 = vsel %vm1686, %v2448, -1e+30
        %2467 = vmax.xlane.f32.xlu0 %v2451
        %v2468 = vpop.xlane.xlu0 %2467
        %2469 = vmax.xlane.f32.xlu0 %v2452
        %v2470 = vpop.xlane.xlu0 %2469
        %2471 = vmax.xlane.f32.xlu0 %v2453
        %v2472 = vpop.xlane.xlu0 %2471
        %2473 = vmax.xlane.f32.xlu0 %v2454
        %v2474 = vpop.xlane.xlu0 %2473
        %2475 = vmax.xlane.f32.xlu0 %v2455
        %v2476 = vpop.xlane.xlu0 %2475
        %2477 = vmax.xlane.f32.xlu0 %v2456
        %v2478 = vpop.xlane.xlu0 %2477
        %2479 = vmax.xlane.f32.xlu0 %v2457
        %v2480 = vpop.xlane.xlu0 %2479
        %2481 = vmax.xlane.f32.xlu0 %v2458
        %v2482 = vpop.xlane.xlu0 %2481
        %2483 = vmax.xlane.f32.xlu0 %v2459
        %v2484 = vpop.xlane.xlu0 %2483
        %2485 = vmax.xlane.f32.xlu0 %v2460
        %v2486 = vpop.xlane.xlu0 %2485
        %2487 = vmax.xlane.f32.xlu0 %v2461
        %v2488 = vpop.xlane.xlu0 %2487
        %2489 = vmax.xlane.f32.xlu0 %v2462
        %v2490 = vpop.xlane.xlu0 %2489
        %2491 = vmax.xlane.f32.xlu0 %v2463
        %v2492 = vpop.xlane.xlu0 %2491
        %2493 = vmax.xlane.f32.xlu0 %v2464
        %v2494 = vpop.xlane.xlu0 %2493
        %2495 = vmax.xlane.f32.xlu0 %v2465
        %v2496 = vpop.xlane.xlu0 %2495
        %2497 = vmax.xlane.f32.xlu0 %v2466
        %v2498 = vpop.xlane.xlu0 %2497
        %v2499 = vsub.f32 %v2451, %v2468
        %v2500 = vsub.f32 %v2452, %v2470
        %v2501 = vsub.f32 %v2453, %v2472
        %v2502 = vsub.f32 %v2454, %v2474
        %v2503 = vsub.f32 %v2455, %v2476
        %v2504 = vsub.f32 %v2456, %v2478
        %v2505 = vsub.f32 %v2457, %v2480
        %v2506 = vsub.f32 %v2458, %v2482
        %v2507 = vsub.f32 %v2459, %v2484
        %v2508 = vsub.f32 %v2460, %v2486
        %v2509 = vsub.f32 %v2461, %v2488
        %v2510 = vsub.f32 %v2462, %v2490
        %v2511 = vsub.f32 %v2463, %v2492
        %v2512 = vsub.f32 %v2464, %v2494
        %v2513 = vsub.f32 %v2465, %v2496
        %v2514 = vsub.f32 %v2466, %v2498
        %v2515 = vmul.f32 %v2499, 1.442695
        %v2516 = vpow.pop %v2515
        %v2517 = vmul.f32 %v2500, 1.442695
        %v2518 = vpow.pop %v2517
        %v2519 = vmul.f32 %v2501, 1.442695
        %v2520 = vpow.pop %v2519
        %v2521 = vmul.f32 %v2502, 1.442695
        %v2522 = vpow.pop %v2521
        %v2523 = vmul.f32 %v2503, 1.442695
        %v2524 = vpow.pop %v2523
        %v2525 = vmul.f32 %v2504, 1.442695
        %v2526 = vpow.pop %v2525
        %v2527 = vmul.f32 %v2505, 1.442695
        %v2528 = vpow.pop %v2527
        %v2529 = vmul.f32 %v2506, 1.442695
        %v2530 = vpow.pop %v2529
        %v2531 = vmul.f32 %v2507, 1.442695
        %v2532 = vpow.pop %v2531
        %v2533 = vmul.f32 %v2508, 1.442695
        %v2534 = vpow.pop %v2533
        %v2535 = vmul.f32 %v2509, 1.442695
        %v2536 = vpow.pop %v2535
        %v2537 = vmul.f32 %v2510, 1.442695
        %v2538 = vpow.pop %v2537
        %v2539 = vmul.f32 %v2511, 1.442695
        %v2540 = vpow.pop %v2539
        %v2541 = vmul.f32 %v2512, 1.442695
        %v2542 = vpow.pop %v2541
        %v2543 = vmul.f32 %v2513, 1.442695
        %v2544 = vpow.pop %v2543
        %v2545 = vmul.f32 %v2514, 1.442695
        %v2546 = vpow.pop %v2545
        %2547 = vadd.xlane.f32.xlu0 %v2516
        %v2548 = vpop.xlane.xlu0 %2547
        %2549 = vadd.xlane.f32.xlu0 %v2518
        %v2550 = vpop.xlane.xlu0 %2549
        %2551 = vadd.xlane.f32.xlu0 %v2520
        %v2552 = vpop.xlane.xlu0 %2551
        %2553 = vadd.xlane.f32.xlu0 %v2522
        %v2554 = vpop.xlane.xlu0 %2553
        %2555 = vadd.xlane.f32.xlu0 %v2524
        %v2556 = vpop.xlane.xlu0 %2555
        %2557 = vadd.xlane.f32.xlu0 %v2526
        %v2558 = vpop.xlane.xlu0 %2557
        %2559 = vadd.xlane.f32.xlu0 %v2528
        %v2560 = vpop.xlane.xlu0 %2559
        %2561 = vadd.xlane.f32.xlu0 %v2530
        %v2562 = vpop.xlane.xlu0 %2561
        %2563 = vadd.xlane.f32.xlu0 %v2532
        %v2564 = vpop.xlane.xlu0 %2563
        %2565 = vadd.xlane.f32.xlu0 %v2534
        %v2566 = vpop.xlane.xlu0 %2565
        %2567 = vadd.xlane.f32.xlu0 %v2536
        %v2568 = vpop.xlane.xlu0 %2567
        %2569 = vadd.xlane.f32.xlu0 %v2538
        %v2570 = vpop.xlane.xlu0 %2569
        %2571 = vadd.xlane.f32.xlu0 %v2540
        %v2572 = vpop.xlane.xlu0 %2571
        %2573 = vadd.xlane.f32.xlu0 %v2542
        %v2574 = vpop.xlane.xlu0 %2573
        %2575 = vadd.xlane.f32.xlu0 %v2544
        %v2576 = vpop.xlane.xlu0 %2575
        %2577 = vadd.xlane.f32.xlu0 %v2546
        %v2578 = vpop.xlane.xlu0 %2577
        %v2579 = vpack.c.bf16 %v2518, %v2516
        %v2580 = vpack.c.bf16 %v2522, %v2520
        %v2581 = vpack.c.bf16 %v2526, %v2524
        %v2582 = vpack.c.bf16 %v2530, %v2528
        %v2583 = vpack.c.bf16 %v2534, %v2532
        %v2584 = vpack.c.bf16 %v2538, %v2536
        %v2585 = vpack.c.bf16 %v2542, %v2540
        %v2586 = vpack.c.bf16 %v2546, %v2544
        %2595 = vrot.lane.b32.xlu0 %v2250, 96
        %v2596 = vpop.permute.xlu0 %2595
        %2597 = vrot.lane.b32.xlu0 %v2251, 96
        %v2598 = vpop.permute.xlu0 %2597
        %2599 = vrot.lane.b32.xlu0 %v2252, 96
        %v2600 = vpop.permute.xlu0 %2599
        %2601 = vrot.lane.b32.xlu0 %v2253, 96
        %v2602 = vpop.permute.xlu0 %2601
        %2603 = vrot.lane.b32.xlu0 %v2254, 96
        %v2604 = vpop.permute.xlu0 %2603
        %2605 = vrot.lane.b32.xlu0 %v2255, 96
        %v2606 = vpop.permute.xlu0 %2605
        %2607 = vrot.lane.b32.xlu0 %v2256, 96
        %v2608 = vpop.permute.xlu0 %2607
        %2609 = vrot.lane.b32.xlu0 %v2257, 96
        %v2610 = vpop.permute.xlu0 %2609
        %2619 = vmatprep.subr.bf16.mxu0 0
        %2620 = vmatpush1.bf16.msra.mxu0 %v2596
        %2621 = vmatprep.subr.bf16.mxu0 0
        %2622 = vmatpush1.bf16.msra.mxu0 %v2598
        %2623 = vmatprep.subr.bf16.mxu0 0
        %2624 = vmatpush1.bf16.msra.mxu0 %v2600
        %2625 = vmatprep.subr.bf16.mxu0 0
        %2626 = vmatpush1.bf16.msra.mxu0 %v2602
        %2627 = vmatprep.subr.bf16.mxu0 0
        %2628 = vmatpush1.bf16.msra.mxu0 %v2604
        %2629 = vmatprep.subr.bf16.mxu0 0
        %2630 = vmatpush1.bf16.msra.mxu0 %v2606
        %2631 = vmatprep.subr.bf16.mxu0 0
        %2632 = vmatpush1.bf16.msra.mxu0 %v2608
        %2633 = vmatprep.subr.bf16.mxu0 0
        %2634 = vmatpush1.bf16.msra.mxu0 %v2610
        %2635 = vmatprep.subr.bf16.mxu0 0
        %2636 = vmatpush1.bf16.msra.mxu0 0
        %2637 = vmatprep.subr.bf16.mxu0 0
        %2638 = vmatpush1.bf16.msra.mxu0 0
        %2639 = vmatprep.subr.bf16.mxu0 0
        %2640 = vmatpush1.bf16.msra.mxu0 0
        %2641 = vmatprep.subr.bf16.mxu0 0
        %2642 = vmatpush1.bf16.msra.mxu0 0
        %2643 = vmatprep.subr.bf16.mxu0 0
        %2644 = vmatpush1.bf16.msra.mxu0 0
        %2645 = vmatprep.subr.bf16.mxu0 0
        %2646 = vmatpush1.bf16.msra.mxu0 0
        %2647 = vmatprep.subr.bf16.mxu0 0
        %2648 = vmatpush1.bf16.msra.mxu0 0
        %2649 = vmatprep.subr.bf16.mxu0 0
        %2650 = vmatpush1.bf16.msra.mxu0 0
        %2651 = vmatprep.mubr.bf16.mxu0 0
        %2652 = vmatmul.mubr.bf16.gmra.mrb[0].mxu0 %v2579
        %v2653 = vpop.f32.mrb[0].mxu0
        %v2654 = vadd.f32 0.0, %v2653
        %v2655 = vpop.f32.mrb[0].mxu0
        %v2656 = vpop.f32.mrb[0].mxu0
        %v2657 = vadd.f32 0.0, %v2656
        %v2658 = vpop.f32.mrb[0].mxu0
        %2659 = vmatprep.mubr.bf16.mxu0 0
        %2660 = vmatmul.mubr.bf16.gmra.mrb[0].mxu0 %v2580
        %v2661 = vpop.f32.mrb[0].mxu0
        %v2662 = vadd.f32 0.0, %v2661
        %v2663 = vpop.f32.mrb[0].mxu0
        %v2664 = vpop.f32.mrb[0].mxu0
        %v2665 = vadd.f32 0.0, %v2664
        %v2666 = vpop.f32.mrb[0].mxu0
        %2667 = vmatprep.mubr.bf16.mxu0 0
        %2668 = vmatmul.mubr.bf16.gmra.mrb[0].mxu0 %v2581
        %v2669 = vpop.f32.mrb[0].mxu0
        %v2670 = vadd.f32 0.0, %v2669
        %v2671 = vpop.f32.mrb[0].mxu0
        %v2672 = vpop.f32.mrb[0].mxu0
        %v2673 = vadd.f32 0.0, %v2672
        %v2674 = vpop.f32.mrb[0].mxu0
        %2675 = vmatprep.mubr.bf16.mxu0 0
        %2676 = vmatmul.mubr.bf16.gmra.mrb[0].mxu0 %v2582
        %v2677 = vpop.f32.mrb[0].mxu0
        %v2678 = vadd.f32 0.0, %v2677
        %v2679 = vpop.f32.mrb[0].mxu0
        %v2680 = vpop.f32.mrb[0].mxu0
        %v2681 = vadd.f32 0.0, %v2680
        %v2682 = vpop.f32.mrb[0].mxu0
        %2683 = vmatprep.mubr.bf16.mxu0 0
        %2684 = vmatmul.mubr.bf16.gmra.mrb[0].mxu0 %v2583
        %v2685 = vpop.f32.mrb[0].mxu0
        %v2686 = vadd.f32 0.0, %v2685
        %v2687 = vpop.f32.mrb[0].mxu0
        %v2688 = vpop.f32.mrb[0].mxu0
        %v2689 = vadd.f32 0.0, %v2688
        %v2690 = vpop.f32.mrb[0].mxu0
        %2691 = vmatprep.mubr.bf16.mxu0 0
        %2692 = vmatmul.mubr.bf16.gmra.mrb[0].mxu0 %v2584
        %v2693 = vpop.f32.mrb[0].mxu0
        %v2694 = vadd.f32 0.0, %v2693
        %v2695 = vpop.f32.mrb[0].mxu0
        %v2696 = vpop.f32.mrb[0].mxu0
        %v2697 = vadd.f32 0.0, %v2696
        %v2698 = vpop.f32.mrb[0].mxu0
        %2699 = vmatprep.mubr.bf16.mxu0 0
        %2700 = vmatmul.mubr.bf16.gmra.mrb[0].mxu0 %v2585
        %v2701 = vpop.f32.mrb[0].mxu0
        %v2702 = vadd.f32 0.0, %v2701
        %v2703 = vpop.f32.mrb[0].mxu0
        %v2704 = vpop.f32.mrb[0].mxu0
        %v2705 = vadd.f32 0.0, %v2704
        %v2706 = vpop.f32.mrb[0].mxu0
        %2707 = vmatprep.mubr.bf16.mxu0 0
        %2708 = vmatmul.mubr.bf16.gmra.mrb[0].mxu0 %v2586
        %v2709 = vpop.f32.mrb[0].mxu0
        %v2710 = vadd.f32 0.0, %v2709
        %v2711 = vpop.f32.mrb[0].mxu0
        %v2712 = vpop.f32.mrb[0].mxu0
        %v2713 = vadd.f32 0.0, %v2712
        %v2714 = vpop.f32.mrb[0].mxu0
        %2715 = vdwg.mxu0
        %v2716 = vrcp.pop %v2548
        %v2717 = vrcp.pop %v2550
        %v2718 = vrcp.pop %v2552
        %v2719 = vrcp.pop %v2554
        %v2720 = vrcp.pop %v2556
        %v2721 = vrcp.pop %v2558
        %v2722 = vrcp.pop %v2560
        %v2723 = vrcp.pop %v2562
        %v2724 = vrcp.pop %v2564
        %v2725 = vrcp.pop %v2566
        %v2726 = vrcp.pop %v2568
        %v2727 = vrcp.pop %v2570
        %v2728 = vrcp.pop %v2572
        %v2729 = vrcp.pop %v2574
        %v2730 = vrcp.pop %v2576
        %v2731 = vrcp.pop %v2578
        %v2732 = vmul.f32 %v2654, %v2716
        %v2733 = vmul.f32 %v2657, %v2717
        %v2734 = vmul.f32 %v2662, %v2718
        %v2735 = vmul.f32 %v2665, %v2719
        %v2736 = vmul.f32 %v2670, %v2720
        %v2737 = vmul.f32 %v2673, %v2721
        %v2738 = vmul.f32 %v2678, %v2722
        %v2739 = vmul.f32 %v2681, %v2723
        %v2740 = vmul.f32 %v2686, %v2724
        %v2741 = vmul.f32 %v2689, %v2725
        %v2742 = vmul.f32 %v2694, %v2726
        %v2743 = vmul.f32 %v2697, %v2727
        %v2744 = vmul.f32 %v2702, %v2728
        %v2745 = vmul.f32 %v2705, %v2729
        %v2746 = vmul.f32 %v2710, %v2730
        %v2747 = vmul.f32 %v2713, %v2731
        %2764 = vrot.lane.b32.xlu0 %v2732, 32
        %v2765 = vpop.permute.xlu0 %2764
        %2766 = vrot.lane.b32.xlu0 %v2733, 32
        %v2767 = vpop.permute.xlu0 %2766
        %2768 = vrot.lane.b32.xlu0 %v2734, 32
        %v2769 = vpop.permute.xlu0 %2768
        %2770 = vrot.lane.b32.xlu0 %v2735, 32
        %v2771 = vpop.permute.xlu0 %2770
        %2772 = vrot.lane.b32.xlu0 %v2736, 32
        %v2773 = vpop.permute.xlu0 %2772
        %2774 = vrot.lane.b32.xlu0 %v2737, 32
        %v2775 = vpop.permute.xlu0 %2774
        %2776 = vrot.lane.b32.xlu0 %v2738, 32
        %v2777 = vpop.permute.xlu0 %2776
        %2778 = vrot.lane.b32.xlu0 %v2739, 32
        %v2779 = vpop.permute.xlu0 %2778
        %2780 = vrot.lane.b32.xlu0 %v2740, 32
        %v2781 = vpop.permute.xlu0 %2780
        %2782 = vrot.lane.b32.xlu0 %v2741, 32
        %v2783 = vpop.permute.xlu0 %2782
        %2784 = vrot.lane.b32.xlu0 %v2742, 32
        %v2785 = vpop.permute.xlu0 %2784
        %2786 = vrot.lane.b32.xlu0 %v2743, 32
        %v2787 = vpop.permute.xlu0 %2786
        %2788 = vrot.lane.b32.xlu0 %v2744, 32
        %v2789 = vpop.permute.xlu0 %2788
        %2790 = vrot.lane.b32.xlu0 %v2745, 32
        %v2791 = vpop.permute.xlu0 %2790
        %2792 = vrot.lane.b32.xlu0 %v2746, 32
        %v2793 = vpop.permute.xlu0 %2792
        %2794 = vrot.lane.b32.xlu0 %v2747, 32
        %v2795 = vpop.permute.xlu0 %2794
        %vm2812 = vcmask 523520
        %2813 = vst.msk [vmem:[#allocation3] sm:$0xff] %vm2812, %v2765
        %2814 = vst.msk [vmem:[#allocation3 + $0x8] sm:$0xff] %vm2812, %v2767
        %2815 = vst.msk [vmem:[#allocation3 + $0x10] sm:$0xff] %vm2812, %v2769
        %2816 = vst.msk [vmem:[#allocation3 + $0x18] sm:$0xff] %vm2812, %v2771
        %2817 = vst.msk [vmem:[#allocation3 + $0x20] sm:$0xff] %vm2812, %v2773
        %2818 = vst.msk [vmem:[#allocation3 + $0x28] sm:$0xff] %vm2812, %v2775
        %2819 = vst.msk [vmem:[#allocation3 + $0x30] sm:$0xff] %vm2812, %v2777
        %2820 = vst.msk [vmem:[#allocation3 + $0x38] sm:$0xff] %vm2812, %v2779
        %2821 = vst.msk [vmem:[#allocation3 + $0x40] sm:$0xff] %vm2812, %v2781
        %2822 = vst.msk [vmem:[#allocation3 + $0x48] sm:$0xff] %vm2812, %v2783
        %2823 = vst.msk [vmem:[#allocation3 + $0x50] sm:$0xff] %vm2812, %v2785
        %2824 = vst.msk [vmem:[#allocation3 + $0x58] sm:$0xff] %vm2812, %v2787
        %2825 = vst.msk [vmem:[#allocation3 + $0x60] sm:$0xff] %vm2812, %v2789
        %2826 = vst.msk [vmem:[#allocation3 + $0x68] sm:$0xff] %vm2812, %v2791
        %2827 = vst.msk [vmem:[#allocation3 + $0x70] sm:$0xff] %vm2812, %v2793
        %2828 = vst.msk [vmem:[#allocation3 + $0x78] sm:$0xff] %vm2812, %v2795
        %v2829 = vld [vmem:[#allocation2] sm:$0xff]
        %v2830 = vld [vmem:[#allocation2 + $0x18] sm:$0xff]
        %v2831 = vld [vmem:[#allocation2 + $0x30] sm:$0xff]
        %v2832 = vld [vmem:[#allocation2 + $0x48] sm:$0xff]
        %v2833 = vld [vmem:[#allocation2 + $0x60] sm:$0xff]
        %v2834 = vld [vmem:[#allocation2 + $0x78] sm:$0xff]
        %v2835 = vld [vmem:[#allocation2 + $0x90] sm:$0xff]
        %v2836 = vld [vmem:[#allocation2 + $0xa8] sm:$0xff]
        %v2837 = vld [vmem:[#allocation2 + $0xc0] sm:$0xff]
        %v2838 = vld [vmem:[#allocation2 + $0xd8] sm:$0xff]
        %v2839 = vld [vmem:[#allocation2 + $0xf0] sm:$0xff]
        %v2840 = vld [vmem:[#allocation2 + $0x108] sm:$0xff]
        %v2841 = vld [vmem:[#allocation2 + $0x120] sm:$0xff]
        %v2842 = vld [vmem:[#allocation2 + $0x138] sm:$0xff]
        %v2843 = vld [vmem:[#allocation2 + $0x150] sm:$0xff]
        %v2844 = vld [vmem:[#allocation2 + $0x168] sm:$0xff]
        %v2845 = vpack.c.bf16 %v2830, %v2829
        %v2846 = vpack.c.bf16 %v2832, %v2831
        %v2847 = vpack.c.bf16 %v2834, %v2833
        %v2848 = vpack.c.bf16 %v2836, %v2835
        %v2849 = vpack.c.bf16 %v2838, %v2837
        %v2850 = vpack.c.bf16 %v2840, %v2839
        %v2851 = vpack.c.bf16 %v2842, %v2841
        %v2852 = vpack.c.bf16 %v2844, %v2843
        %v2853 = vld [vmem:[#allocation2 + $0x8] sm:$0xff]
        %v2854 = vld [vmem:[#allocation2 + $0x20] sm:$0xff]
        %v2855 = vld [vmem:[#allocation2 + $0x38] sm:$0xff]
        %v2856 = vld [vmem:[#allocation2 + $0x50] sm:$0xff]
        %v2857 = vld [vmem:[#allocation2 + $0x68] sm:$0xff]
        %v2858 = vld [vmem:[#allocation2 + $0x80] sm:$0xff]
        %v2859 = vld [vmem:[#allocation2 + $0x98] sm:$0xff]
        %v2860 = vld [vmem:[#allocation2 + $0xb0] sm:$0xff]
        %v2861 = vld [vmem:[#allocation2 + $0xc8] sm:$0xff]
        %v2862 = vld [vmem:[#allocation2 + $0xe0] sm:$0xff]
        %v2863 = vld [vmem:[#allocation2 + $0xf8] sm:$0xff]
        %v2864 = vld [vmem:[#allocation2 + $0x110] sm:$0xff]
        %v2865 = vld [vmem:[#allocation2 + $0x128] sm:$0xff]
        %v2866 = vld [vmem:[#allocation2 + $0x140] sm:$0xff]
        %v2867 = vld [vmem:[#allocation2 + $0x158] sm:$0xff]
        %v2868 = vld [vmem:[#allocation2 + $0x170] sm:$0xff]
        %v2869 = vpack.c.bf16 %v2854, %v2853
        %v2870 = vpack.c.bf16 %v2856, %v2855
        %v2871 = vpack.c.bf16 %v2858, %v2857
        %v2872 = vpack.c.bf16 %v2860, %v2859
        %v2873 = vpack.c.bf16 %v2862, %v2861
        %v2874 = vpack.c.bf16 %v2864, %v2863
        %v2875 = vpack.c.bf16 %v2866, %v2865
        %v2876 = vpack.c.bf16 %v2868, %v2867
        %v2877 = vld [vmem:[#allocation2 + $0x10] sm:$0xff]
        %v2878 = vld [vmem:[#allocation2 + $0x28] sm:$0xff]
        %v2879 = vld [vmem:[#allocation2 + $0x40] sm:$0xff]
        %v2880 = vld [vmem:[#allocation2 + $0x58] sm:$0xff]
        %v2881 = vld [vmem:[#allocation2 + $0x70] sm:$0xff]
        %v2882 = vld [vmem:[#allocation2 + $0x88] sm:$0xff]
        %v2883 = vld [vmem:[#allocation2 + $0xa0] sm:$0xff]
        %v2884 = vld [vmem:[#allocation2 + $0xb8] sm:$0xff]
        %v2885 = vld [vmem:[#allocation2 + $0xd0] sm:$0xff]
        %v2886 = vld [vmem:[#allocation2 + $0xe8] sm:$0xff]
        %v2887 = vld [vmem:[#allocation2 + $0x100] sm:$0xff]
        %v2888 = vld [vmem:[#allocation2 + $0x118] sm:$0xff]
        %v2889 = vld [vmem:[#allocation2 + $0x130] sm:$0xff]
        %v2890 = vld [vmem:[#allocation2 + $0x148] sm:$0xff]
        %v2891 = vld [vmem:[#allocation2 + $0x160] sm:$0xff]
        %v2892 = vld [vmem:[#allocation2 + $0x178] sm:$0xff]
        %v2893 = vpack.c.bf16 %v2878, %v2877
        %v2894 = vpack.c.bf16 %v2880, %v2879
        %v2895 = vpack.c.bf16 %v2882, %v2881
        %v2896 = vpack.c.bf16 %v2884, %v2883
        %v2897 = vpack.c.bf16 %v2886, %v2885
        %v2898 = vpack.c.bf16 %v2888, %v2887
        %v2899 = vpack.c.bf16 %v2890, %v2889
        %v2900 = vpack.c.bf16 %v2892, %v2891
        %2909 = vrot.lane.b32.xlu0 %v2845, 64
        %v2910 = vpop.permute.xlu0 %2909
        %2911 = vrot.lane.b32.xlu0 %v2846, 64
        %v2912 = vpop.permute.xlu0 %2911
        %2913 = vrot.lane.b32.xlu0 %v2847, 64
        %v2914 = vpop.permute.xlu0 %2913
        %2915 = vrot.lane.b32.xlu0 %v2848, 64
        %v2916 = vpop.permute.xlu0 %2915
        %2917 = vrot.lane.b32.xlu0 %v2849, 64
        %v2918 = vpop.permute.xlu0 %2917
        %2919 = vrot.lane.b32.xlu0 %v2850, 64
        %v2920 = vpop.permute.xlu0 %2919
        %2921 = vrot.lane.b32.xlu0 %v2851, 64
        %v2922 = vpop.permute.xlu0 %2921
        %2923 = vrot.lane.b32.xlu0 %v2852, 64
        %v2924 = vpop.permute.xlu0 %2923
        %2933 = vrot.lane.b32.xlu0 %v2869, 64
        %v2934 = vpop.permute.xlu0 %2933
        %2935 = vrot.lane.b32.xlu0 %v2870, 64
        %v2936 = vpop.permute.xlu0 %2935
        %2937 = vrot.lane.b32.xlu0 %v2871, 64
        %v2938 = vpop.permute.xlu0 %2937
        %2939 = vrot.lane.b32.xlu0 %v2872, 64
        %v2940 = vpop.permute.xlu0 %2939
        %2941 = vrot.lane.b32.xlu0 %v2873, 64
        %v2942 = vpop.permute.xlu0 %2941
        %2943 = vrot.lane.b32.xlu0 %v2874, 64
        %v2944 = vpop.permute.xlu0 %2943
        %2945 = vrot.lane.b32.xlu0 %v2875, 64
        %v2946 = vpop.permute.xlu0 %2945
        %2947 = vrot.lane.b32.xlu0 %v2876, 64
        %v2948 = vpop.permute.xlu0 %2947
        %v2950 = vsel %vm1759, %v2910, 0
        %v2953 = vsel %vm1759, %v2912, 0
        %v2956 = vsel %vm1759, %v2914, 0
        %v2959 = vsel %vm1759, %v2916, 0
        %v2962 = vsel %vm1759, %v2918, 0
        %v2965 = vsel %vm1759, %v2920, 0
        %v2968 = vsel %vm1759, %v2922, 0
        %v2971 = vsel %vm1759, %v2924, 0
        %v2974 = vsel %vm1759, %v2934, 0
        %v2977 = vsel %vm1759, %v2936, 0
        %v2980 = vsel %vm1759, %v2938, 0
        %v2983 = vsel %vm1759, %v2940, 0
        %v2986 = vsel %vm1759, %v2942, 0
        %v2989 = vsel %vm1759, %v2944, 0
        %v2992 = vsel %vm1759, %v2946, 0
        %v2995 = vsel %vm1759, %v2948, 0
        %2997 = vmatprep.subr.bf16.mxu0 0
        %2998 = vmatpush1.bf16.xpose.msra.mxu0 %v2974
        %2999 = vmatprep.subr.bf16.mxu0 0
        %3000 = vmatpush1.bf16.xpose.msra.mxu0 %v2977
        %3001 = vmatprep.subr.bf16.mxu0 0
        %3002 = vmatpush1.bf16.xpose.msra.mxu0 %v2980
        %3003 = vmatprep.subr.bf16.mxu0 0
        %3004 = vmatpush1.bf16.xpose.msra.mxu0 %v2983
        %3005 = vmatprep.subr.bf16.mxu0 0
        %3006 = vmatpush1.bf16.xpose.msra.mxu0 %v2986
        %3007 = vmatprep.subr.bf16.mxu0 0
        %3008 = vmatpush1.bf16.xpose.msra.mxu0 %v2989
        %3009 = vmatprep.subr.bf16.mxu0 0
        %3010 = vmatpush1.bf16.xpose.msra.mxu0 %v2992
        %3011 = vmatprep.subr.bf16.mxu0 0
        %3012 = vmatpush1.bf16.xpose.msra.mxu0 %v2995
        %3013 = vmatprep.subr.bf16.mxu0 0
        %3014 = vmatpush1.bf16.xpose.msra.mxu0 0
        %3015 = vmatprep.subr.bf16.mxu0 0
        %3016 = vmatpush1.bf16.xpose.msra.mxu0 0
        %3017 = vmatprep.subr.bf16.mxu0 0
        %3018 = vmatpush1.bf16.xpose.msra.mxu0 0
        %3019 = vmatprep.subr.bf16.mxu0 0
        %3020 = vmatpush1.bf16.xpose.msra.mxu0 0
        %3021 = vmatprep.subr.bf16.mxu0 0
        %3022 = vmatpush1.bf16.xpose.msra.mxu0 0
        %3023 = vmatprep.subr.bf16.mxu0 0
        %3024 = vmatpush1.bf16.xpose.msra.mxu0 0
        %3025 = vmatprep.subr.bf16.mxu0 0
        %3026 = vmatpush1.bf16.xpose.msra.mxu0 0
        %3027 = vmatprep.subr.bf16.mxu0 0
        %3028 = vmatpush1.bf16.xpose.msra.mxu0 0
        %3029 = vmatprep.mubr.bf16.mxu0 0
        %3030 = vmatmul.mubr.bf16.gmra.mrb[0].mxu0 %v2950
        %v3031 = vpop.f32.mrb[0].mxu0
        %v3032 = vadd.f32 0.0, %v3031
        %v3033 = vpop.f32.mrb[0].mxu0
        %v3034 = vpop.f32.mrb[0].mxu0
        %v3035 = vadd.f32 0.0, %v3034
        %v3036 = vpop.f32.mrb[0].mxu0
        %3037 = vmatprep.mubr.bf16.mxu0 0
        %3038 = vmatmul.mubr.bf16.gmra.mrb[0].mxu0 %v2953
        %v3039 = vpop.f32.mrb[0].mxu0
        %v3040 = vadd.f32 0.0, %v3039
        %v3041 = vpop.f32.mrb[0].mxu0
        %v3042 = vpop.f32.mrb[0].mxu0
        %v3043 = vadd.f32 0.0, %v3042
        %v3044 = vpop.f32.mrb[0].mxu0
        %3045 = vmatprep.mubr.bf16.mxu0 0
        %3046 = vmatmul.mubr.bf16.gmra.mrb[0].mxu0 %v2956
        %v3047 = vpop.f32.mrb[0].mxu0
        %v3048 = vadd.f32 0.0, %v3047
        %v3049 = vpop.f32.mrb[0].mxu0
        %v3050 = vpop.f32.mrb[0].mxu0
        %v3051 = vadd.f32 0.0, %v3050
        %v3052 = vpop.f32.mrb[0].mxu0
        %3053 = vmatprep.mubr.bf16.mxu0 0
        %3054 = vmatmul.mubr.bf16.gmra.mrb[0].mxu0 %v2959
        %v3055 = vpop.f32.mrb[0].mxu0
        %v3056 = vadd.f32 0.0, %v3055
        %v3057 = vpop.f32.mrb[0].mxu0
        %v3058 = vpop.f32.mrb[0].mxu0
        %v3059 = vadd.f32 0.0, %v3058
        %v3060 = vpop.f32.mrb[0].mxu0
        %3061 = vmatprep.mubr.bf16.mxu0 0
        %3062 = vmatmul.mubr.bf16.gmra.mrb[0].mxu0 %v2962
        %v3063 = vpop.f32.mrb[0].mxu0
        %v3064 = vadd.f32 0.0, %v3063
        %v3065 = vpop.f32.mrb[0].mxu0
        %v3066 = vpop.f32.mrb[0].mxu0
        %v3067 = vadd.f32 0.0, %v3066
        %v3068 = vpop.f32.mrb[0].mxu0
        %3069 = vmatprep.mubr.bf16.mxu0 0
        %3070 = vmatmul.mubr.bf16.gmra.mrb[0].mxu0 %v2965
        %v3071 = vpop.f32.mrb[0].mxu0
        %v3072 = vadd.f32 0.0, %v3071
        %v3073 = vpop.f32.mrb[0].mxu0
        %v3074 = vpop.f32.mrb[0].mxu0
        %v3075 = vadd.f32 0.0, %v3074
        %v3076 = vpop.f32.mrb[0].mxu0
        %3077 = vmatprep.mubr.bf16.mxu0 0
        %3078 = vmatmul.mubr.bf16.gmra.mrb[0].mxu0 %v2968
        %v3079 = vpop.f32.mrb[0].mxu0
        %v3080 = vadd.f32 0.0, %v3079
        %v3081 = vpop.f32.mrb[0].mxu0
        %v3082 = vpop.f32.mrb[0].mxu0
        %v3083 = vadd.f32 0.0, %v3082
        %v3084 = vpop.f32.mrb[0].mxu0
        %3085 = vmatprep.mubr.bf16.mxu0 0
        %3086 = vmatmul.mubr.bf16.gmra.mrb[0].mxu0 %v2971
        %v3087 = vpop.f32.mrb[0].mxu0
        %v3088 = vadd.f32 0.0, %v3087
        %v3089 = vpop.f32.mrb[0].mxu0
        %v3090 = vpop.f32.mrb[0].mxu0
        %v3091 = vadd.f32 0.0, %v3090
        %v3092 = vpop.f32.mrb[0].mxu0
        %3093 = vdwg.mxu0
        %v3094 = vsel %vm1671, %v3032, -1e+30
        %v3095 = vsel %vm1672, %v3035, -1e+30
        %v3096 = vsel %vm1673, %v3040, -1e+30
        %v3097 = vsel %vm1674, %v3043, -1e+30
        %v3098 = vsel %vm1675, %v3048, -1e+30
        %v3099 = vsel %vm1676, %v3051, -1e+30
        %v3100 = vsel %vm1677, %v3056, -1e+30
        %v3101 = vsel %vm1678, %v3059, -1e+30
        %v3102 = vsel %vm1679, %v3064, -1e+30
        %v3103 = vsel %vm1680, %v3067, -1e+30
        %v3104 = vsel %vm1681, %v3072, -1e+30
        %v3105 = vsel %vm1682, %v3075, -1e+30
        %v3106 = vsel %vm1683, %v3080, -1e+30
        %v3107 = vsel %vm1684, %v3083, -1e+30
        %v3108 = vsel %vm1685, %v3088, -1e+30
        %v3109 = vsel %vm1686, %v3091, -1e+30
        %3110 = vmax.xlane.f32.xlu0 %v3094
        %v3111 = vpop.xlane.xlu0 %3110
        %3112 = vmax.xlane.f32.xlu0 %v3095
        %v3113 = vpop.xlane.xlu0 %3112
        %3114 = vmax.xlane.f32.xlu0 %v3096
        %v3115 = vpop.xlane.xlu0 %3114
        %3116 = vmax.xlane.f32.xlu0 %v3097
        %v3117 = vpop.xlane.xlu0 %3116
        %3118 = vmax.xlane.f32.xlu0 %v3098
        %v3119 = vpop.xlane.xlu0 %3118
        %3120 = vmax.xlane.f32.xlu0 %v3099
        %v3121 = vpop.xlane.xlu0 %3120
        %3122 = vmax.xlane.f32.xlu0 %v3100
        %v3123 = vpop.xlane.xlu0 %3122
        %3124 = vmax.xlane.f32.xlu0 %v3101
        %v3125 = vpop.xlane.xlu0 %3124
        %3126 = vmax.xlane.f32.xlu0 %v3102
        %v3127 = vpop.xlane.xlu0 %3126
        %3128 = vmax.xlane.f32.xlu0 %v3103
        %v3129 = vpop.xlane.xlu0 %3128
        %3130 = vmax.xlane.f32.xlu0 %v3104
        %v3131 = vpop.xlane.xlu0 %3130
        %3132 = vmax.xlane.f32.xlu0 %v3105
        %v3133 = vpop.xlane.xlu0 %3132
        %3134 = vmax.xlane.f32.xlu0 %v3106
        %v3135 = vpop.xlane.xlu0 %3134
        %3136 = vmax.xlane.f32.xlu0 %v3107
        %v3137 = vpop.xlane.xlu0 %3136
        %3138 = vmax.xlane.f32.xlu0 %v3108
        %v3139 = vpop.xlane.xlu0 %3138
        %3140 = vmax.xlane.f32.xlu0 %v3109
        %v3141 = vpop.xlane.xlu0 %3140
        %v3142 = vsub.f32 %v3094, %v3111
        %v3143 = vsub.f32 %v3095, %v3113
        %v3144 = vsub.f32 %v3096, %v3115
        %v3145 = vsub.f32 %v3097, %v3117
        %v3146 = vsub.f32 %v3098, %v3119
        %v3147 = vsub.f32 %v3099, %v3121
        %v3148 = vsub.f32 %v3100, %v3123
        %v3149 = vsub.f32 %v3101, %v3125
        %v3150 = vsub.f32 %v3102, %v3127
        %v3151 = vsub.f32 %v3103, %v3129
        %v3152 = vsub.f32 %v3104, %v3131
        %v3153 = vsub.f32 %v3105, %v3133
        %v3154 = vsub.f32 %v3106, %v3135
        %v3155 = vsub.f32 %v3107, %v3137
        %v3156 = vsub.f32 %v3108, %v3139
        %v3157 = vsub.f32 %v3109, %v3141
        %v3158 = vmul.f32 %v3142, 1.442695
        %v3159 = vpow.pop %v3158
        %v3160 = vmul.f32 %v3143, 1.442695
        %v3161 = vpow.pop %v3160
        %v3162 = vmul.f32 %v3144, 1.442695
        %v3163 = vpow.pop %v3162
        %v3164 = vmul.f32 %v3145, 1.442695
        %v3165 = vpow.pop %v3164
        %v3166 = vmul.f32 %v3146, 1.442695
        %v3167 = vpow.pop %v3166
        %v3168 = vmul.f32 %v3147, 1.442695
        %v3169 = vpow.pop %v3168
        %v3170 = vmul.f32 %v3148, 1.442695
        %v3171 = vpow.pop %v3170
        %v3172 = vmul.f32 %v3149, 1.442695
        %v3173 = vpow.pop %v3172
        %v3174 = vmul.f32 %v3150, 1.442695
        %v3175 = vpow.pop %v3174
        %v3176 = vmul.f32 %v3151, 1.442695
        %v3177 = vpow.pop %v3176
        %v3178 = vmul.f32 %v3152, 1.442695
        %v3179 = vpow.pop %v3178
        %v3180 = vmul.f32 %v3153, 1.442695
        %v3181 = vpow.pop %v3180
        %v3182 = vmul.f32 %v3154, 1.442695
        %v3183 = vpow.pop %v3182
        %v3184 = vmul.f32 %v3155, 1.442695
        %v3185 = vpow.pop %v3184
        %v3186 = vmul.f32 %v3156, 1.442695
        %v3187 = vpow.pop %v3186
        %v3188 = vmul.f32 %v3157, 1.442695
        %v3189 = vpow.pop %v3188
        %3190 = vadd.xlane.f32.xlu0 %v3159
        %v3191 = vpop.xlane.xlu0 %3190
        %3192 = vadd.xlane.f32.xlu0 %v3161
        %v3193 = vpop.xlane.xlu0 %3192
        %3194 = vadd.xlane.f32.xlu0 %v3163
        %v3195 = vpop.xlane.xlu0 %3194
        %3196 = vadd.xlane.f32.xlu0 %v3165
        %v3197 = vpop.xlane.xlu0 %3196
        %3198 = vadd.xlane.f32.xlu0 %v3167
        %v3199 = vpop.xlane.xlu0 %3198
        %3200 = vadd.xlane.f32.xlu0 %v3169
        %v3201 = vpop.xlane.xlu0 %3200
        %3202 = vadd.xlane.f32.xlu0 %v3171
        %v3203 = vpop.xlane.xlu0 %3202
        %3204 = vadd.xlane.f32.xlu0 %v3173
        %v3205 = vpop.xlane.xlu0 %3204
        %3206 = vadd.xlane.f32.xlu0 %v3175
        %v3207 = vpop.xlane.xlu0 %3206
        %3208 = vadd.xlane.f32.xlu0 %v3177
        %v3209 = vpop.xlane.xlu0 %3208
        %3210 = vadd.xlane.f32.xlu0 %v3179
        %v3211 = vpop.xlane.xlu0 %3210
        %3212 = vadd.xlane.f32.xlu0 %v3181
        %v3213 = vpop.xlane.xlu0 %3212
        %3214 = vadd.xlane.f32.xlu0 %v3183
        %v3215 = vpop.xlane.xlu0 %3214
        %3216 = vadd.xlane.f32.xlu0 %v3185
        %v3217 = vpop.xlane.xlu0 %3216
        %3218 = vadd.xlane.f32.xlu0 %v3187
        %v3219 = vpop.xlane.xlu0 %3218
        %3220 = vadd.xlane.f32.xlu0 %v3189
        %v3221 = vpop.xlane.xlu0 %3220
        %v3222 = vpack.c.bf16 %v3161, %v3159
        %v3223 = vpack.c.bf16 %v3165, %v3163
        %v3224 = vpack.c.bf16 %v3169, %v3167
        %v3225 = vpack.c.bf16 %v3173, %v3171
        %v3226 = vpack.c.bf16 %v3177, %v3175
        %v3227 = vpack.c.bf16 %v3181, %v3179
        %v3228 = vpack.c.bf16 %v3185, %v3183
        %v3229 = vpack.c.bf16 %v3189, %v3187
        %3238 = vrot.lane.b32.xlu0 %v2893, 64
        %v3239 = vpop.permute.xlu0 %3238
        %3240 = vrot.lane.b32.xlu0 %v2894, 64
        %v3241 = vpop.permute.xlu0 %3240
        %3242 = vrot.lane.b32.xlu0 %v2895, 64
        %v3243 = vpop.permute.xlu0 %3242
        %3244 = vrot.lane.b32.xlu0 %v2896, 64
        %v3245 = vpop.permute.xlu0 %3244
        %3246 = vrot.lane.b32.xlu0 %v2897, 64
        %v3247 = vpop.permute.xlu0 %3246
        %3248 = vrot.lane.b32.xlu0 %v2898, 64
        %v3249 = vpop.permute.xlu0 %3248
        %3250 = vrot.lane.b32.xlu0 %v2899, 64
        %v3251 = vpop.permute.xlu0 %3250
        %3252 = vrot.lane.b32.xlu0 %v2900, 64
        %v3253 = vpop.permute.xlu0 %3252
        %3262 = vmatprep.subr.bf16.mxu0 0
        %3263 = vmatpush1.bf16.msra.mxu0 %v3239
        %3264 = vmatprep.subr.bf16.mxu0 0
        %3265 = vmatpush1.bf16.msra.mxu0 %v3241
        %3266 = vmatprep.subr.bf16.mxu0 0
        %3267 = vmatpush1.bf16.msra.mxu0 %v3243
        %3268 = vmatprep.subr.bf16.mxu0 0
        %3269 = vmatpush1.bf16.msra.mxu0 %v3245
        %3270 = vmatprep.subr.bf16.mxu0 0
        %3271 = vmatpush1.bf16.msra.mxu0 %v3247
        %3272 = vmatprep.subr.bf16.mxu0 0
        %3273 = vmatpush1.bf16.msra.mxu0 %v3249
        %3274 = vmatprep.subr.bf16.mxu0 0
        %3275 = vmatpush1.bf16.msra.mxu0 %v3251
        %3276 = vmatprep.subr.bf16.mxu0 0
        %3277 = vmatpush1.bf16.msra.mxu0 %v3253
        %3278 = vmatprep.subr.bf16.mxu0 0
        %3279 = vmatpush1.bf16.msra.mxu0 0
        %3280 = vmatprep.subr.bf16.mxu0 0
        %3281 = vmatpush1.bf16.msra.mxu0 0
        %3282 = vmatprep.subr.bf16.mxu0 0
        %3283 = vmatpush1.bf16.msra.mxu0 0
        %3284 = vmatprep.subr.bf16.mxu0 0
        %3285 = vmatpush1.bf16.msra.mxu0 0
        %3286 = vmatprep.subr.bf16.mxu0 0
        %3287 = vmatpush1.bf16.msra.mxu0 0
        %3288 = vmatprep.subr.bf16.mxu0 0
        %3289 = vmatpush1.bf16.msra.mxu0 0
        %3290 = vmatprep.subr.bf16.mxu0 0
        %3291 = vmatpush1.bf16.msra.mxu0 0
        %3292 = vmatprep.subr.bf16.mxu0 0
        %3293 = vmatpush1.bf16.msra.mxu0 0
        %3294 = vmatprep.mubr.bf16.mxu0 0
        %3295 = vmatmul.mubr.bf16.gmra.mrb[0].mxu0 %v3222
        %v3296 = vpop.f32.mrb[0].mxu0
        %v3297 = vadd.f32 0.0, %v3296
        %v3298 = vpop.f32.mrb[0].mxu0
        %v3299 = vpop.f32.mrb[0].mxu0
        %v3300 = vadd.f32 0.0, %v3299
        %v3301 = vpop.f32.mrb[0].mxu0
        %3302 = vmatprep.mubr.bf16.mxu0 0
        %3303 = vmatmul.mubr.bf16.gmra.mrb[0].mxu0 %v3223
        %v3304 = vpop.f32.mrb[0].mxu0
        %v3305 = vadd.f32 0.0, %v3304
        %v3306 = vpop.f32.mrb[0].mxu0
        %v3307 = vpop.f32.mrb[0].mxu0
        %v3308 = vadd.f32 0.0, %v3307
        %v3309 = vpop.f32.mrb[0].mxu0
        %3310 = vmatprep.mubr.bf16.mxu0 0
        %3311 = vmatmul.mubr.bf16.gmra.mrb[0].mxu0 %v3224
        %v3312 = vpop.f32.mrb[0].mxu0
        %v3313 = vadd.f32 0.0, %v3312
        %v3314 = vpop.f32.mrb[0].mxu0
        %v3315 = vpop.f32.mrb[0].mxu0
        %v3316 = vadd.f32 0.0, %v3315
        %v3317 = vpop.f32.mrb[0].mxu0
        %3318 = vmatprep.mubr.bf16.mxu0 0
        %3319 = vmatmul.mubr.bf16.gmra.mrb[0].mxu0 %v3225
        %v3320 = vpop.f32.mrb[0].mxu0
        %v3321 = vadd.f32 0.0, %v3320
        %v3322 = vpop.f32.mrb[0].mxu0
        %v3323 = vpop.f32.mrb[0].mxu0
        %v3324 = vadd.f32 0.0, %v3323
        %v3325 = vpop.f32.mrb[0].mxu0
        %3326 = vmatprep.mubr.bf16.mxu0 0
        %3327 = vmatmul.mubr.bf16.gmra.mrb[0].mxu0 %v3226
        %v3328 = vpop.f32.mrb[0].mxu0
        %v3329 = vadd.f32 0.0, %v3328
        %v3330 = vpop.f32.mrb[0].mxu0
        %v3331 = vpop.f32.mrb[0].mxu0
        %v3332 = vadd.f32 0.0, %v3331
        %v3333 = vpop.f32.mrb[0].mxu0
        %3334 = vmatprep.mubr.bf16.mxu0 0
        %3335 = vmatmul.mubr.bf16.gmra.mrb[0].mxu0 %v3227
        %v3336 = vpop.f32.mrb[0].mxu0
        %v3337 = vadd.f32 0.0, %v3336
        %v3338 = vpop.f32.mrb[0].mxu0
        %v3339 = vpop.f32.mrb[0].mxu0
        %v3340 = vadd.f32 0.0, %v3339
        %v3341 = vpop.f32.mrb[0].mxu0
        %3342 = vmatprep.mubr.bf16.mxu0 0
        %3343 = vmatmul.mubr.bf16.gmra.mrb[0].mxu0 %v3228
        %v3344 = vpop.f32.mrb[0].mxu0
        %v3345 = vadd.f32 0.0, %v3344
        %v3346 = vpop.f32.mrb[0].mxu0
        %v3347 = vpop.f32.mrb[0].mxu0
        %v3348 = vadd.f32 0.0, %v3347
        %v3349 = vpop.f32.mrb[0].mxu0
        %3350 = vmatprep.mubr.bf16.mxu0 0
        %3351 = vmatmul.mubr.bf16.gmra.mrb[0].mxu0 %v3229
        %v3352 = vpop.f32.mrb[0].mxu0
        %v3353 = vadd.f32 0.0, %v3352
        %v3354 = vpop.f32.mrb[0].mxu0
        %v3355 = vpop.f32.mrb[0].mxu0
        %v3356 = vadd.f32 0.0, %v3355
        %v3357 = vpop.f32.mrb[0].mxu0
        %3358 = vdwg.mxu0
        %v3359 = vrcp.pop %v3191
        %v3360 = vrcp.pop %v3193
        %v3361 = vrcp.pop %v3195
        %v3362 = vrcp.pop %v3197
        %v3363 = vrcp.pop %v3199
        %v3364 = vrcp.pop %v3201
        %v3365 = vrcp.pop %v3203
        %v3366 = vrcp.pop %v3205
        %v3367 = vrcp.pop %v3207
        %v3368 = vrcp.pop %v3209
        %v3369 = vrcp.pop %v3211
        %v3370 = vrcp.pop %v3213
        %v3371 = vrcp.pop %v3215
        %v3372 = vrcp.pop %v3217
        %v3373 = vrcp.pop %v3219
        %v3374 = vrcp.pop %v3221
        %v3375 = vmul.f32 %v3297, %v3359
        %v3376 = vmul.f32 %v3300, %v3360
        %v3377 = vmul.f32 %v3305, %v3361
        %v3378 = vmul.f32 %v3308, %v3362
        %v3379 = vmul.f32 %v3313, %v3363
        %v3380 = vmul.f32 %v3316, %v3364
        %v3381 = vmul.f32 %v3321, %v3365
        %v3382 = vmul.f32 %v3324, %v3366
        %v3383 = vmul.f32 %v3329, %v3367
        %v3384 = vmul.f32 %v3332, %v3368
        %v3385 = vmul.f32 %v3337, %v3369
        %v3386 = vmul.f32 %v3340, %v3370
        %v3387 = vmul.f32 %v3345, %v3371
        %v3388 = vmul.f32 %v3348, %v3372
        %v3389 = vmul.f32 %v3353, %v3373
        %v3390 = vmul.f32 %v3356, %v3374
        %3407 = vrot.lane.b32.xlu0 %v3375, 64
        %v3408 = vpop.permute.xlu0 %3407
        %3409 = vrot.lane.b32.xlu0 %v3376, 64
        %v3410 = vpop.permute.xlu0 %3409
        %3411 = vrot.lane.b32.xlu0 %v3377, 64
        %v3412 = vpop.permute.xlu0 %3411
        %3413 = vrot.lane.b32.xlu0 %v3378, 64
        %v3414 = vpop.permute.xlu0 %3413
        %3415 = vrot.lane.b32.xlu0 %v3379, 64
        %v3416 = vpop.permute.xlu0 %3415
        %3417 = vrot.lane.b32.xlu0 %v3380, 64
        %v3418 = vpop.permute.xlu0 %3417
        %3419 = vrot.lane.b32.xlu0 %v3381, 64
        %v3420 = vpop.permute.xlu0 %3419
        %3421 = vrot.lane.b32.xlu0 %v3382, 64
        %v3422 = vpop.permute.xlu0 %3421
        %3423 = vrot.lane.b32.xlu0 %v3383, 64
        %v3424 = vpop.permute.xlu0 %3423
        %3425 = vrot.lane.b32.xlu0 %v3384, 64
        %v3426 = vpop.permute.xlu0 %3425
        %3427 = vrot.lane.b32.xlu0 %v3385, 64
        %v3428 = vpop.permute.xlu0 %3427
        %3429 = vrot.lane.b32.xlu0 %v3386, 64
        %v3430 = vpop.permute.xlu0 %3429
        %3431 = vrot.lane.b32.xlu0 %v3387, 64
        %v3432 = vpop.permute.xlu0 %3431
        %3433 = vrot.lane.b32.xlu0 %v3388, 64
        %v3434 = vpop.permute.xlu0 %3433
        %3435 = vrot.lane.b32.xlu0 %v3389, 64
        %v3436 = vpop.permute.xlu0 %3435
        %3437 = vrot.lane.b32.xlu0 %v3390, 64
        %v3438 = vpop.permute.xlu0 %3437
        %vm3455 = vcmask 785920
        %3456 = vst.msk [vmem:[#allocation3] sm:$0xff] %vm3455, %v3408
        %3457 = vst.msk [vmem:[#allocation3 + $0x8] sm:$0xff] %vm3455, %v3410
        %3458 = vst.msk [vmem:[#allocation3 + $0x10] sm:$0xff] %vm3455, %v3412
        %3459 = vst.msk [vmem:[#allocation3 + $0x18] sm:$0xff] %vm3455, %v3414
        %3460 = vst.msk [vmem:[#allocation3 + $0x20] sm:$0xff] %vm3455, %v3416
        %3461 = vst.msk [vmem:[#allocation3 + $0x28] sm:$0xff] %vm3455, %v3418
        %3462 = vst.msk [vmem:[#allocation3 + $0x30] sm:$0xff] %vm3455, %v3420
        %3463 = vst.msk [vmem:[#allocation3 + $0x38] sm:$0xff] %vm3455, %v3422
        %3464 = vst.msk [vmem:[#allocation3 + $0x40] sm:$0xff] %vm3455, %v3424
        %3465 = vst.msk [vmem:[#allocation3 + $0x48] sm:$0xff] %vm3455, %v3426
        %3466 = vst.msk [vmem:[#allocation3 + $0x50] sm:$0xff] %vm3455, %v3428
        %3467 = vst.msk [vmem:[#allocation3 + $0x58] sm:$0xff] %vm3455, %v3430
        %3468 = vst.msk [vmem:[#allocation3 + $0x60] sm:$0xff] %vm3455, %v3432
        %3469 = vst.msk [vmem:[#allocation3 + $0x68] sm:$0xff] %vm3455, %v3434
        %3470 = vst.msk [vmem:[#allocation3 + $0x70] sm:$0xff] %vm3455, %v3436
        %3471 = vst.msk [vmem:[#allocation3 + $0x78] sm:$0xff] %vm3455, %v3438
        %v3472 = vld [vmem:[#allocation2] sm:$0xff]
        %v3473 = vld [vmem:[#allocation2 + $0x18] sm:$0xff]
        %v3474 = vld [vmem:[#allocation2 + $0x30] sm:$0xff]
        %v3475 = vld [vmem:[#allocation2 + $0x48] sm:$0xff]
        %v3476 = vld [vmem:[#allocation2 + $0x60] sm:$0xff]
        %v3477 = vld [vmem:[#allocation2 + $0x78] sm:$0xff]
        %v3478 = vld [vmem:[#allocation2 + $0x90] sm:$0xff]
        %v3479 = vld [vmem:[#allocation2 + $0xa8] sm:$0xff]
        %v3480 = vld [vmem:[#allocation2 + $0xc0] sm:$0xff]
        %v3481 = vld [vmem:[#allocation2 + $0xd8] sm:$0xff]
        %v3482 = vld [vmem:[#allocation2 + $0xf0] sm:$0xff]
        %v3483 = vld [vmem:[#allocation2 + $0x108] sm:$0xff]
        %v3484 = vld [vmem:[#allocation2 + $0x120] sm:$0xff]
        %v3485 = vld [vmem:[#allocation2 + $0x138] sm:$0xff]
        %v3486 = vld [vmem:[#allocation2 + $0x150] sm:$0xff]
        %v3487 = vld [vmem:[#allocation2 + $0x168] sm:$0xff]
        %v3488 = vpack.c.bf16 %v3473, %v3472
        %v3489 = vpack.c.bf16 %v3475, %v3474
        %v3490 = vpack.c.bf16 %v3477, %v3476
        %v3491 = vpack.c.bf16 %v3479, %v3478
        %v3492 = vpack.c.bf16 %v3481, %v3480
        %v3493 = vpack.c.bf16 %v3483, %v3482
        %v3494 = vpack.c.bf16 %v3485, %v3484
        %v3495 = vpack.c.bf16 %v3487, %v3486
        %v3496 = vld [vmem:[#allocation2 + $0x8] sm:$0xff]
        %v3497 = vld [vmem:[#allocation2 + $0x20] sm:$0xff]
        %v3498 = vld [vmem:[#allocation2 + $0x38] sm:$0xff]
        %v3499 = vld [vmem:[#allocation2 + $0x50] sm:$0xff]
        %v3500 = vld [vmem:[#allocation2 + $0x68] sm:$0xff]
        %v3501 = vld [vmem:[#allocation2 + $0x80] sm:$0xff]
        %v3502 = vld [vmem:[#allocation2 + $0x98] sm:$0xff]
        %v3503 = vld [vmem:[#allocation2 + $0xb0] sm:$0xff]
        %v3504 = vld [vmem:[#allocation2 + $0xc8] sm:$0xff]
        %v3505 = vld [vmem:[#allocation2 + $0xe0] sm:$0xff]
        %v3506 = vld [vmem:[#allocation2 + $0xf8] sm:$0xff]
        %v3507 = vld [vmem:[#allocation2 + $0x110] sm:$0xff]
        %v3508 = vld [vmem:[#allocation2 + $0x128] sm:$0xff]
        %v3509 = vld [vmem:[#allocation2 + $0x140] sm:$0xff]
        %v3510 = vld [vmem:[#allocation2 + $0x158] sm:$0xff]
        %v3511 = vld [vmem:[#allocation2 + $0x170] sm:$0xff]
        %v3512 = vpack.c.bf16 %v3497, %v3496
        %v3513 = vpack.c.bf16 %v3499, %v3498
        %v3514 = vpack.c.bf16 %v3501, %v3500
        %v3515 = vpack.c.bf16 %v3503, %v3502
        %v3516 = vpack.c.bf16 %v3505, %v3504
        %v3517 = vpack.c.bf16 %v3507, %v3506
        %v3518 = vpack.c.bf16 %v3509, %v3508
        %v3519 = vpack.c.bf16 %v3511, %v3510
        %v3520 = vld [vmem:[#allocation2 + $0x10] sm:$0xff]
        %v3521 = vld [vmem:[#allocation2 + $0x28] sm:$0xff]
        %v3522 = vld [vmem:[#allocation2 + $0x40] sm:$0xff]
        %v3523 = vld [vmem:[#allocation2 + $0x58] sm:$0xff]
        %v3524 = vld [vmem:[#allocation2 + $0x70] sm:$0xff]
        %v3525 = vld [vmem:[#allocation2 + $0x88] sm:$0xff]
        %v3526 = vld [vmem:[#allocation2 + $0xa0] sm:$0xff]
        %v3527 = vld [vmem:[#allocation2 + $0xb8] sm:$0xff]
        %v3528 = vld [vmem:[#allocation2 + $0xd0] sm:$0xff]
        %v3529 = vld [vmem:[#allocation2 + $0xe8] sm:$0xff]
        %v3530 = vld [vmem:[#allocation2 + $0x100] sm:$0xff]
        %v3531 = vld [vmem:[#allocation2 + $0x118] sm:$0xff]
        %v3532 = vld [vmem:[#allocation2 + $0x130] sm:$0xff]
        %v3533 = vld [vmem:[#allocation2 + $0x148] sm:$0xff]
        %v3534 = vld [vmem:[#allocation2 + $0x160] sm:$0xff]
        %v3535 = vld [vmem:[#allocation2 + $0x178] sm:$0xff]
        %v3536 = vpack.c.bf16 %v3521, %v3520
        %v3537 = vpack.c.bf16 %v3523, %v3522
        %v3538 = vpack.c.bf16 %v3525, %v3524
        %v3539 = vpack.c.bf16 %v3527, %v3526
        %v3540 = vpack.c.bf16 %v3529, %v3528
        %v3541 = vpack.c.bf16 %v3531, %v3530
        %v3542 = vpack.c.bf16 %v3533, %v3532
        %v3543 = vpack.c.bf16 %v3535, %v3534
        %3552 = vrot.lane.b32.xlu0 %v3488, 32
        %v3553 = vpop.permute.xlu0 %3552
        %3554 = vrot.lane.b32.xlu0 %v3489, 32
        %v3555 = vpop.permute.xlu0 %3554
        %3556 = vrot.lane.b32.xlu0 %v3490, 32
        %v3557 = vpop.permute.xlu0 %3556
        %3558 = vrot.lane.b32.xlu0 %v3491, 32
        %v3559 = vpop.permute.xlu0 %3558
        %3560 = vrot.lane.b32.xlu0 %v3492, 32
        %v3561 = vpop.permute.xlu0 %3560
        %3562 = vrot.lane.b32.xlu0 %v3493, 32
        %v3563 = vpop.permute.xlu0 %3562
        %3564 = vrot.lane.b32.xlu0 %v3494, 32
        %v3565 = vpop.permute.xlu0 %3564
        %3566 = vrot.lane.b32.xlu0 %v3495, 32
        %v3567 = vpop.permute.xlu0 %3566
        %3576 = vrot.lane.b32.xlu0 %v3512, 32
        %v3577 = vpop.permute.xlu0 %3576
        %3578 = vrot.lane.b32.xlu0 %v3513, 32
        %v3579 = vpop.permute.xlu0 %3578
        %3580 = vrot.lane.b32.xlu0 %v3514, 32
        %v3581 = vpop.permute.xlu0 %3580
        %3582 = vrot.lane.b32.xlu0 %v3515, 32
        %v3583 = vpop.permute.xlu0 %3582
        %3584 = vrot.lane.b32.xlu0 %v3516, 32
        %v3585 = vpop.permute.xlu0 %3584
        %3586 = vrot.lane.b32.xlu0 %v3517, 32
        %v3587 = vpop.permute.xlu0 %3586
        %3588 = vrot.lane.b32.xlu0 %v3518, 32
        %v3589 = vpop.permute.xlu0 %3588
        %3590 = vrot.lane.b32.xlu0 %v3519, 32
        %v3591 = vpop.permute.xlu0 %3590
        %v3593 = vsel %vm1759, %v3553, 0
        %v3596 = vsel %vm1759, %v3555, 0
        %v3599 = vsel %vm1759, %v3557, 0
        %v3602 = vsel %vm1759, %v3559, 0
        %v3605 = vsel %vm1759, %v3561, 0
        %v3608 = vsel %vm1759, %v3563, 0
        %v3611 = vsel %vm1759, %v3565, 0
        %v3614 = vsel %vm1759, %v3567, 0
        %v3617 = vsel %vm1759, %v3577, 0
        %v3620 = vsel %vm1759, %v3579, 0
        %v3623 = vsel %vm1759, %v3581, 0
        %v3626 = vsel %vm1759, %v3583, 0
        %v3629 = vsel %vm1759, %v3585, 0
        %v3632 = vsel %vm1759, %v3587, 0
        %v3635 = vsel %vm1759, %v3589, 0
        %v3638 = vsel %vm1759, %v3591, 0
        %3640 = vmatprep.subr.bf16.mxu0 0
        %3641 = vmatpush1.bf16.xpose.msra.mxu0 %v3617
        %3642 = vmatprep.subr.bf16.mxu0 0
        %3643 = vmatpush1.bf16.xpose.msra.mxu0 %v3620
        %3644 = vmatprep.subr.bf16.mxu0 0
        %3645 = vmatpush1.bf16.xpose.msra.mxu0 %v3623
        %3646 = vmatprep.subr.bf16.mxu0 0
        %3647 = vmatpush1.bf16.xpose.msra.mxu0 %v3626
        %3648 = vmatprep.subr.bf16.mxu0 0
        %3649 = vmatpush1.bf16.xpose.msra.mxu0 %v3629
        %3650 = vmatprep.subr.bf16.mxu0 0
        %3651 = vmatpush1.bf16.xpose.msra.mxu0 %v3632
        %3652 = vmatprep.subr.bf16.mxu0 0
        %3653 = vmatpush1.bf16.xpose.msra.mxu0 %v3635
        %3654 = vmatprep.subr.bf16.mxu0 0
        %3655 = vmatpush1.bf16.xpose.msra.mxu0 %v3638
        %3656 = vmatprep.subr.bf16.mxu0 0
        %3657 = vmatpush1.bf16.xpose.msra.mxu0 0
        %3658 = vmatprep.subr.bf16.mxu0 0
        %3659 = vmatpush1.bf16.xpose.msra.mxu0 0
        %3660 = vmatprep.subr.bf16.mxu0 0
        %3661 = vmatpush1.bf16.xpose.msra.mxu0 0
        %3662 = vmatprep.subr.bf16.mxu0 0
        %3663 = vmatpush1.bf16.xpose.msra.mxu0 0
        %3664 = vmatprep.subr.bf16.mxu0 0
        %3665 = vmatpush1.bf16.xpose.msra.mxu0 0
        %3666 = vmatprep.subr.bf16.mxu0 0
        %3667 = vmatpush1.bf16.xpose.msra.mxu0 0
        %3668 = vmatprep.subr.bf16.mxu0 0
        %3669 = vmatpush1.bf16.xpose.msra.mxu0 0
        %3670 = vmatprep.subr.bf16.mxu0 0
        %3671 = vmatpush1.bf16.xpose.msra.mxu0 0
        %3672 = vmatprep.mubr.bf16.mxu0 0
        %3673 = vmatmul.mubr.bf16.gmra.mrb[0].mxu0 %v3593
        %v3674 = vpop.f32.mrb[0].mxu0
        %v3675 = vadd.f32 0.0, %v3674
        %v3676 = vpop.f32.mrb[0].mxu0
        %v3677 = vpop.f32.mrb[0].mxu0
        %v3678 = vadd.f32 0.0, %v3677
        %v3679 = vpop.f32.mrb[0].mxu0
        %3680 = vmatprep.mubr.bf16.mxu0 0
        %3681 = vmatmul.mubr.bf16.gmra.mrb[0].mxu0 %v3596
        %v3682 = vpop.f32.mrb[0].mxu0
        %v3683 = vadd.f32 0.0, %v3682
        %v3684 = vpop.f32.mrb[0].mxu0
        %v3685 = vpop.f32.mrb[0].mxu0
        %v3686 = vadd.f32 0.0, %v3685
        %v3687 = vpop.f32.mrb[0].mxu0
        %3688 = vmatprep.mubr.bf16.mxu0 0
        %3689 = vmatmul.mubr.bf16.gmra.mrb[0].mxu0 %v3599
        %v3690 = vpop.f32.mrb[0].mxu0
        %v3691 = vadd.f32 0.0, %v3690
        %v3692 = vpop.f32.mrb[0].mxu0
        %v3693 = vpop.f32.mrb[0].mxu0
        %v3694 = vadd.f32 0.0, %v3693
        %v3695 = vpop.f32.mrb[0].mxu0
        %3696 = vmatprep.mubr.bf16.mxu0 0
        %3697 = vmatmul.mubr.bf16.gmra.mrb[0].mxu0 %v3602
        %v3698 = vpop.f32.mrb[0].mxu0
        %v3699 = vadd.f32 0.0, %v3698
        %v3700 = vpop.f32.mrb[0].mxu0
        %v3701 = vpop.f32.mrb[0].mxu0
        %v3702 = vadd.f32 0.0, %v3701
        %v3703 = vpop.f32.mrb[0].mxu0
        %3704 = vmatprep.mubr.bf16.mxu0 0
        %3705 = vmatmul.mubr.bf16.gmra.mrb[0].mxu0 %v3605
        %v3706 = vpop.f32.mrb[0].mxu0
        %v3707 = vadd.f32 0.0, %v3706
        %v3708 = vpop.f32.mrb[0].mxu0
        %v3709 = vpop.f32.mrb[0].mxu0
        %v3710 = vadd.f32 0.0, %v3709
        %v3711 = vpop.f32.mrb[0].mxu0
        %3712 = vmatprep.mubr.bf16.mxu0 0
        %3713 = vmatmul.mubr.bf16.gmra.mrb[0].mxu0 %v3608
        %v3714 = vpop.f32.mrb[0].mxu0
        %v3715 = vadd.f32 0.0, %v3714
        %v3716 = vpop.f32.mrb[0].mxu0
        %v3717 = vpop.f32.mrb[0].mxu0
        %v3718 = vadd.f32 0.0, %v3717
        %v3719 = vpop.f32.mrb[0].mxu0
        %3720 = vmatprep.mubr.bf16.mxu0 0
        %3721 = vmatmul.mubr.bf16.gmra.mrb[0].mxu0 %v3611
        %v3722 = vpop.f32.mrb[0].mxu0
        %v3723 = vadd.f32 0.0, %v3722
        %v3724 = vpop.f32.mrb[0].mxu0
        %v3725 = vpop.f32.mrb[0].mxu0
        %v3726 = vadd.f32 0.0, %v3725
        %v3727 = vpop.f32.mrb[0].mxu0
        %3728 = vmatprep.mubr.bf16.mxu0 0
        %3729 = vmatmul.mubr.bf16.gmra.mrb[0].mxu0 %v3614
        %v3730 = vpop.f32.mrb[0].mxu0
        %v3731 = vadd.f32 0.0, %v3730
        %v3732 = vpop.f32.mrb[0].mxu0
        %v3733 = vpop.f32.mrb[0].mxu0
        %v3734 = vadd.f32 0.0, %v3733
        %v3735 = vpop.f32.mrb[0].mxu0
        %3736 = vdwg.mxu0
        %v3737 = vsel %vm1671, %v3675, -1e+30
        %v3738 = vsel %vm1672, %v3678, -1e+30
        %v3739 = vsel %vm1673, %v3683, -1e+30
        %v3740 = vsel %vm1674, %v3686, -1e+30
        %v3741 = vsel %vm1675, %v3691, -1e+30
        %v3742 = vsel %vm1676, %v3694, -1e+30
        %v3743 = vsel %vm1677, %v3699, -1e+30
        %v3744 = vsel %vm1678, %v3702, -1e+30
        %v3745 = vsel %vm1679, %v3707, -1e+30
        %v3746 = vsel %vm1680, %v3710, -1e+30
        %v3747 = vsel %vm1681, %v3715, -1e+30
        %v3748 = vsel %vm1682, %v3718, -1e+30
        %v3749 = vsel %vm1683, %v3723, -1e+30
        %v3750 = vsel %vm1684, %v3726, -1e+30
        %v3751 = vsel %vm1685, %v3731, -1e+30
        %v3752 = vsel %vm1686, %v3734, -1e+30
        %3753 = vmax.xlane.f32.xlu0 %v3737
        %v3754 = vpop.xlane.xlu0 %3753
        %3755 = vmax.xlane.f32.xlu0 %v3738
        %v3756 = vpop.xlane.xlu0 %3755
        %3757 = vmax.xlane.f32.xlu0 %v3739
        %v3758 = vpop.xlane.xlu0 %3757
        %3759 = vmax.xlane.f32.xlu0 %v3740
        %v3760 = vpop.xlane.xlu0 %3759
        %3761 = vmax.xlane.f32.xlu0 %v3741
        %v3762 = vpop.xlane.xlu0 %3761
        %3763 = vmax.xlane.f32.xlu0 %v3742
        %v3764 = vpop.xlane.xlu0 %3763
        %3765 = vmax.xlane.f32.xlu0 %v3743
        %v3766 = vpop.xlane.xlu0 %3765
        %3767 = vmax.xlane.f32.xlu0 %v3744
        %v3768 = vpop.xlane.xlu0 %3767
        %3769 = vmax.xlane.f32.xlu0 %v3745
        %v3770 = vpop.xlane.xlu0 %3769
        %3771 = vmax.xlane.f32.xlu0 %v3746
        %v3772 = vpop.xlane.xlu0 %3771
        %3773 = vmax.xlane.f32.xlu0 %v3747
        %v3774 = vpop.xlane.xlu0 %3773
        %3775 = vmax.xlane.f32.xlu0 %v3748
        %v3776 = vpop.xlane.xlu0 %3775
        %3777 = vmax.xlane.f32.xlu0 %v3749
        %v3778 = vpop.xlane.xlu0 %3777
        %3779 = vmax.xlane.f32.xlu0 %v3750
        %v3780 = vpop.xlane.xlu0 %3779
        %3781 = vmax.xlane.f32.xlu0 %v3751
        %v3782 = vpop.xlane.xlu0 %3781
        %3783 = vmax.xlane.f32.xlu0 %v3752
        %v3784 = vpop.xlane.xlu0 %3783
        %v3785 = vsub.f32 %v3737, %v3754
        %v3786 = vsub.f32 %v3738, %v3756
        %v3787 = vsub.f32 %v3739, %v3758
        %v3788 = vsub.f32 %v3740, %v3760
        %v3789 = vsub.f32 %v3741, %v3762
        %v3790 = vsub.f32 %v3742, %v3764
        %v3791 = vsub.f32 %v3743, %v3766
        %v3792 = vsub.f32 %v3744, %v3768
        %v3793 = vsub.f32 %v3745, %v3770
        %v3794 = vsub.f32 %v3746, %v3772
        %v3795 = vsub.f32 %v3747, %v3774
        %v3796 = vsub.f32 %v3748, %v3776
        %v3797 = vsub.f32 %v3749, %v3778
        %v3798 = vsub.f32 %v3750, %v3780
        %v3799 = vsub.f32 %v3751, %v3782
        %v3800 = vsub.f32 %v3752, %v3784
        %v3801 = vmul.f32 %v3785, 1.442695
        %v3802 = vpow.pop %v3801
        %v3803 = vmul.f32 %v3786, 1.442695
        %v3804 = vpow.pop %v3803
        %v3805 = vmul.f32 %v3787, 1.442695
        %v3806 = vpow.pop %v3805
        %v3807 = vmul.f32 %v3788, 1.442695
        %v3808 = vpow.pop %v3807
        %v3809 = vmul.f32 %v3789, 1.442695
        %v3810 = vpow.pop %v3809
        %v3811 = vmul.f32 %v3790, 1.442695
        %v3812 = vpow.pop %v3811
        %v3813 = vmul.f32 %v3791, 1.442695
        %v3814 = vpow.pop %v3813
        %v3815 = vmul.f32 %v3792, 1.442695
        %v3816 = vpow.pop %v3815
        %v3817 = vmul.f32 %v3793, 1.442695
        %v3818 = vpow.pop %v3817
        %v3819 = vmul.f32 %v3794, 1.442695
        %v3820 = vpow.pop %v3819
        %v3821 = vmul.f32 %v3795, 1.442695
        %v3822 = vpow.pop %v3821
        %v3823 = vmul.f32 %v3796, 1.442695
        %v3824 = vpow.pop %v3823
        %v3825 = vmul.f32 %v3797, 1.442695
        %v3826 = vpow.pop %v3825
        %v3827 = vmul.f32 %v3798, 1.442695
        %v3828 = vpow.pop %v3827
        %v3829 = vmul.f32 %v3799, 1.442695
        %v3830 = vpow.pop %v3829
        %v3831 = vmul.f32 %v3800, 1.442695
        %v3832 = vpow.pop %v3831
        %3833 = vadd.xlane.f32.xlu0 %v3802
        %v3834 = vpop.xlane.xlu0 %3833
        %3835 = vadd.xlane.f32.xlu0 %v3804
        %v3836 = vpop.xlane.xlu0 %3835
        %3837 = vadd.xlane.f32.xlu0 %v3806
        %v3838 = vpop.xlane.xlu0 %3837
        %3839 = vadd.xlane.f32.xlu0 %v3808
        %v3840 = vpop.xlane.xlu0 %3839
        %3841 = vadd.xlane.f32.xlu0 %v3810
        %v3842 = vpop.xlane.xlu0 %3841
        %3843 = vadd.xlane.f32.xlu0 %v3812
        %v3844 = vpop.xlane.xlu0 %3843
        %3845 = vadd.xlane.f32.xlu0 %v3814
        %v3846 = vpop.xlane.xlu0 %3845
        %3847 = vadd.xlane.f32.xlu0 %v3816
        %v3848 = vpop.xlane.xlu0 %3847
        %3849 = vadd.xlane.f32.xlu0 %v3818
        %v3850 = vpop.xlane.xlu0 %3849
        %3851 = vadd.xlane.f32.xlu0 %v3820
        %v3852 = vpop.xlane.xlu0 %3851
        %3853 = vadd.xlane.f32.xlu0 %v3822
        %v3854 = vpop.xlane.xlu0 %3853
        %3855 = vadd.xlane.f32.xlu0 %v3824
        %v3856 = vpop.xlane.xlu0 %3855
        %3857 = vadd.xlane.f32.xlu0 %v3826
        %v3858 = vpop.xlane.xlu0 %3857
        %3859 = vadd.xlane.f32.xlu0 %v3828
        %v3860 = vpop.xlane.xlu0 %3859
        %3861 = vadd.xlane.f32.xlu0 %v3830
        %v3862 = vpop.xlane.xlu0 %3861
        %3863 = vadd.xlane.f32.xlu0 %v3832
        %v3864 = vpop.xlane.xlu0 %3863
        %v3865 = vpack.c.bf16 %v3804, %v3802
        %v3866 = vpack.c.bf16 %v3808, %v3806
        %v3867 = vpack.c.bf16 %v3812, %v3810
        %v3868 = vpack.c.bf16 %v3816, %v3814
        %v3869 = vpack.c.bf16 %v3820, %v3818
        %v3870 = vpack.c.bf16 %v3824, %v3822
        %v3871 = vpack.c.bf16 %v3828, %v3826
        %v3872 = vpack.c.bf16 %v3832, %v3830
        %3881 = vrot.lane.b32.xlu0 %v3536, 32
        %v3882 = vpop.permute.xlu0 %3881
        %3883 = vrot.lane.b32.xlu0 %v3537, 32
        %v3884 = vpop.permute.xlu0 %3883
        %3885 = vrot.lane.b32.xlu0 %v3538, 32
        %v3886 = vpop.permute.xlu0 %3885
        %3887 = vrot.lane.b32.xlu0 %v3539, 32
        %v3888 = vpop.permute.xlu0 %3887
        %3889 = vrot.lane.b32.xlu0 %v3540, 32
        %v3890 = vpop.permute.xlu0 %3889
        %3891 = vrot.lane.b32.xlu0 %v3541, 32
        %v3892 = vpop.permute.xlu0 %3891
        %3893 = vrot.lane.b32.xlu0 %v3542, 32
        %v3894 = vpop.permute.xlu0 %3893
        %3895 = vrot.lane.b32.xlu0 %v3543, 32
        %v3896 = vpop.permute.xlu0 %3895
        %3905 = vmatprep.subr.bf16.mxu0 0
        %3906 = vmatpush1.bf16.msra.mxu0 %v3882
        %3907 = vmatprep.subr.bf16.mxu0 0
        %3908 = vmatpush1.bf16.msra.mxu0 %v3884
        %3909 = vmatprep.subr.bf16.mxu0 0
        %3910 = vmatpush1.bf16.msra.mxu0 %v3886
        %3911 = vmatprep.subr.bf16.mxu0 0
        %3912 = vmatpush1.bf16.msra.mxu0 %v3888
        %3913 = vmatprep.subr.bf16.mxu0 0
        %3914 = vmatpush1.bf16.msra.mxu0 %v3890
        %3915 = vmatprep.subr.bf16.mxu0 0
        %3916 = vmatpush1.bf16.msra.mxu0 %v3892
        %3917 = vmatprep.subr.bf16.mxu0 0
        %3918 = vmatpush1.bf16.msra.mxu0 %v3894
        %3919 = vmatprep.subr.bf16.mxu0 0
        %3920 = vmatpush1.bf16.msra.mxu0 %v3896
        %3921 = vmatprep.subr.bf16.mxu0 0
        %3922 = vmatpush1.bf16.msra.mxu0 0
        %3923 = vmatprep.subr.bf16.mxu0 0
        %3924 = vmatpush1.bf16.msra.mxu0 0
        %3925 = vmatprep.subr.bf16.mxu0 0
        %3926 = vmatpush1.bf16.msra.mxu0 0
        %3927 = vmatprep.subr.bf16.mxu0 0
        %3928 = vmatpush1.bf16.msra.mxu0 0
        %3929 = vmatprep.subr.bf16.mxu0 0
        %3930 = vmatpush1.bf16.msra.mxu0 0
        %3931 = vmatprep.subr.bf16.mxu0 0
        %3932 = vmatpush1.bf16.msra.mxu0 0
        %3933 = vmatprep.subr.bf16.mxu0 0
        %3934 = vmatpush1.bf16.msra.mxu0 0
        %3935 = vmatprep.subr.bf16.mxu0 0
        %3936 = vmatpush1.bf16.msra.mxu0 0
        %3937 = vmatprep.mubr.bf16.mxu0 0
        %3938 = vmatmul.mubr.bf16.gmra.mrb[0].mxu0 %v3865
        %v3939 = vpop.f32.mrb[0].mxu0
        %v3940 = vadd.f32 0.0, %v3939
        %v3941 = vpop.f32.mrb[0].mxu0
        %v3942 = vpop.f32.mrb[0].mxu0
        %v3943 = vadd.f32 0.0, %v3942
        %v3944 = vpop.f32.mrb[0].mxu0
        %3945 = vmatprep.mubr.bf16.mxu0 0
        %3946 = vmatmul.mubr.bf16.gmra.mrb[0].mxu0 %v3866
        %v3947 = vpop.f32.mrb[0].mxu0
        %v3948 = vadd.f32 0.0, %v3947
        %v3949 = vpop.f32.mrb[0].mxu0
        %v3950 = vpop.f32.mrb[0].mxu0
        %v3951 = vadd.f32 0.0, %v3950
        %v3952 = vpop.f32.mrb[0].mxu0
        %3953 = vmatprep.mubr.bf16.mxu0 0
        %3954 = vmatmul.mubr.bf16.gmra.mrb[0].mxu0 %v3867
        %v3955 = vpop.f32.mrb[0].mxu0
        %v3956 = vadd.f32 0.0, %v3955
        %v3957 = vpop.f32.mrb[0].mxu0
        %v3958 = vpop.f32.mrb[0].mxu0
        %v3959 = vadd.f32 0.0, %v3958
        %v3960 = vpop.f32.mrb[0].mxu0
        %3961 = vmatprep.mubr.bf16.mxu0 0
        %3962 = vmatmul.mubr.bf16.gmra.mrb[0].mxu0 %v3868
        %v3963 = vpop.f32.mrb[0].mxu0
        %v3964 = vadd.f32 0.0, %v3963
        %v3965 = vpop.f32.mrb[0].mxu0
        %v3966 = vpop.f32.mrb[0].mxu0
        %v3967 = vadd.f32 0.0, %v3966
        %v3968 = vpop.f32.mrb[0].mxu0
        %3969 = vmatprep.mubr.bf16.mxu0 0
        %3970 = vmatmul.mubr.bf16.gmra.mrb[0].mxu0 %v3869
        %v3971 = vpop.f32.mrb[0].mxu0
        %v3972 = vadd.f32 0.0, %v3971
        %v3973 = vpop.f32.mrb[0].mxu0
        %v3974 = vpop.f32.mrb[0].mxu0
        %v3975 = vadd.f32 0.0, %v3974
        %v3976 = vpop.f32.mrb[0].mxu0
        %3977 = vmatprep.mubr.bf16.mxu0 0
        %3978 = vmatmul.mubr.bf16.gmra.mrb[0].mxu0 %v3870
        %v3979 = vpop.f32.mrb[0].mxu0
        %v3980 = vadd.f32 0.0, %v3979
        %v3981 = vpop.f32.mrb[0].mxu0
        %v3982 = vpop.f32.mrb[0].mxu0
        %v3983 = vadd.f32 0.0, %v3982
        %v3984 = vpop.f32.mrb[0].mxu0
        %3985 = vmatprep.mubr.bf16.mxu0 0
        %3986 = vmatmul.mubr.bf16.gmra.mrb[0].mxu0 %v3871
        %v3987 = vpop.f32.mrb[0].mxu0
        %v3988 = vadd.f32 0.0, %v3987
        %v3989 = vpop.f32.mrb[0].mxu0
        %v3990 = vpop.f32.mrb[0].mxu0
        %v3991 = vadd.f32 0.0, %v3990
        %v3992 = vpop.f32.mrb[0].mxu0
        %3993 = vmatprep.mubr.bf16.mxu0 0
        %3994 = vmatmul.mubr.bf16.gmra.mrb[0].mxu0 %v3872
        %v3995 = vpop.f32.mrb[0].mxu0
        %v3996 = vadd.f32 0.0, %v3995
        %v3997 = vpop.f32.mrb[0].mxu0
        %v3998 = vpop.f32.mrb[0].mxu0
        %v3999 = vadd.f32 0.0, %v3998
        %v4000 = vpop.f32.mrb[0].mxu0
        %4001 = vdwg.mxu0
        %v4002 = vrcp.pop %v3834
        %v4003 = vrcp.pop %v3836
        %v4004 = vrcp.pop %v3838
        %v4005 = vrcp.pop %v3840
        %v4006 = vrcp.pop %v3842
        %v4007 = vrcp.pop %v3844
        %v4008 = vrcp.pop %v3846
        %v4009 = vrcp.pop %v3848
        %v4010 = vrcp.pop %v3850
        %v4011 = vrcp.pop %v3852
        %v4012 = vrcp.pop %v3854
        %v4013 = vrcp.pop %v3856
        %v4014 = vrcp.pop %v3858
        %v4015 = vrcp.pop %v3860
        %v4016 = vrcp.pop %v3862
        %v4017 = vrcp.pop %v3864
        %v4018 = vmul.f32 %v3940, %v4002
        %v4019 = vmul.f32 %v3943, %v4003
        %v4020 = vmul.f32 %v3948, %v4004
        %v4021 = vmul.f32 %v3951, %v4005
        %v4022 = vmul.f32 %v3956, %v4006
        %v4023 = vmul.f32 %v3959, %v4007
        %v4024 = vmul.f32 %v3964, %v4008
        %v4025 = vmul.f32 %v3967, %v4009
        %v4026 = vmul.f32 %v3972, %v4010
        %v4027 = vmul.f32 %v3975, %v4011
        %v4028 = vmul.f32 %v3980, %v4012
        %v4029 = vmul.f32 %v3983, %v4013
        %v4030 = vmul.f32 %v3988, %v4014
        %v4031 = vmul.f32 %v3991, %v4015
        %v4032 = vmul.f32 %v3996, %v4016
        %v4033 = vmul.f32 %v3999, %v4017
        %4050 = vrot.lane.b32.xlu0 %v4018, 96
        %v4051 = vpop.permute.xlu0 %4050
        %4052 = vrot.lane.b32.xlu0 %v4019, 96
        %v4053 = vpop.permute.xlu0 %4052
        %4054 = vrot.lane.b32.xlu0 %v4020, 96
        %v4055 = vpop.permute.xlu0 %4054
        %4056 = vrot.lane.b32.xlu0 %v4021, 96
        %v4057 = vpop.permute.xlu0 %4056
        %4058 = vrot.lane.b32.xlu0 %v4022, 96
        %v4059 = vpop.permute.xlu0 %4058
        %4060 = vrot.lane.b32.xlu0 %v4023, 96
        %v4061 = vpop.permute.xlu0 %4060
        %4062 = vrot.lane.b32.xlu0 %v4024, 96
        %v4063 = vpop.permute.xlu0 %4062
        %4064 = vrot.lane.b32.xlu0 %v4025, 96
        %v4065 = vpop.permute.xlu0 %4064
        %4066 = vrot.lane.b32.xlu0 %v4026, 96
        %v4067 = vpop.permute.xlu0 %4066
        %4068 = vrot.lane.b32.xlu0 %v4027, 96
        %v4069 = vpop.permute.xlu0 %4068
        %4070 = vrot.lane.b32.xlu0 %v4028, 96
        %v4071 = vpop.permute.xlu0 %4070
        %4072 = vrot.lane.b32.xlu0 %v4029, 96
        %v4073 = vpop.permute.xlu0 %4072
        %4074 = vrot.lane.b32.xlu0 %v4030, 96
        %v4075 = vpop.permute.xlu0 %4074
        %4076 = vrot.lane.b32.xlu0 %v4031, 96
        %v4077 = vpop.permute.xlu0 %4076
        %4078 = vrot.lane.b32.xlu0 %v4032, 96
        %v4079 = vpop.permute.xlu0 %4078
        %4080 = vrot.lane.b32.xlu0 %v4033, 96
        %v4081 = vpop.permute.xlu0 %4080
        %vm4098 = vcmask 1048320
        %4099 = vst.msk [vmem:[#allocation3] sm:$0xff] %vm4098, %v4051
        %4100 = vst.msk [vmem:[#allocation3 + $0x8] sm:$0xff] %vm4098, %v4053
        %4101 = vst.msk [vmem:[#allocation3 + $0x10] sm:$0xff] %vm4098, %v4055
        %4102 = vst.msk [vmem:[#allocation3 + $0x18] sm:$0xff] %vm4098, %v4057
        %4103 = vst.msk [vmem:[#allocation3 + $0x20] sm:$0xff] %vm4098, %v4059
        %4104 = vst.msk [vmem:[#allocation3 + $0x28] sm:$0xff] %vm4098, %v4061
        %4105 = vst.msk [vmem:[#allocation3 + $0x30] sm:$0xff] %vm4098, %v4063
        %4106 = vst.msk [vmem:[#allocation3 + $0x38] sm:$0xff] %vm4098, %v4065
        %4107 = vst.msk [vmem:[#allocation3 + $0x40] sm:$0xff] %vm4098, %v4067
        %4108 = vst.msk [vmem:[#allocation3 + $0x48] sm:$0xff] %vm4098, %v4069
        %4109 = vst.msk [vmem:[#allocation3 + $0x50] sm:$0xff] %vm4098, %v4071
        %4110 = vst.msk [vmem:[#allocation3 + $0x58] sm:$0xff] %vm4098, %v4073
        %4111 = vst.msk [vmem:[#allocation3 + $0x60] sm:$0xff] %vm4098, %v4075
        %4112 = vst.msk [vmem:[#allocation3 + $0x68] sm:$0xff] %vm4098, %v4077
        %4113 = vst.msk [vmem:[#allocation3 + $0x70] sm:$0xff] %vm4098, %v4079
        %4114 = vst.msk [vmem:[#allocation3 + $0x78] sm:$0xff] %vm4098, %v4081
        %v4115 = vld [vmem:[#allocation2 + $0x180] sm:$0xff]
        %v4116 = vld [vmem:[#allocation2 + $0x198] sm:$0xff]
        %v4117 = vld [vmem:[#allocation2 + $0x1b0] sm:$0xff]
        %v4118 = vld [vmem:[#allocation2 + $0x1c8] sm:$0xff]
        %v4119 = vld [vmem:[#allocation2 + $0x1e0] sm:$0xff]
        %v4120 = vld [vmem:[#allocation2 + $0x1f8] sm:$0xff]
        %v4121 = vld [vmem:[#allocation2 + $0x210] sm:$0xff]
        %v4122 = vld [vmem:[#allocation2 + $0x228] sm:$0xff]
        %v4123 = vld [vmem:[#allocation2 + $0x240] sm:$0xff]
        %v4124 = vld [vmem:[#allocation2 + $0x258] sm:$0xff]
        %v4125 = vld [vmem:[#allocation2 + $0x270] sm:$0xff]
        %v4126 = vld [vmem:[#allocation2 + $0x288] sm:$0xff]
        %v4127 = vld [vmem:[#allocation2 + $0x2a0] sm:$0xff]
        %v4128 = vld [vmem:[#allocation2 + $0x2b8] sm:$0xff]
        %v4129 = vld [vmem:[#allocation2 + $0x2d0] sm:$0xff]
        %v4130 = vld [vmem:[#allocation2 + $0x2e8] sm:$0xff]
        %v4131 = vpack.c.bf16 %v4116, %v4115
        %v4132 = vpack.c.bf16 %v4118, %v4117
        %v4133 = vpack.c.bf16 %v4120, %v4119
        %v4134 = vpack.c.bf16 %v4122, %v4121
        %v4135 = vpack.c.bf16 %v4124, %v4123
        %v4136 = vpack.c.bf16 %v4126, %v4125
        %v4137 = vpack.c.bf16 %v4128, %v4127
        %v4138 = vpack.c.bf16 %v4130, %v4129
        %v4139 = vld [vmem:[#allocation2 + $0x188] sm:$0xff]
        %v4140 = vld [vmem:[#allocation2 + $0x1a0] sm:$0xff]
        %v4141 = vld [vmem:[#allocation2 + $0x1b8] sm:$0xff]
        %v4142 = vld [vmem:[#allocation2 + $0x1d0] sm:$0xff]
        %v4143 = vld [vmem:[#allocation2 + $0x1e8] sm:$0xff]
        %v4144 = vld [vmem:[#allocation2 + $0x200] sm:$0xff]
        %v4145 = vld [vmem:[#allocation2 + $0x218] sm:$0xff]
        %v4146 = vld [vmem:[#allocation2 + $0x230] sm:$0xff]
        %v4147 = vld [vmem:[#allocation2 + $0x248] sm:$0xff]
        %v4148 = vld [vmem:[#allocation2 + $0x260] sm:$0xff]
        %v4149 = vld [vmem:[#allocation2 + $0x278] sm:$0xff]
        %v4150 = vld [vmem:[#allocation2 + $0x290] sm:$0xff]
        %v4151 = vld [vmem:[#allocation2 + $0x2a8] sm:$0xff]
        %v4152 = vld [vmem:[#allocation2 + $0x2c0] sm:$0xff]
        %v4153 = vld [vmem:[#allocation2 + $0x2d8] sm:$0xff]
        %v4154 = vld [vmem:[#allocation2 + $0x2f0] sm:$0xff]
        %v4155 = vpack.c.bf16 %v4140, %v4139
        %v4156 = vpack.c.bf16 %v4142, %v4141
        %v4157 = vpack.c.bf16 %v4144, %v4143
        %v4158 = vpack.c.bf16 %v4146, %v4145
        %v4159 = vpack.c.bf16 %v4148, %v4147
        %v4160 = vpack.c.bf16 %v4150, %v4149
        %v4161 = vpack.c.bf16 %v4152, %v4151
        %v4162 = vpack.c.bf16 %v4154, %v4153
        %v4163 = vld [vmem:[#allocation2 + $0x190] sm:$0xff]
        %v4164 = vld [vmem:[#allocation2 + $0x1a8] sm:$0xff]
        %v4165 = vld [vmem:[#allocation2 + $0x1c0] sm:$0xff]
        %v4166 = vld [vmem:[#allocation2 + $0x1d8] sm:$0xff]
        %v4167 = vld [vmem:[#allocation2 + $0x1f0] sm:$0xff]
        %v4168 = vld [vmem:[#allocation2 + $0x208] sm:$0xff]
        %v4169 = vld [vmem:[#allocation2 + $0x220] sm:$0xff]
        %v4170 = vld [vmem:[#allocation2 + $0x238] sm:$0xff]
        %v4171 = vld [vmem:[#allocation2 + $0x250] sm:$0xff]
        %v4172 = vld [vmem:[#allocation2 + $0x268] sm:$0xff]
        %v4173 = vld [vmem:[#allocation2 + $0x280] sm:$0xff]
        %v4174 = vld [vmem:[#allocation2 + $0x298] sm:$0xff]
        %v4175 = vld [vmem:[#allocation2 + $0x2b0] sm:$0xff]
        %v4176 = vld [vmem:[#allocation2 + $0x2c8] sm:$0xff]
        %v4177 = vld [vmem:[#allocation2 + $0x2e0] sm:$0xff]
        %v4178 = vld [vmem:[#allocation2 + $0x2f8] sm:$0xff]
        %v4179 = vpack.c.bf16 %v4164, %v4163
        %v4180 = vpack.c.bf16 %v4166, %v4165
        %v4181 = vpack.c.bf16 %v4168, %v4167
        %v4182 = vpack.c.bf16 %v4170, %v4169
        %v4183 = vpack.c.bf16 %v4172, %v4171
        %v4184 = vpack.c.bf16 %v4174, %v4173
        %v4185 = vpack.c.bf16 %v4176, %v4175
        %v4186 = vpack.c.bf16 %v4178, %v4177
        %v4188 = vsel %vm1759, %v4131, 0
        %v4191 = vsel %vm1759, %v4132, 0
        %v4194 = vsel %vm1759, %v4133, 0
        %v4197 = vsel %vm1759, %v4134, 0
        %v4200 = vsel %vm1759, %v4135, 0
        %v4203 = vsel %vm1759, %v4136, 0
        %v4206 = vsel %vm1759, %v4137, 0
        %v4209 = vsel %vm1759, %v4138, 0
        %v4212 = vsel %vm1759, %v4155, 0
        %v4215 = vsel %vm1759, %v4156, 0
        %v4218 = vsel %vm1759, %v4157, 0
        %v4221 = vsel %vm1759, %v4158, 0
        %v4224 = vsel %vm1759, %v4159, 0
        %v4227 = vsel %vm1759, %v4160, 0
        %v4230 = vsel %vm1759, %v4161, 0
        %v4233 = vsel %vm1759, %v4162, 0
        %4235 = vmatprep.subr.bf16.mxu0 0
        %4236 = vmatpush1.bf16.xpose.msra.mxu0 %v4212
        %4237 = vmatprep.subr.bf16.mxu0 0
        %4238 = vmatpush1.bf16.xpose.msra.mxu0 %v4215
        %4239 = vmatprep.subr.bf16.mxu0 0
        %4240 = vmatpush1.bf16.xpose.msra.mxu0 %v4218
        %4241 = vmatprep.subr.bf16.mxu0 0
        %4242 = vmatpush1.bf16.xpose.msra.mxu0 %v4221
        %4243 = vmatprep.subr.bf16.mxu0 0
        %4244 = vmatpush1.bf16.xpose.msra.mxu0 %v4224
        %4245 = vmatprep.subr.bf16.mxu0 0
        %4246 = vmatpush1.bf16.xpose.msra.mxu0 %v4227
        %4247 = vmatprep.subr.bf16.mxu0 0
        %4248 = vmatpush1.bf16.xpose.msra.mxu0 %v4230
        %4249 = vmatprep.subr.bf16.mxu0 0
        %4250 = vmatpush1.bf16.xpose.msra.mxu0 %v4233
        %4251 = vmatprep.subr.bf16.mxu0 0
        %4252 = vmatpush1.bf16.xpose.msra.mxu0 0
        %4253 = vmatprep.subr.bf16.mxu0 0
        %4254 = vmatpush1.bf16.xpose.msra.mxu0 0
        %4255 = vmatprep.subr.bf16.mxu0 0
        %4256 = vmatpush1.bf16.xpose.msra.mxu0 0
        %4257 = vmatprep.subr.bf16.mxu0 0
        %4258 = vmatpush1.bf16.xpose.msra.mxu0 0
        %4259 = vmatprep.subr.bf16.mxu0 0
        %4260 = vmatpush1.bf16.xpose.msra.mxu0 0
        %4261 = vmatprep.subr.bf16.mxu0 0
        %4262 = vmatpush1.bf16.xpose.msra.mxu0 0
        %4263 = vmatprep.subr.bf16.mxu0 0
        %4264 = vmatpush1.bf16.xpose.msra.mxu0 0
        %4265 = vmatprep.subr.bf16.mxu0 0
        %4266 = vmatpush1.bf16.xpose.msra.mxu0 0
        %4267 = vmatprep.mubr.bf16.mxu0 0
        %4268 = vmatmul.mubr.bf16.gmra.mrb[0].mxu0 %v4188
        %v4269 = vpop.f32.mrb[0].mxu0
        %v4270 = vadd.f32 0.0, %v4269
        %v4271 = vpop.f32.mrb[0].mxu0
        %v4272 = vpop.f32.mrb[0].mxu0
        %v4273 = vadd.f32 0.0, %v4272
        %v4274 = vpop.f32.mrb[0].mxu0
        %4275 = vmatprep.mubr.bf16.mxu0 0
        %4276 = vmatmul.mubr.bf16.gmra.mrb[0].mxu0 %v4191
        %v4277 = vpop.f32.mrb[0].mxu0
        %v4278 = vadd.f32 0.0, %v4277
        %v4279 = vpop.f32.mrb[0].mxu0
        %v4280 = vpop.f32.mrb[0].mxu0
        %v4281 = vadd.f32 0.0, %v4280
        %v4282 = vpop.f32.mrb[0].mxu0
        %4283 = vmatprep.mubr.bf16.mxu0 0
        %4284 = vmatmul.mubr.bf16.gmra.mrb[0].mxu0 %v4194
        %v4285 = vpop.f32.mrb[0].mxu0
        %v4286 = vadd.f32 0.0, %v4285
        %v4287 = vpop.f32.mrb[0].mxu0
        %v4288 = vpop.f32.mrb[0].mxu0
        %v4289 = vadd.f32 0.0, %v4288
        %v4290 = vpop.f32.mrb[0].mxu0
        %4291 = vmatprep.mubr.bf16.mxu0 0
        %4292 = vmatmul.mubr.bf16.gmra.mrb[0].mxu0 %v4197
        %v4293 = vpop.f32.mrb[0].mxu0
        %v4294 = vadd.f32 0.0, %v4293
        %v4295 = vpop.f32.mrb[0].mxu0
        %v4296 = vpop.f32.mrb[0].mxu0
        %v4297 = vadd.f32 0.0, %v4296
        %v4298 = vpop.f32.mrb[0].mxu0
        %4299 = vmatprep.mubr.bf16.mxu0 0
        %4300 = vmatmul.mubr.bf16.gmra.mrb[0].mxu0 %v4200
        %v4301 = vpop.f32.mrb[0].mxu0
        %v4302 = vadd.f32 0.0, %v4301
        %v4303 = vpop.f32.mrb[0].mxu0
        %v4304 = vpop.f32.mrb[0].mxu0
        %v4305 = vadd.f32 0.0, %v4304
        %v4306 = vpop.f32.mrb[0].mxu0
        %4307 = vmatprep.mubr.bf16.mxu0 0
        %4308 = vmatmul.mubr.bf16.gmra.mrb[0].mxu0 %v4203
        %v4309 = vpop.f32.mrb[0].mxu0
        %v4310 = vadd.f32 0.0, %v4309
        %v4311 = vpop.f32.mrb[0].mxu0
        %v4312 = vpop.f32.mrb[0].mxu0
        %v4313 = vadd.f32 0.0, %v4312
        %v4314 = vpop.f32.mrb[0].mxu0
        %4315 = vmatprep.mubr.bf16.mxu0 0
        %4316 = vmatmul.mubr.bf16.gmra.mrb[0].mxu0 %v4206
        %v4317 = vpop.f32.mrb[0].mxu0
        %v4318 = vadd.f32 0.0, %v4317
        %v4319 = vpop.f32.mrb[0].mxu0
        %v4320 = vpop.f32.mrb[0].mxu0
        %v4321 = vadd.f32 0.0, %v4320
        %v4322 = vpop.f32.mrb[0].mxu0
        %4323 = vmatprep.mubr.bf16.mxu0 0
        %4324 = vmatmul.mubr.bf16.gmra.mrb[0].mxu0 %v4209
        %v4325 = vpop.f32.mrb[0].mxu0
        %v4326 = vadd.f32 0.0, %v4325
        %v4327 = vpop.f32.mrb[0].mxu0
        %v4328 = vpop.f32.mrb[0].mxu0
        %v4329 = vadd.f32 0.0, %v4328
        %v4330 = vpop.f32.mrb[0].mxu0
        %4331 = vdwg.mxu0
        %v4332 = vsel %vm1671, %v4270, -1e+30
        %v4333 = vsel %vm1672, %v4273, -1e+30
        %v4334 = vsel %vm1673, %v4278, -1e+30
        %v4335 = vsel %vm1674, %v4281, -1e+30
        %v4336 = vsel %vm1675, %v4286, -1e+30
        %v4337 = vsel %vm1676, %v4289, -1e+30
        %v4338 = vsel %vm1677, %v4294, -1e+30
        %v4339 = vsel %vm1678, %v4297, -1e+30
        %v4340 = vsel %vm1679, %v4302, -1e+30
        %v4341 = vsel %vm1680, %v4305, -1e+30
        %v4342 = vsel %vm1681, %v4310, -1e+30
        %v4343 = vsel %vm1682, %v4313, -1e+30
        %v4344 = vsel %vm1683, %v4318, -1e+30
        %v4345 = vsel %vm1684, %v4321, -1e+30
        %v4346 = vsel %vm1685, %v4326, -1e+30
        %v4347 = vsel %vm1686, %v4329, -1e+30
        %4348 = vmax.xlane.f32.xlu0 %v4332
        %v4349 = vpop.xlane.xlu0 %4348
        %4350 = vmax.xlane.f32.xlu0 %v4333
        %v4351 = vpop.xlane.xlu0 %4350
        %4352 = vmax.xlane.f32.xlu0 %v4334
        %v4353 = vpop.xlane.xlu0 %4352
        %4354 = vmax.xlane.f32.xlu0 %v4335
        %v4355 = vpop.xlane.xlu0 %4354
        %4356 = vmax.xlane.f32.xlu0 %v4336
        %v4357 = vpop.xlane.xlu0 %4356
        %4358 = vmax.xlane.f32.xlu0 %v4337
        %v4359 = vpop.xlane.xlu0 %4358
        %4360 = vmax.xlane.f32.xlu0 %v4338
        %v4361 = vpop.xlane.xlu0 %4360
        %4362 = vmax.xlane.f32.xlu0 %v4339
        %v4363 = vpop.xlane.xlu0 %4362
        %4364 = vmax.xlane.f32.xlu0 %v4340
        %v4365 = vpop.xlane.xlu0 %4364
        %4366 = vmax.xlane.f32.xlu0 %v4341
        %v4367 = vpop.xlane.xlu0 %4366
        %4368 = vmax.xlane.f32.xlu0 %v4342
        %v4369 = vpop.xlane.xlu0 %4368
        %4370 = vmax.xlane.f32.xlu0 %v4343
        %v4371 = vpop.xlane.xlu0 %4370
        %4372 = vmax.xlane.f32.xlu0 %v4344
        %v4373 = vpop.xlane.xlu0 %4372
        %4374 = vmax.xlane.f32.xlu0 %v4345
        %v4375 = vpop.xlane.xlu0 %4374
        %4376 = vmax.xlane.f32.xlu0 %v4346
        %v4377 = vpop.xlane.xlu0 %4376
        %4378 = vmax.xlane.f32.xlu0 %v4347
        %v4379 = vpop.xlane.xlu0 %4378
        %v4380 = vsub.f32 %v4332, %v4349
        %v4381 = vsub.f32 %v4333, %v4351
        %v4382 = vsub.f32 %v4334, %v4353
        %v4383 = vsub.f32 %v4335, %v4355
        %v4384 = vsub.f32 %v4336, %v4357
        %v4385 = vsub.f32 %v4337, %v4359
        %v4386 = vsub.f32 %v4338, %v4361
        %v4387 = vsub.f32 %v4339, %v4363
        %v4388 = vsub.f32 %v4340, %v4365
        %v4389 = vsub.f32 %v4341, %v4367
        %v4390 = vsub.f32 %v4342, %v4369
        %v4391 = vsub.f32 %v4343, %v4371
        %v4392 = vsub.f32 %v4344, %v4373
        %v4393 = vsub.f32 %v4345, %v4375
        %v4394 = vsub.f32 %v4346, %v4377
        %v4395 = vsub.f32 %v4347, %v4379
        %v4396 = vmul.f32 %v4380, 1.442695
        %v4397 = vpow.pop %v4396
        %v4398 = vmul.f32 %v4381, 1.442695
        %v4399 = vpow.pop %v4398
        %v4400 = vmul.f32 %v4382, 1.442695
        %v4401 = vpow.pop %v4400
        %v4402 = vmul.f32 %v4383, 1.442695
        %v4403 = vpow.pop %v4402
        %v4404 = vmul.f32 %v4384, 1.442695
        %v4405 = vpow.pop %v4404
        %v4406 = vmul.f32 %v4385, 1.442695
        %v4407 = vpow.pop %v4406
        %v4408 = vmul.f32 %v4386, 1.442695
        %v4409 = vpow.pop %v4408
        %v4410 = vmul.f32 %v4387, 1.442695
        %v4411 = vpow.pop %v4410
        %v4412 = vmul.f32 %v4388, 1.442695
        %v4413 = vpow.pop %v4412
        %v4414 = vmul.f32 %v4389, 1.442695
        %v4415 = vpow.pop %v4414
        %v4416 = vmul.f32 %v4390, 1.442695
        %v4417 = vpow.pop %v4416
        %v4418 = vmul.f32 %v4391, 1.442695
        %v4419 = vpow.pop %v4418
        %v4420 = vmul.f32 %v4392, 1.442695
        %v4421 = vpow.pop %v4420
        %v4422 = vmul.f32 %v4393, 1.442695
        %v4423 = vpow.pop %v4422
        %v4424 = vmul.f32 %v4394, 1.442695
        %v4425 = vpow.pop %v4424
        %v4426 = vmul.f32 %v4395, 1.442695
        %v4427 = vpow.pop %v4426
        %4428 = vadd.xlane.f32.xlu0 %v4397
        %v4429 = vpop.xlane.xlu0 %4428
        %4430 = vadd.xlane.f32.xlu0 %v4399
        %v4431 = vpop.xlane.xlu0 %4430
        %4432 = vadd.xlane.f32.xlu0 %v4401
        %v4433 = vpop.xlane.xlu0 %4432
        %4434 = vadd.xlane.f32.xlu0 %v4403
        %v4435 = vpop.xlane.xlu0 %4434
        %4436 = vadd.xlane.f32.xlu0 %v4405
        %v4437 = vpop.xlane.xlu0 %4436
        %4438 = vadd.xlane.f32.xlu0 %v4407
        %v4439 = vpop.xlane.xlu0 %4438
        %4440 = vadd.xlane.f32.xlu0 %v4409
        %v4441 = vpop.xlane.xlu0 %4440
        %4442 = vadd.xlane.f32.xlu0 %v4411
        %v4443 = vpop.xlane.xlu0 %4442
        %4444 = vadd.xlane.f32.xlu0 %v4413
        %v4445 = vpop.xlane.xlu0 %4444
        %4446 = vadd.xlane.f32.xlu0 %v4415
        %v4447 = vpop.xlane.xlu0 %4446
        %4448 = vadd.xlane.f32.xlu0 %v4417
        %v4449 = vpop.xlane.xlu0 %4448
        %4450 = vadd.xlane.f32.xlu0 %v4419
        %v4451 = vpop.xlane.xlu0 %4450
        %4452 = vadd.xlane.f32.xlu0 %v4421
        %v4453 = vpop.xlane.xlu0 %4452
        %4454 = vadd.xlane.f32.xlu0 %v4423
        %v4455 = vpop.xlane.xlu0 %4454
        %4456 = vadd.xlane.f32.xlu0 %v4425
        %v4457 = vpop.xlane.xlu0 %4456
        %4458 = vadd.xlane.f32.xlu0 %v4427
        %v4459 = vpop.xlane.xlu0 %4458
        %v4460 = vpack.c.bf16 %v4399, %v4397
        %v4461 = vpack.c.bf16 %v4403, %v4401
        %v4462 = vpack.c.bf16 %v4407, %v4405
        %v4463 = vpack.c.bf16 %v4411, %v4409
        %v4464 = vpack.c.bf16 %v4415, %v4413
        %v4465 = vpack.c.bf16 %v4419, %v4417
        %v4466 = vpack.c.bf16 %v4423, %v4421
        %v4467 = vpack.c.bf16 %v4427, %v4425
        %4468 = vmatprep.subr.bf16.mxu0 0
        %4469 = vmatpush1.bf16.msra.mxu0 %v4179
        %4470 = vmatprep.subr.bf16.mxu0 0
        %4471 = vmatpush1.bf16.msra.mxu0 %v4180
        %4472 = vmatprep.subr.bf16.mxu0 0
        %4473 = vmatpush1.bf16.msra.mxu0 %v4181
        %4474 = vmatprep.subr.bf16.mxu0 0
        %4475 = vmatpush1.bf16.msra.mxu0 %v4182
        %4476 = vmatprep.subr.bf16.mxu0 0
        %4477 = vmatpush1.bf16.msra.mxu0 %v4183
        %4478 = vmatprep.subr.bf16.mxu0 0
        %4479 = vmatpush1.bf16.msra.mxu0 %v4184
        %4480 = vmatprep.subr.bf16.mxu0 0
        %4481 = vmatpush1.bf16.msra.mxu0 %v4185
        %4482 = vmatprep.subr.bf16.mxu0 0
        %4483 = vmatpush1.bf16.msra.mxu0 %v4186
        %4484 = vmatprep.subr.bf16.mxu0 0
        %4485 = vmatpush1.bf16.msra.mxu0 0
        %4486 = vmatprep.subr.bf16.mxu0 0
        %4487 = vmatpush1.bf16.msra.mxu0 0
        %4488 = vmatprep.subr.bf16.mxu0 0
        %4489 = vmatpush1.bf16.msra.mxu0 0
        %4490 = vmatprep.subr.bf16.mxu0 0
        %4491 = vmatpush1.bf16.msra.mxu0 0
        %4492 = vmatprep.subr.bf16.mxu0 0
        %4493 = vmatpush1.bf16.msra.mxu0 0
        %4494 = vmatprep.subr.bf16.mxu0 0
        %4495 = vmatpush1.bf16.msra.mxu0 0
        %4496 = vmatprep.subr.bf16.mxu0 0
        %4497 = vmatpush1.bf16.msra.mxu0 0
        %4498 = vmatprep.subr.bf16.mxu0 0
        %4499 = vmatpush1.bf16.msra.mxu0 0
        %4500 = vmatprep.mubr.bf16.mxu0 0
        %4501 = vmatmul.mubr.bf16.gmra.mrb[0].mxu0 %v4460
        %v4502 = vpop.f32.mrb[0].mxu0
        %v4503 = vadd.f32 0.0, %v4502
        %v4504 = vpop.f32.mrb[0].mxu0
        %v4505 = vpop.f32.mrb[0].mxu0
        %v4506 = vadd.f32 0.0, %v4505
        %v4507 = vpop.f32.mrb[0].mxu0
        %4508 = vmatprep.mubr.bf16.mxu0 0
        %4509 = vmatmul.mubr.bf16.gmra.mrb[0].mxu0 %v4461
        %v4510 = vpop.f32.mrb[0].mxu0
        %v4511 = vadd.f32 0.0, %v4510
        %v4512 = vpop.f32.mrb[0].mxu0
        %v4513 = vpop.f32.mrb[0].mxu0
        %v4514 = vadd.f32 0.0, %v4513
        %v4515 = vpop.f32.mrb[0].mxu0
        %4516 = vmatprep.mubr.bf16.mxu0 0
        %4517 = vmatmul.mubr.bf16.gmra.mrb[0].mxu0 %v4462
        %v4518 = vpop.f32.mrb[0].mxu0
        %v4519 = vadd.f32 0.0, %v4518
        %v4520 = vpop.f32.mrb[0].mxu0
        %v4521 = vpop.f32.mrb[0].mxu0
        %v4522 = vadd.f32 0.0, %v4521
        %v4523 = vpop.f32.mrb[0].mxu0
        %4524 = vmatprep.mubr.bf16.mxu0 0
        %4525 = vmatmul.mubr.bf16.gmra.mrb[0].mxu0 %v4463
        %v4526 = vpop.f32.mrb[0].mxu0
        %v4527 = vadd.f32 0.0, %v4526
        %v4528 = vpop.f32.mrb[0].mxu0
        %v4529 = vpop.f32.mrb[0].mxu0
        %v4530 = vadd.f32 0.0, %v4529
        %v4531 = vpop.f32.mrb[0].mxu0
        %4532 = vmatprep.mubr.bf16.mxu0 0
        %4533 = vmatmul.mubr.bf16.gmra.mrb[0].mxu0 %v4464
        %v4534 = vpop.f32.mrb[0].mxu0
        %v4535 = vadd.f32 0.0, %v4534
        %v4536 = vpop.f32.mrb[0].mxu0
        %v4537 = vpop.f32.mrb[0].mxu0
        %v4538 = vadd.f32 0.0, %v4537
        %v4539 = vpop.f32.mrb[0].mxu0
        %4540 = vmatprep.mubr.bf16.mxu0 0
        %4541 = vmatmul.mubr.bf16.gmra.mrb[0].mxu0 %v4465
        %v4542 = vpop.f32.mrb[0].mxu0
        %v4543 = vadd.f32 0.0, %v4542
        %v4544 = vpop.f32.mrb[0].mxu0
        %v4545 = vpop.f32.mrb[0].mxu0
        %v4546 = vadd.f32 0.0, %v4545
        %v4547 = vpop.f32.mrb[0].mxu0
        %4548 = vmatprep.mubr.bf16.mxu0 0
        %4549 = vmatmul.mubr.bf16.gmra.mrb[0].mxu0 %v4466
        %v4550 = vpop.f32.mrb[0].mxu0
        %v4551 = vadd.f32 0.0, %v4550
        %v4552 = vpop.f32.mrb[0].mxu0
        %v4553 = vpop.f32.mrb[0].mxu0
        %v4554 = vadd.f32 0.0, %v4553
        %v4555 = vpop.f32.mrb[0].mxu0
        %4556 = vmatprep.mubr.bf16.mxu0 0
        %4557 = vmatmul.mubr.bf16.gmra.mrb[0].mxu0 %v4467
        %v4558 = vpop.f32.mrb[0].mxu0
        %v4559 = vadd.f32 0.0, %v4558
        %v4560 = vpop.f32.mrb[0].mxu0
        %v4561 = vpop.f32.mrb[0].mxu0
        %v4562 = vadd.f32 0.0, %v4561
        %v4563 = vpop.f32.mrb[0].mxu0
        %4564 = vdwg.mxu0
        %v4565 = vrcp.pop %v4429
        %v4566 = vrcp.pop %v4431
        %v4567 = vrcp.pop %v4433
        %v4568 = vrcp.pop %v4435
        %v4569 = vrcp.pop %v4437
        %v4570 = vrcp.pop %v4439
        %v4571 = vrcp.pop %v4441
        %v4572 = vrcp.pop %v4443
        %v4573 = vrcp.pop %v4445
        %v4574 = vrcp.pop %v4447
        %v4575 = vrcp.pop %v4449
        %v4576 = vrcp.pop %v4451
        %v4577 = vrcp.pop %v4453
        %v4578 = vrcp.pop %v4455
        %v4579 = vrcp.pop %v4457
        %v4580 = vrcp.pop %v4459
        %v4581 = vmul.f32 %v4503, %v4565
        %v4582 = vmul.f32 %v4506, %v4566
        %v4583 = vmul.f32 %v4511, %v4567
        %v4584 = vmul.f32 %v4514, %v4568
        %v4585 = vmul.f32 %v4519, %v4569
        %v4586 = vmul.f32 %v4522, %v4570
        %v4587 = vmul.f32 %v4527, %v4571
        %v4588 = vmul.f32 %v4530, %v4572
        %v4589 = vmul.f32 %v4535, %v4573
        %v4590 = vmul.f32 %v4538, %v4574
        %v4591 = vmul.f32 %v4543, %v4575
        %v4592 = vmul.f32 %v4546, %v4576
        %v4593 = vmul.f32 %v4551, %v4577
        %v4594 = vmul.f32 %v4554, %v4578
        %v4595 = vmul.f32 %v4559, %v4579
        %v4596 = vmul.f32 %v4562, %v4580
        %4597 = vst.msk [vmem:[#allocation3 + $0x80] sm:$0xff] %vm1759, %v4581
        %4598 = vst.msk [vmem:[#allocation3 + $0x88] sm:$0xff] %vm1759, %v4582
        %4599 = vst.msk [vmem:[#allocation3 + $0x90] sm:$0xff] %vm1759, %v4583
        %4600 = vst.msk [vmem:[#allocation3 + $0x98] sm:$0xff] %vm1759, %v4584
        %4601 = vst.msk [vmem:[#allocation3 + $0xa0] sm:$0xff] %vm1759, %v4585
        %4602 = vst.msk [vmem:[#allocation3 + $0xa8] sm:$0xff] %vm1759, %v4586
        %4603 = vst.msk [vmem:[#allocation3 + $0xb0] sm:$0xff] %vm1759, %v4587
        %4604 = vst.msk [vmem:[#allocation3 + $0xb8] sm:$0xff] %vm1759, %v4588
        %4605 = vst.msk [vmem:[#allocation3 + $0xc0] sm:$0xff] %vm1759, %v4589
        %4606 = vst.msk [vmem:[#allocation3 + $0xc8] sm:$0xff] %vm1759, %v4590
        %4607 = vst.msk [vmem:[#allocation3 + $0xd0] sm:$0xff] %vm1759, %v4591
        %4608 = vst.msk [vmem:[#allocation3 + $0xd8] sm:$0xff] %vm1759, %v4592
        %4609 = vst.msk [vmem:[#allocation3 + $0xe0] sm:$0xff] %vm1759, %v4593
        %4610 = vst.msk [vmem:[#allocation3 + $0xe8] sm:$0xff] %vm1759, %v4594
        %4611 = vst.msk [vmem:[#allocation3 + $0xf0] sm:$0xff] %vm1759, %v4595
        %4612 = vst.msk [vmem:[#allocation3 + $0xf8] sm:$0xff] %vm1759, %v4596
        %v4613 = vld [vmem:[#allocation2 + $0x180] sm:$0xff]
        %v4614 = vld [vmem:[#allocation2 + $0x198] sm:$0xff]
        %v4615 = vld [vmem:[#allocation2 + $0x1b0] sm:$0xff]
        %v4616 = vld [vmem:[#allocation2 + $0x1c8] sm:$0xff]
        %v4617 = vld [vmem:[#allocation2 + $0x1e0] sm:$0xff]
        %v4618 = vld [vmem:[#allocation2 + $0x1f8] sm:$0xff]
        %v4619 = vld [vmem:[#allocation2 + $0x210] sm:$0xff]
        %v4620 = vld [vmem:[#allocation2 + $0x228] sm:$0xff]
        %v4621 = vld [vmem:[#allocation2 + $0x240] sm:$0xff]
        %v4622 = vld [vmem:[#allocation2 + $0x258] sm:$0xff]
        %v4623 = vld [vmem:[#allocation2 + $0x270] sm:$0xff]
        %v4624 = vld [vmem:[#allocation2 + $0x288] sm:$0xff]
        %v4625 = vld [vmem:[#allocation2 + $0x2a0] sm:$0xff]
        %v4626 = vld [vmem:[#allocation2 + $0x2b8] sm:$0xff]
        %v4627 = vld [vmem:[#allocation2 + $0x2d0] sm:$0xff]
        %v4628 = vld [vmem:[#allocation2 + $0x2e8] sm:$0xff]
        %v4629 = vpack.c.bf16 %v4614, %v4613
        %v4630 = vpack.c.bf16 %v4616, %v4615
        %v4631 = vpack.c.bf16 %v4618, %v4617
        %v4632 = vpack.c.bf16 %v4620, %v4619
        %v4633 = vpack.c.bf16 %v4622, %v4621
        %v4634 = vpack.c.bf16 %v4624, %v4623
        %v4635 = vpack.c.bf16 %v4626, %v4625
        %v4636 = vpack.c.bf16 %v4628, %v4627
        %v4637 = vld [vmem:[#allocation2 + $0x188] sm:$0xff]
        %v4638 = vld [vmem:[#allocation2 + $0x1a0] sm:$0xff]
        %v4639 = vld [vmem:[#allocation2 + $0x1b8] sm:$0xff]
        %v4640 = vld [vmem:[#allocation2 + $0x1d0] sm:$0xff]
        %v4641 = vld [vmem:[#allocation2 + $0x1e8] sm:$0xff]
        %v4642 = vld [vmem:[#allocation2 + $0x200] sm:$0xff]
        %v4643 = vld [vmem:[#allocation2 + $0x218] sm:$0xff]
        %v4644 = vld [vmem:[#allocation2 + $0x230] sm:$0xff]
        %v4645 = vld [vmem:[#allocation2 + $0x248] sm:$0xff]
        %v4646 = vld [vmem:[#allocation2 + $0x260] sm:$0xff]
        %v4647 = vld [vmem:[#allocation2 + $0x278] sm:$0xff]
        %v4648 = vld [vmem:[#allocation2 + $0x290] sm:$0xff]
        %v4649 = vld [vmem:[#allocation2 + $0x2a8] sm:$0xff]
        %v4650 = vld [vmem:[#allocation2 + $0x2c0] sm:$0xff]
        %v4651 = vld [vmem:[#allocation2 + $0x2d8] sm:$0xff]
        %v4652 = vld [vmem:[#allocation2 + $0x2f0] sm:$0xff]
        %v4653 = vpack.c.bf16 %v4638, %v4637
        %v4654 = vpack.c.bf16 %v4640, %v4639
        %v4655 = vpack.c.bf16 %v4642, %v4641
        %v4656 = vpack.c.bf16 %v4644, %v4643
        %v4657 = vpack.c.bf16 %v4646, %v4645
        %v4658 = vpack.c.bf16 %v4648, %v4647
        %v4659 = vpack.c.bf16 %v4650, %v4649
        %v4660 = vpack.c.bf16 %v4652, %v4651
        %v4661 = vld [vmem:[#allocation2 + $0x190] sm:$0xff]
        %v4662 = vld [vmem:[#allocation2 + $0x1a8] sm:$0xff]
        %v4663 = vld [vmem:[#allocation2 + $0x1c0] sm:$0xff]
        %v4664 = vld [vmem:[#allocation2 + $0x1d8] sm:$0xff]
        %v4665 = vld [vmem:[#allocation2 + $0x1f0] sm:$0xff]
        %v4666 = vld [vmem:[#allocation2 + $0x208] sm:$0xff]
        %v4667 = vld [vmem:[#allocation2 + $0x220] sm:$0xff]
        %v4668 = vld [vmem:[#allocation2 + $0x238] sm:$0xff]
        %v4669 = vld [vmem:[#allocation2 + $0x250] sm:$0xff]
        %v4670 = vld [vmem:[#allocation2 + $0x268] sm:$0xff]
        %v4671 = vld [vmem:[#allocation2 + $0x280] sm:$0xff]
        %v4672 = vld [vmem:[#allocation2 + $0x298] sm:$0xff]
        %v4673 = vld [vmem:[#allocation2 + $0x2b0] sm:$0xff]
        %v4674 = vld [vmem:[#allocation2 + $0x2c8] sm:$0xff]
        %v4675 = vld [vmem:[#allocation2 + $0x2e0] sm:$0xff]
        %v4676 = vld [vmem:[#allocation2 + $0x2f8] sm:$0xff]
        %v4677 = vpack.c.bf16 %v4662, %v4661
        %v4678 = vpack.c.bf16 %v4664, %v4663
        %v4679 = vpack.c.bf16 %v4666, %v4665
        %v4680 = vpack.c.bf16 %v4668, %v4667
        %v4681 = vpack.c.bf16 %v4670, %v4669
        %v4682 = vpack.c.bf16 %v4672, %v4671
        %v4683 = vpack.c.bf16 %v4674, %v4673
        %v4684 = vpack.c.bf16 %v4676, %v4675
        %4693 = vrot.lane.b32.xlu0 %v4629, 96
        %v4694 = vpop.permute.xlu0 %4693
        %4695 = vrot.lane.b32.xlu0 %v4630, 96
        %v4696 = vpop.permute.xlu0 %4695
        %4697 = vrot.lane.b32.xlu0 %v4631, 96
        %v4698 = vpop.permute.xlu0 %4697
        %4699 = vrot.lane.b32.xlu0 %v4632, 96
        %v4700 = vpop.permute.xlu0 %4699
        %4701 = vrot.lane.b32.xlu0 %v4633, 96
        %v4702 = vpop.permute.xlu0 %4701
        %4703 = vrot.lane.b32.xlu0 %v4634, 96
        %v4704 = vpop.permute.xlu0 %4703
        %4705 = vrot.lane.b32.xlu0 %v4635, 96
        %v4706 = vpop.permute.xlu0 %4705
        %4707 = vrot.lane.b32.xlu0 %v4636, 96
        %v4708 = vpop.permute.xlu0 %4707
        %4717 = vrot.lane.b32.xlu0 %v4653, 96
        %v4718 = vpop.permute.xlu0 %4717
        %4719 = vrot.lane.b32.xlu0 %v4654, 96
        %v4720 = vpop.permute.xlu0 %4719
        %4721 = vrot.lane.b32.xlu0 %v4655, 96
        %v4722 = vpop.permute.xlu0 %4721
        %4723 = vrot.lane.b32.xlu0 %v4656, 96
        %v4724 = vpop.permute.xlu0 %4723
        %4725 = vrot.lane.b32.xlu0 %v4657, 96
        %v4726 = vpop.permute.xlu0 %4725
        %4727 = vrot.lane.b32.xlu0 %v4658, 96
        %v4728 = vpop.permute.xlu0 %4727
        %4729 = vrot.lane.b32.xlu0 %v4659, 96
        %v4730 = vpop.permute.xlu0 %4729
        %4731 = vrot.lane.b32.xlu0 %v4660, 96
        %v4732 = vpop.permute.xlu0 %4731
        %v4734 = vsel %vm1759, %v4694, 0
        %v4737 = vsel %vm1759, %v4696, 0
        %v4740 = vsel %vm1759, %v4698, 0
        %v4743 = vsel %vm1759, %v4700, 0
        %v4746 = vsel %vm1759, %v4702, 0
        %v4749 = vsel %vm1759, %v4704, 0
        %v4752 = vsel %vm1759, %v4706, 0
        %v4755 = vsel %vm1759, %v4708, 0
        %v4758 = vsel %vm1759, %v4718, 0
        %v4761 = vsel %vm1759, %v4720, 0
        %v4764 = vsel %vm1759, %v4722, 0
        %v4767 = vsel %vm1759, %v4724, 0
        %v4770 = vsel %vm1759, %v4726, 0
        %v4773 = vsel %vm1759, %v4728, 0
        %v4776 = vsel %vm1759, %v4730, 0
        %v4779 = vsel %vm1759, %v4732, 0
        %4781 = vmatprep.subr.bf16.mxu0 0
        %4782 = vmatpush1.bf16.xpose.msra.mxu0 %v4758
        %4783 = vmatprep.subr.bf16.mxu0 0
        %4784 = vmatpush1.bf16.xpose.msra.mxu0 %v4761
        %4785 = vmatprep.subr.bf16.mxu0 0
        %4786 = vmatpush1.bf16.xpose.msra.mxu0 %v4764
        %4787 = vmatprep.subr.bf16.mxu0 0
        %4788 = vmatpush1.bf16.xpose.msra.mxu0 %v4767
        %4789 = vmatprep.subr.bf16.mxu0 0
        %4790 = vmatpush1.bf16.xpose.msra.mxu0 %v4770
        %4791 = vmatprep.subr.bf16.mxu0 0
        %4792 = vmatpush1.bf16.xpose.msra.mxu0 %v4773
        %4793 = vmatprep.subr.bf16.mxu0 0
        %4794 = vmatpush1.bf16.xpose.msra.mxu0 %v4776
        %4795 = vmatprep.subr.bf16.mxu0 0
        %4796 = vmatpush1.bf16.xpose.msra.mxu0 %v4779
        %4797 = vmatprep.subr.bf16.mxu0 0
        %4798 = vmatpush1.bf16.xpose.msra.mxu0 0
        %4799 = vmatprep.subr.bf16.mxu0 0
        %4800 = vmatpush1.bf16.xpose.msra.mxu0 0
        %4801 = vmatprep.subr.bf16.mxu0 0
        %4802 = vmatpush1.bf16.xpose.msra.mxu0 0
        %4803 = vmatprep.subr.bf16.mxu0 0
        %4804 = vmatpush1.bf16.xpose.msra.mxu0 0
        %4805 = vmatprep.subr.bf16.mxu0 0
        %4806 = vmatpush1.bf16.xpose.msra.mxu0 0
        %4807 = vmatprep.subr.bf16.mxu0 0
        %4808 = vmatpush1.bf16.xpose.msra.mxu0 0
        %4809 = vmatprep.subr.bf16.mxu0 0
        %4810 = vmatpush1.bf16.xpose.msra.mxu0 0
        %4811 = vmatprep.subr.bf16.mxu0 0
        %4812 = vmatpush1.bf16.xpose.msra.mxu0 0
        %4813 = vmatprep.mubr.bf16.mxu0 0
        %4814 = vmatmul.mubr.bf16.gmra.mrb[0].mxu0 %v4734
        %v4815 = vpop.f32.mrb[0].mxu0
        %v4816 = vadd.f32 0.0, %v4815
        %v4817 = vpop.f32.mrb[0].mxu0
        %v4818 = vpop.f32.mrb[0].mxu0
        %v4819 = vadd.f32 0.0, %v4818
        %v4820 = vpop.f32.mrb[0].mxu0
        %4821 = vmatprep.mubr.bf16.mxu0 0
        %4822 = vmatmul.mubr.bf16.gmra.mrb[0].mxu0 %v4737
        %v4823 = vpop.f32.mrb[0].mxu0
        %v4824 = vadd.f32 0.0, %v4823
        %v4825 = vpop.f32.mrb[0].mxu0
        %v4826 = vpop.f32.mrb[0].mxu0
        %v4827 = vadd.f32 0.0, %v4826
        %v4828 = vpop.f32.mrb[0].mxu0
        %4829 = vmatprep.mubr.bf16.mxu0 0
        %4830 = vmatmul.mubr.bf16.gmra.mrb[0].mxu0 %v4740
        %v4831 = vpop.f32.mrb[0].mxu0
        %v4832 = vadd.f32 0.0, %v4831
        %v4833 = vpop.f32.mrb[0].mxu0
        %v4834 = vpop.f32.mrb[0].mxu0
        %v4835 = vadd.f32 0.0, %v4834
        %v4836 = vpop.f32.mrb[0].mxu0
        %4837 = vmatprep.mubr.bf16.mxu0 0
        %4838 = vmatmul.mubr.bf16.gmra.mrb[0].mxu0 %v4743
        %v4839 = vpop.f32.mrb[0].mxu0
        %v4840 = vadd.f32 0.0, %v4839
        %v4841 = vpop.f32.mrb[0].mxu0
        %v4842 = vpop.f32.mrb[0].mxu0
        %v4843 = vadd.f32 0.0, %v4842
        %v4844 = vpop.f32.mrb[0].mxu0
        %4845 = vmatprep.mubr.bf16.mxu0 0
        %4846 = vmatmul.mubr.bf16.gmra.mrb[0].mxu0 %v4746
        %v4847 = vpop.f32.mrb[0].mxu0
        %v4848 = vadd.f32 0.0, %v4847
        %v4849 = vpop.f32.mrb[0].mxu0
        %v4850 = vpop.f32.mrb[0].mxu0
        %v4851 = vadd.f32 0.0, %v4850
        %v4852 = vpop.f32.mrb[0].mxu0
        %4853 = vmatprep.mubr.bf16.mxu0 0
        %4854 = vmatmul.mubr.bf16.gmra.mrb[0].mxu0 %v4749
        %v4855 = vpop.f32.mrb[0].mxu0
        %v4856 = vadd.f32 0.0, %v4855
        %v4857 = vpop.f32.mrb[0].mxu0
        %v4858 = vpop.f32.mrb[0].mxu0
        %v4859 = vadd.f32 0.0, %v4858
        %v4860 = vpop.f32.mrb[0].mxu0
        %4861 = vmatprep.mubr.bf16.mxu0 0
        %4862 = vmatmul.mubr.bf16.gmra.mrb[0].mxu0 %v4752
        %v4863 = vpop.f32.mrb[0].mxu0
        %v4864 = vadd.f32 0.0, %v4863
        %v4865 = vpop.f32.mrb[0].mxu0
        %v4866 = vpop.f32.mrb[0].mxu0
        %v4867 = vadd.f32 0.0, %v4866
        %v4868 = vpop.f32.mrb[0].mxu0
        %4869 = vmatprep.mubr.bf16.mxu0 0
        %4870 = vmatmul.mubr.bf16.gmra.mrb[0].mxu0 %v4755
        %v4871 = vpop.f32.mrb[0].mxu0
        %v4872 = vadd.f32 0.0, %v4871
        %v4873 = vpop.f32.mrb[0].mxu0
        %v4874 = vpop.f32.mrb[0].mxu0
        %v4875 = vadd.f32 0.0, %v4874
        %v4876 = vpop.f32.mrb[0].mxu0
        %4877 = vdwg.mxu0
        %v4878 = vsel %vm1671, %v4816, -1e+30
        %v4879 = vsel %vm1672, %v4819, -1e+30
        %v4880 = vsel %vm1673, %v4824, -1e+30
        %v4881 = vsel %vm1674, %v4827, -1e+30
        %v4882 = vsel %vm1675, %v4832, -1e+30
        %v4883 = vsel %vm1676, %v4835, -1e+30
        %v4884 = vsel %vm1677, %v4840, -1e+30
        %v4885 = vsel %vm1678, %v4843, -1e+30
        %v4886 = vsel %vm1679, %v4848, -1e+30
        %v4887 = vsel %vm1680, %v4851, -1e+30
        %v4888 = vsel %vm1681, %v4856, -1e+30
        %v4889 = vsel %vm1682, %v4859, -1e+30
        %v4890 = vsel %vm1683, %v4864, -1e+30
        %v4891 = vsel %vm1684, %v4867, -1e+30
        %v4892 = vsel %vm1685, %v4872, -1e+30
        %v4893 = vsel %vm1686, %v4875, -1e+30
        %4894 = vmax.xlane.f32.xlu0 %v4878
        %v4895 = vpop.xlane.xlu0 %4894
        %4896 = vmax.xlane.f32.xlu0 %v4879
        %v4897 = vpop.xlane.xlu0 %4896
        %4898 = vmax.xlane.f32.xlu0 %v4880
        %v4899 = vpop.xlane.xlu0 %4898
        %4900 = vmax.xlane.f32.xlu0 %v4881
        %v4901 = vpop.xlane.xlu0 %4900
        %4902 = vmax.xlane.f32.xlu0 %v4882
        %v4903 = vpop.xlane.xlu0 %4902
        %4904 = vmax.xlane.f32.xlu0 %v4883
        %v4905 = vpop.xlane.xlu0 %4904
        %4906 = vmax.xlane.f32.xlu0 %v4884
        %v4907 = vpop.xlane.xlu0 %4906
        %4908 = vmax.xlane.f32.xlu0 %v4885
        %v4909 = vpop.xlane.xlu0 %4908
        %4910 = vmax.xlane.f32.xlu0 %v4886
        %v4911 = vpop.xlane.xlu0 %4910
        %4912 = vmax.xlane.f32.xlu0 %v4887
        %v4913 = vpop.xlane.xlu0 %4912
        %4914 = vmax.xlane.f32.xlu0 %v4888
        %v4915 = vpop.xlane.xlu0 %4914
        %4916 = vmax.xlane.f32.xlu0 %v4889
        %v4917 = vpop.xlane.xlu0 %4916
        %4918 = vmax.xlane.f32.xlu0 %v4890
        %v4919 = vpop.xlane.xlu0 %4918
        %4920 = vmax.xlane.f32.xlu0 %v4891
        %v4921 = vpop.xlane.xlu0 %4920
        %4922 = vmax.xlane.f32.xlu0 %v4892
        %v4923 = vpop.xlane.xlu0 %4922
        %4924 = vmax.xlane.f32.xlu0 %v4893
        %v4925 = vpop.xlane.xlu0 %4924
        %v4926 = vsub.f32 %v4878, %v4895
        %v4927 = vsub.f32 %v4879, %v4897
        %v4928 = vsub.f32 %v4880, %v4899
        %v4929 = vsub.f32 %v4881, %v4901
        %v4930 = vsub.f32 %v4882, %v4903
        %v4931 = vsub.f32 %v4883, %v4905
        %v4932 = vsub.f32 %v4884, %v4907
        %v4933 = vsub.f32 %v4885, %v4909
        %v4934 = vsub.f32 %v4886, %v4911
        %v4935 = vsub.f32 %v4887, %v4913
        %v4936 = vsub.f32 %v4888, %v4915
        %v4937 = vsub.f32 %v4889, %v4917
        %v4938 = vsub.f32 %v4890, %v4919
        %v4939 = vsub.f32 %v4891, %v4921
        %v4940 = vsub.f32 %v4892, %v4923
        %v4941 = vsub.f32 %v4893, %v4925
        %v4942 = vmul.f32 %v4926, 1.442695
        %v4943 = vpow.pop %v4942
        %v4944 = vmul.f32 %v4927, 1.442695
        %v4945 = vpow.pop %v4944
        %v4946 = vmul.f32 %v4928, 1.442695
        %v4947 = vpow.pop %v4946
        %v4948 = vmul.f32 %v4929, 1.442695
        %v4949 = vpow.pop %v4948
        %v4950 = vmul.f32 %v4930, 1.442695
        %v4951 = vpow.pop %v4950
        %v4952 = vmul.f32 %v4931, 1.442695
        %v4953 = vpow.pop %v4952
        %v4954 = vmul.f32 %v4932, 1.442695
        %v4955 = vpow.pop %v4954
        %v4956 = vmul.f32 %v4933, 1.442695
        %v4957 = vpow.pop %v4956
        %v4958 = vmul.f32 %v4934, 1.442695
        %v4959 = vpow.pop %v4958
        %v4960 = vmul.f32 %v4935, 1.442695
        %v4961 = vpow.pop %v4960
        %v4962 = vmul.f32 %v4936, 1.442695
        %v4963 = vpow.pop %v4962
        %v4964 = vmul.f32 %v4937, 1.442695
        %v4965 = vpow.pop %v4964
        %v4966 = vmul.f32 %v4938, 1.442695
        %v4967 = vpow.pop %v4966
        %v4968 = vmul.f32 %v4939, 1.442695
        %v4969 = vpow.pop %v4968
        %v4970 = vmul.f32 %v4940, 1.442695
        %v4971 = vpow.pop %v4970
        %v4972 = vmul.f32 %v4941, 1.442695
        %v4973 = vpow.pop %v4972
        %4974 = vadd.xlane.f32.xlu0 %v4943
        %v4975 = vpop.xlane.xlu0 %4974
        %4976 = vadd.xlane.f32.xlu0 %v4945
        %v4977 = vpop.xlane.xlu0 %4976
        %4978 = vadd.xlane.f32.xlu0 %v4947
        %v4979 = vpop.xlane.xlu0 %4978
        %4980 = vadd.xlane.f32.xlu0 %v4949
        %v4981 = vpop.xlane.xlu0 %4980
        %4982 = vadd.xlane.f32.xlu0 %v4951
        %v4983 = vpop.xlane.xlu0 %4982
        %4984 = vadd.xlane.f32.xlu0 %v4953
        %v4985 = vpop.xlane.xlu0 %4984
        %4986 = vadd.xlane.f32.xlu0 %v4955
        %v4987 = vpop.xlane.xlu0 %4986
        %4988 = vadd.xlane.f32.xlu0 %v4957
        %v4989 = vpop.xlane.xlu0 %4988
        %4990 = vadd.xlane.f32.xlu0 %v4959
        %v4991 = vpop.xlane.xlu0 %4990
        %4992 = vadd.xlane.f32.xlu0 %v4961
        %v4993 = vpop.xlane.xlu0 %4992
        %4994 = vadd.xlane.f32.xlu0 %v4963
        %v4995 = vpop.xlane.xlu0 %4994
        %4996 = vadd.xlane.f32.xlu0 %v4965
        %v4997 = vpop.xlane.xlu0 %4996
        %4998 = vadd.xlane.f32.xlu0 %v4967
        %v4999 = vpop.xlane.xlu0 %4998
        %5000 = vadd.xlane.f32.xlu0 %v4969
        %v5001 = vpop.xlane.xlu0 %5000
        %5002 = vadd.xlane.f32.xlu0 %v4971
        %v5003 = vpop.xlane.xlu0 %5002
        %5004 = vadd.xlane.f32.xlu0 %v4973
        %v5005 = vpop.xlane.xlu0 %5004
        %v5006 = vpack.c.bf16 %v4945, %v4943
        %v5007 = vpack.c.bf16 %v4949, %v4947
        %v5008 = vpack.c.bf16 %v4953, %v4951
        %v5009 = vpack.c.bf16 %v4957, %v4955
        %v5010 = vpack.c.bf16 %v4961, %v4959
        %v5011 = vpack.c.bf16 %v4965, %v4963
        %v5012 = vpack.c.bf16 %v4969, %v4967
        %v5013 = vpack.c.bf16 %v4973, %v4971
        %5022 = vrot.lane.b32.xlu0 %v4677, 96
        %v5023 = vpop.permute.xlu0 %5022
        %5024 = vrot.lane.b32.xlu0 %v4678, 96
        %v5025 = vpop.permute.xlu0 %5024
        %5026 = vrot.lane.b32.xlu0 %v4679, 96
        %v5027 = vpop.permute.xlu0 %5026
        %5028 = vrot.lane.b32.xlu0 %v4680, 96
        %v5029 = vpop.permute.xlu0 %5028
        %5030 = vrot.lane.b32.xlu0 %v4681, 96
        %v5031 = vpop.permute.xlu0 %5030
        %5032 = vrot.lane.b32.xlu0 %v4682, 96
        %v5033 = vpop.permute.xlu0 %5032
        %5034 = vrot.lane.b32.xlu0 %v4683, 96
        %v5035 = vpop.permute.xlu0 %5034
        %5036 = vrot.lane.b32.xlu0 %v4684, 96
        %v5037 = vpop.permute.xlu0 %5036
        %5046 = vmatprep.subr.bf16.mxu0 0
        %5047 = vmatpush1.bf16.msra.mxu0 %v5023
        %5048 = vmatprep.subr.bf16.mxu0 0
        %5049 = vmatpush1.bf16.msra.mxu0 %v5025
        %5050 = vmatprep.subr.bf16.mxu0 0
        %5051 = vmatpush1.bf16.msra.mxu0 %v5027
        %5052 = vmatprep.subr.bf16.mxu0 0
        %5053 = vmatpush1.bf16.msra.mxu0 %v5029
        %5054 = vmatprep.subr.bf16.mxu0 0
        %5055 = vmatpush1.bf16.msra.mxu0 %v5031
        %5056 = vmatprep.subr.bf16.mxu0 0
        %5057 = vmatpush1.bf16.msra.mxu0 %v5033
        %5058 = vmatprep.subr.bf16.mxu0 0
        %5059 = vmatpush1.bf16.msra.mxu0 %v5035
        %5060 = vmatprep.subr.bf16.mxu0 0
        %5061 = vmatpush1.bf16.msra.mxu0 %v5037
        %5062 = vmatprep.subr.bf16.mxu0 0
        %5063 = vmatpush1.bf16.msra.mxu0 0
        %5064 = vmatprep.subr.bf16.mxu0 0
        %5065 = vmatpush1.bf16.msra.mxu0 0
        %5066 = vmatprep.subr.bf16.mxu0 0
        %5067 = vmatpush1.bf16.msra.mxu0 0
        %5068 = vmatprep.subr.bf16.mxu0 0
        %5069 = vmatpush1.bf16.msra.mxu0 0
        %5070 = vmatprep.subr.bf16.mxu0 0
        %5071 = vmatpush1.bf16.msra.mxu0 0
        %5072 = vmatprep.subr.bf16.mxu0 0
        %5073 = vmatpush1.bf16.msra.mxu0 0
        %5074 = vmatprep.subr.bf16.mxu0 0
        %5075 = vmatpush1.bf16.msra.mxu0 0
        %5076 = vmatprep.subr.bf16.mxu0 0
        %5077 = vmatpush1.bf16.msra.mxu0 0
        %5078 = vmatprep.mubr.bf16.mxu0 0
        %5079 = vmatmul.mubr.bf16.gmra.mrb[0].mxu0 %v5006
        %v5080 = vpop.f32.mrb[0].mxu0
        %v5081 = vadd.f32 0.0, %v5080
        %v5082 = vpop.f32.mrb[0].mxu0
        %v5083 = vpop.f32.mrb[0].mxu0
        %v5084 = vadd.f32 0.0, %v5083
        %v5085 = vpop.f32.mrb[0].mxu0
        %5086 = vmatprep.mubr.bf16.mxu0 0
        %5087 = vmatmul.mubr.bf16.gmra.mrb[0].mxu0 %v5007
        %v5088 = vpop.f32.mrb[0].mxu0
        %v5089 = vadd.f32 0.0, %v5088
        %v5090 = vpop.f32.mrb[0].mxu0
        %v5091 = vpop.f32.mrb[0].mxu0
        %v5092 = vadd.f32 0.0, %v5091
        %v5093 = vpop.f32.mrb[0].mxu0
        %5094 = vmatprep.mubr.bf16.mxu0 0
        %5095 = vmatmul.mubr.bf16.gmra.mrb[0].mxu0 %v5008
        %v5096 = vpop.f32.mrb[0].mxu0
        %v5097 = vadd.f32 0.0, %v5096
        %v5098 = vpop.f32.mrb[0].mxu0
        %v5099 = vpop.f32.mrb[0].mxu0
        %v5100 = vadd.f32 0.0, %v5099
        %v5101 = vpop.f32.mrb[0].mxu0
        %5102 = vmatprep.mubr.bf16.mxu0 0
        %5103 = vmatmul.mubr.bf16.gmra.mrb[0].mxu0 %v5009
        %v5104 = vpop.f32.mrb[0].mxu0
        %v5105 = vadd.f32 0.0, %v5104
        %v5106 = vpop.f32.mrb[0].mxu0
        %v5107 = vpop.f32.mrb[0].mxu0
        %v5108 = vadd.f32 0.0, %v5107
        %v5109 = vpop.f32.mrb[0].mxu0
        %5110 = vmatprep.mubr.bf16.mxu0 0
        %5111 = vmatmul.mubr.bf16.gmra.mrb[0].mxu0 %v5010
        %v5112 = vpop.f32.mrb[0].mxu0
        %v5113 = vadd.f32 0.0, %v5112
        %v5114 = vpop.f32.mrb[0].mxu0
        %v5115 = vpop.f32.mrb[0].mxu0
        %v5116 = vadd.f32 0.0, %v5115
        %v5117 = vpop.f32.mrb[0].mxu0
        %5118 = vmatprep.mubr.bf16.mxu0 0
        %5119 = vmatmul.mubr.bf16.gmra.mrb[0].mxu0 %v5011
        %v5120 = vpop.f32.mrb[0].mxu0
        %v5121 = vadd.f32 0.0, %v5120
        %v5122 = vpop.f32.mrb[0].mxu0
        %v5123 = vpop.f32.mrb[0].mxu0
        %v5124 = vadd.f32 0.0, %v5123
        %v5125 = vpop.f32.mrb[0].mxu0
        %5126 = vmatprep.mubr.bf16.mxu0 0
        %5127 = vmatmul.mubr.bf16.gmra.mrb[0].mxu0 %v5012
        %v5128 = vpop.f32.mrb[0].mxu0
        %v5129 = vadd.f32 0.0, %v5128
        %v5130 = vpop.f32.mrb[0].mxu0
        %v5131 = vpop.f32.mrb[0].mxu0
        %v5132 = vadd.f32 0.0, %v5131
        %v5133 = vpop.f32.mrb[0].mxu0
        %5134 = vmatprep.mubr.bf16.mxu0 0
        %5135 = vmatmul.mubr.bf16.gmra.mrb[0].mxu0 %v5013
        %v5136 = vpop.f32.mrb[0].mxu0
        %v5137 = vadd.f32 0.0, %v5136
        %v5138 = vpop.f32.mrb[0].mxu0
        %v5139 = vpop.f32.mrb[0].mxu0
        %v5140 = vadd.f32 0.0, %v5139
        %v5141 = vpop.f32.mrb[0].mxu0
        %5142 = vdwg.mxu0
        %v5143 = vrcp.pop %v4975
        %v5144 = vrcp.pop %v4977
        %v5145 = vrcp.pop %v4979
        %v5146 = vrcp.pop %v4981
        %v5147 = vrcp.pop %v4983
        %v5148 = vrcp.pop %v4985
        %v5149 = vrcp.pop %v4987
        %v5150 = vrcp.pop %v4989
        %v5151 = vrcp.pop %v4991
        %v5152 = vrcp.pop %v4993
        %v5153 = vrcp.pop %v4995
        %v5154 = vrcp.pop %v4997
        %v5155 = vrcp.pop %v4999
        %v5156 = vrcp.pop %v5001
        %v5157 = vrcp.pop %v5003
        %v5158 = vrcp.pop %v5005
        %v5159 = vmul.f32 %v5081, %v5143
        %v5160 = vmul.f32 %v5084, %v5144
        %v5161 = vmul.f32 %v5089, %v5145
        %v5162 = vmul.f32 %v5092, %v5146
        %v5163 = vmul.f32 %v5097, %v5147
        %v5164 = vmul.f32 %v5100, %v5148
        %v5165 = vmul.f32 %v5105, %v5149
        %v5166 = vmul.f32 %v5108, %v5150
        %v5167 = vmul.f32 %v5113, %v5151
        %v5168 = vmul.f32 %v5116, %v5152
        %v5169 = vmul.f32 %v5121, %v5153
        %v5170 = vmul.f32 %v5124, %v5154
        %v5171 = vmul.f32 %v5129, %v5155
        %v5172 = vmul.f32 %v5132, %v5156
        %v5173 = vmul.f32 %v5137, %v5157
        %v5174 = vmul.f32 %v5140, %v5158
        %5191 = vrot.lane.b32.xlu0 %v5159, 32
        %v5192 = vpop.permute.xlu0 %5191
        %5193 = vrot.lane.b32.xlu0 %v5160, 32
        %v5194 = vpop.permute.xlu0 %5193
        %5195 = vrot.lane.b32.xlu0 %v5161, 32
        %v5196 = vpop.permute.xlu0 %5195
        %5197 = vrot.lane.b32.xlu0 %v5162, 32
        %v5198 = vpop.permute.xlu0 %5197
        %5199 = vrot.lane.b32.xlu0 %v5163, 32
        %v5200 = vpop.permute.xlu0 %5199
        %5201 = vrot.lane.b32.xlu0 %v5164, 32
        %v5202 = vpop.permute.xlu0 %5201
        %5203 = vrot.lane.b32.xlu0 %v5165, 32
        %v5204 = vpop.permute.xlu0 %5203
        %5205 = vrot.lane.b32.xlu0 %v5166, 32
        %v5206 = vpop.permute.xlu0 %5205
        %5207 = vrot.lane.b32.xlu0 %v5167, 32
        %v5208 = vpop.permute.xlu0 %5207
        %5209 = vrot.lane.b32.xlu0 %v5168, 32
        %v5210 = vpop.permute.xlu0 %5209
        %5211 = vrot.lane.b32.xlu0 %v5169, 32
        %v5212 = vpop.permute.xlu0 %5211
        %5213 = vrot.lane.b32.xlu0 %v5170, 32
        %v5214 = vpop.permute.xlu0 %5213
        %5215 = vrot.lane.b32.xlu0 %v5171, 32
        %v5216 = vpop.permute.xlu0 %5215
        %5217 = vrot.lane.b32.xlu0 %v5172, 32
        %v5218 = vpop.permute.xlu0 %5217
        %5219 = vrot.lane.b32.xlu0 %v5173, 32
        %v5220 = vpop.permute.xlu0 %5219
        %5221 = vrot.lane.b32.xlu0 %v5174, 32
        %v5222 = vpop.permute.xlu0 %5221
        %5239 = vst.msk [vmem:[#allocation3 + $0x80] sm:$0xff] %vm2812, %v5192
        %5240 = vst.msk [vmem:[#allocation3 + $0x88] sm:$0xff] %vm2812, %v5194
        %5241 = vst.msk [vmem:[#allocation3 + $0x90] sm:$0xff] %vm2812, %v5196
        %5242 = vst.msk [vmem:[#allocation3 + $0x98] sm:$0xff] %vm2812, %v5198
        %5243 = vst.msk [vmem:[#allocation3 + $0xa0] sm:$0xff] %vm2812, %v5200
        %5244 = vst.msk [vmem:[#allocation3 + $0xa8] sm:$0xff] %vm2812, %v5202
        %5245 = vst.msk [vmem:[#allocation3 + $0xb0] sm:$0xff] %vm2812, %v5204
        %5246 = vst.msk [vmem:[#allocation3 + $0xb8] sm:$0xff] %vm2812, %v5206
        %5247 = vst.msk [vmem:[#allocation3 + $0xc0] sm:$0xff] %vm2812, %v5208
        %5248 = vst.msk [vmem:[#allocation3 + $0xc8] sm:$0xff] %vm2812, %v5210
        %5249 = vst.msk [vmem:[#allocation3 + $0xd0] sm:$0xff] %vm2812, %v5212
        %5250 = vst.msk [vmem:[#allocation3 + $0xd8] sm:$0xff] %vm2812, %v5214
        %5251 = vst.msk [vmem:[#allocation3 + $0xe0] sm:$0xff] %vm2812, %v5216
        %5252 = vst.msk [vmem:[#allocation3 + $0xe8] sm:$0xff] %vm2812, %v5218
        %5253 = vst.msk [vmem:[#allocation3 + $0xf0] sm:$0xff] %vm2812, %v5220
        %5254 = vst.msk [vmem:[#allocation3 + $0xf8] sm:$0xff] %vm2812, %v5222
        %v5255 = vld [vmem:[#allocation2 + $0x180] sm:$0xff]
        %v5256 = vld [vmem:[#allocation2 + $0x198] sm:$0xff]
        %v5257 = vld [vmem:[#allocation2 + $0x1b0] sm:$0xff]
        %v5258 = vld [vmem:[#allocation2 + $0x1c8] sm:$0xff]
        %v5259 = vld [vmem:[#allocation2 + $0x1e0] sm:$0xff]
        %v5260 = vld [vmem:[#allocation2 + $0x1f8] sm:$0xff]
        %v5261 = vld [vmem:[#allocation2 + $0x210] sm:$0xff]
        %v5262 = vld [vmem:[#allocation2 + $0x228] sm:$0xff]
        %v5263 = vld [vmem:[#allocation2 + $0x240] sm:$0xff]
        %v5264 = vld [vmem:[#allocation2 + $0x258] sm:$0xff]
        %v5265 = vld [vmem:[#allocation2 + $0x270] sm:$0xff]
        %v5266 = vld [vmem:[#allocation2 + $0x288] sm:$0xff]
        %v5267 = vld [vmem:[#allocation2 + $0x2a0] sm:$0xff]
        %v5268 = vld [vmem:[#allocation2 + $0x2b8] sm:$0xff]
        %v5269 = vld [vmem:[#allocation2 + $0x2d0] sm:$0xff]
        %v5270 = vld [vmem:[#allocation2 + $0x2e8] sm:$0xff]
        %v5271 = vpack.c.bf16 %v5256, %v5255
        %v5272 = vpack.c.bf16 %v5258, %v5257
        %v5273 = vpack.c.bf16 %v5260, %v5259
        %v5274 = vpack.c.bf16 %v5262, %v5261
        %v5275 = vpack.c.bf16 %v5264, %v5263
        %v5276 = vpack.c.bf16 %v5266, %v5265
        %v5277 = vpack.c.bf16 %v5268, %v5267
        %v5278 = vpack.c.bf16 %v5270, %v5269
        %v5279 = vld [vmem:[#allocation2 + $0x188] sm:$0xff]
        %v5280 = vld [vmem:[#allocation2 + $0x1a0] sm:$0xff]
        %v5281 = vld [vmem:[#allocation2 + $0x1b8] sm:$0xff]
        %v5282 = vld [vmem:[#allocation2 + $0x1d0] sm:$0xff]
        %v5283 = vld [vmem:[#allocation2 + $0x1e8] sm:$0xff]
        %v5284 = vld [vmem:[#allocation2 + $0x200] sm:$0xff]
        %v5285 = vld [vmem:[#allocation2 + $0x218] sm:$0xff]
        %v5286 = vld [vmem:[#allocation2 + $0x230] sm:$0xff]
        %v5287 = vld [vmem:[#allocation2 + $0x248] sm:$0xff]
        %v5288 = vld [vmem:[#allocation2 + $0x260] sm:$0xff]
        %v5289 = vld [vmem:[#allocation2 + $0x278] sm:$0xff]
        %v5290 = vld [vmem:[#allocation2 + $0x290] sm:$0xff]
        %v5291 = vld [vmem:[#allocation2 + $0x2a8] sm:$0xff]
        %v5292 = vld [vmem:[#allocation2 + $0x2c0] sm:$0xff]
        %v5293 = vld [vmem:[#allocation2 + $0x2d8] sm:$0xff]
        %v5294 = vld [vmem:[#allocation2 + $0x2f0] sm:$0xff]
        %v5295 = vpack.c.bf16 %v5280, %v5279
        %v5296 = vpack.c.bf16 %v5282, %v5281
        %v5297 = vpack.c.bf16 %v5284, %v5283
        %v5298 = vpack.c.bf16 %v5286, %v5285
        %v5299 = vpack.c.bf16 %v5288, %v5287
        %v5300 = vpack.c.bf16 %v5290, %v5289
        %v5301 = vpack.c.bf16 %v5292, %v5291
        %v5302 = vpack.c.bf16 %v5294, %v5293
        %v5303 = vld [vmem:[#allocation2 + $0x190] sm:$0xff]
        %v5304 = vld [vmem:[#allocation2 + $0x1a8] sm:$0xff]
        %v5305 = vld [vmem:[#allocation2 + $0x1c0] sm:$0xff]
        %v5306 = vld [vmem:[#allocation2 + $0x1d8] sm:$0xff]
        %v5307 = vld [vmem:[#allocation2 + $0x1f0] sm:$0xff]
        %v5308 = vld [vmem:[#allocation2 + $0x208] sm:$0xff]
        %v5309 = vld [vmem:[#allocation2 + $0x220] sm:$0xff]
        %v5310 = vld [vmem:[#allocation2 + $0x238] sm:$0xff]
        %v5311 = vld [vmem:[#allocation2 + $0x250] sm:$0xff]
        %v5312 = vld [vmem:[#allocation2 + $0x268] sm:$0xff]
        %v5313 = vld [vmem:[#allocation2 + $0x280] sm:$0xff]
        %v5314 = vld [vmem:[#allocation2 + $0x298] sm:$0xff]
        %v5315 = vld [vmem:[#allocation2 + $0x2b0] sm:$0xff]
        %v5316 = vld [vmem:[#allocation2 + $0x2c8] sm:$0xff]
        %v5317 = vld [vmem:[#allocation2 + $0x2e0] sm:$0xff]
        %v5318 = vld [vmem:[#allocation2 + $0x2f8] sm:$0xff]
        %v5319 = vpack.c.bf16 %v5304, %v5303
        %v5320 = vpack.c.bf16 %v5306, %v5305
        %v5321 = vpack.c.bf16 %v5308, %v5307
        %v5322 = vpack.c.bf16 %v5310, %v5309
        %v5323 = vpack.c.bf16 %v5312, %v5311
        %v5324 = vpack.c.bf16 %v5314, %v5313
        %v5325 = vpack.c.bf16 %v5316, %v5315
        %v5326 = vpack.c.bf16 %v5318, %v5317
        %5335 = vrot.lane.b32.xlu0 %v5271, 64
        %v5336 = vpop.permute.xlu0 %5335
        %5337 = vrot.lane.b32.xlu0 %v5272, 64
        %v5338 = vpop.permute.xlu0 %5337
        %5339 = vrot.lane.b32.xlu0 %v5273, 64
        %v5340 = vpop.permute.xlu0 %5339
        %5341 = vrot.lane.b32.xlu0 %v5274, 64
        %v5342 = vpop.permute.xlu0 %5341
        %5343 = vrot.lane.b32.xlu0 %v5275, 64
        %v5344 = vpop.permute.xlu0 %5343
        %5345 = vrot.lane.b32.xlu0 %v5276, 64
        %v5346 = vpop.permute.xlu0 %5345
        %5347 = vrot.lane.b32.xlu0 %v5277, 64
        %v5348 = vpop.permute.xlu0 %5347
        %5349 = vrot.lane.b32.xlu0 %v5278, 64
        %v5350 = vpop.permute.xlu0 %5349
        %5359 = vrot.lane.b32.xlu0 %v5295, 64
        %v5360 = vpop.permute.xlu0 %5359
        %5361 = vrot.lane.b32.xlu0 %v5296, 64
        %v5362 = vpop.permute.xlu0 %5361
        %5363 = vrot.lane.b32.xlu0 %v5297, 64
        %v5364 = vpop.permute.xlu0 %5363
        %5365 = vrot.lane.b32.xlu0 %v5298, 64
        %v5366 = vpop.permute.xlu0 %5365
        %5367 = vrot.lane.b32.xlu0 %v5299, 64
        %v5368 = vpop.permute.xlu0 %5367
        %5369 = vrot.lane.b32.xlu0 %v5300, 64
        %v5370 = vpop.permute.xlu0 %5369
        %5371 = vrot.lane.b32.xlu0 %v5301, 64
        %v5372 = vpop.permute.xlu0 %5371
        %5373 = vrot.lane.b32.xlu0 %v5302, 64
        %v5374 = vpop.permute.xlu0 %5373
        %v5376 = vsel %vm1759, %v5336, 0
        %v5379 = vsel %vm1759, %v5338, 0
        %v5382 = vsel %vm1759, %v5340, 0
        %v5385 = vsel %vm1759, %v5342, 0
        %v5388 = vsel %vm1759, %v5344, 0
        %v5391 = vsel %vm1759, %v5346, 0
        %v5394 = vsel %vm1759, %v5348, 0
        %v5397 = vsel %vm1759, %v5350, 0
        %v5400 = vsel %vm1759, %v5360, 0
        %v5403 = vsel %vm1759, %v5362, 0
        %v5406 = vsel %vm1759, %v5364, 0
        %v5409 = vsel %vm1759, %v5366, 0
        %v5412 = vsel %vm1759, %v5368, 0
        %v5415 = vsel %vm1759, %v5370, 0
        %v5418 = vsel %vm1759, %v5372, 0
        %v5421 = vsel %vm1759, %v5374, 0
        %5423 = vmatprep.subr.bf16.mxu0 0
        %5424 = vmatpush1.bf16.xpose.msra.mxu0 %v5400
        %5425 = vmatprep.subr.bf16.mxu0 0
        %5426 = vmatpush1.bf16.xpose.msra.mxu0 %v5403
        %5427 = vmatprep.subr.bf16.mxu0 0
        %5428 = vmatpush1.bf16.xpose.msra.mxu0 %v5406
        %5429 = vmatprep.subr.bf16.mxu0 0
        %5430 = vmatpush1.bf16.xpose.msra.mxu0 %v5409
        %5431 = vmatprep.subr.bf16.mxu0 0
        %5432 = vmatpush1.bf16.xpose.msra.mxu0 %v5412
        %5433 = vmatprep.subr.bf16.mxu0 0
        %5434 = vmatpush1.bf16.xpose.msra.mxu0 %v5415
        %5435 = vmatprep.subr.bf16.mxu0 0
        %5436 = vmatpush1.bf16.xpose.msra.mxu0 %v5418
        %5437 = vmatprep.subr.bf16.mxu0 0
        %5438 = vmatpush1.bf16.xpose.msra.mxu0 %v5421
        %5439 = vmatprep.subr.bf16.mxu0 0
        %5440 = vmatpush1.bf16.xpose.msra.mxu0 0
        %5441 = vmatprep.subr.bf16.mxu0 0
        %5442 = vmatpush1.bf16.xpose.msra.mxu0 0
        %5443 = vmatprep.subr.bf16.mxu0 0
        %5444 = vmatpush1.bf16.xpose.msra.mxu0 0
        %5445 = vmatprep.subr.bf16.mxu0 0
        %5446 = vmatpush1.bf16.xpose.msra.mxu0 0
        %5447 = vmatprep.subr.bf16.mxu0 0
        %5448 = vmatpush1.bf16.xpose.msra.mxu0 0
        %5449 = vmatprep.subr.bf16.mxu0 0
        %5450 = vmatpush1.bf16.xpose.msra.mxu0 0
        %5451 = vmatprep.subr.bf16.mxu0 0
        %5452 = vmatpush1.bf16.xpose.msra.mxu0 0
        %5453 = vmatprep.subr.bf16.mxu0 0
        %5454 = vmatpush1.bf16.xpose.msra.mxu0 0
        %5455 = vmatprep.mubr.bf16.mxu0 0
        %5456 = vmatmul.mubr.bf16.gmra.mrb[0].mxu0 %v5376
        %v5457 = vpop.f32.mrb[0].mxu0
        %v5458 = vadd.f32 0.0, %v5457
        %v5459 = vpop.f32.mrb[0].mxu0
        %v5460 = vpop.f32.mrb[0].mxu0
        %v5461 = vadd.f32 0.0, %v5460
        %v5462 = vpop.f32.mrb[0].mxu0
        %5463 = vmatprep.mubr.bf16.mxu0 0
        %5464 = vmatmul.mubr.bf16.gmra.mrb[0].mxu0 %v5379
        %v5465 = vpop.f32.mrb[0].mxu0
        %v5466 = vadd.f32 0.0, %v5465
        %v5467 = vpop.f32.mrb[0].mxu0
        %v5468 = vpop.f32.mrb[0].mxu0
        %v5469 = vadd.f32 0.0, %v5468
        %v5470 = vpop.f32.mrb[0].mxu0
        %5471 = vmatprep.mubr.bf16.mxu0 0
        %5472 = vmatmul.mubr.bf16.gmra.mrb[0].mxu0 %v5382
        %v5473 = vpop.f32.mrb[0].mxu0
        %v5474 = vadd.f32 0.0, %v5473
        %v5475 = vpop.f32.mrb[0].mxu0
        %v5476 = vpop.f32.mrb[0].mxu0
        %v5477 = vadd.f32 0.0, %v5476
        %v5478 = vpop.f32.mrb[0].mxu0
        %5479 = vmatprep.mubr.bf16.mxu0 0
        %5480 = vmatmul.mubr.bf16.gmra.mrb[0].mxu0 %v5385
        %v5481 = vpop.f32.mrb[0].mxu0
        %v5482 = vadd.f32 0.0, %v5481
        %v5483 = vpop.f32.mrb[0].mxu0
        %v5484 = vpop.f32.mrb[0].mxu0
        %v5485 = vadd.f32 0.0, %v5484
        %v5486 = vpop.f32.mrb[0].mxu0
        %5487 = vmatprep.mubr.bf16.mxu0 0
        %5488 = vmatmul.mubr.bf16.gmra.mrb[0].mxu0 %v5388
        %v5489 = vpop.f32.mrb[0].mxu0
        %v5490 = vadd.f32 0.0, %v5489
        %v5491 = vpop.f32.mrb[0].mxu0
        %v5492 = vpop.f32.mrb[0].mxu0
        %v5493 = vadd.f32 0.0, %v5492
        %v5494 = vpop.f32.mrb[0].mxu0
        %5495 = vmatprep.mubr.bf16.mxu0 0
        %5496 = vmatmul.mubr.bf16.gmra.mrb[0].mxu0 %v5391
        %v5497 = vpop.f32.mrb[0].mxu0
        %v5498 = vadd.f32 0.0, %v5497
        %v5499 = vpop.f32.mrb[0].mxu0
        %v5500 = vpop.f32.mrb[0].mxu0
        %v5501 = vadd.f32 0.0, %v5500
        %v5502 = vpop.f32.mrb[0].mxu0
        %5503 = vmatprep.mubr.bf16.mxu0 0
        %5504 = vmatmul.mubr.bf16.gmra.mrb[0].mxu0 %v5394
        %v5505 = vpop.f32.mrb[0].mxu0
        %v5506 = vadd.f32 0.0, %v5505
        %v5507 = vpop.f32.mrb[0].mxu0
        %v5508 = vpop.f32.mrb[0].mxu0
        %v5509 = vadd.f32 0.0, %v5508
        %v5510 = vpop.f32.mrb[0].mxu0
        %5511 = vmatprep.mubr.bf16.mxu0 0
        %5512 = vmatmul.mubr.bf16.gmra.mrb[0].mxu0 %v5397
        %v5513 = vpop.f32.mrb[0].mxu0
        %v5514 = vadd.f32 0.0, %v5513
        %v5515 = vpop.f32.mrb[0].mxu0
        %v5516 = vpop.f32.mrb[0].mxu0
        %v5517 = vadd.f32 0.0, %v5516
        %v5518 = vpop.f32.mrb[0].mxu0
        %5519 = vdwg.mxu0
        %v5520 = vsel %vm1671, %v5458, -1e+30
        %v5521 = vsel %vm1672, %v5461, -1e+30
        %v5522 = vsel %vm1673, %v5466, -1e+30
        %v5523 = vsel %vm1674, %v5469, -1e+30
        %v5524 = vsel %vm1675, %v5474, -1e+30
        %v5525 = vsel %vm1676, %v5477, -1e+30
        %v5526 = vsel %vm1677, %v5482, -1e+30
        %v5527 = vsel %vm1678, %v5485, -1e+30
        %v5528 = vsel %vm1679, %v5490, -1e+30
        %v5529 = vsel %vm1680, %v5493, -1e+30
        %v5530 = vsel %vm1681, %v5498, -1e+30
        %v5531 = vsel %vm1682, %v5501, -1e+30
        %v5532 = vsel %vm1683, %v5506, -1e+30
        %v5533 = vsel %vm1684, %v5509, -1e+30
        %v5534 = vsel %vm1685, %v5514, -1e+30
        %v5535 = vsel %vm1686, %v5517, -1e+30
        %5536 = vmax.xlane.f32.xlu0 %v5520
        %v5537 = vpop.xlane.xlu0 %5536
        %5538 = vmax.xlane.f32.xlu0 %v5521
        %v5539 = vpop.xlane.xlu0 %5538
        %5540 = vmax.xlane.f32.xlu0 %v5522
        %v5541 = vpop.xlane.xlu0 %5540
        %5542 = vmax.xlane.f32.xlu0 %v5523
        %v5543 = vpop.xlane.xlu0 %5542
        %5544 = vmax.xlane.f32.xlu0 %v5524
        %v5545 = vpop.xlane.xlu0 %5544
        %5546 = vmax.xlane.f32.xlu0 %v5525
        %v5547 = vpop.xlane.xlu0 %5546
        %5548 = vmax.xlane.f32.xlu0 %v5526
        %v5549 = vpop.xlane.xlu0 %5548
        %5550 = vmax.xlane.f32.xlu0 %v5527
        %v5551 = vpop.xlane.xlu0 %5550
        %5552 = vmax.xlane.f32.xlu0 %v5528
        %v5553 = vpop.xlane.xlu0 %5552
        %5554 = vmax.xlane.f32.xlu0 %v5529
        %v5555 = vpop.xlane.xlu0 %5554
        %5556 = vmax.xlane.f32.xlu0 %v5530
        %v5557 = vpop.xlane.xlu0 %5556
        %5558 = vmax.xlane.f32.xlu0 %v5531
        %v5559 = vpop.xlane.xlu0 %5558
        %5560 = vmax.xlane.f32.xlu0 %v5532
        %v5561 = vpop.xlane.xlu0 %5560
        %5562 = vmax.xlane.f32.xlu0 %v5533
        %v5563 = vpop.xlane.xlu0 %5562
        %5564 = vmax.xlane.f32.xlu0 %v5534
        %v5565 = vpop.xlane.xlu0 %5564
        %5566 = vmax.xlane.f32.xlu0 %v5535
        %v5567 = vpop.xlane.xlu0 %5566
        %v5568 = vsub.f32 %v5520, %v5537
        %v5569 = vsub.f32 %v5521, %v5539
        %v5570 = vsub.f32 %v5522, %v5541
        %v5571 = vsub.f32 %v5523, %v5543
        %v5572 = vsub.f32 %v5524, %v5545
        %v5573 = vsub.f32 %v5525, %v5547
        %v5574 = vsub.f32 %v5526, %v5549
        %v5575 = vsub.f32 %v5527, %v5551
        %v5576 = vsub.f32 %v5528, %v5553
        %v5577 = vsub.f32 %v5529, %v5555
        %v5578 = vsub.f32 %v5530, %v5557
        %v5579 = vsub.f32 %v5531, %v5559
        %v5580 = vsub.f32 %v5532, %v5561
        %v5581 = vsub.f32 %v5533, %v5563
        %v5582 = vsub.f32 %v5534, %v5565
        %v5583 = vsub.f32 %v5535, %v5567
        %v5584 = vmul.f32 %v5568, 1.442695
        %v5585 = vpow.pop %v5584
        %v5586 = vmul.f32 %v5569, 1.442695
        %v5587 = vpow.pop %v5586
        %v5588 = vmul.f32 %v5570, 1.442695
        %v5589 = vpow.pop %v5588
        %v5590 = vmul.f32 %v5571, 1.442695
        %v5591 = vpow.pop %v5590
        %v5592 = vmul.f32 %v5572, 1.442695
        %v5593 = vpow.pop %v5592
        %v5594 = vmul.f32 %v5573, 1.442695
        %v5595 = vpow.pop %v5594
        %v5596 = vmul.f32 %v5574, 1.442695
        %v5597 = vpow.pop %v5596
        %v5598 = vmul.f32 %v5575, 1.442695
        %v5599 = vpow.pop %v5598
        %v5600 = vmul.f32 %v5576, 1.442695
        %v5601 = vpow.pop %v5600
        %v5602 = vmul.f32 %v5577, 1.442695
        %v5603 = vpow.pop %v5602
        %v5604 = vmul.f32 %v5578, 1.442695
        %v5605 = vpow.pop %v5604
        %v5606 = vmul.f32 %v5579, 1.442695
        %v5607 = vpow.pop %v5606
        %v5608 = vmul.f32 %v5580, 1.442695
        %v5609 = vpow.pop %v5608
        %v5610 = vmul.f32 %v5581, 1.442695
        %v5611 = vpow.pop %v5610
        %v5612 = vmul.f32 %v5582, 1.442695
        %v5613 = vpow.pop %v5612
        %v5614 = vmul.f32 %v5583, 1.442695
        %v5615 = vpow.pop %v5614
        %5616 = vadd.xlane.f32.xlu0 %v5585
        %v5617 = vpop.xlane.xlu0 %5616
        %5618 = vadd.xlane.f32.xlu0 %v5587
        %v5619 = vpop.xlane.xlu0 %5618
        %5620 = vadd.xlane.f32.xlu0 %v5589
        %v5621 = vpop.xlane.xlu0 %5620
        %5622 = vadd.xlane.f32.xlu0 %v5591
        %v5623 = vpop.xlane.xlu0 %5622
        %5624 = vadd.xlane.f32.xlu0 %v5593
        %v5625 = vpop.xlane.xlu0 %5624
        %5626 = vadd.xlane.f32.xlu0 %v5595
        %v5627 = vpop.xlane.xlu0 %5626
        %5628 = vadd.xlane.f32.xlu0 %v5597
        %v5629 = vpop.xlane.xlu0 %5628
        %5630 = vadd.xlane.f32.xlu0 %v5599
        %v5631 = vpop.xlane.xlu0 %5630
        %5632 = vadd.xlane.f32.xlu0 %v5601
        %v5633 = vpop.xlane.xlu0 %5632
        %5634 = vadd.xlane.f32.xlu0 %v5603
        %v5635 = vpop.xlane.xlu0 %5634
        %5636 = vadd.xlane.f32.xlu0 %v5605
        %v5637 = vpop.xlane.xlu0 %5636
        %5638 = vadd.xlane.f32.xlu0 %v5607
        %v5639 = vpop.xlane.xlu0 %5638
        %5640 = vadd.xlane.f32.xlu0 %v5609
        %v5641 = vpop.xlane.xlu0 %5640
        %5642 = vadd.xlane.f32.xlu0 %v5611
        %v5643 = vpop.xlane.xlu0 %5642
        %5644 = vadd.xlane.f32.xlu0 %v5613
        %v5645 = vpop.xlane.xlu0 %5644
        %5646 = vadd.xlane.f32.xlu0 %v5615
        %v5647 = vpop.xlane.xlu0 %5646
        %v5648 = vpack.c.bf16 %v5587, %v5585
        %v5649 = vpack.c.bf16 %v5591, %v5589
        %v5650 = vpack.c.bf16 %v5595, %v5593
        %v5651 = vpack.c.bf16 %v5599, %v5597
        %v5652 = vpack.c.bf16 %v5603, %v5601
        %v5653 = vpack.c.bf16 %v5607, %v5605
        %v5654 = vpack.c.bf16 %v5611, %v5609
        %v5655 = vpack.c.bf16 %v5615, %v5613
        %5664 = vrot.lane.b32.xlu0 %v5319, 64
        %v5665 = vpop.permute.xlu0 %5664
        %5666 = vrot.lane.b32.xlu0 %v5320, 64
        %v5667 = vpop.permute.xlu0 %5666
        %5668 = vrot.lane.b32.xlu0 %v5321, 64
        %v5669 = vpop.permute.xlu0 %5668
        %5670 = vrot.lane.b32.xlu0 %v5322, 64
        %v5671 = vpop.permute.xlu0 %5670
        %5672 = vrot.lane.b32.xlu0 %v5323, 64
        %v5673 = vpop.permute.xlu0 %5672
        %5674 = vrot.lane.b32.xlu0 %v5324, 64
        %v5675 = vpop.permute.xlu0 %5674
        %5676 = vrot.lane.b32.xlu0 %v5325, 64
        %v5677 = vpop.permute.xlu0 %5676
        %5678 = vrot.lane.b32.xlu0 %v5326, 64
        %v5679 = vpop.permute.xlu0 %5678
        %5688 = vmatprep.subr.bf16.mxu0 0
        %5689 = vmatpush1.bf16.msra.mxu0 %v5665
        %5690 = vmatprep.subr.bf16.mxu0 0
        %5691 = vmatpush1.bf16.msra.mxu0 %v5667
        %5692 = vmatprep.subr.bf16.mxu0 0
        %5693 = vmatpush1.bf16.msra.mxu0 %v5669
        %5694 = vmatprep.subr.bf16.mxu0 0
        %5695 = vmatpush1.bf16.msra.mxu0 %v5671
        %5696 = vmatprep.subr.bf16.mxu0 0
        %5697 = vmatpush1.bf16.msra.mxu0 %v5673
        %5698 = vmatprep.subr.bf16.mxu0 0
        %5699 = vmatpush1.bf16.msra.mxu0 %v5675
        %5700 = vmatprep.subr.bf16.mxu0 0
        %5701 = vmatpush1.bf16.msra.mxu0 %v5677
        %5702 = vmatprep.subr.bf16.mxu0 0
        %5703 = vmatpush1.bf16.msra.mxu0 %v5679
        %5704 = vmatprep.subr.bf16.mxu0 0
        %5705 = vmatpush1.bf16.msra.mxu0 0
        %5706 = vmatprep.subr.bf16.mxu0 0
        %5707 = vmatpush1.bf16.msra.mxu0 0
        %5708 = vmatprep.subr.bf16.mxu0 0
        %5709 = vmatpush1.bf16.msra.mxu0 0
        %5710 = vmatprep.subr.bf16.mxu0 0
        %5711 = vmatpush1.bf16.msra.mxu0 0
        %5712 = vmatprep.subr.bf16.mxu0 0
        %5713 = vmatpush1.bf16.msra.mxu0 0
        %5714 = vmatprep.subr.bf16.mxu0 0
        %5715 = vmatpush1.bf16.msra.mxu0 0
        %5716 = vmatprep.subr.bf16.mxu0 0
        %5717 = vmatpush1.bf16.msra.mxu0 0
        %5718 = vmatprep.subr.bf16.mxu0 0
        %5719 = vmatpush1.bf16.msra.mxu0 0
        %5720 = vmatprep.mubr.bf16.mxu0 0
        %5721 = vmatmul.mubr.bf16.gmra.mrb[0].mxu0 %v5648
        %v5722 = vpop.f32.mrb[0].mxu0
        %v5723 = vadd.f32 0.0, %v5722
        %v5724 = vpop.f32.mrb[0].mxu0
        %v5725 = vpop.f32.mrb[0].mxu0
        %v5726 = vadd.f32 0.0, %v5725
        %v5727 = vpop.f32.mrb[0].mxu0
        %5728 = vmatprep.mubr.bf16.mxu0 0
        %5729 = vmatmul.mubr.bf16.gmra.mrb[0].mxu0 %v5649
        %v5730 = vpop.f32.mrb[0].mxu0
        %v5731 = vadd.f32 0.0, %v5730
        %v5732 = vpop.f32.mrb[0].mxu0
        %v5733 = vpop.f32.mrb[0].mxu0
        %v5734 = vadd.f32 0.0, %v5733
        %v5735 = vpop.f32.mrb[0].mxu0
        %5736 = vmatprep.mubr.bf16.mxu0 0
        %5737 = vmatmul.mubr.bf16.gmra.mrb[0].mxu0 %v5650
        %v5738 = vpop.f32.mrb[0].mxu0
        %v5739 = vadd.f32 0.0, %v5738
        %v5740 = vpop.f32.mrb[0].mxu0
        %v5741 = vpop.f32.mrb[0].mxu0
        %v5742 = vadd.f32 0.0, %v5741
        %v5743 = vpop.f32.mrb[0].mxu0
        %5744 = vmatprep.mubr.bf16.mxu0 0
        %5745 = vmatmul.mubr.bf16.gmra.mrb[0].mxu0 %v5651
        %v5746 = vpop.f32.mrb[0].mxu0
        %v5747 = vadd.f32 0.0, %v5746
        %v5748 = vpop.f32.mrb[0].mxu0
        %v5749 = vpop.f32.mrb[0].mxu0
        %v5750 = vadd.f32 0.0, %v5749
        %v5751 = vpop.f32.mrb[0].mxu0
        %5752 = vmatprep.mubr.bf16.mxu0 0
        %5753 = vmatmul.mubr.bf16.gmra.mrb[0].mxu0 %v5652
        %v5754 = vpop.f32.mrb[0].mxu0
        %v5755 = vadd.f32 0.0, %v5754
        %v5756 = vpop.f32.mrb[0].mxu0
        %v5757 = vpop.f32.mrb[0].mxu0
        %v5758 = vadd.f32 0.0, %v5757
        %v5759 = vpop.f32.mrb[0].mxu0
        %5760 = vmatprep.mubr.bf16.mxu0 0
        %5761 = vmatmul.mubr.bf16.gmra.mrb[0].mxu0 %v5653
        %v5762 = vpop.f32.mrb[0].mxu0
        %v5763 = vadd.f32 0.0, %v5762
        %v5764 = vpop.f32.mrb[0].mxu0
        %v5765 = vpop.f32.mrb[0].mxu0
        %v5766 = vadd.f32 0.0, %v5765
        %v5767 = vpop.f32.mrb[0].mxu0
        %5768 = vmatprep.mubr.bf16.mxu0 0
        %5769 = vmatmul.mubr.bf16.gmra.mrb[0].mxu0 %v5654
        %v5770 = vpop.f32.mrb[0].mxu0
        %v5771 = vadd.f32 0.0, %v5770
        %v5772 = vpop.f32.mrb[0].mxu0
        %v5773 = vpop.f32.mrb[0].mxu0
        %v5774 = vadd.f32 0.0, %v5773
        %v5775 = vpop.f32.mrb[0].mxu0
        %5776 = vmatprep.mubr.bf16.mxu0 0
        %5777 = vmatmul.mubr.bf16.gmra.mrb[0].mxu0 %v5655
        %v5778 = vpop.f32.mrb[0].mxu0
        %v5779 = vadd.f32 0.0, %v5778
        %v5780 = vpop.f32.mrb[0].mxu0
        %v5781 = vpop.f32.mrb[0].mxu0
        %v5782 = vadd.f32 0.0, %v5781
        %v5783 = vpop.f32.mrb[0].mxu0
        %5784 = vdwg.mxu0
        %v5785 = vrcp.pop %v5617
        %v5786 = vrcp.pop %v5619
        %v5787 = vrcp.pop %v5621
        %v5788 = vrcp.pop %v5623
        %v5789 = vrcp.pop %v5625
        %v5790 = vrcp.pop %v5627
        %v5791 = vrcp.pop %v5629
        %v5792 = vrcp.pop %v5631
        %v5793 = vrcp.pop %v5633
        %v5794 = vrcp.pop %v5635
        %v5795 = vrcp.pop %v5637
        %v5796 = vrcp.pop %v5639
        %v5797 = vrcp.pop %v5641
        %v5798 = vrcp.pop %v5643
        %v5799 = vrcp.pop %v5645
        %v5800 = vrcp.pop %v5647
        %v5801 = vmul.f32 %v5723, %v5785
        %v5802 = vmul.f32 %v5726, %v5786
        %v5803 = vmul.f32 %v5731, %v5787
        %v5804 = vmul.f32 %v5734, %v5788
        %v5805 = vmul.f32 %v5739, %v5789
        %v5806 = vmul.f32 %v5742, %v5790
        %v5807 = vmul.f32 %v5747, %v5791
        %v5808 = vmul.f32 %v5750, %v5792
        %v5809 = vmul.f32 %v5755, %v5793
        %v5810 = vmul.f32 %v5758, %v5794
        %v5811 = vmul.f32 %v5763, %v5795
        %v5812 = vmul.f32 %v5766, %v5796
        %v5813 = vmul.f32 %v5771, %v5797
        %v5814 = vmul.f32 %v5774, %v5798
        %v5815 = vmul.f32 %v5779, %v5799
        %v5816 = vmul.f32 %v5782, %v5800
        %5833 = vrot.lane.b32.xlu0 %v5801, 64
        %v5834 = vpop.permute.xlu0 %5833
        %5835 = vrot.lane.b32.xlu0 %v5802, 64
        %v5836 = vpop.permute.xlu0 %5835
        %5837 = vrot.lane.b32.xlu0 %v5803, 64
        %v5838 = vpop.permute.xlu0 %5837
        %5839 = vrot.lane.b32.xlu0 %v5804, 64
        %v5840 = vpop.permute.xlu0 %5839
        %5841 = vrot.lane.b32.xlu0 %v5805, 64
        %v5842 = vpop.permute.xlu0 %5841
        %5843 = vrot.lane.b32.xlu0 %v5806, 64
        %v5844 = vpop.permute.xlu0 %5843
        %5845 = vrot.lane.b32.xlu0 %v5807, 64
        %v5846 = vpop.permute.xlu0 %5845
        %5847 = vrot.lane.b32.xlu0 %v5808, 64
        %v5848 = vpop.permute.xlu0 %5847
        %5849 = vrot.lane.b32.xlu0 %v5809, 64
        %v5850 = vpop.permute.xlu0 %5849
        %5851 = vrot.lane.b32.xlu0 %v5810, 64
        %v5852 = vpop.permute.xlu0 %5851
        %5853 = vrot.lane.b32.xlu0 %v5811, 64
        %v5854 = vpop.permute.xlu0 %5853
        %5855 = vrot.lane.b32.xlu0 %v5812, 64
        %v5856 = vpop.permute.xlu0 %5855
        %5857 = vrot.lane.b32.xlu0 %v5813, 64
        %v5858 = vpop.permute.xlu0 %5857
        %5859 = vrot.lane.b32.xlu0 %v5814, 64
        %v5860 = vpop.permute.xlu0 %5859
        %5861 = vrot.lane.b32.xlu0 %v5815, 64
        %v5862 = vpop.permute.xlu0 %5861
        %5863 = vrot.lane.b32.xlu0 %v5816, 64
        %v5864 = vpop.permute.xlu0 %5863
        %5881 = vst.msk [vmem:[#allocation3 + $0x80] sm:$0xff] %vm3455, %v5834
        %5882 = vst.msk [vmem:[#allocation3 + $0x88] sm:$0xff] %vm3455, %v5836
        %5883 = vst.msk [vmem:[#allocation3 + $0x90] sm:$0xff] %vm3455, %v5838
        %5884 = vst.msk [vmem:[#allocation3 + $0x98] sm:$0xff] %vm3455, %v5840
        %5885 = vst.msk [vmem:[#allocation3 + $0xa0] sm:$0xff] %vm3455, %v5842
        %5886 = vst.msk [vmem:[#allocation3 + $0xa8] sm:$0xff] %vm3455, %v5844
        %5887 = vst.msk [vmem:[#allocation3 + $0xb0] sm:$0xff] %vm3455, %v5846
        %5888 = vst.msk [vmem:[#allocation3 + $0xb8] sm:$0xff] %vm3455, %v5848
        %5889 = vst.msk [vmem:[#allocation3 + $0xc0] sm:$0xff] %vm3455, %v5850
        %5890 = vst.msk [vmem:[#allocation3 + $0xc8] sm:$0xff] %vm3455, %v5852
        %5891 = vst.msk [vmem:[#allocation3 + $0xd0] sm:$0xff] %vm3455, %v5854
        %5892 = vst.msk [vmem:[#allocation3 + $0xd8] sm:$0xff] %vm3455, %v5856
        %5893 = vst.msk [vmem:[#allocation3 + $0xe0] sm:$0xff] %vm3455, %v5858
        %5894 = vst.msk [vmem:[#allocation3 + $0xe8] sm:$0xff] %vm3455, %v5860
        %5895 = vst.msk [vmem:[#allocation3 + $0xf0] sm:$0xff] %vm3455, %v5862
        %5896 = vst.msk [vmem:[#allocation3 + $0xf8] sm:$0xff] %vm3455, %v5864
        %v5897 = vld [vmem:[#allocation2 + $0x180] sm:$0xff]
        %v5898 = vld [vmem:[#allocation2 + $0x198] sm:$0xff]
        %v5899 = vld [vmem:[#allocation2 + $0x1b0] sm:$0xff]
        %v5900 = vld [vmem:[#allocation2 + $0x1c8] sm:$0xff]
        %v5901 = vld [vmem:[#allocation2 + $0x1e0] sm:$0xff]
        %v5902 = vld [vmem:[#allocation2 + $0x1f8] sm:$0xff]
        %v5903 = vld [vmem:[#allocation2 + $0x210] sm:$0xff]
        %v5904 = vld [vmem:[#allocation2 + $0x228] sm:$0xff]
        %v5905 = vld [vmem:[#allocation2 + $0x240] sm:$0xff]
        %v5906 = vld [vmem:[#allocation2 + $0x258] sm:$0xff]
        %v5907 = vld [vmem:[#allocation2 + $0x270] sm:$0xff]
        %v5908 = vld [vmem:[#allocation2 + $0x288] sm:$0xff]
        %v5909 = vld [vmem:[#allocation2 + $0x2a0] sm:$0xff]
        %v5910 = vld [vmem:[#allocation2 + $0x2b8] sm:$0xff]
        %v5911 = vld [vmem:[#allocation2 + $0x2d0] sm:$0xff]
        %v5912 = vld [vmem:[#allocation2 + $0x2e8] sm:$0xff]
        %v5913 = vpack.c.bf16 %v5898, %v5897
        %v5914 = vpack.c.bf16 %v5900, %v5899
        %v5915 = vpack.c.bf16 %v5902, %v5901
        %v5916 = vpack.c.bf16 %v5904, %v5903
        %v5917 = vpack.c.bf16 %v5906, %v5905
        %v5918 = vpack.c.bf16 %v5908, %v5907
        %v5919 = vpack.c.bf16 %v5910, %v5909
        %v5920 = vpack.c.bf16 %v5912, %v5911
        %v5921 = vld [vmem:[#allocation2 + $0x188] sm:$0xff]
        %v5922 = vld [vmem:[#allocation2 + $0x1a0] sm:$0xff]
        %v5923 = vld [vmem:[#allocation2 + $0x1b8] sm:$0xff]
        %v5924 = vld [vmem:[#allocation2 + $0x1d0] sm:$0xff]
        %v5925 = vld [vmem:[#allocation2 + $0x1e8] sm:$0xff]
        %v5926 = vld [vmem:[#allocation2 + $0x200] sm:$0xff]
        %v5927 = vld [vmem:[#allocation2 + $0x218] sm:$0xff]
        %v5928 = vld [vmem:[#allocation2 + $0x230] sm:$0xff]
        %v5929 = vld [vmem:[#allocation2 + $0x248] sm:$0xff]
        %v5930 = vld [vmem:[#allocation2 + $0x260] sm:$0xff]
        %v5931 = vld [vmem:[#allocation2 + $0x278] sm:$0xff]
        %v5932 = vld [vmem:[#allocation2 + $0x290] sm:$0xff]
        %v5933 = vld [vmem:[#allocation2 + $0x2a8] sm:$0xff]
        %v5934 = vld [vmem:[#allocation2 + $0x2c0] sm:$0xff]
        %v5935 = vld [vmem:[#allocation2 + $0x2d8] sm:$0xff]
        %v5936 = vld [vmem:[#allocation2 + $0x2f0] sm:$0xff]
        %v5937 = vpack.c.bf16 %v5922, %v5921
        %v5938 = vpack.c.bf16 %v5924, %v5923
        %v5939 = vpack.c.bf16 %v5926, %v5925
        %v5940 = vpack.c.bf16 %v5928, %v5927
        %v5941 = vpack.c.bf16 %v5930, %v5929
        %v5942 = vpack.c.bf16 %v5932, %v5931
        %v5943 = vpack.c.bf16 %v5934, %v5933
        %v5944 = vpack.c.bf16 %v5936, %v5935
        %v5945 = vld [vmem:[#allocation2 + $0x190] sm:$0xff]
        %v5946 = vld [vmem:[#allocation2 + $0x1a8] sm:$0xff]
        %v5947 = vld [vmem:[#allocation2 + $0x1c0] sm:$0xff]
        %v5948 = vld [vmem:[#allocation2 + $0x1d8] sm:$0xff]
        %v5949 = vld [vmem:[#allocation2 + $0x1f0] sm:$0xff]
        %v5950 = vld [vmem:[#allocation2 + $0x208] sm:$0xff]
        %v5951 = vld [vmem:[#allocation2 + $0x220] sm:$0xff]
        %v5952 = vld [vmem:[#allocation2 + $0x238] sm:$0xff]
        %v5953 = vld [vmem:[#allocation2 + $0x250] sm:$0xff]
        %v5954 = vld [vmem:[#allocation2 + $0x268] sm:$0xff]
        %v5955 = vld [vmem:[#allocation2 + $0x280] sm:$0xff]
        %v5956 = vld [vmem:[#allocation2 + $0x298] sm:$0xff]
        %v5957 = vld [vmem:[#allocation2 + $0x2b0] sm:$0xff]
        %v5958 = vld [vmem:[#allocation2 + $0x2c8] sm:$0xff]
        %v5959 = vld [vmem:[#allocation2 + $0x2e0] sm:$0xff]
        %v5960 = vld [vmem:[#allocation2 + $0x2f8] sm:$0xff]
        %v5961 = vpack.c.bf16 %v5946, %v5945
        %v5962 = vpack.c.bf16 %v5948, %v5947
        %v5963 = vpack.c.bf16 %v5950, %v5949
        %v5964 = vpack.c.bf16 %v5952, %v5951
        %v5965 = vpack.c.bf16 %v5954, %v5953
        %v5966 = vpack.c.bf16 %v5956, %v5955
        %v5967 = vpack.c.bf16 %v5958, %v5957
        %v5968 = vpack.c.bf16 %v5960, %v5959
        %5977 = vrot.lane.b32.xlu0 %v5913, 32
        %v5978 = vpop.permute.xlu0 %5977
        %5979 = vrot.lane.b32.xlu0 %v5914, 32
        %v5980 = vpop.permute.xlu0 %5979
        %5981 = vrot.lane.b32.xlu0 %v5915, 32
        %v5982 = vpop.permute.xlu0 %5981
        %5983 = vrot.lane.b32.xlu0 %v5916, 32
        %v5984 = vpop.permute.xlu0 %5983
        %5985 = vrot.lane.b32.xlu0 %v5917, 32
        %v5986 = vpop.permute.xlu0 %5985
        %5987 = vrot.lane.b32.xlu0 %v5918, 32
        %v5988 = vpop.permute.xlu0 %5987
        %5989 = vrot.lane.b32.xlu0 %v5919, 32
        %v5990 = vpop.permute.xlu0 %5989
        %5991 = vrot.lane.b32.xlu0 %v5920, 32
        %v5992 = vpop.permute.xlu0 %5991
        %6001 = vrot.lane.b32.xlu0 %v5937, 32
        %v6002 = vpop.permute.xlu0 %6001
        %6003 = vrot.lane.b32.xlu0 %v5938, 32
        %v6004 = vpop.permute.xlu0 %6003
        %6005 = vrot.lane.b32.xlu0 %v5939, 32
        %v6006 = vpop.permute.xlu0 %6005
        %6007 = vrot.lane.b32.xlu0 %v5940, 32
        %v6008 = vpop.permute.xlu0 %6007
        %6009 = vrot.lane.b32.xlu0 %v5941, 32
        %v6010 = vpop.permute.xlu0 %6009
        %6011 = vrot.lane.b32.xlu0 %v5942, 32
        %v6012 = vpop.permute.xlu0 %6011
        %6013 = vrot.lane.b32.xlu0 %v5943, 32
        %v6014 = vpop.permute.xlu0 %6013
        %6015 = vrot.lane.b32.xlu0 %v5944, 32
        %v6016 = vpop.permute.xlu0 %6015
        %v6018 = vsel %vm1759, %v5978, 0
        %v6021 = vsel %vm1759, %v5980, 0
        %v6024 = vsel %vm1759, %v5982, 0
        %v6027 = vsel %vm1759, %v5984, 0
        %v6030 = vsel %vm1759, %v5986, 0
        %v6033 = vsel %vm1759, %v5988, 0
        %v6036 = vsel %vm1759, %v5990, 0
        %v6039 = vsel %vm1759, %v5992, 0
        %v6042 = vsel %vm1759, %v6002, 0
        %v6045 = vsel %vm1759, %v6004, 0
        %v6048 = vsel %vm1759, %v6006, 0
        %v6051 = vsel %vm1759, %v6008, 0
        %v6054 = vsel %vm1759, %v6010, 0
        %v6057 = vsel %vm1759, %v6012, 0
        %v6060 = vsel %vm1759, %v6014, 0
        %v6063 = vsel %vm1759, %v6016, 0
        %6065 = vmatprep.subr.bf16.mxu0 0
        %6066 = vmatpush1.bf16.xpose.msra.mxu0 %v6042
        %6067 = vmatprep.subr.bf16.mxu0 0
        %6068 = vmatpush1.bf16.xpose.msra.mxu0 %v6045
        %6069 = vmatprep.subr.bf16.mxu0 0
        %6070 = vmatpush1.bf16.xpose.msra.mxu0 %v6048
        %6071 = vmatprep.subr.bf16.mxu0 0
        %6072 = vmatpush1.bf16.xpose.msra.mxu0 %v6051
        %6073 = vmatprep.subr.bf16.mxu0 0
        %6074 = vmatpush1.bf16.xpose.msra.mxu0 %v6054
        %6075 = vmatprep.subr.bf16.mxu0 0
        %6076 = vmatpush1.bf16.xpose.msra.mxu0 %v6057
        %6077 = vmatprep.subr.bf16.mxu0 0
        %6078 = vmatpush1.bf16.xpose.msra.mxu0 %v6060
        %6079 = vmatprep.subr.bf16.mxu0 0
        %6080 = vmatpush1.bf16.xpose.msra.mxu0 %v6063
        %6081 = vmatprep.subr.bf16.mxu0 0
        %6082 = vmatpush1.bf16.xpose.msra.mxu0 0
        %6083 = vmatprep.subr.bf16.mxu0 0
        %6084 = vmatpush1.bf16.xpose.msra.mxu0 0
        %6085 = vmatprep.subr.bf16.mxu0 0
        %6086 = vmatpush1.bf16.xpose.msra.mxu0 0
        %6087 = vmatprep.subr.bf16.mxu0 0
        %6088 = vmatpush1.bf16.xpose.msra.mxu0 0
        %6089 = vmatprep.subr.bf16.mxu0 0
        %6090 = vmatpush1.bf16.xpose.msra.mxu0 0
        %6091 = vmatprep.subr.bf16.mxu0 0
        %6092 = vmatpush1.bf16.xpose.msra.mxu0 0
        %6093 = vmatprep.subr.bf16.mxu0 0
        %6094 = vmatpush1.bf16.xpose.msra.mxu0 0
        %6095 = vmatprep.subr.bf16.mxu0 0
        %6096 = vmatpush1.bf16.xpose.msra.mxu0 0
        %6097 = vmatprep.mubr.bf16.mxu0 0
        %6098 = vmatmul.mubr.bf16.gmra.mrb[0].mxu0 %v6018
        %v6099 = vpop.f32.mrb[0].mxu0
        %v6100 = vadd.f32 0.0, %v6099
        %v6101 = vpop.f32.mrb[0].mxu0
        %v6102 = vpop.f32.mrb[0].mxu0
        %v6103 = vadd.f32 0.0, %v6102
        %v6104 = vpop.f32.mrb[0].mxu0
        %6105 = vmatprep.mubr.bf16.mxu0 0
        %6106 = vmatmul.mubr.bf16.gmra.mrb[0].mxu0 %v6021
        %v6107 = vpop.f32.mrb[0].mxu0
        %v6108 = vadd.f32 0.0, %v6107
        %v6109 = vpop.f32.mrb[0].mxu0
        %v6110 = vpop.f32.mrb[0].mxu0
        %v6111 = vadd.f32 0.0, %v6110
        %v6112 = vpop.f32.mrb[0].mxu0
        %6113 = vmatprep.mubr.bf16.mxu0 0
        %6114 = vmatmul.mubr.bf16.gmra.mrb[0].mxu0 %v6024
        %v6115 = vpop.f32.mrb[0].mxu0
        %v6116 = vadd.f32 0.0, %v6115
        %v6117 = vpop.f32.mrb[0].mxu0
        %v6118 = vpop.f32.mrb[0].mxu0
        %v6119 = vadd.f32 0.0, %v6118
        %v6120 = vpop.f32.mrb[0].mxu0
        %6121 = vmatprep.mubr.bf16.mxu0 0
        %6122 = vmatmul.mubr.bf16.gmra.mrb[0].mxu0 %v6027
        %v6123 = vpop.f32.mrb[0].mxu0
        %v6124 = vadd.f32 0.0, %v6123
        %v6125 = vpop.f32.mrb[0].mxu0
        %v6126 = vpop.f32.mrb[0].mxu0
        %v6127 = vadd.f32 0.0, %v6126
        %v6128 = vpop.f32.mrb[0].mxu0
        %6129 = vmatprep.mubr.bf16.mxu0 0
        %6130 = vmatmul.mubr.bf16.gmra.mrb[0].mxu0 %v6030
        %v6131 = vpop.f32.mrb[0].mxu0
        %v6132 = vadd.f32 0.0, %v6131
        %v6133 = vpop.f32.mrb[0].mxu0
        %v6134 = vpop.f32.mrb[0].mxu0
        %v6135 = vadd.f32 0.0, %v6134
        %v6136 = vpop.f32.mrb[0].mxu0
        %6137 = vmatprep.mubr.bf16.mxu0 0
        %6138 = vmatmul.mubr.bf16.gmra.mrb[0].mxu0 %v6033
        %v6139 = vpop.f32.mrb[0].mxu0
        %v6140 = vadd.f32 0.0, %v6139
        %v6141 = vpop.f32.mrb[0].mxu0
        %v6142 = vpop.f32.mrb[0].mxu0
        %v6143 = vadd.f32 0.0, %v6142
        %v6144 = vpop.f32.mrb[0].mxu0
        %6145 = vmatprep.mubr.bf16.mxu0 0
        %6146 = vmatmul.mubr.bf16.gmra.mrb[0].mxu0 %v6036
        %v6147 = vpop.f32.mrb[0].mxu0
        %v6148 = vadd.f32 0.0, %v6147
        %v6149 = vpop.f32.mrb[0].mxu0
        %v6150 = vpop.f32.mrb[0].mxu0
        %v6151 = vadd.f32 0.0, %v6150
        %v6152 = vpop.f32.mrb[0].mxu0
        %6153 = vmatprep.mubr.bf16.mxu0 0
        %6154 = vmatmul.mubr.bf16.gmra.mrb[0].mxu0 %v6039
        %v6155 = vpop.f32.mrb[0].mxu0
        %v6156 = vadd.f32 0.0, %v6155
        %v6157 = vpop.f32.mrb[0].mxu0
        %v6158 = vpop.f32.mrb[0].mxu0
        %v6159 = vadd.f32 0.0, %v6158
        %v6160 = vpop.f32.mrb[0].mxu0
        %6161 = vdwg.mxu0
        %v6162 = vsel %vm1671, %v6100, -1e+30
        %v6163 = vsel %vm1672, %v6103, -1e+30
        %v6164 = vsel %vm1673, %v6108, -1e+30
        %v6165 = vsel %vm1674, %v6111, -1e+30
        %v6166 = vsel %vm1675, %v6116, -1e+30
        %v6167 = vsel %vm1676, %v6119, -1e+30
        %v6168 = vsel %vm1677, %v6124, -1e+30
        %v6169 = vsel %vm1678, %v6127, -1e+30
        %v6170 = vsel %vm1679, %v6132, -1e+30
        %v6171 = vsel %vm1680, %v6135, -1e+30
        %v6172 = vsel %vm1681, %v6140, -1e+30
        %v6173 = vsel %vm1682, %v6143, -1e+30
        %v6174 = vsel %vm1683, %v6148, -1e+30
        %v6175 = vsel %vm1684, %v6151, -1e+30
        %v6176 = vsel %vm1685, %v6156, -1e+30
        %v6177 = vsel %vm1686, %v6159, -1e+30
        %6178 = vmax.xlane.f32.xlu0 %v6162
        %v6179 = vpop.xlane.xlu0 %6178
        %6180 = vmax.xlane.f32.xlu0 %v6163
        %v6181 = vpop.xlane.xlu0 %6180
        %6182 = vmax.xlane.f32.xlu0 %v6164
        %v6183 = vpop.xlane.xlu0 %6182
        %6184 = vmax.xlane.f32.xlu0 %v6165
        %v6185 = vpop.xlane.xlu0 %6184
        %6186 = vmax.xlane.f32.xlu0 %v6166
        %v6187 = vpop.xlane.xlu0 %6186
        %6188 = vmax.xlane.f32.xlu0 %v6167
        %v6189 = vpop.xlane.xlu0 %6188
        %6190 = vmax.xlane.f32.xlu0 %v6168
        %v6191 = vpop.xlane.xlu0 %6190
        %6192 = vmax.xlane.f32.xlu0 %v6169
        %v6193 = vpop.xlane.xlu0 %6192
        %6194 = vmax.xlane.f32.xlu0 %v6170
        %v6195 = vpop.xlane.xlu0 %6194
        %6196 = vmax.xlane.f32.xlu0 %v6171
        %v6197 = vpop.xlane.xlu0 %6196
        %6198 = vmax.xlane.f32.xlu0 %v6172
        %v6199 = vpop.xlane.xlu0 %6198
        %6200 = vmax.xlane.f32.xlu0 %v6173
        %v6201 = vpop.xlane.xlu0 %6200
        %6202 = vmax.xlane.f32.xlu0 %v6174
        %v6203 = vpop.xlane.xlu0 %6202
        %6204 = vmax.xlane.f32.xlu0 %v6175
        %v6205 = vpop.xlane.xlu0 %6204
        %6206 = vmax.xlane.f32.xlu0 %v6176
        %v6207 = vpop.xlane.xlu0 %6206
        %6208 = vmax.xlane.f32.xlu0 %v6177
        %v6209 = vpop.xlane.xlu0 %6208
        %v6210 = vsub.f32 %v6162, %v6179
        %v6211 = vsub.f32 %v6163, %v6181
        %v6212 = vsub.f32 %v6164, %v6183
        %v6213 = vsub.f32 %v6165, %v6185
        %v6214 = vsub.f32 %v6166, %v6187
        %v6215 = vsub.f32 %v6167, %v6189
        %v6216 = vsub.f32 %v6168, %v6191
        %v6217 = vsub.f32 %v6169, %v6193
        %v6218 = vsub.f32 %v6170, %v6195
        %v6219 = vsub.f32 %v6171, %v6197
        %v6220 = vsub.f32 %v6172, %v6199
        %v6221 = vsub.f32 %v6173, %v6201
        %v6222 = vsub.f32 %v6174, %v6203
        %v6223 = vsub.f32 %v6175, %v6205
        %v6224 = vsub.f32 %v6176, %v6207
        %v6225 = vsub.f32 %v6177, %v6209
        %v6226 = vmul.f32 %v6210, 1.442695
        %v6227 = vpow.pop %v6226
        %v6228 = vmul.f32 %v6211, 1.442695
        %v6229 = vpow.pop %v6228
        %v6230 = vmul.f32 %v6212, 1.442695
        %v6231 = vpow.pop %v6230
        %v6232 = vmul.f32 %v6213, 1.442695
        %v6233 = vpow.pop %v6232
        %v6234 = vmul.f32 %v6214, 1.442695
        %v6235 = vpow.pop %v6234
        %v6236 = vmul.f32 %v6215, 1.442695
        %v6237 = vpow.pop %v6236
        %v6238 = vmul.f32 %v6216, 1.442695
        %v6239 = vpow.pop %v6238
        %v6240 = vmul.f32 %v6217, 1.442695
        %v6241 = vpow.pop %v6240
        %v6242 = vmul.f32 %v6218, 1.442695
        %v6243 = vpow.pop %v6242
        %v6244 = vmul.f32 %v6219, 1.442695
        %v6245 = vpow.pop %v6244
        %v6246 = vmul.f32 %v6220, 1.442695
        %v6247 = vpow.pop %v6246
        %v6248 = vmul.f32 %v6221, 1.442695
        %v6249 = vpow.pop %v6248
        %v6250 = vmul.f32 %v6222, 1.442695
        %v6251 = vpow.pop %v6250
        %v6252 = vmul.f32 %v6223, 1.442695
        %v6253 = vpow.pop %v6252
        %v6254 = vmul.f32 %v6224, 1.442695
        %v6255 = vpow.pop %v6254
        %v6256 = vmul.f32 %v6225, 1.442695
        %v6257 = vpow.pop %v6256
        %6258 = vadd.xlane.f32.xlu0 %v6227
        %v6259 = vpop.xlane.xlu0 %6258
        %6260 = vadd.xlane.f32.xlu0 %v6229
        %v6261 = vpop.xlane.xlu0 %6260
        %6262 = vadd.xlane.f32.xlu0 %v6231
        %v6263 = vpop.xlane.xlu0 %6262
        %6264 = vadd.xlane.f32.xlu0 %v6233
        %v6265 = vpop.xlane.xlu0 %6264
        %6266 = vadd.xlane.f32.xlu0 %v6235
        %v6267 = vpop.xlane.xlu0 %6266
        %6268 = vadd.xlane.f32.xlu0 %v6237
        %v6269 = vpop.xlane.xlu0 %6268
        %6270 = vadd.xlane.f32.xlu0 %v6239
        %v6271 = vpop.xlane.xlu0 %6270
        %6272 = vadd.xlane.f32.xlu0 %v6241
        %v6273 = vpop.xlane.xlu0 %6272
        %6274 = vadd.xlane.f32.xlu0 %v6243
        %v6275 = vpop.xlane.xlu0 %6274
        %6276 = vadd.xlane.f32.xlu0 %v6245
        %v6277 = vpop.xlane.xlu0 %6276
        %6278 = vadd.xlane.f32.xlu0 %v6247
        %v6279 = vpop.xlane.xlu0 %6278
        %6280 = vadd.xlane.f32.xlu0 %v6249
        %v6281 = vpop.xlane.xlu0 %6280
        %6282 = vadd.xlane.f32.xlu0 %v6251
        %v6283 = vpop.xlane.xlu0 %6282
        %6284 = vadd.xlane.f32.xlu0 %v6253
        %v6285 = vpop.xlane.xlu0 %6284
        %6286 = vadd.xlane.f32.xlu0 %v6255
        %v6287 = vpop.xlane.xlu0 %6286
        %6288 = vadd.xlane.f32.xlu0 %v6257
        %v6289 = vpop.xlane.xlu0 %6288
        %v6290 = vpack.c.bf16 %v6229, %v6227
        %v6291 = vpack.c.bf16 %v6233, %v6231
        %v6292 = vpack.c.bf16 %v6237, %v6235
        %v6293 = vpack.c.bf16 %v6241, %v6239
        %v6294 = vpack.c.bf16 %v6245, %v6243
        %v6295 = vpack.c.bf16 %v6249, %v6247
        %v6296 = vpack.c.bf16 %v6253, %v6251
        %v6297 = vpack.c.bf16 %v6257, %v6255
        %6306 = vrot.lane.b32.xlu0 %v5961, 32
        %v6307 = vpop.permute.xlu0 %6306
        %6308 = vrot.lane.b32.xlu0 %v5962, 32
        %v6309 = vpop.permute.xlu0 %6308
        %6310 = vrot.lane.b32.xlu0 %v5963, 32
        %v6311 = vpop.permute.xlu0 %6310
        %6312 = vrot.lane.b32.xlu0 %v5964, 32
        %v6313 = vpop.permute.xlu0 %6312
        %6314 = vrot.lane.b32.xlu0 %v5965, 32
        %v6315 = vpop.permute.xlu0 %6314
        %6316 = vrot.lane.b32.xlu0 %v5966, 32
        %v6317 = vpop.permute.xlu0 %6316
        %6318 = vrot.lane.b32.xlu0 %v5967, 32
        %v6319 = vpop.permute.xlu0 %6318
        %6320 = vrot.lane.b32.xlu0 %v5968, 32
        %v6321 = vpop.permute.xlu0 %6320
        %6330 = vmatprep.subr.bf16.mxu0 0
        %6331 = vmatpush1.bf16.msra.mxu0 %v6307
        %6332 = vmatprep.subr.bf16.mxu0 0
        %6333 = vmatpush1.bf16.msra.mxu0 %v6309
        %6334 = vmatprep.subr.bf16.mxu0 0
        %6335 = vmatpush1.bf16.msra.mxu0 %v6311
        %6336 = vmatprep.subr.bf16.mxu0 0
        %6337 = vmatpush1.bf16.msra.mxu0 %v6313
        %6338 = vmatprep.subr.bf16.mxu0 0
        %6339 = vmatpush1.bf16.msra.mxu0 %v6315
        %6340 = vmatprep.subr.bf16.mxu0 0
        %6341 = vmatpush1.bf16.msra.mxu0 %v6317
        %6342 = vmatprep.subr.bf16.mxu0 0
        %6343 = vmatpush1.bf16.msra.mxu0 %v6319
        %6344 = vmatprep.subr.bf16.mxu0 0
        %6345 = vmatpush1.bf16.msra.mxu0 %v6321
        %6346 = vmatprep.subr.bf16.mxu0 0
        %6347 = vmatpush1.bf16.msra.mxu0 0
        %6348 = vmatprep.subr.bf16.mxu0 0
        %6349 = vmatpush1.bf16.msra.mxu0 0
        %6350 = vmatprep.subr.bf16.mxu0 0
        %6351 = vmatpush1.bf16.msra.mxu0 0
        %6352 = vmatprep.subr.bf16.mxu0 0
        %6353 = vmatpush1.bf16.msra.mxu0 0
        %6354 = vmatprep.subr.bf16.mxu0 0
        %6355 = vmatpush1.bf16.msra.mxu0 0
        %6356 = vmatprep.subr.bf16.mxu0 0
        %6357 = vmatpush1.bf16.msra.mxu0 0
        %6358 = vmatprep.subr.bf16.mxu0 0
        %6359 = vmatpush1.bf16.msra.mxu0 0
        %6360 = vmatprep.subr.bf16.mxu0 0
        %6361 = vmatpush1.bf16.msra.mxu0 0
        %6362 = vmatprep.mubr.bf16.mxu0 0
        %6363 = vmatmul.mubr.bf16.gmra.mrb[0].mxu0 %v6290
        %v6364 = vpop.f32.mrb[0].mxu0
        %v6365 = vadd.f32 0.0, %v6364
        %v6366 = vpop.f32.mrb[0].mxu0
        %v6367 = vpop.f32.mrb[0].mxu0
        %v6368 = vadd.f32 0.0, %v6367
        %v6369 = vpop.f32.mrb[0].mxu0
        %6370 = vmatprep.mubr.bf16.mxu0 0
        %6371 = vmatmul.mubr.bf16.gmra.mrb[0].mxu0 %v6291
        %v6372 = vpop.f32.mrb[0].mxu0
        %v6373 = vadd.f32 0.0, %v6372
        %v6374 = vpop.f32.mrb[0].mxu0
        %v6375 = vpop.f32.mrb[0].mxu0
        %v6376 = vadd.f32 0.0, %v6375
        %v6377 = vpop.f32.mrb[0].mxu0
        %6378 = vmatprep.mubr.bf16.mxu0 0
        %6379 = vmatmul.mubr.bf16.gmra.mrb[0].mxu0 %v6292
        %v6380 = vpop.f32.mrb[0].mxu0
        %v6381 = vadd.f32 0.0, %v6380
        %v6382 = vpop.f32.mrb[0].mxu0
        %v6383 = vpop.f32.mrb[0].mxu0
        %v6384 = vadd.f32 0.0, %v6383
        %v6385 = vpop.f32.mrb[0].mxu0
        %6386 = vmatprep.mubr.bf16.mxu0 0
        %6387 = vmatmul.mubr.bf16.gmra.mrb[0].mxu0 %v6293
        %v6388 = vpop.f32.mrb[0].mxu0
        %v6389 = vadd.f32 0.0, %v6388
        %v6390 = vpop.f32.mrb[0].mxu0
        %v6391 = vpop.f32.mrb[0].mxu0
        %v6392 = vadd.f32 0.0, %v6391
        %v6393 = vpop.f32.mrb[0].mxu0
        %6394 = vmatprep.mubr.bf16.mxu0 0
        %6395 = vmatmul.mubr.bf16.gmra.mrb[0].mxu0 %v6294
        %v6396 = vpop.f32.mrb[0].mxu0
        %v6397 = vadd.f32 0.0, %v6396
        %v6398 = vpop.f32.mrb[0].mxu0
        %v6399 = vpop.f32.mrb[0].mxu0
        %v6400 = vadd.f32 0.0, %v6399
        %v6401 = vpop.f32.mrb[0].mxu0
        %6402 = vmatprep.mubr.bf16.mxu0 0
        %6403 = vmatmul.mubr.bf16.gmra.mrb[0].mxu0 %v6295
        %v6404 = vpop.f32.mrb[0].mxu0
        %v6405 = vadd.f32 0.0, %v6404
        %v6406 = vpop.f32.mrb[0].mxu0
        %v6407 = vpop.f32.mrb[0].mxu0
        %v6408 = vadd.f32 0.0, %v6407
        %v6409 = vpop.f32.mrb[0].mxu0
        %6410 = vmatprep.mubr.bf16.mxu0 0
        %6411 = vmatmul.mubr.bf16.gmra.mrb[0].mxu0 %v6296
        %v6412 = vpop.f32.mrb[0].mxu0
        %v6413 = vadd.f32 0.0, %v6412
        %v6414 = vpop.f32.mrb[0].mxu0
        %v6415 = vpop.f32.mrb[0].mxu0
        %v6416 = vadd.f32 0.0, %v6415
        %v6417 = vpop.f32.mrb[0].mxu0
        %6418 = vmatprep.mubr.bf16.mxu0 0
        %6419 = vmatmul.mubr.bf16.gmra.mrb[0].mxu0 %v6297
        %v6420 = vpop.f32.mrb[0].mxu0
        %v6421 = vadd.f32 0.0, %v6420
        %v6422 = vpop.f32.mrb[0].mxu0
        %v6423 = vpop.f32.mrb[0].mxu0
        %v6424 = vadd.f32 0.0, %v6423
        %v6425 = vpop.f32.mrb[0].mxu0
        %6426 = vdwg.mxu0
        %v6427 = vrcp.pop %v6259
        %v6428 = vrcp.pop %v6261
        %v6429 = vrcp.pop %v6263
        %v6430 = vrcp.pop %v6265
        %v6431 = vrcp.pop %v6267
        %v6432 = vrcp.pop %v6269
        %v6433 = vrcp.pop %v6271
        %v6434 = vrcp.pop %v6273
        %v6435 = vrcp.pop %v6275
        %v6436 = vrcp.pop %v6277
        %v6437 = vrcp.pop %v6279
        %v6438 = vrcp.pop %v6281
        %v6439 = vrcp.pop %v6283
        %v6440 = vrcp.pop %v6285
        %v6441 = vrcp.pop %v6287
        %v6442 = vrcp.pop %v6289
        %v6443 = vmul.f32 %v6365, %v6427
        %v6444 = vmul.f32 %v6368, %v6428
        %v6445 = vmul.f32 %v6373, %v6429
        %v6446 = vmul.f32 %v6376, %v6430
        %v6447 = vmul.f32 %v6381, %v6431
        %v6448 = vmul.f32 %v6384, %v6432
        %v6449 = vmul.f32 %v6389, %v6433
        %v6450 = vmul.f32 %v6392, %v6434
        %v6451 = vmul.f32 %v6397, %v6435
        %v6452 = vmul.f32 %v6400, %v6436
        %v6453 = vmul.f32 %v6405, %v6437
        %v6454 = vmul.f32 %v6408, %v6438
        %v6455 = vmul.f32 %v6413, %v6439
        %v6456 = vmul.f32 %v6416, %v6440
        %v6457 = vmul.f32 %v6421, %v6441
        %v6458 = vmul.f32 %v6424, %v6442
        %6475 = vrot.lane.b32.xlu0 %v6443, 96
        %v6476 = vpop.permute.xlu0 %6475
        %6477 = vrot.lane.b32.xlu0 %v6444, 96
        %v6478 = vpop.permute.xlu0 %6477
        %6479 = vrot.lane.b32.xlu0 %v6445, 96
        %v6480 = vpop.permute.xlu0 %6479
        %6481 = vrot.lane.b32.xlu0 %v6446, 96
        %v6482 = vpop.permute.xlu0 %6481
        %6483 = vrot.lane.b32.xlu0 %v6447, 96
        %v6484 = vpop.permute.xlu0 %6483
        %6485 = vrot.lane.b32.xlu0 %v6448, 96
        %v6486 = vpop.permute.xlu0 %6485
        %6487 = vrot.lane.b32.xlu0 %v6449, 96
        %v6488 = vpop.permute.xlu0 %6487
        %6489 = vrot.lane.b32.xlu0 %v6450, 96
        %v6490 = vpop.permute.xlu0 %6489
        %6491 = vrot.lane.b32.xlu0 %v6451, 96
        %v6492 = vpop.permute.xlu0 %6491
        %6493 = vrot.lane.b32.xlu0 %v6452, 96
        %v6494 = vpop.permute.xlu0 %6493
        %6495 = vrot.lane.b32.xlu0 %v6453, 96
        %v6496 = vpop.permute.xlu0 %6495
        %6497 = vrot.lane.b32.xlu0 %v6454, 96
        %v6498 = vpop.permute.xlu0 %6497
        %6499 = vrot.lane.b32.xlu0 %v6455, 96
        %v6500 = vpop.permute.xlu0 %6499
        %6501 = vrot.lane.b32.xlu0 %v6456, 96
        %v6502 = vpop.permute.xlu0 %6501
        %6503 = vrot.lane.b32.xlu0 %v6457, 96
        %v6504 = vpop.permute.xlu0 %6503
        %6505 = vrot.lane.b32.xlu0 %v6458, 96
        %v6506 = vpop.permute.xlu0 %6505
        %6523 = vst.msk [vmem:[#allocation3 + $0x80] sm:$0xff] %vm4098, %v6476
        %6524 = vst.msk [vmem:[#allocation3 + $0x88] sm:$0xff] %vm4098, %v6478
        %6525 = vst.msk [vmem:[#allocation3 + $0x90] sm:$0xff] %vm4098, %v6480
        %6526 = vst.msk [vmem:[#allocation3 + $0x98] sm:$0xff] %vm4098, %v6482
        %6527 = vst.msk [vmem:[#allocation3 + $0xa0] sm:$0xff] %vm4098, %v6484
        %6528 = vst.msk [vmem:[#allocation3 + $0xa8] sm:$0xff] %vm4098, %v6486
        %6529 = vst.msk [vmem:[#allocation3 + $0xb0] sm:$0xff] %vm4098, %v6488
        %6530 = vst.msk [vmem:[#allocation3 + $0xb8] sm:$0xff] %vm4098, %v6490
        %6531 = vst.msk [vmem:[#allocation3 + $0xc0] sm:$0xff] %vm4098, %v6492
        %6532 = vst.msk [vmem:[#allocation3 + $0xc8] sm:$0xff] %vm4098, %v6494
        %6533 = vst.msk [vmem:[#allocation3 + $0xd0] sm:$0xff] %vm4098, %v6496
        %6534 = vst.msk [vmem:[#allocation3 + $0xd8] sm:$0xff] %vm4098, %v6498
        %6535 = vst.msk [vmem:[#allocation3 + $0xe0] sm:$0xff] %vm4098, %v6500
        %6536 = vst.msk [vmem:[#allocation3 + $0xe8] sm:$0xff] %vm4098, %v6502
        %6537 = vst.msk [vmem:[#allocation3 + $0xf0] sm:$0xff] %vm4098, %v6504
        %6538 = vst.msk [vmem:[#allocation3 + $0xf8] sm:$0xff] %vm4098, %v6506
        %v6539 = vld [vmem:[#allocation3] sm:$0xff]
        %v6540 = vld [vmem:[#allocation3 + $0x8] sm:$0xff]
        %v6541 = vld [vmem:[#allocation3 + $0x10] sm:$0xff]
        %v6542 = vld [vmem:[#allocation3 + $0x18] sm:$0xff]
        %v6543 = vld [vmem:[#allocation3 + $0x20] sm:$0xff]
        %v6544 = vld [vmem:[#allocation3 + $0x28] sm:$0xff]
        %v6545 = vld [vmem:[#allocation3 + $0x30] sm:$0xff]
        %v6546 = vld [vmem:[#allocation3 + $0x38] sm:$0xff]
        %v6547 = vld [vmem:[#allocation3 + $0x40] sm:$0xff]
        %v6548 = vld [vmem:[#allocation3 + $0x48] sm:$0xff]
        %v6549 = vld [vmem:[#allocation3 + $0x50] sm:$0xff]
        %v6550 = vld [vmem:[#allocation3 + $0x58] sm:$0xff]
        %v6551 = vld [vmem:[#allocation3 + $0x60] sm:$0xff]
        %v6552 = vld [vmem:[#allocation3 + $0x68] sm:$0xff]
        %v6553 = vld [vmem:[#allocation3 + $0x70] sm:$0xff]
        %v6554 = vld [vmem:[#allocation3 + $0x78] sm:$0xff]
        %v6555 = vld [vmem:[#allocation3 + $0x80] sm:$0xff]
        %v6556 = vld [vmem:[#allocation3 + $0x88] sm:$0xff]
        %v6557 = vld [vmem:[#allocation3 + $0x90] sm:$0xff]
        %v6558 = vld [vmem:[#allocation3 + $0x98] sm:$0xff]
        %v6559 = vld [vmem:[#allocation3 + $0xa0] sm:$0xff]
        %v6560 = vld [vmem:[#allocation3 + $0xa8] sm:$0xff]
        %v6561 = vld [vmem:[#allocation3 + $0xb0] sm:$0xff]
        %v6562 = vld [vmem:[#allocation3 + $0xb8] sm:$0xff]
        %v6563 = vld [vmem:[#allocation3 + $0xc0] sm:$0xff]
        %v6564 = vld [vmem:[#allocation3 + $0xc8] sm:$0xff]
        %v6565 = vld [vmem:[#allocation3 + $0xd0] sm:$0xff]
        %v6566 = vld [vmem:[#allocation3 + $0xd8] sm:$0xff]
        %v6567 = vld [vmem:[#allocation3 + $0xe0] sm:$0xff]
        %v6568 = vld [vmem:[#allocation3 + $0xe8] sm:$0xff]
        %v6569 = vld [vmem:[#allocation3 + $0xf0] sm:$0xff]
        %v6570 = vld [vmem:[#allocation3 + $0xf8] sm:$0xff]
        %v6571 = vpack.c.bf16 %v6540, %v6539
        %v6572 = vpack.c.bf16 %v6542, %v6541
        %v6573 = vpack.c.bf16 %v6544, %v6543
        %v6574 = vpack.c.bf16 %v6546, %v6545
        %v6575 = vpack.c.bf16 %v6548, %v6547
        %v6576 = vpack.c.bf16 %v6550, %v6549
        %v6577 = vpack.c.bf16 %v6552, %v6551
        %v6578 = vpack.c.bf16 %v6554, %v6553
        %v6579 = vpack.c.bf16 %v6556, %v6555
        %v6580 = vpack.c.bf16 %v6558, %v6557
        %v6581 = vpack.c.bf16 %v6560, %v6559
        %v6582 = vpack.c.bf16 %v6562, %v6561
        %v6583 = vpack.c.bf16 %v6564, %v6563
        %v6584 = vpack.c.bf16 %v6566, %v6565
        %v6585 = vpack.c.bf16 %v6568, %v6567
        %v6586 = vpack.c.bf16 %v6570, %v6569
        %v6587 = vld [vmem:[#allocation12] sm:$0xf]
        %v6588 = vld [vmem:[#allocation12 + $0x4] sm:$0xf]
        %v6589 = vld [vmem:[#allocation12 + $0x8] sm:$0xf]
        %v6590 = vld [vmem:[#allocation12 + $0xc] sm:$0xf]
        %v6591 = vld [vmem:[#allocation12 + $0x10] sm:$0xf]
        %v6592 = vld [vmem:[#allocation12 + $0x14] sm:$0xf]
        %v6593 = vld [vmem:[#allocation12 + $0x18] sm:$0xf]
        %v6594 = vld [vmem:[#allocation12 + $0x1c] sm:$0xf]
        %v6595 = vld [vmem:[#allocation12 + $0x20] sm:$0xf]
        %v6596 = vld [vmem:[#allocation12 + $0x24] sm:$0xf]
        %v6597 = vld [vmem:[#allocation12 + $0x28] sm:$0xf]
        %v6598 = vld [vmem:[#allocation12 + $0x2c] sm:$0xf]
        %v6599 = vld [vmem:[#allocation12 + $0x30] sm:$0xf]
        %v6600 = vld [vmem:[#allocation12 + $0x34] sm:$0xf]
        %v6601 = vld [vmem:[#allocation12 + $0x38] sm:$0xf]
        %v6602 = vld [vmem:[#allocation12 + $0x3c] sm:$0xf]
        %v6603 = vld [vmem:[%s6] sm:$0x1]
        %v6605 = vlaneseq
        %v6606 = vshrl.u32 %v6605, 7
        %v6607 = vsub.s32 0, %v6606
        %v6608 = vrot.slane %v6603, %v6607
        %v6626 = vunpack.c.l.b16 %v6587
        %v6627 = vunpack.c.l.b16 %v6588
        %v6628 = vunpack.c.l.b16 %v6589
        %v6629 = vunpack.c.l.b16 %v6590
        %v6630 = vunpack.c.l.b16 %v6591
        %v6631 = vunpack.c.l.b16 %v6592
        %v6632 = vunpack.c.l.b16 %v6593
        %v6633 = vunpack.c.l.b16 %v6594
        %v6634 = vunpack.c.l.b16 %v6595
        %v6635 = vunpack.c.l.b16 %v6596
        %v6636 = vunpack.c.l.b16 %v6597
        %v6637 = vunpack.c.l.b16 %v6598
        %v6638 = vunpack.c.l.b16 %v6599
        %v6639 = vunpack.c.l.b16 %v6600
        %v6640 = vunpack.c.l.b16 %v6601
        %v6641 = vunpack.c.l.b16 %v6602
        %v6642 = vpack.c.b16 %v6627, %v6626
        %v6643 = vpack.c.b16 %v6629, %v6628
        %v6644 = vpack.c.b16 %v6631, %v6630
        %v6645 = vpack.c.b16 %v6633, %v6632
        %v6646 = vpack.c.b16 %v6635, %v6634
        %v6647 = vpack.c.b16 %v6637, %v6636
        %v6648 = vpack.c.b16 %v6639, %v6638
        %v6649 = vpack.c.b16 %v6641, %v6640
        %6658 = vmatprep.subr.bf16.mxu0 0
        %6659 = vmatpush1.bf16.msra.mxu0 %v6642
        %6660 = vmatprep.subr.bf16.mxu0 0
        %6661 = vmatpush1.bf16.msra.mxu0 %v6643
        %6662 = vmatprep.subr.bf16.mxu0 0
        %6663 = vmatpush1.bf16.msra.mxu0 %v6644
        %6664 = vmatprep.subr.bf16.mxu0 0
        %6665 = vmatpush1.bf16.msra.mxu0 %v6645
        %6666 = vmatprep.subr.bf16.mxu0 0
        %6667 = vmatpush1.bf16.msra.mxu0 %v6646
        %6668 = vmatprep.subr.bf16.mxu0 0
        %6669 = vmatpush1.bf16.msra.mxu0 %v6647
        %6670 = vmatprep.subr.bf16.mxu0 0
        %6671 = vmatpush1.bf16.msra.mxu0 %v6648
        %6672 = vmatprep.subr.bf16.mxu0 0
        %6673 = vmatpush1.bf16.msra.mxu0 %v6649
        %6674 = vmatprep.subr.bf16.mxu0 0
        %6675 = vmatpush1.bf16.msra.mxu0 0
        %6676 = vmatprep.subr.bf16.mxu0 0
        %6677 = vmatpush1.bf16.msra.mxu0 0
        %6678 = vmatprep.subr.bf16.mxu0 0
        %6679 = vmatpush1.bf16.msra.mxu0 0
        %6680 = vmatprep.subr.bf16.mxu0 0
        %6681 = vmatpush1.bf16.msra.mxu0 0
        %6682 = vmatprep.subr.bf16.mxu0 0
        %6683 = vmatpush1.bf16.msra.mxu0 0
        %6684 = vmatprep.subr.bf16.mxu0 0
        %6685 = vmatpush1.bf16.msra.mxu0 0
        %6686 = vmatprep.subr.bf16.mxu0 0
        %6687 = vmatpush1.bf16.msra.mxu0 0
        %6688 = vmatprep.subr.bf16.mxu0 0
        %6689 = vmatpush1.bf16.msra.mxu0 0
        %6690 = vmatprep.mubr.bf16.mxu0 0
        %6691 = vmatmul.mubr.bf16.gmra.mrb[0].mxu0 %v6571
        %v6692 = vpop.f32.mrb[0].mxu0
        %v6693 = vadd.f32 %v6608, %v6692
        %v6694 = vpop.f32.mrb[0].mxu0
        %v6695 = vpop.f32.mrb[0].mxu0
        %v6696 = vadd.f32 %v6608, %v6695
        %v6697 = vpop.f32.mrb[0].mxu0
        %6698 = vmatprep.mubr.bf16.mxu0 0
        %6699 = vmatmul.mubr.bf16.gmra.mrb[0].mxu0 %v6572
        %v6700 = vpop.f32.mrb[0].mxu0
        %v6701 = vadd.f32 %v6608, %v6700
        %v6702 = vpop.f32.mrb[0].mxu0
        %v6703 = vpop.f32.mrb[0].mxu0
        %v6704 = vadd.f32 %v6608, %v6703
        %v6705 = vpop.f32.mrb[0].mxu0
        %6706 = vmatprep.mubr.bf16.mxu0 0
        %6707 = vmatmul.mubr.bf16.gmra.mrb[0].mxu0 %v6573
        %v6708 = vpop.f32.mrb[0].mxu0
        %v6709 = vadd.f32 %v6608, %v6708
        %v6710 = vpop.f32.mrb[0].mxu0
        %v6711 = vpop.f32.mrb[0].mxu0
        %v6712 = vadd.f32 %v6608, %v6711
        %v6713 = vpop.f32.mrb[0].mxu0
        %6714 = vmatprep.mubr.bf16.mxu0 0
        %6715 = vmatmul.mubr.bf16.gmra.mrb[0].mxu0 %v6574
        %v6716 = vpop.f32.mrb[0].mxu0
        %v6717 = vadd.f32 %v6608, %v6716
        %v6718 = vpop.f32.mrb[0].mxu0
        %v6719 = vpop.f32.mrb[0].mxu0
        %v6720 = vadd.f32 %v6608, %v6719
        %v6721 = vpop.f32.mrb[0].mxu0
        %6722 = vmatprep.mubr.bf16.mxu0 0
        %6723 = vmatmul.mubr.bf16.gmra.mrb[0].mxu0 %v6575
        %v6724 = vpop.f32.mrb[0].mxu0
        %v6725 = vadd.f32 %v6608, %v6724
        %v6726 = vpop.f32.mrb[0].mxu0
        %v6727 = vpop.f32.mrb[0].mxu0
        %v6728 = vadd.f32 %v6608, %v6727
        %v6729 = vpop.f32.mrb[0].mxu0
        %6730 = vmatprep.mubr.bf16.mxu0 0
        %6731 = vmatmul.mubr.bf16.gmra.mrb[0].mxu0 %v6576
        %v6732 = vpop.f32.mrb[0].mxu0
        %v6733 = vadd.f32 %v6608, %v6732
        %v6734 = vpop.f32.mrb[0].mxu0
        %v6735 = vpop.f32.mrb[0].mxu0
        %v6736 = vadd.f32 %v6608, %v6735
        %v6737 = vpop.f32.mrb[0].mxu0
        %6738 = vmatprep.mubr.bf16.mxu0 0
        %6739 = vmatmul.mubr.bf16.gmra.mrb[0].mxu0 %v6577
        %v6740 = vpop.f32.mrb[0].mxu0
        %v6741 = vadd.f32 %v6608, %v6740
        %v6742 = vpop.f32.mrb[0].mxu0
        %v6743 = vpop.f32.mrb[0].mxu0
        %v6744 = vadd.f32 %v6608, %v6743
        %v6745 = vpop.f32.mrb[0].mxu0
        %6746 = vmatprep.mubr.bf16.mxu0 0
        %6747 = vmatmul.mubr.bf16.gmra.mrb[0].mxu0 %v6578
        %v6748 = vpop.f32.mrb[0].mxu0
        %v6749 = vadd.f32 %v6608, %v6748
        %v6750 = vpop.f32.mrb[0].mxu0
        %v6751 = vpop.f32.mrb[0].mxu0
        %v6752 = vadd.f32 %v6608, %v6751
        %v6753 = vpop.f32.mrb[0].mxu0
        %6754 = vmatprep.mubr.bf16.mxu0 0
        %6755 = vmatmul.mubr.bf16.gmra.mrb[0].mxu0 %v6579
        %v6756 = vpop.f32.mrb[0].mxu0
        %v6757 = vadd.f32 %v6608, %v6756
        %v6758 = vpop.f32.mrb[0].mxu0
        %v6759 = vpop.f32.mrb[0].mxu0
        %v6760 = vadd.f32 %v6608, %v6759
        %v6761 = vpop.f32.mrb[0].mxu0
        %6762 = vmatprep.mubr.bf16.mxu0 0
        %6763 = vmatmul.mubr.bf16.gmra.mrb[0].mxu0 %v6580
        %v6764 = vpop.f32.mrb[0].mxu0
        %v6765 = vadd.f32 %v6608, %v6764
        %v6766 = vpop.f32.mrb[0].mxu0
        %v6767 = vpop.f32.mrb[0].mxu0
        %v6768 = vadd.f32 %v6608, %v6767
        %v6769 = vpop.f32.mrb[0].mxu0
        %6770 = vmatprep.mubr.bf16.mxu0 0
        %6771 = vmatmul.mubr.bf16.gmra.mrb[0].mxu0 %v6581
        %v6772 = vpop.f32.mrb[0].mxu0
        %v6773 = vadd.f32 %v6608, %v6772
        %v6774 = vpop.f32.mrb[0].mxu0
        %v6775 = vpop.f32.mrb[0].mxu0
        %v6776 = vadd.f32 %v6608, %v6775
        %v6777 = vpop.f32.mrb[0].mxu0
        %6778 = vmatprep.mubr.bf16.mxu0 0
        %6779 = vmatmul.mubr.bf16.gmra.mrb[0].mxu0 %v6582
        %v6780 = vpop.f32.mrb[0].mxu0
        %v6781 = vadd.f32 %v6608, %v6780
        %v6782 = vpop.f32.mrb[0].mxu0
        %v6783 = vpop.f32.mrb[0].mxu0
        %v6784 = vadd.f32 %v6608, %v6783
        %v6785 = vpop.f32.mrb[0].mxu0
        %6786 = vmatprep.mubr.bf16.mxu0 0
        %6787 = vmatmul.mubr.bf16.gmra.mrb[0].mxu0 %v6583
        %v6788 = vpop.f32.mrb[0].mxu0
        %v6789 = vadd.f32 %v6608, %v6788
        %v6790 = vpop.f32.mrb[0].mxu0
        %v6791 = vpop.f32.mrb[0].mxu0
        %v6792 = vadd.f32 %v6608, %v6791
        %v6793 = vpop.f32.mrb[0].mxu0
        %6794 = vmatprep.mubr.bf16.mxu0 0
        %6795 = vmatmul.mubr.bf16.gmra.mrb[0].mxu0 %v6584
        %v6796 = vpop.f32.mrb[0].mxu0
        %v6797 = vadd.f32 %v6608, %v6796
        %v6798 = vpop.f32.mrb[0].mxu0
        %v6799 = vpop.f32.mrb[0].mxu0
        %v6800 = vadd.f32 %v6608, %v6799
        %v6801 = vpop.f32.mrb[0].mxu0
        %6802 = vmatprep.mubr.bf16.mxu0 0
        %6803 = vmatmul.mubr.bf16.gmra.mrb[0].mxu0 %v6585
        %v6804 = vpop.f32.mrb[0].mxu0
        %v6805 = vadd.f32 %v6608, %v6804
        %v6806 = vpop.f32.mrb[0].mxu0
        %v6807 = vpop.f32.mrb[0].mxu0
        %v6808 = vadd.f32 %v6608, %v6807
        %v6809 = vpop.f32.mrb[0].mxu0
        %6810 = vmatprep.mubr.bf16.mxu0 0
        %6811 = vmatmul.mubr.bf16.gmra.mrb[0].mxu0 %v6586
        %v6812 = vpop.f32.mrb[0].mxu0
        %v6813 = vadd.f32 %v6608, %v6812
        %v6814 = vpop.f32.mrb[0].mxu0
        %v6815 = vpop.f32.mrb[0].mxu0
        %v6816 = vadd.f32 %v6608, %v6815
        %v6817 = vpop.f32.mrb[0].mxu0
        %6818 = vdwg.mxu0
        %v6819 = vadd.f32 %v546, %v6693
        %v6820 = vadd.f32 %v547, %v6696
        %v6821 = vadd.f32 %v548, %v6701
        %v6822 = vadd.f32 %v549, %v6704
        %v6823 = vadd.f32 %v550, %v6709
        %v6824 = vadd.f32 %v551, %v6712
        %v6825 = vadd.f32 %v552, %v6717
        %v6826 = vadd.f32 %v553, %v6720
        %v6827 = vadd.f32 %v554, %v6725
        %v6828 = vadd.f32 %v555, %v6728
        %v6829 = vadd.f32 %v556, %v6733
        %v6830 = vadd.f32 %v557, %v6736
        %v6831 = vadd.f32 %v558, %v6741
        %v6832 = vadd.f32 %v559, %v6744
        %v6833 = vadd.f32 %v560, %v6749
        %v6834 = vadd.f32 %v561, %v6752
        %v6835 = vadd.f32 %v562, %v6757
        %v6836 = vadd.f32 %v563, %v6760
        %v6837 = vadd.f32 %v564, %v6765
        %v6838 = vadd.f32 %v565, %v6768
        %v6839 = vadd.f32 %v566, %v6773
        %v6840 = vadd.f32 %v567, %v6776
        %v6841 = vadd.f32 %v568, %v6781
        %v6842 = vadd.f32 %v569, %v6784
        %v6843 = vadd.f32 %v570, %v6789
        %v6844 = vadd.f32 %v571, %v6792
        %v6845 = vadd.f32 %v572, %v6797
        %v6846 = vadd.f32 %v573, %v6800
        %v6847 = vadd.f32 %v574, %v6805
        %v6848 = vadd.f32 %v575, %v6808
        %v6849 = vadd.f32 %v576, %v6813
        %v6850 = vadd.f32 %v577, %v6816
        %v6851 = vld [vmem:[%s7] sm:$0x1]
        %v6852 = vld [vmem:[%s8] sm:$0x1]
        %6853 = vadd.xlane.f32.xlu0 %v6819
        %v6854 = vpop.xlane.xlu0 %6853
        %6855 = vadd.xlane.f32.xlu0 %v6820
        %v6856 = vpop.xlane.xlu0 %6855
        %6857 = vadd.xlane.f32.xlu0 %v6821
        %v6858 = vpop.xlane.xlu0 %6857
        %6859 = vadd.xlane.f32.xlu0 %v6822
        %v6860 = vpop.xlane.xlu0 %6859
        %6861 = vadd.xlane.f32.xlu0 %v6823
        %v6862 = vpop.xlane.xlu0 %6861
        %6863 = vadd.xlane.f32.xlu0 %v6824
        %v6864 = vpop.xlane.xlu0 %6863
        %6865 = vadd.xlane.f32.xlu0 %v6825
        %v6866 = vpop.xlane.xlu0 %6865
        %6867 = vadd.xlane.f32.xlu0 %v6826
        %v6868 = vpop.xlane.xlu0 %6867
        %6869 = vadd.xlane.f32.xlu0 %v6827
        %v6870 = vpop.xlane.xlu0 %6869
        %6871 = vadd.xlane.f32.xlu0 %v6828
        %v6872 = vpop.xlane.xlu0 %6871
        %6873 = vadd.xlane.f32.xlu0 %v6829
        %v6874 = vpop.xlane.xlu0 %6873
        %6875 = vadd.xlane.f32.xlu0 %v6830
        %v6876 = vpop.xlane.xlu0 %6875
        %6877 = vadd.xlane.f32.xlu0 %v6831
        %v6878 = vpop.xlane.xlu0 %6877
        %6879 = vadd.xlane.f32.xlu0 %v6832
        %v6880 = vpop.xlane.xlu0 %6879
        %6881 = vadd.xlane.f32.xlu0 %v6833
        %v6882 = vpop.xlane.xlu0 %6881
        %6883 = vadd.xlane.f32.xlu0 %v6834
        %v6884 = vpop.xlane.xlu0 %6883
        %6885 = vadd.xlane.f32.xlu0 %v6835
        %v6886 = vpop.xlane.xlu0 %6885
        %6887 = vadd.xlane.f32.xlu0 %v6836
        %v6888 = vpop.xlane.xlu0 %6887
        %6889 = vadd.xlane.f32.xlu0 %v6837
        %v6890 = vpop.xlane.xlu0 %6889
        %6891 = vadd.xlane.f32.xlu0 %v6838
        %v6892 = vpop.xlane.xlu0 %6891
        %6893 = vadd.xlane.f32.xlu0 %v6839
        %v6894 = vpop.xlane.xlu0 %6893
        %6895 = vadd.xlane.f32.xlu0 %v6840
        %v6896 = vpop.xlane.xlu0 %6895
        %6897 = vadd.xlane.f32.xlu0 %v6841
        %v6898 = vpop.xlane.xlu0 %6897
        %6899 = vadd.xlane.f32.xlu0 %v6842
        %v6900 = vpop.xlane.xlu0 %6899
        %6901 = vadd.xlane.f32.xlu0 %v6843
        %v6902 = vpop.xlane.xlu0 %6901
        %6903 = vadd.xlane.f32.xlu0 %v6844
        %v6904 = vpop.xlane.xlu0 %6903
        %6905 = vadd.xlane.f32.xlu0 %v6845
        %v6906 = vpop.xlane.xlu0 %6905
        %6907 = vadd.xlane.f32.xlu0 %v6846
        %v6908 = vpop.xlane.xlu0 %6907
        %6909 = vadd.xlane.f32.xlu0 %v6847
        %v6910 = vpop.xlane.xlu0 %6909
        %6911 = vadd.xlane.f32.xlu0 %v6848
        %v6912 = vpop.xlane.xlu0 %6911
        %6913 = vadd.xlane.f32.xlu0 %v6849
        %v6914 = vpop.xlane.xlu0 %6913
        %6915 = vadd.xlane.f32.xlu0 %v6850
        %v6916 = vpop.xlane.xlu0 %6915
        %v6917 = vmul.f32 %v6854, %v644
        %v6918 = vmul.f32 %v6856, %v644
        %v6919 = vmul.f32 %v6858, %v644
        %v6920 = vmul.f32 %v6860, %v644
        %v6921 = vmul.f32 %v6862, %v644
        %v6922 = vmul.f32 %v6864, %v644
        %v6923 = vmul.f32 %v6866, %v644
        %v6924 = vmul.f32 %v6868, %v644
        %v6925 = vmul.f32 %v6870, %v644
        %v6926 = vmul.f32 %v6872, %v644
        %v6927 = vmul.f32 %v6874, %v644
        %v6928 = vmul.f32 %v6876, %v644
        %v6929 = vmul.f32 %v6878, %v644
        %v6930 = vmul.f32 %v6880, %v644
        %v6931 = vmul.f32 %v6882, %v644
        %v6932 = vmul.f32 %v6884, %v644
        %v6933 = vmul.f32 %v6886, %v644
        %v6934 = vmul.f32 %v6888, %v644
        %v6935 = vmul.f32 %v6890, %v644
        %v6936 = vmul.f32 %v6892, %v644
        %v6937 = vmul.f32 %v6894, %v644
        %v6938 = vmul.f32 %v6896, %v644
        %v6939 = vmul.f32 %v6898, %v644
        %v6940 = vmul.f32 %v6900, %v644
        %v6941 = vmul.f32 %v6902, %v644
        %v6942 = vmul.f32 %v6904, %v644
        %v6943 = vmul.f32 %v6906, %v644
        %v6944 = vmul.f32 %v6908, %v644
        %v6945 = vmul.f32 %v6910, %v644
        %v6946 = vmul.f32 %v6912, %v644
        %v6947 = vmul.f32 %v6914, %v644
        %v6948 = vmul.f32 %v6916, %v644
        %v6949 = vsub.f32 %v6819, %v6917
        %v6950 = vsub.f32 %v6820, %v6918
        %v6951 = vsub.f32 %v6821, %v6919
        %v6952 = vsub.f32 %v6822, %v6920
        %v6953 = vsub.f32 %v6823, %v6921
        %v6954 = vsub.f32 %v6824, %v6922
        %v6955 = vsub.f32 %v6825, %v6923
        %v6956 = vsub.f32 %v6826, %v6924
        %v6957 = vsub.f32 %v6827, %v6925
        %v6958 = vsub.f32 %v6828, %v6926
        %v6959 = vsub.f32 %v6829, %v6927
        %v6960 = vsub.f32 %v6830, %v6928
        %v6961 = vsub.f32 %v6831, %v6929
        %v6962 = vsub.f32 %v6832, %v6930
        %v6963 = vsub.f32 %v6833, %v6931
        %v6964 = vsub.f32 %v6834, %v6932
        %v6965 = vsub.f32 %v6835, %v6933
        %v6966 = vsub.f32 %v6836, %v6934
        %v6967 = vsub.f32 %v6837, %v6935
        %v6968 = vsub.f32 %v6838, %v6936
        %v6969 = vsub.f32 %v6839, %v6937
        %v6970 = vsub.f32 %v6840, %v6938
        %v6971 = vsub.f32 %v6841, %v6939
        %v6972 = vsub.f32 %v6842, %v6940
        %v6973 = vsub.f32 %v6843, %v6941
        %v6974 = vsub.f32 %v6844, %v6942
        %v6975 = vsub.f32 %v6845, %v6943
        %v6976 = vsub.f32 %v6846, %v6944
        %v6977 = vsub.f32 %v6847, %v6945
        %v6978 = vsub.f32 %v6848, %v6946
        %v6979 = vsub.f32 %v6849, %v6947
        %v6980 = vsub.f32 %v6850, %v6948
        %v6981 = vmul.f32 %v6949, %v6949
        %v6982 = vmul.f32 %v6950, %v6950
        %v6983 = vmul.f32 %v6951, %v6951
        %v6984 = vmul.f32 %v6952, %v6952
        %v6985 = vmul.f32 %v6953, %v6953
        %v6986 = vmul.f32 %v6954, %v6954
        %v6987 = vmul.f32 %v6955, %v6955
        %v6988 = vmul.f32 %v6956, %v6956
        %v6989 = vmul.f32 %v6957, %v6957
        %v6990 = vmul.f32 %v6958, %v6958
        %v6991 = vmul.f32 %v6959, %v6959
        %v6992 = vmul.f32 %v6960, %v6960
        %v6993 = vmul.f32 %v6961, %v6961
        %v6994 = vmul.f32 %v6962, %v6962
        %v6995 = vmul.f32 %v6963, %v6963
        %v6996 = vmul.f32 %v6964, %v6964
        %v6997 = vmul.f32 %v6965, %v6965
        %v6998 = vmul.f32 %v6966, %v6966
        %v6999 = vmul.f32 %v6967, %v6967
        %v7000 = vmul.f32 %v6968, %v6968
        %v7001 = vmul.f32 %v6969, %v6969
        %v7002 = vmul.f32 %v6970, %v6970
        %v7003 = vmul.f32 %v6971, %v6971
        %v7004 = vmul.f32 %v6972, %v6972
        %v7005 = vmul.f32 %v6973, %v6973
        %v7006 = vmul.f32 %v6974, %v6974
        %v7007 = vmul.f32 %v6975, %v6975
        %v7008 = vmul.f32 %v6976, %v6976
        %v7009 = vmul.f32 %v6977, %v6977
        %v7010 = vmul.f32 %v6978, %v6978
        %v7011 = vmul.f32 %v6979, %v6979
        %v7012 = vmul.f32 %v6980, %v6980
        %7013 = vadd.xlane.f32.xlu0 %v6981
        %v7014 = vpop.xlane.xlu0 %7013
        %7015 = vadd.xlane.f32.xlu0 %v6982
        %v7016 = vpop.xlane.xlu0 %7015
        %7017 = vadd.xlane.f32.xlu0 %v6983
        %v7018 = vpop.xlane.xlu0 %7017
        %7019 = vadd.xlane.f32.xlu0 %v6984
        %v7020 = vpop.xlane.xlu0 %7019
        %7021 = vadd.xlane.f32.xlu0 %v6985
        %v7022 = vpop.xlane.xlu0 %7021
        %7023 = vadd.xlane.f32.xlu0 %v6986
        %v7024 = vpop.xlane.xlu0 %7023
        %7025 = vadd.xlane.f32.xlu0 %v6987
        %v7026 = vpop.xlane.xlu0 %7025
        %7027 = vadd.xlane.f32.xlu0 %v6988
        %v7028 = vpop.xlane.xlu0 %7027
        %7029 = vadd.xlane.f32.xlu0 %v6989
        %v7030 = vpop.xlane.xlu0 %7029
        %7031 = vadd.xlane.f32.xlu0 %v6990
        %v7032 = vpop.xlane.xlu0 %7031
        %7033 = vadd.xlane.f32.xlu0 %v6991
        %v7034 = vpop.xlane.xlu0 %7033
        %7035 = vadd.xlane.f32.xlu0 %v6992
        %v7036 = vpop.xlane.xlu0 %7035
        %7037 = vadd.xlane.f32.xlu0 %v6993
        %v7038 = vpop.xlane.xlu0 %7037
        %7039 = vadd.xlane.f32.xlu0 %v6994
        %v7040 = vpop.xlane.xlu0 %7039
        %7041 = vadd.xlane.f32.xlu0 %v6995
        %v7042 = vpop.xlane.xlu0 %7041
        %7043 = vadd.xlane.f32.xlu0 %v6996
        %v7044 = vpop.xlane.xlu0 %7043
        %7045 = vadd.xlane.f32.xlu0 %v6997
        %v7046 = vpop.xlane.xlu0 %7045
        %7047 = vadd.xlane.f32.xlu0 %v6998
        %v7048 = vpop.xlane.xlu0 %7047
        %7049 = vadd.xlane.f32.xlu0 %v6999
        %v7050 = vpop.xlane.xlu0 %7049
        %7051 = vadd.xlane.f32.xlu0 %v7000
        %v7052 = vpop.xlane.xlu0 %7051
        %7053 = vadd.xlane.f32.xlu0 %v7001
        %v7054 = vpop.xlane.xlu0 %7053
        %7055 = vadd.xlane.f32.xlu0 %v7002
        %v7056 = vpop.xlane.xlu0 %7055
        %7057 = vadd.xlane.f32.xlu0 %v7003
        %v7058 = vpop.xlane.xlu0 %7057
        %7059 = vadd.xlane.f32.xlu0 %v7004
        %v7060 = vpop.xlane.xlu0 %7059
        %7061 = vadd.xlane.f32.xlu0 %v7005
        %v7062 = vpop.xlane.xlu0 %7061
        %7063 = vadd.xlane.f32.xlu0 %v7006
        %v7064 = vpop.xlane.xlu0 %7063
        %7065 = vadd.xlane.f32.xlu0 %v7007
        %v7066 = vpop.xlane.xlu0 %7065
        %7067 = vadd.xlane.f32.xlu0 %v7008
        %v7068 = vpop.xlane.xlu0 %7067
        %7069 = vadd.xlane.f32.xlu0 %v7009
        %v7070 = vpop.xlane.xlu0 %7069
        %7071 = vadd.xlane.f32.xlu0 %v7010
        %v7072 = vpop.xlane.xlu0 %7071
        %7073 = vadd.xlane.f32.xlu0 %v7011
        %v7074 = vpop.xlane.xlu0 %7073
        %7075 = vadd.xlane.f32.xlu0 %v7012
        %v7076 = vpop.xlane.xlu0 %7075
        %v7077 = vmul.f32 %v7014, %v644
        %v7078 = vmul.f32 %v7016, %v644
        %v7079 = vmul.f32 %v7018, %v644
        %v7080 = vmul.f32 %v7020, %v644
        %v7081 = vmul.f32 %v7022, %v644
        %v7082 = vmul.f32 %v7024, %v644
        %v7083 = vmul.f32 %v7026, %v644
        %v7084 = vmul.f32 %v7028, %v644
        %v7085 = vmul.f32 %v7030, %v644
        %v7086 = vmul.f32 %v7032, %v644
        %v7087 = vmul.f32 %v7034, %v644
        %v7088 = vmul.f32 %v7036, %v644
        %v7089 = vmul.f32 %v7038, %v644
        %v7090 = vmul.f32 %v7040, %v644
        %v7091 = vmul.f32 %v7042, %v644
        %v7092 = vmul.f32 %v7044, %v644
        %v7093 = vmul.f32 %v7046, %v644
        %v7094 = vmul.f32 %v7048, %v644
        %v7095 = vmul.f32 %v7050, %v644
        %v7096 = vmul.f32 %v7052, %v644
        %v7097 = vmul.f32 %v7054, %v644
        %v7098 = vmul.f32 %v7056, %v644
        %v7099 = vmul.f32 %v7058, %v644
        %v7100 = vmul.f32 %v7060, %v644
        %v7101 = vmul.f32 %v7062, %v644
        %v7102 = vmul.f32 %v7064, %v644
        %v7103 = vmul.f32 %v7066, %v644
        %v7104 = vmul.f32 %v7068, %v644
        %v7105 = vmul.f32 %v7070, %v644
        %v7106 = vmul.f32 %v7072, %v644
        %v7107 = vmul.f32 %v7074, %v644
        %v7108 = vmul.f32 %v7076, %v644
        %v7109 = vadd.f32 %v7077, 1e-05
        %v7110 = vadd.f32 %v7078, 1e-05
        %v7111 = vadd.f32 %v7079, 1e-05
        %v7112 = vadd.f32 %v7080, 1e-05
        %v7113 = vadd.f32 %v7081, 1e-05
        %v7114 = vadd.f32 %v7082, 1e-05
        %v7115 = vadd.f32 %v7083, 1e-05
        %v7116 = vadd.f32 %v7084, 1e-05
        %v7117 = vadd.f32 %v7085, 1e-05
        %v7118 = vadd.f32 %v7086, 1e-05
        %v7119 = vadd.f32 %v7087, 1e-05
        %v7120 = vadd.f32 %v7088, 1e-05
        %v7121 = vadd.f32 %v7089, 1e-05
        %v7122 = vadd.f32 %v7090, 1e-05
        %v7123 = vadd.f32 %v7091, 1e-05
        %v7124 = vadd.f32 %v7092, 1e-05
        %v7125 = vadd.f32 %v7093, 1e-05
        %v7126 = vadd.f32 %v7094, 1e-05
        %v7127 = vadd.f32 %v7095, 1e-05
        %v7128 = vadd.f32 %v7096, 1e-05
        %v7129 = vadd.f32 %v7097, 1e-05
        %v7130 = vadd.f32 %v7098, 1e-05
        %v7131 = vadd.f32 %v7099, 1e-05
        %v7132 = vadd.f32 %v7100, 1e-05
        %v7133 = vadd.f32 %v7101, 1e-05
        %v7134 = vadd.f32 %v7102, 1e-05
        %v7135 = vadd.f32 %v7103, 1e-05
        %v7136 = vadd.f32 %v7104, 1e-05
        %v7137 = vadd.f32 %v7105, 1e-05
        %v7138 = vadd.f32 %v7106, 1e-05
        %v7139 = vadd.f32 %v7107, 1e-05
        %v7140 = vadd.f32 %v7108, 1e-05
        %v7141 = vrsqrt.pop %v7109
        %v7142 = vrsqrt.pop %v7110
        %v7143 = vrsqrt.pop %v7111
        %v7144 = vrsqrt.pop %v7112
        %v7145 = vrsqrt.pop %v7113
        %v7146 = vrsqrt.pop %v7114
        %v7147 = vrsqrt.pop %v7115
        %v7148 = vrsqrt.pop %v7116
        %v7149 = vrsqrt.pop %v7117
        %v7150 = vrsqrt.pop %v7118
        %v7151 = vrsqrt.pop %v7119
        %v7152 = vrsqrt.pop %v7120
        %v7153 = vrsqrt.pop %v7121
        %v7154 = vrsqrt.pop %v7122
        %v7155 = vrsqrt.pop %v7123
        %v7156 = vrsqrt.pop %v7124
        %v7157 = vrsqrt.pop %v7125
        %v7158 = vrsqrt.pop %v7126
        %v7159 = vrsqrt.pop %v7127
        %v7160 = vrsqrt.pop %v7128
        %v7161 = vrsqrt.pop %v7129
        %v7162 = vrsqrt.pop %v7130
        %v7163 = vrsqrt.pop %v7131
        %v7164 = vrsqrt.pop %v7132
        %v7165 = vrsqrt.pop %v7133
        %v7166 = vrsqrt.pop %v7134
        %v7167 = vrsqrt.pop %v7135
        %v7168 = vrsqrt.pop %v7136
        %v7169 = vrsqrt.pop %v7137
        %v7170 = vrsqrt.pop %v7138
        %v7171 = vrsqrt.pop %v7139
        %v7172 = vrsqrt.pop %v7140
        %v7173 = vmul.f32 %v6949, %v7141
        %v7174 = vmul.f32 %v6950, %v7142
        %v7175 = vmul.f32 %v6951, %v7143
        %v7176 = vmul.f32 %v6952, %v7144
        %v7177 = vmul.f32 %v6953, %v7145
        %v7178 = vmul.f32 %v6954, %v7146
        %v7179 = vmul.f32 %v6955, %v7147
        %v7180 = vmul.f32 %v6956, %v7148
        %v7181 = vmul.f32 %v6957, %v7149
        %v7182 = vmul.f32 %v6958, %v7150
        %v7183 = vmul.f32 %v6959, %v7151
        %v7184 = vmul.f32 %v6960, %v7152
        %v7185 = vmul.f32 %v6961, %v7153
        %v7186 = vmul.f32 %v6962, %v7154
        %v7187 = vmul.f32 %v6963, %v7155
        %v7188 = vmul.f32 %v6964, %v7156
        %v7189 = vmul.f32 %v6965, %v7157
        %v7190 = vmul.f32 %v6966, %v7158
        %v7191 = vmul.f32 %v6967, %v7159
        %v7192 = vmul.f32 %v6968, %v7160
        %v7193 = vmul.f32 %v6969, %v7161
        %v7194 = vmul.f32 %v6970, %v7162
        %v7195 = vmul.f32 %v6971, %v7163
        %v7196 = vmul.f32 %v6972, %v7164
        %v7197 = vmul.f32 %v6973, %v7165
        %v7198 = vmul.f32 %v6974, %v7166
        %v7199 = vmul.f32 %v6975, %v7167
        %v7200 = vmul.f32 %v6976, %v7168
        %v7201 = vmul.f32 %v6977, %v7169
        %v7202 = vmul.f32 %v6978, %v7170
        %v7203 = vmul.f32 %v6979, %v7171
        %v7204 = vmul.f32 %v6980, %v7172
        %v7206 = vlaneseq
        %v7207 = vshrl.u32 %v7206, 7
        %v7208 = vsub.s32 0, %v7207
        %v7209 = vrot.slane %v6851, %v7208
        %v7211 = vmul.f32 %v7173, %v7209
        %v7212 = vmul.f32 %v7174, %v7209
        %v7213 = vmul.f32 %v7175, %v7209
        %v7214 = vmul.f32 %v7176, %v7209
        %v7215 = vmul.f32 %v7177, %v7209
        %v7216 = vmul.f32 %v7178, %v7209
        %v7217 = vmul.f32 %v7179, %v7209
        %v7218 = vmul.f32 %v7180, %v7209
        %v7219 = vmul.f32 %v7181, %v7209
        %v7220 = vmul.f32 %v7182, %v7209
        %v7221 = vmul.f32 %v7183, %v7209
        %v7222 = vmul.f32 %v7184, %v7209
        %v7223 = vmul.f32 %v7185, %v7209
        %v7224 = vmul.f32 %v7186, %v7209
        %v7225 = vmul.f32 %v7187, %v7209
        %v7226 = vmul.f32 %v7188, %v7209
        %v7227 = vmul.f32 %v7189, %v7209
        %v7228 = vmul.f32 %v7190, %v7209
        %v7229 = vmul.f32 %v7191, %v7209
        %v7230 = vmul.f32 %v7192, %v7209
        %v7231 = vmul.f32 %v7193, %v7209
        %v7232 = vmul.f32 %v7194, %v7209
        %v7233 = vmul.f32 %v7195, %v7209
        %v7234 = vmul.f32 %v7196, %v7209
        %v7235 = vmul.f32 %v7197, %v7209
        %v7236 = vmul.f32 %v7198, %v7209
        %v7237 = vmul.f32 %v7199, %v7209
        %v7238 = vmul.f32 %v7200, %v7209
        %v7239 = vmul.f32 %v7201, %v7209
        %v7240 = vmul.f32 %v7202, %v7209
        %v7241 = vmul.f32 %v7203, %v7209
        %v7242 = vmul.f32 %v7204, %v7209
        %v7244 = vlaneseq
        %v7245 = vshrl.u32 %v7244, 7
        %v7246 = vsub.s32 0, %v7245
        %v7247 = vrot.slane %v6852, %v7246
        %v7249 = vadd.f32 %v7211, %v7247
        %v7250 = vadd.f32 %v7212, %v7247
        %v7251 = vadd.f32 %v7213, %v7247
        %v7252 = vadd.f32 %v7214, %v7247
        %v7253 = vadd.f32 %v7215, %v7247
        %v7254 = vadd.f32 %v7216, %v7247
        %v7255 = vadd.f32 %v7217, %v7247
        %v7256 = vadd.f32 %v7218, %v7247
        %v7257 = vadd.f32 %v7219, %v7247
        %v7258 = vadd.f32 %v7220, %v7247
        %v7259 = vadd.f32 %v7221, %v7247
        %v7260 = vadd.f32 %v7222, %v7247
        %v7261 = vadd.f32 %v7223, %v7247
        %v7262 = vadd.f32 %v7224, %v7247
        %v7263 = vadd.f32 %v7225, %v7247
        %v7264 = vadd.f32 %v7226, %v7247
        %v7265 = vadd.f32 %v7227, %v7247
        %v7266 = vadd.f32 %v7228, %v7247
        %v7267 = vadd.f32 %v7229, %v7247
        %v7268 = vadd.f32 %v7230, %v7247
        %v7269 = vadd.f32 %v7231, %v7247
        %v7270 = vadd.f32 %v7232, %v7247
        %v7271 = vadd.f32 %v7233, %v7247
        %v7272 = vadd.f32 %v7234, %v7247
        %v7273 = vadd.f32 %v7235, %v7247
        %v7274 = vadd.f32 %v7236, %v7247
        %v7275 = vadd.f32 %v7237, %v7247
        %v7276 = vadd.f32 %v7238, %v7247
        %v7277 = vadd.f32 %v7239, %v7247
        %v7278 = vadd.f32 %v7240, %v7247
        %v7279 = vadd.f32 %v7241, %v7247
        %v7280 = vadd.f32 %v7242, %v7247
        %v7281 = vpack.c.bf16 %v7250, %v7249
        %v7282 = vpack.c.bf16 %v7252, %v7251
        %v7283 = vpack.c.bf16 %v7254, %v7253
        %v7284 = vpack.c.bf16 %v7256, %v7255
        %v7285 = vpack.c.bf16 %v7258, %v7257
        %v7286 = vpack.c.bf16 %v7260, %v7259
        %v7287 = vpack.c.bf16 %v7262, %v7261
        %v7288 = vpack.c.bf16 %v7264, %v7263
        %v7289 = vpack.c.bf16 %v7266, %v7265
        %v7290 = vpack.c.bf16 %v7268, %v7267
        %v7291 = vpack.c.bf16 %v7270, %v7269
        %v7292 = vpack.c.bf16 %v7272, %v7271
        %v7293 = vpack.c.bf16 %v7274, %v7273
        %v7294 = vpack.c.bf16 %v7276, %v7275
        %v7295 = vpack.c.bf16 %v7278, %v7277
        %v7296 = vpack.c.bf16 %v7280, %v7279
        %v7297 = vld [vmem:[#allocation13] sm:$0xff]
        %v7298 = vld [vmem:[#allocation13 + $0x8] sm:$0xff]
        %v7299 = vld [vmem:[#allocation13 + $0x10] sm:$0xff]
        %v7300 = vld [vmem:[#allocation13 + $0x18] sm:$0xff]
        %v7301 = vld [vmem:[#allocation13 + $0x20] sm:$0xff]
        %v7302 = vld [vmem:[#allocation13 + $0x28] sm:$0xff]
        %v7303 = vld [vmem:[#allocation13 + $0x30] sm:$0xff]
        %v7304 = vld [vmem:[#allocation13 + $0x38] sm:$0xff]
        %v7305 = vld [vmem:[#allocation13 + $0x40] sm:$0xff]
        %v7306 = vld [vmem:[#allocation13 + $0x48] sm:$0xff]
        %v7307 = vld [vmem:[#allocation13 + $0x50] sm:$0xff]
        %v7308 = vld [vmem:[#allocation13 + $0x58] sm:$0xff]
        %v7309 = vld [vmem:[#allocation13 + $0x60] sm:$0xff]
        %v7310 = vld [vmem:[#allocation13 + $0x68] sm:$0xff]
        %v7311 = vld [vmem:[#allocation13 + $0x70] sm:$0xff]
        %v7312 = vld [vmem:[#allocation13 + $0x78] sm:$0xff]
        %v7313 = vld [vmem:[#allocation13 + $0x80] sm:$0xff]
        %v7314 = vld [vmem:[#allocation13 + $0x88] sm:$0xff]
        %v7315 = vld [vmem:[#allocation13 + $0x90] sm:$0xff]
        %v7316 = vld [vmem:[#allocation13 + $0x98] sm:$0xff]
        %v7317 = vld [vmem:[#allocation13 + $0xa0] sm:$0xff]
        %v7318 = vld [vmem:[#allocation13 + $0xa8] sm:$0xff]
        %v7319 = vld [vmem:[#allocation13 + $0xb0] sm:$0xff]
        %v7320 = vld [vmem:[#allocation13 + $0xb8] sm:$0xff]
        %v7321 = vld [vmem:[#allocation13 + $0xc0] sm:$0xff]
        %v7322 = vld [vmem:[#allocation13 + $0xc8] sm:$0xff]
        %v7323 = vld [vmem:[#allocation13 + $0xd0] sm:$0xff]
        %v7324 = vld [vmem:[#allocation13 + $0xd8] sm:$0xff]
        %v7325 = vld [vmem:[#allocation13 + $0xe0] sm:$0xff]
        %v7326 = vld [vmem:[#allocation13 + $0xe8] sm:$0xff]
        %v7327 = vld [vmem:[#allocation13 + $0xf0] sm:$0xff]
        %v7328 = vld [vmem:[#allocation13 + $0xf8] sm:$0xff]
        %v7329 = vld [vmem:[%s10] sm:$0xf]
        %v7331 = vlaneseq
        %v7332 = vshrl.u32 %v7331, 7
        %v7333 = vsub.s32 0, %v7332
        %v7334 = vrot.slane %v7329, %v7333
        %v7335 = vlaneseq
        %v7336 = vshrl.u32 %v7335, 7
        %v7337 = vsub.s32 1, %v7336
        %v7338 = vrot.slane %v7329, %v7337
        %v7339 = vlaneseq
        %v7340 = vshrl.u32 %v7339, 7
        %v7341 = vsub.s32 2, %v7340
        %v7342 = vrot.slane %v7329, %v7341
        %v7343 = vlaneseq
        %v7344 = vshrl.u32 %v7343, 7
        %v7345 = vsub.s32 3, %v7344
        %v7346 = vrot.slane %v7329, %v7345
        %v7383 = vunpack.c.l.b16 %v7297
        %v7384 = vunpack.c.h.b16 %v7297
        %v7385 = vunpack.c.l.b16 %v7298
        %v7386 = vunpack.c.h.b16 %v7298
        %v7387 = vunpack.c.l.b16 %v7299
        %v7388 = vunpack.c.h.b16 %v7299
        %v7389 = vunpack.c.l.b16 %v7300
        %v7390 = vunpack.c.h.b16 %v7300
        %v7391 = vunpack.c.l.b16 %v7301
        %v7392 = vunpack.c.h.b16 %v7301
        %v7393 = vunpack.c.l.b16 %v7302
        %v7394 = vunpack.c.h.b16 %v7302
        %v7395 = vunpack.c.l.b16 %v7303
        %v7396 = vunpack.c.h.b16 %v7303
        %v7397 = vunpack.c.l.b16 %v7304
        %v7398 = vunpack.c.h.b16 %v7304
        %v7399 = vunpack.c.l.b16 %v7305
        %v7400 = vunpack.c.h.b16 %v7305
        %v7401 = vunpack.c.l.b16 %v7306
        %v7402 = vunpack.c.h.b16 %v7306
        %v7403 = vunpack.c.l.b16 %v7307
        %v7404 = vunpack.c.h.b16 %v7307
        %v7405 = vunpack.c.l.b16 %v7308
        %v7406 = vunpack.c.h.b16 %v7308
        %v7407 = vunpack.c.l.b16 %v7309
        %v7408 = vunpack.c.h.b16 %v7309
        %v7409 = vunpack.c.l.b16 %v7310
        %v7410 = vunpack.c.h.b16 %v7310
        %v7411 = vunpack.c.l.b16 %v7311
        %v7412 = vunpack.c.h.b16 %v7311
        %v7413 = vunpack.c.l.b16 %v7312
        %v7414 = vunpack.c.h.b16 %v7312
        %v7415 = vunpack.c.l.b16 %v7313
        %v7416 = vunpack.c.h.b16 %v7313
        %v7417 = vunpack.c.l.b16 %v7314
        %v7418 = vunpack.c.h.b16 %v7314
        %v7419 = vunpack.c.l.b16 %v7315
        %v7420 = vunpack.c.h.b16 %v7315
        %v7421 = vunpack.c.l.b16 %v7316
        %v7422 = vunpack.c.h.b16 %v7316
        %v7423 = vunpack.c.l.b16 %v7317
        %v7424 = vunpack.c.h.b16 %v7317
        %v7425 = vunpack.c.l.b16 %v7318
        %v7426 = vunpack.c.h.b16 %v7318
        %v7427 = vunpack.c.l.b16 %v7319
        %v7428 = vunpack.c.h.b16 %v7319
        %v7429 = vunpack.c.l.b16 %v7320
        %v7430 = vunpack.c.h.b16 %v7320
        %v7431 = vunpack.c.l.b16 %v7321
        %v7432 = vunpack.c.h.b16 %v7321
        %v7433 = vunpack.c.l.b16 %v7322
        %v7434 = vunpack.c.h.b16 %v7322
        %v7435 = vunpack.c.l.b16 %v7323
        %v7436 = vunpack.c.h.b16 %v7323
        %v7437 = vunpack.c.l.b16 %v7324
        %v7438 = vunpack.c.h.b16 %v7324
        %v7439 = vunpack.c.l.b16 %v7325
        %v7440 = vunpack.c.h.b16 %v7325
        %v7441 = vunpack.c.l.b16 %v7326
        %v7442 = vunpack.c.h.b16 %v7326
        %v7443 = vunpack.c.l.b16 %v7327
        %v7444 = vunpack.c.h.b16 %v7327
        %v7445 = vunpack.c.l.b16 %v7328
        %v7446 = vunpack.c.h.b16 %v7328
        %v7447 = vpack.c.b16 %v7387, %v7383
        %v7448 = vpack.c.b16 %v7388, %v7384
        %v7449 = vpack.c.b16 %v7389, %v7385
        %v7450 = vpack.c.b16 %v7390, %v7386
        %v7451 = vpack.c.b16 %v7395, %v7391
        %v7452 = vpack.c.b16 %v7396, %v7392
        %v7453 = vpack.c.b16 %v7397, %v7393
        %v7454 = vpack.c.b16 %v7398, %v7394
        %v7455 = vpack.c.b16 %v7403, %v7399
        %v7456 = vpack.c.b16 %v7404, %v7400
        %v7457 = vpack.c.b16 %v7405, %v7401
        %v7458 = vpack.c.b16 %v7406, %v7402
        %v7459 = vpack.c.b16 %v7411, %v7407
        %v7460 = vpack.c.b16 %v7412, %v7408
        %v7461 = vpack.c.b16 %v7413, %v7409
        %v7462 = vpack.c.b16 %v7414, %v7410
        %v7463 = vpack.c.b16 %v7419, %v7415
        %v7464 = vpack.c.b16 %v7420, %v7416
        %v7465 = vpack.c.b16 %v7421, %v7417
        %v7466 = vpack.c.b16 %v7422, %v7418
        %v7467 = vpack.c.b16 %v7427, %v7423
        %v7468 = vpack.c.b16 %v7428, %v7424
        %v7469 = vpack.c.b16 %v7429, %v7425
        %v7470 = vpack.c.b16 %v7430, %v7426
        %v7471 = vpack.c.b16 %v7435, %v7431
        %v7472 = vpack.c.b16 %v7436, %v7432
        %v7473 = vpack.c.b16 %v7437, %v7433
        %v7474 = vpack.c.b16 %v7438, %v7434
        %v7475 = vpack.c.b16 %v7443, %v7439
        %v7476 = vpack.c.b16 %v7444, %v7440
        %v7477 = vpack.c.b16 %v7445, %v7441
        %v7478 = vpack.c.b16 %v7446, %v7442
        %7511 = vmatprep.subr.bf16.mxu0 %v7448
        %7512 = vmatpush1.bf16.msra.mxu0 %v7447
        %7513 = vmatprep.subr.bf16.mxu0 %v7452
        %7514 = vmatpush1.bf16.msra.mxu0 %v7451
        %7515 = vmatprep.subr.bf16.mxu0 %v7456
        %7516 = vmatpush1.bf16.msra.mxu0 %v7455
        %7517 = vmatprep.subr.bf16.mxu0 %v7460
        %7518 = vmatpush1.bf16.msra.mxu0 %v7459
        %7519 = vmatprep.subr.bf16.mxu0 %v7464
        %7520 = vmatpush1.bf16.msra.mxu0 %v7463
        %7521 = vmatprep.subr.bf16.mxu0 %v7468
        %7522 = vmatpush1.bf16.msra.mxu0 %v7467
        %7523 = vmatprep.subr.bf16.mxu0 %v7472
        %7524 = vmatpush1.bf16.msra.mxu0 %v7471
        %7525 = vmatprep.subr.bf16.mxu0 %v7476
        %7526 = vmatpush1.bf16.msra.mxu0 %v7475
        %7527 = vmatprep.subr.bf16.mxu0 0
        %7528 = vmatpush1.bf16.msra.mxu0 0
        %7529 = vmatprep.subr.bf16.mxu0 0
        %7530 = vmatpush1.bf16.msra.mxu0 0
        %7531 = vmatprep.subr.bf16.mxu0 0
        %7532 = vmatpush1.bf16.msra.mxu0 0
        %7533 = vmatprep.subr.bf16.mxu0 0
        %7534 = vmatpush1.bf16.msra.mxu0 0
        %7535 = vmatprep.subr.bf16.mxu0 0
        %7536 = vmatpush1.bf16.msra.mxu0 0
        %7537 = vmatprep.subr.bf16.mxu0 0
        %7538 = vmatpush1.bf16.msra.mxu0 0
        %7539 = vmatprep.subr.bf16.mxu0 0
        %7540 = vmatpush1.bf16.msra.mxu0 0
        %7541 = vmatprep.subr.bf16.mxu0 0
        %7542 = vmatpush1.bf16.msra.mxu0 0
        %7543 = vmatprep.mubr.bf16.mxu0 0
        %7544 = vmatmul.mubr.bf16.gmra.mrb[0].mxu0 %v7281
        %v7545 = vpop.f32.mrb[0].mxu0
        %v7546 = vadd.f32 %v7334, %v7545
        %v7547 = vpop.f32.mrb[0].mxu0
        %v7548 = vadd.f32 %v7338, %v7547
        %v7549 = vpop.f32.mrb[0].mxu0
        %v7550 = vadd.f32 %v7334, %v7549
        %v7551 = vpop.f32.mrb[0].mxu0
        %v7552 = vadd.f32 %v7338, %v7551
        %7553 = vmatprep.mubr.bf16.mxu0 0
        %7554 = vmatmul.mubr.bf16.gmra.mrb[0].mxu0 %v7282
        %v7555 = vpop.f32.mrb[0].mxu0
        %v7556 = vadd.f32 %v7334, %v7555
        %v7557 = vpop.f32.mrb[0].mxu0
        %v7558 = vadd.f32 %v7338, %v7557
        %v7559 = vpop.f32.mrb[0].mxu0
        %v7560 = vadd.f32 %v7334, %v7559
        %v7561 = vpop.f32.mrb[0].mxu0
        %v7562 = vadd.f32 %v7338, %v7561
        %7563 = vmatprep.mubr.bf16.mxu0 0
        %7564 = vmatmul.mubr.bf16.gmra.mrb[0].mxu0 %v7283
        %v7565 = vpop.f32.mrb[0].mxu0
        %v7566 = vadd.f32 %v7334, %v7565
        %v7567 = vpop.f32.mrb[0].mxu0
        %v7568 = vadd.f32 %v7338, %v7567
        %v7569 = vpop.f32.mrb[0].mxu0
        %v7570 = vadd.f32 %v7334, %v7569
        %v7571 = vpop.f32.mrb[0].mxu0
        %v7572 = vadd.f32 %v7338, %v7571
        %7573 = vmatprep.mubr.bf16.mxu0 0
        %7574 = vmatmul.mubr.bf16.gmra.mrb[0].mxu0 %v7284
        %v7575 = vpop.f32.mrb[0].mxu0
        %v7576 = vadd.f32 %v7334, %v7575
        %v7577 = vpop.f32.mrb[0].mxu0
        %v7578 = vadd.f32 %v7338, %v7577
        %v7579 = vpop.f32.mrb[0].mxu0
        %v7580 = vadd.f32 %v7334, %v7579
        %v7581 = vpop.f32.mrb[0].mxu0
        %v7582 = vadd.f32 %v7338, %v7581
        %7583 = vmatprep.mubr.bf16.mxu0 0
        %7584 = vmatmul.mubr.bf16.gmra.mrb[0].mxu0 %v7285
        %v7585 = vpop.f32.mrb[0].mxu0
        %v7586 = vadd.f32 %v7334, %v7585
        %v7587 = vpop.f32.mrb[0].mxu0
        %v7588 = vadd.f32 %v7338, %v7587
        %v7589 = vpop.f32.mrb[0].mxu0
        %v7590 = vadd.f32 %v7334, %v7589
        %v7591 = vpop.f32.mrb[0].mxu0
        %v7592 = vadd.f32 %v7338, %v7591
        %7593 = vmatprep.mubr.bf16.mxu0 0
        %7594 = vmatmul.mubr.bf16.gmra.mrb[0].mxu0 %v7286
        %v7595 = vpop.f32.mrb[0].mxu0
        %v7596 = vadd.f32 %v7334, %v7595
        %v7597 = vpop.f32.mrb[0].mxu0
        %v7598 = vadd.f32 %v7338, %v7597
        %v7599 = vpop.f32.mrb[0].mxu0
        %v7600 = vadd.f32 %v7334, %v7599
        %v7601 = vpop.f32.mrb[0].mxu0
        %v7602 = vadd.f32 %v7338, %v7601
        %7603 = vmatprep.mubr.bf16.mxu0 0
        %7604 = vmatmul.mubr.bf16.gmra.mrb[0].mxu0 %v7287
        %v7605 = vpop.f32.mrb[0].mxu0
        %v7606 = vadd.f32 %v7334, %v7605
        %v7607 = vpop.f32.mrb[0].mxu0
        %v7608 = vadd.f32 %v7338, %v7607
        %v7609 = vpop.f32.mrb[0].mxu0
        %v7610 = vadd.f32 %v7334, %v7609
        %v7611 = vpop.f32.mrb[0].mxu0
        %v7612 = vadd.f32 %v7338, %v7611
        %7613 = vmatprep.mubr.bf16.mxu0 0
        %7614 = vmatmul.mubr.bf16.gmra.mrb[0].mxu0 %v7288
        %v7615 = vpop.f32.mrb[0].mxu0
        %v7616 = vadd.f32 %v7334, %v7615
        %v7617 = vpop.f32.mrb[0].mxu0
        %v7618 = vadd.f32 %v7338, %v7617
        %v7619 = vpop.f32.mrb[0].mxu0
        %v7620 = vadd.f32 %v7334, %v7619
        %v7621 = vpop.f32.mrb[0].mxu0
        %v7622 = vadd.f32 %v7338, %v7621
        %7623 = vmatprep.mubr.bf16.mxu0 0
        %7624 = vmatmul.mubr.bf16.gmra.mrb[0].mxu0 %v7289
        %v7625 = vpop.f32.mrb[0].mxu0
        %v7626 = vadd.f32 %v7334, %v7625
        %v7627 = vpop.f32.mrb[0].mxu0
        %v7628 = vadd.f32 %v7338, %v7627
        %v7629 = vpop.f32.mrb[0].mxu0
        %v7630 = vadd.f32 %v7334, %v7629
        %v7631 = vpop.f32.mrb[0].mxu0
        %v7632 = vadd.f32 %v7338, %v7631
        %7633 = vmatprep.mubr.bf16.mxu0 0
        %7634 = vmatmul.mubr.bf16.gmra.mrb[0].mxu0 %v7290
        %v7635 = vpop.f32.mrb[0].mxu0
        %v7636 = vadd.f32 %v7334, %v7635
        %v7637 = vpop.f32.mrb[0].mxu0
        %v7638 = vadd.f32 %v7338, %v7637
        %v7639 = vpop.f32.mrb[0].mxu0
        %v7640 = vadd.f32 %v7334, %v7639
        %v7641 = vpop.f32.mrb[0].mxu0
        %v7642 = vadd.f32 %v7338, %v7641
        %7643 = vmatprep.mubr.bf16.mxu0 0
        %7644 = vmatmul.mubr.bf16.gmra.mrb[0].mxu0 %v7291
        %v7645 = vpop.f32.mrb[0].mxu0
        %v7646 = vadd.f32 %v7334, %v7645
        %v7647 = vpop.f32.mrb[0].mxu0
        %v7648 = vadd.f32 %v7338, %v7647
        %v7649 = vpop.f32.mrb[0].mxu0
        %v7650 = vadd.f32 %v7334, %v7649
        %v7651 = vpop.f32.mrb[0].mxu0
        %v7652 = vadd.f32 %v7338, %v7651
        %7653 = vmatprep.mubr.bf16.mxu0 0
        %7654 = vmatmul.mubr.bf16.gmra.mrb[0].mxu0 %v7292
        %v7655 = vpop.f32.mrb[0].mxu0
        %v7656 = vadd.f32 %v7334, %v7655
        %v7657 = vpop.f32.mrb[0].mxu0
        %v7658 = vadd.f32 %v7338, %v7657
        %v7659 = vpop.f32.mrb[0].mxu0
        %v7660 = vadd.f32 %v7334, %v7659
        %v7661 = vpop.f32.mrb[0].mxu0
        %v7662 = vadd.f32 %v7338, %v7661
        %7663 = vmatprep.mubr.bf16.mxu0 0
        %7664 = vmatmul.mubr.bf16.gmra.mrb[0].mxu0 %v7293
        %v7665 = vpop.f32.mrb[0].mxu0
        %v7666 = vadd.f32 %v7334, %v7665
        %v7667 = vpop.f32.mrb[0].mxu0
        %v7668 = vadd.f32 %v7338, %v7667
        %v7669 = vpop.f32.mrb[0].mxu0
        %v7670 = vadd.f32 %v7334, %v7669
        %v7671 = vpop.f32.mrb[0].mxu0
        %v7672 = vadd.f32 %v7338, %v7671
        %7673 = vmatprep.mubr.bf16.mxu0 0
        %7674 = vmatmul.mubr.bf16.gmra.mrb[0].mxu0 %v7294
        %v7675 = vpop.f32.mrb[0].mxu0
        %v7676 = vadd.f32 %v7334, %v7675
        %v7677 = vpop.f32.mrb[0].mxu0
        %v7678 = vadd.f32 %v7338, %v7677
        %v7679 = vpop.f32.mrb[0].mxu0
        %v7680 = vadd.f32 %v7334, %v7679
        %v7681 = vpop.f32.mrb[0].mxu0
        %v7682 = vadd.f32 %v7338, %v7681
        %7683 = vmatprep.mubr.bf16.mxu0 0
        %7684 = vmatmul.mubr.bf16.gmra.mrb[0].mxu0 %v7295
        %v7685 = vpop.f32.mrb[0].mxu0
        %v7686 = vadd.f32 %v7334, %v7685
        %v7687 = vpop.f32.mrb[0].mxu0
        %v7688 = vadd.f32 %v7338, %v7687
        %v7689 = vpop.f32.mrb[0].mxu0
        %v7690 = vadd.f32 %v7334, %v7689
        %v7691 = vpop.f32.mrb[0].mxu0
        %v7692 = vadd.f32 %v7338, %v7691
        %7693 = vmatprep.mubr.bf16.mxu0 0
        %7694 = vmatmul.mubr.bf16.gmra.mrb[0].mxu0 %v7296
        %v7695 = vpop.f32.mrb[0].mxu0
        %v7696 = vadd.f32 %v7334, %v7695
        %v7697 = vpop.f32.mrb[0].mxu0
        %v7698 = vadd.f32 %v7338, %v7697
        %v7699 = vpop.f32.mrb[0].mxu0
        %v7700 = vadd.f32 %v7334, %v7699
        %v7701 = vpop.f32.mrb[0].mxu0
        %v7702 = vadd.f32 %v7338, %v7701
        %7703 = vdwg.mxu0
        %7704 = vmatprep.subr.bf16.mxu0 %v7450
        %7705 = vmatpush1.bf16.msra.mxu0 %v7449
        %7706 = vmatprep.subr.bf16.mxu0 %v7454
        %7707 = vmatpush1.bf16.msra.mxu0 %v7453
        %7708 = vmatprep.subr.bf16.mxu0 %v7458
        %7709 = vmatpush1.bf16.msra.mxu0 %v7457
        %7710 = vmatprep.subr.bf16.mxu0 %v7462
        %7711 = vmatpush1.bf16.msra.mxu0 %v7461
        %7712 = vmatprep.subr.bf16.mxu0 %v7466
        %7713 = vmatpush1.bf16.msra.mxu0 %v7465
        %7714 = vmatprep.subr.bf16.mxu0 %v7470
        %7715 = vmatpush1.bf16.msra.mxu0 %v7469
        %7716 = vmatprep.subr.bf16.mxu0 %v7474
        %7717 = vmatpush1.bf16.msra.mxu0 %v7473
        %7718 = vmatprep.subr.bf16.mxu0 %v7478
        %7719 = vmatpush1.bf16.msra.mxu0 %v7477
        %7720 = vmatprep.subr.bf16.mxu0 0
        %7721 = vmatpush1.bf16.msra.mxu0 0
        %7722 = vmatprep.subr.bf16.mxu0 0
        %7723 = vmatpush1.bf16.msra.mxu0 0
        %7724 = vmatprep.subr.bf16.mxu0 0
        %7725 = vmatpush1.bf16.msra.mxu0 0
        %7726 = vmatprep.subr.bf16.mxu0 0
        %7727 = vmatpush1.bf16.msra.mxu0 0
        %7728 = vmatprep.subr.bf16.mxu0 0
        %7729 = vmatpush1.bf16.msra.mxu0 0
        %7730 = vmatprep.subr.bf16.mxu0 0
        %7731 = vmatpush1.bf16.msra.mxu0 0
        %7732 = vmatprep.subr.bf16.mxu0 0
        %7733 = vmatpush1.bf16.msra.mxu0 0
        %7734 = vmatprep.subr.bf16.mxu0 0
        %7735 = vmatpush1.bf16.msra.mxu0 0
        %7736 = vmatprep.mubr.bf16.mxu0 0
        %7737 = vmatmul.mubr.bf16.gmra.mrb[0].mxu0 %v7281
        %v7738 = vpop.f32.mrb[0].mxu0
        %v7739 = vadd.f32 %v7342, %v7738
        %v7740 = vpop.f32.mrb[0].mxu0
        %v7741 = vadd.f32 %v7346, %v7740
        %v7742 = vpop.f32.mrb[0].mxu0
        %v7743 = vadd.f32 %v7342, %v7742
        %v7744 = vpop.f32.mrb[0].mxu0
        %v7745 = vadd.f32 %v7346, %v7744
        %7746 = vmatprep.mubr.bf16.mxu0 0
        %7747 = vmatmul.mubr.bf16.gmra.mrb[0].mxu0 %v7282
        %v7748 = vpop.f32.mrb[0].mxu0
        %v7749 = vadd.f32 %v7342, %v7748
        %v7750 = vpop.f32.mrb[0].mxu0
        %v7751 = vadd.f32 %v7346, %v7750
        %v7752 = vpop.f32.mrb[0].mxu0
        %v7753 = vadd.f32 %v7342, %v7752
        %v7754 = vpop.f32.mrb[0].mxu0
        %v7755 = vadd.f32 %v7346, %v7754
        %7756 = vmatprep.mubr.bf16.mxu0 0
        %7757 = vmatmul.mubr.bf16.gmra.mrb[0].mxu0 %v7283
        %v7758 = vpop.f32.mrb[0].mxu0
        %v7759 = vadd.f32 %v7342, %v7758
        %v7760 = vpop.f32.mrb[0].mxu0
        %v7761 = vadd.f32 %v7346, %v7760
        %v7762 = vpop.f32.mrb[0].mxu0
        %v7763 = vadd.f32 %v7342, %v7762
        %v7764 = vpop.f32.mrb[0].mxu0
        %v7765 = vadd.f32 %v7346, %v7764
        %7766 = vmatprep.mubr.bf16.mxu0 0
        %7767 = vmatmul.mubr.bf16.gmra.mrb[0].mxu0 %v7284
        %v7768 = vpop.f32.mrb[0].mxu0
        %v7769 = vadd.f32 %v7342, %v7768
        %v7770 = vpop.f32.mrb[0].mxu0
        %v7771 = vadd.f32 %v7346, %v7770
        %v7772 = vpop.f32.mrb[0].mxu0
        %v7773 = vadd.f32 %v7342, %v7772
        %v7774 = vpop.f32.mrb[0].mxu0
        %v7775 = vadd.f32 %v7346, %v7774
        %7776 = vmatprep.mubr.bf16.mxu0 0
        %7777 = vmatmul.mubr.bf16.gmra.mrb[0].mxu0 %v7285
        %v7778 = vpop.f32.mrb[0].mxu0
        %v7779 = vadd.f32 %v7342, %v7778
        %v7780 = vpop.f32.mrb[0].mxu0
        %v7781 = vadd.f32 %v7346, %v7780
        %v7782 = vpop.f32.mrb[0].mxu0
        %v7783 = vadd.f32 %v7342, %v7782
        %v7784 = vpop.f32.mrb[0].mxu0
        %v7785 = vadd.f32 %v7346, %v7784
        %7786 = vmatprep.mubr.bf16.mxu0 0
        %7787 = vmatmul.mubr.bf16.gmra.mrb[0].mxu0 %v7286
        %v7788 = vpop.f32.mrb[0].mxu0
        %v7789 = vadd.f32 %v7342, %v7788
        %v7790 = vpop.f32.mrb[0].mxu0
        %v7791 = vadd.f32 %v7346, %v7790
        %v7792 = vpop.f32.mrb[0].mxu0
        %v7793 = vadd.f32 %v7342, %v7792
        %v7794 = vpop.f32.mrb[0].mxu0
        %v7795 = vadd.f32 %v7346, %v7794
        %7796 = vmatprep.mubr.bf16.mxu0 0
        %7797 = vmatmul.mubr.bf16.gmra.mrb[0].mxu0 %v7287
        %v7798 = vpop.f32.mrb[0].mxu0
        %v7799 = vadd.f32 %v7342, %v7798
        %v7800 = vpop.f32.mrb[0].mxu0
        %v7801 = vadd.f32 %v7346, %v7800
        %v7802 = vpop.f32.mrb[0].mxu0
        %v7803 = vadd.f32 %v7342, %v7802
        %v7804 = vpop.f32.mrb[0].mxu0
        %v7805 = vadd.f32 %v7346, %v7804
        %7806 = vmatprep.mubr.bf16.mxu0 0
        %7807 = vmatmul.mubr.bf16.gmra.mrb[0].mxu0 %v7288
        %v7808 = vpop.f32.mrb[0].mxu0
        %v7809 = vadd.f32 %v7342, %v7808
        %v7810 = vpop.f32.mrb[0].mxu0
        %v7811 = vadd.f32 %v7346, %v7810
        %v7812 = vpop.f32.mrb[0].mxu0
        %v7813 = vadd.f32 %v7342, %v7812
        %v7814 = vpop.f32.mrb[0].mxu0
        %v7815 = vadd.f32 %v7346, %v7814
        %7816 = vmatprep.mubr.bf16.mxu0 0
        %7817 = vmatmul.mubr.bf16.gmra.mrb[0].mxu0 %v7289
        %v7818 = vpop.f32.mrb[0].mxu0
        %v7819 = vadd.f32 %v7342, %v7818
        %v7820 = vpop.f32.mrb[0].mxu0
        %v7821 = vadd.f32 %v7346, %v7820
        %v7822 = vpop.f32.mrb[0].mxu0
        %v7823 = vadd.f32 %v7342, %v7822
        %v7824 = vpop.f32.mrb[0].mxu0
        %v7825 = vadd.f32 %v7346, %v7824
        %7826 = vmatprep.mubr.bf16.mxu0 0
        %7827 = vmatmul.mubr.bf16.gmra.mrb[0].mxu0 %v7290
        %v7828 = vpop.f32.mrb[0].mxu0
        %v7829 = vadd.f32 %v7342, %v7828
        %v7830 = vpop.f32.mrb[0].mxu0
        %v7831 = vadd.f32 %v7346, %v7830
        %v7832 = vpop.f32.mrb[0].mxu0
        %v7833 = vadd.f32 %v7342, %v7832
        %v7834 = vpop.f32.mrb[0].mxu0
        %v7835 = vadd.f32 %v7346, %v7834
        %7836 = vmatprep.mubr.bf16.mxu0 0
        %7837 = vmatmul.mubr.bf16.gmra.mrb[0].mxu0 %v7291
        %v7838 = vpop.f32.mrb[0].mxu0
        %v7839 = vadd.f32 %v7342, %v7838
        %v7840 = vpop.f32.mrb[0].mxu0
        %v7841 = vadd.f32 %v7346, %v7840
        %v7842 = vpop.f32.mrb[0].mxu0
        %v7843 = vadd.f32 %v7342, %v7842
        %v7844 = vpop.f32.mrb[0].mxu0
        %v7845 = vadd.f32 %v7346, %v7844
        %7846 = vmatprep.mubr.bf16.mxu0 0
        %7847 = vmatmul.mubr.bf16.gmra.mrb[0].mxu0 %v7292
        %v7848 = vpop.f32.mrb[0].mxu0
        %v7849 = vadd.f32 %v7342, %v7848
        %v7850 = vpop.f32.mrb[0].mxu0
        %v7851 = vadd.f32 %v7346, %v7850
        %v7852 = vpop.f32.mrb[0].mxu0
        %v7853 = vadd.f32 %v7342, %v7852
        %v7854 = vpop.f32.mrb[0].mxu0
        %v7855 = vadd.f32 %v7346, %v7854
        %7856 = vmatprep.mubr.bf16.mxu0 0
        %7857 = vmatmul.mubr.bf16.gmra.mrb[0].mxu0 %v7293
        %v7858 = vpop.f32.mrb[0].mxu0
        %v7859 = vadd.f32 %v7342, %v7858
        %v7860 = vpop.f32.mrb[0].mxu0
        %v7861 = vadd.f32 %v7346, %v7860
        %v7862 = vpop.f32.mrb[0].mxu0
        %v7863 = vadd.f32 %v7342, %v7862
        %v7864 = vpop.f32.mrb[0].mxu0
        %v7865 = vadd.f32 %v7346, %v7864
        %7866 = vmatprep.mubr.bf16.mxu0 0
        %7867 = vmatmul.mubr.bf16.gmra.mrb[0].mxu0 %v7294
        %v7868 = vpop.f32.mrb[0].mxu0
        %v7869 = vadd.f32 %v7342, %v7868
        %v7870 = vpop.f32.mrb[0].mxu0
        %v7871 = vadd.f32 %v7346, %v7870
        %v7872 = vpop.f32.mrb[0].mxu0
        %v7873 = vadd.f32 %v7342, %v7872
        %v7874 = vpop.f32.mrb[0].mxu0
        %v7875 = vadd.f32 %v7346, %v7874
        %7876 = vmatprep.mubr.bf16.mxu0 0
        %7877 = vmatmul.mubr.bf16.gmra.mrb[0].mxu0 %v7295
        %v7878 = vpop.f32.mrb[0].mxu0
        %v7879 = vadd.f32 %v7342, %v7878
        %v7880 = vpop.f32.mrb[0].mxu0
        %v7881 = vadd.f32 %v7346, %v7880
        %v7882 = vpop.f32.mrb[0].mxu0
        %v7883 = vadd.f32 %v7342, %v7882
        %v7884 = vpop.f32.mrb[0].mxu0
        %v7885 = vadd.f32 %v7346, %v7884
        %7886 = vmatprep.mubr.bf16.mxu0 0
        %7887 = vmatmul.mubr.bf16.gmra.mrb[0].mxu0 %v7296
        %v7888 = vpop.f32.mrb[0].mxu0
        %v7889 = vadd.f32 %v7342, %v7888
        %v7890 = vpop.f32.mrb[0].mxu0
        %v7891 = vadd.f32 %v7346, %v7890
        %v7892 = vpop.f32.mrb[0].mxu0
        %v7893 = vadd.f32 %v7342, %v7892
        %v7894 = vpop.f32.mrb[0].mxu0
        %v7895 = vadd.f32 %v7346, %v7894
        %7896 = vdwg.mxu0
        %v7897 = vmul.f32 %v7546, %v7546
        %v7898 = vmul.f32 %v7548, %v7548
        %v7899 = vmul.f32 %v7739, %v7739
        %v7900 = vmul.f32 %v7741, %v7741
        %v7901 = vmul.f32 %v7550, %v7550
        %v7902 = vmul.f32 %v7552, %v7552
        %v7903 = vmul.f32 %v7743, %v7743
        %v7904 = vmul.f32 %v7745, %v7745
        %v7905 = vmul.f32 %v7556, %v7556
        %v7906 = vmul.f32 %v7558, %v7558
        %v7907 = vmul.f32 %v7749, %v7749
        %v7908 = vmul.f32 %v7751, %v7751
        %v7909 = vmul.f32 %v7560, %v7560
        %v7910 = vmul.f32 %v7562, %v7562
        %v7911 = vmul.f32 %v7753, %v7753
        %v7912 = vmul.f32 %v7755, %v7755
        %v7913 = vmul.f32 %v7566, %v7566
        %v7914 = vmul.f32 %v7568, %v7568
        %v7915 = vmul.f32 %v7759, %v7759
        %v7916 = vmul.f32 %v7761, %v7761
        %v7917 = vmul.f32 %v7570, %v7570
        %v7918 = vmul.f32 %v7572, %v7572
        %v7919 = vmul.f32 %v7763, %v7763
        %v7920 = vmul.f32 %v7765, %v7765
        %v7921 = vmul.f32 %v7576, %v7576
        %v7922 = vmul.f32 %v7578, %v7578
        %v7923 = vmul.f32 %v7769, %v7769
        %v7924 = vmul.f32 %v7771, %v7771
        %v7925 = vmul.f32 %v7580, %v7580
        %v7926 = vmul.f32 %v7582, %v7582
        %v7927 = vmul.f32 %v7773, %v7773
        %v7928 = vmul.f32 %v7775, %v7775
        %v7929 = vmul.f32 %v7586, %v7586
        %v7930 = vmul.f32 %v7588, %v7588
        %v7931 = vmul.f32 %v7779, %v7779
        %v7932 = vmul.f32 %v7781, %v7781
        %v7933 = vmul.f32 %v7590, %v7590
        %v7934 = vmul.f32 %v7592, %v7592
        %v7935 = vmul.f32 %v7783, %v7783
        %v7936 = vmul.f32 %v7785, %v7785
        %v7937 = vmul.f32 %v7596, %v7596
        %v7938 = vmul.f32 %v7598, %v7598
        %v7939 = vmul.f32 %v7789, %v7789
        %v7940 = vmul.f32 %v7791, %v7791
        %v7941 = vmul.f32 %v7600, %v7600
        %v7942 = vmul.f32 %v7602, %v7602
        %v7943 = vmul.f32 %v7793, %v7793
        %v7944 = vmul.f32 %v7795, %v7795
        %v7945 = vmul.f32 %v7606, %v7606
        %v7946 = vmul.f32 %v7608, %v7608
        %v7947 = vmul.f32 %v7799, %v7799
        %v7948 = vmul.f32 %v7801, %v7801
        %v7949 = vmul.f32 %v7610, %v7610
        %v7950 = vmul.f32 %v7612, %v7612
        %v7951 = vmul.f32 %v7803, %v7803
        %v7952 = vmul.f32 %v7805, %v7805
        %v7953 = vmul.f32 %v7616, %v7616
        %v7954 = vmul.f32 %v7618, %v7618
        %v7955 = vmul.f32 %v7809, %v7809
        %v7956 = vmul.f32 %v7811, %v7811
        %v7957 = vmul.f32 %v7620, %v7620
        %v7958 = vmul.f32 %v7622, %v7622
        %v7959 = vmul.f32 %v7813, %v7813
        %v7960 = vmul.f32 %v7815, %v7815
        %v7961 = vmul.f32 %v7626, %v7626
        %v7962 = vmul.f32 %v7628, %v7628
        %v7963 = vmul.f32 %v7819, %v7819
        %v7964 = vmul.f32 %v7821, %v7821
        %v7965 = vmul.f32 %v7630, %v7630
        %v7966 = vmul.f32 %v7632, %v7632
        %v7967 = vmul.f32 %v7823, %v7823
        %v7968 = vmul.f32 %v7825, %v7825
        %v7969 = vmul.f32 %v7636, %v7636
        %v7970 = vmul.f32 %v7638, %v7638
        %v7971 = vmul.f32 %v7829, %v7829
        %v7972 = vmul.f32 %v7831, %v7831
        %v7973 = vmul.f32 %v7640, %v7640
        %v7974 = vmul.f32 %v7642, %v7642
        %v7975 = vmul.f32 %v7833, %v7833
        %v7976 = vmul.f32 %v7835, %v7835
        %v7977 = vmul.f32 %v7646, %v7646
        %v7978 = vmul.f32 %v7648, %v7648
        %v7979 = vmul.f32 %v7839, %v7839
        %v7980 = vmul.f32 %v7841, %v7841
        %v7981 = vmul.f32 %v7650, %v7650
        %v7982 = vmul.f32 %v7652, %v7652
        %v7983 = vmul.f32 %v7843, %v7843
        %v7984 = vmul.f32 %v7845, %v7845
        %v7985 = vmul.f32 %v7656, %v7656
        %v7986 = vmul.f32 %v7658, %v7658
        %v7987 = vmul.f32 %v7849, %v7849
        %v7988 = vmul.f32 %v7851, %v7851
        %v7989 = vmul.f32 %v7660, %v7660
        %v7990 = vmul.f32 %v7662, %v7662
        %v7991 = vmul.f32 %v7853, %v7853
        %v7992 = vmul.f32 %v7855, %v7855
        %v7993 = vmul.f32 %v7666, %v7666
        %v7994 = vmul.f32 %v7668, %v7668
        %v7995 = vmul.f32 %v7859, %v7859
        %v7996 = vmul.f32 %v7861, %v7861
        %v7997 = vmul.f32 %v7670, %v7670
        %v7998 = vmul.f32 %v7672, %v7672
        %v7999 = vmul.f32 %v7863, %v7863
        %v8000 = vmul.f32 %v7865, %v7865
        %v8001 = vmul.f32 %v7676, %v7676
        %v8002 = vmul.f32 %v7678, %v7678
        %v8003 = vmul.f32 %v7869, %v7869
        %v8004 = vmul.f32 %v7871, %v7871
        %v8005 = vmul.f32 %v7680, %v7680
        %v8006 = vmul.f32 %v7682, %v7682
        %v8007 = vmul.f32 %v7873, %v7873
        %v8008 = vmul.f32 %v7875, %v7875
        %v8009 = vmul.f32 %v7686, %v7686
        %v8010 = vmul.f32 %v7688, %v7688
        %v8011 = vmul.f32 %v7879, %v7879
        %v8012 = vmul.f32 %v7881, %v7881
        %v8013 = vmul.f32 %v7690, %v7690
        %v8014 = vmul.f32 %v7692, %v7692
        %v8015 = vmul.f32 %v7883, %v7883
        %v8016 = vmul.f32 %v7885, %v7885
        %v8017 = vmul.f32 %v7696, %v7696
        %v8018 = vmul.f32 %v7698, %v7698
        %v8019 = vmul.f32 %v7889, %v7889
        %v8020 = vmul.f32 %v7891, %v7891
        %v8021 = vmul.f32 %v7700, %v7700
        %v8022 = vmul.f32 %v7702, %v7702
        %v8023 = vmul.f32 %v7893, %v7893
        %v8024 = vmul.f32 %v7895, %v7895
        %v8025 = vmul.f32 %v7546, %v7897
        %v8026 = vmul.f32 %v7548, %v7898
        %v8027 = vmul.f32 %v7739, %v7899
        %v8028 = vmul.f32 %v7741, %v7900
        %v8029 = vmul.f32 %v7550, %v7901
        %v8030 = vmul.f32 %v7552, %v7902
        %v8031 = vmul.f32 %v7743, %v7903
        %v8032 = vmul.f32 %v7745, %v7904
        %v8033 = vmul.f32 %v7556, %v7905
        %v8034 = vmul.f32 %v7558, %v7906
        %v8035 = vmul.f32 %v7749, %v7907
        %v8036 = vmul.f32 %v7751, %v7908
        %v8037 = vmul.f32 %v7560, %v7909
        %v8038 = vmul.f32 %v7562, %v7910
        %v8039 = vmul.f32 %v7753, %v7911
        %v8040 = vmul.f32 %v7755, %v7912
        %v8041 = vmul.f32 %v7566, %v7913
        %v8042 = vmul.f32 %v7568, %v7914
        %v8043 = vmul.f32 %v7759, %v7915
        %v8044 = vmul.f32 %v7761, %v7916
        %v8045 = vmul.f32 %v7570, %v7917
        %v8046 = vmul.f32 %v7572, %v7918
        %v8047 = vmul.f32 %v7763, %v7919
        %v8048 = vmul.f32 %v7765, %v7920
        %v8049 = vmul.f32 %v7576, %v7921
        %v8050 = vmul.f32 %v7578, %v7922
        %v8051 = vmul.f32 %v7769, %v7923
        %v8052 = vmul.f32 %v7771, %v7924
        %v8053 = vmul.f32 %v7580, %v7925
        %v8054 = vmul.f32 %v7582, %v7926
        %v8055 = vmul.f32 %v7773, %v7927
        %v8056 = vmul.f32 %v7775, %v7928
        %v8057 = vmul.f32 %v7586, %v7929
        %v8058 = vmul.f32 %v7588, %v7930
        %v8059 = vmul.f32 %v7779, %v7931
        %v8060 = vmul.f32 %v7781, %v7932
        %v8061 = vmul.f32 %v7590, %v7933
        %v8062 = vmul.f32 %v7592, %v7934
        %v8063 = vmul.f32 %v7783, %v7935
        %v8064 = vmul.f32 %v7785, %v7936
        %v8065 = vmul.f32 %v7596, %v7937
        %v8066 = vmul.f32 %v7598, %v7938
        %v8067 = vmul.f32 %v7789, %v7939
        %v8068 = vmul.f32 %v7791, %v7940
        %v8069 = vmul.f32 %v7600, %v7941
        %v8070 = vmul.f32 %v7602, %v7942
        %v8071 = vmul.f32 %v7793, %v7943
        %v8072 = vmul.f32 %v7795, %v7944
        %v8073 = vmul.f32 %v7606, %v7945
        %v8074 = vmul.f32 %v7608, %v7946
        %v8075 = vmul.f32 %v7799, %v7947
        %v8076 = vmul.f32 %v7801, %v7948
        %v8077 = vmul.f32 %v7610, %v7949
        %v8078 = vmul.f32 %v7612, %v7950
        %v8079 = vmul.f32 %v7803, %v7951
        %v8080 = vmul.f32 %v7805, %v7952
        %v8081 = vmul.f32 %v7616, %v7953
        %v8082 = vmul.f32 %v7618, %v7954
        %v8083 = vmul.f32 %v7809, %v7955
        %v8084 = vmul.f32 %v7811, %v7956
        %v8085 = vmul.f32 %v7620, %v7957
        %v8086 = vmul.f32 %v7622, %v7958
        %v8087 = vmul.f32 %v7813, %v7959
        %v8088 = vmul.f32 %v7815, %v7960
        %v8089 = vmul.f32 %v7626, %v7961
        %v8090 = vmul.f32 %v7628, %v7962
        %v8091 = vmul.f32 %v7819, %v7963
        %v8092 = vmul.f32 %v7821, %v7964
        %v8093 = vmul.f32 %v7630, %v7965
        %v8094 = vmul.f32 %v7632, %v7966
        %v8095 = vmul.f32 %v7823, %v7967
        %v8096 = vmul.f32 %v7825, %v7968
        %v8097 = vmul.f32 %v7636, %v7969
        %v8098 = vmul.f32 %v7638, %v7970
        %v8099 = vmul.f32 %v7829, %v7971
        %v8100 = vmul.f32 %v7831, %v7972
        %v8101 = vmul.f32 %v7640, %v7973
        %v8102 = vmul.f32 %v7642, %v7974
        %v8103 = vmul.f32 %v7833, %v7975
        %v8104 = vmul.f32 %v7835, %v7976
        %v8105 = vmul.f32 %v7646, %v7977
        %v8106 = vmul.f32 %v7648, %v7978
        %v8107 = vmul.f32 %v7839, %v7979
        %v8108 = vmul.f32 %v7841, %v7980
        %v8109 = vmul.f32 %v7650, %v7981
        %v8110 = vmul.f32 %v7652, %v7982
        %v8111 = vmul.f32 %v7843, %v7983
        %v8112 = vmul.f32 %v7845, %v7984
        %v8113 = vmul.f32 %v7656, %v7985
        %v8114 = vmul.f32 %v7658, %v7986
        %v8115 = vmul.f32 %v7849, %v7987
        %v8116 = vmul.f32 %v7851, %v7988
        %v8117 = vmul.f32 %v7660, %v7989
        %v8118 = vmul.f32 %v7662, %v7990
        %v8119 = vmul.f32 %v7853, %v7991
        %v8120 = vmul.f32 %v7855, %v7992
        %v8121 = vmul.f32 %v7666, %v7993
        %v8122 = vmul.f32 %v7668, %v7994
        %v8123 = vmul.f32 %v7859, %v7995
        %v8124 = vmul.f32 %v7861, %v7996
        %v8125 = vmul.f32 %v7670, %v7997
        %v8126 = vmul.f32 %v7672, %v7998
        %v8127 = vmul.f32 %v7863, %v7999
        %v8128 = vmul.f32 %v7865, %v8000
        %v8129 = vmul.f32 %v7676, %v8001
        %v8130 = vmul.f32 %v7678, %v8002
        %v8131 = vmul.f32 %v7869, %v8003
        %v8132 = vmul.f32 %v7871, %v8004
        %v8133 = vmul.f32 %v7680, %v8005
        %v8134 = vmul.f32 %v7682, %v8006
        %v8135 = vmul.f32 %v7873, %v8007
        %v8136 = vmul.f32 %v7875, %v8008
        %v8137 = vmul.f32 %v7686, %v8009
        %v8138 = vmul.f32 %v7688, %v8010
        %v8139 = vmul.f32 %v7879, %v8011
        %v8140 = vmul.f32 %v7881, %v8012
        %v8141 = vmul.f32 %v7690, %v8013
        %v8142 = vmul.f32 %v7692, %v8014
        %v8143 = vmul.f32 %v7883, %v8015
        %v8144 = vmul.f32 %v7885, %v8016
        %v8145 = vmul.f32 %v7696, %v8017
        %v8146 = vmul.f32 %v7698, %v8018
        %v8147 = vmul.f32 %v7889, %v8019
        %v8148 = vmul.f32 %v7891, %v8020
        %v8149 = vmul.f32 %v7700, %v8021
        %v8150 = vmul.f32 %v7702, %v8022
        %v8151 = vmul.f32 %v7893, %v8023
        %v8152 = vmul.f32 %v7895, %v8024
        %v8153 = vmul.f32 %v8025, 0.044715
        %v8154 = vmul.f32 %v8026, 0.044715
        %v8155 = vmul.f32 %v8027, 0.044715
        %v8156 = vmul.f32 %v8028, 0.044715
        %v8157 = vmul.f32 %v8029, 0.044715
        %v8158 = vmul.f32 %v8030, 0.044715
        %v8159 = vmul.f32 %v8031, 0.044715
        %v8160 = vmul.f32 %v8032, 0.044715
        %v8161 = vmul.f32 %v8033, 0.044715
        %v8162 = vmul.f32 %v8034, 0.044715
        %v8163 = vmul.f32 %v8035, 0.044715
        %v8164 = vmul.f32 %v8036, 0.044715
        %v8165 = vmul.f32 %v8037, 0.044715
        %v8166 = vmul.f32 %v8038, 0.044715
        %v8167 = vmul.f32 %v8039, 0.044715
        %v8168 = vmul.f32 %v8040, 0.044715
        %v8169 = vmul.f32 %v8041, 0.044715
        %v8170 = vmul.f32 %v8042, 0.044715
        %v8171 = vmul.f32 %v8043, 0.044715
        %v8172 = vmul.f32 %v8044, 0.044715
        %v8173 = vmul.f32 %v8045, 0.044715
        %v8174 = vmul.f32 %v8046, 0.044715
        %v8175 = vmul.f32 %v8047, 0.044715
        %v8176 = vmul.f32 %v8048, 0.044715
        %v8177 = vmul.f32 %v8049, 0.044715
        %v8178 = vmul.f32 %v8050, 0.044715
        %v8179 = vmul.f32 %v8051, 0.044715
        %v8180 = vmul.f32 %v8052, 0.044715
        %v8181 = vmul.f32 %v8053, 0.044715
        %v8182 = vmul.f32 %v8054, 0.044715
        %v8183 = vmul.f32 %v8055, 0.044715
        %v8184 = vmul.f32 %v8056, 0.044715
        %v8185 = vmul.f32 %v8057, 0.044715
        %v8186 = vmul.f32 %v8058, 0.044715
        %v8187 = vmul.f32 %v8059, 0.044715
        %v8188 = vmul.f32 %v8060, 0.044715
        %v8189 = vmul.f32 %v8061, 0.044715
        %v8190 = vmul.f32 %v8062, 0.044715
        %v8191 = vmul.f32 %v8063, 0.044715
        %v8192 = vmul.f32 %v8064, 0.044715
        %v8193 = vmul.f32 %v8065, 0.044715
        %v8194 = vmul.f32 %v8066, 0.044715
        %v8195 = vmul.f32 %v8067, 0.044715
        %v8196 = vmul.f32 %v8068, 0.044715
        %v8197 = vmul.f32 %v8069, 0.044715
        %v8198 = vmul.f32 %v8070, 0.044715
        %v8199 = vmul.f32 %v8071, 0.044715
        %v8200 = vmul.f32 %v8072, 0.044715
        %v8201 = vmul.f32 %v8073, 0.044715
        %v8202 = vmul.f32 %v8074, 0.044715
        %v8203 = vmul.f32 %v8075, 0.044715
        %v8204 = vmul.f32 %v8076, 0.044715
        %v8205 = vmul.f32 %v8077, 0.044715
        %v8206 = vmul.f32 %v8078, 0.044715
        %v8207 = vmul.f32 %v8079, 0.044715
        %v8208 = vmul.f32 %v8080, 0.044715
        %v8209 = vmul.f32 %v8081, 0.044715
        %v8210 = vmul.f32 %v8082, 0.044715
        %v8211 = vmul.f32 %v8083, 0.044715
        %v8212 = vmul.f32 %v8084, 0.044715
        %v8213 = vmul.f32 %v8085, 0.044715
        %v8214 = vmul.f32 %v8086, 0.044715
        %v8215 = vmul.f32 %v8087, 0.044715
        %v8216 = vmul.f32 %v8088, 0.044715
        %v8217 = vmul.f32 %v8089, 0.044715
        %v8218 = vmul.f32 %v8090, 0.044715
        %v8219 = vmul.f32 %v8091, 0.044715
        %v8220 = vmul.f32 %v8092, 0.044715
        %v8221 = vmul.f32 %v8093, 0.044715
        %v8222 = vmul.f32 %v8094, 0.044715
        %v8223 = vmul.f32 %v8095, 0.044715
        %v8224 = vmul.f32 %v8096, 0.044715
        %v8225 = vmul.f32 %v8097, 0.044715
        %v8226 = vmul.f32 %v8098, 0.044715
        %v8227 = vmul.f32 %v8099, 0.044715
        %v8228 = vmul.f32 %v8100, 0.044715
        %v8229 = vmul.f32 %v8101, 0.044715
        %v8230 = vmul.f32 %v8102, 0.044715
        %v8231 = vmul.f32 %v8103, 0.044715
        %v8232 = vmul.f32 %v8104, 0.044715
        %v8233 = vmul.f32 %v8105, 0.044715
        %v8234 = vmul.f32 %v8106, 0.044715
        %v8235 = vmul.f32 %v8107, 0.044715
        %v8236 = vmul.f32 %v8108, 0.044715
        %v8237 = vmul.f32 %v8109, 0.044715
        %v8238 = vmul.f32 %v8110, 0.044715
        %v8239 = vmul.f32 %v8111, 0.044715
        %v8240 = vmul.f32 %v8112, 0.044715
        %v8241 = vmul.f32 %v8113, 0.044715
        %v8242 = vmul.f32 %v8114, 0.044715
        %v8243 = vmul.f32 %v8115, 0.044715
        %v8244 = vmul.f32 %v8116, 0.044715
        %v8245 = vmul.f32 %v8117, 0.044715
        %v8246 = vmul.f32 %v8118, 0.044715
        %v8247 = vmul.f32 %v8119, 0.044715
        %v8248 = vmul.f32 %v8120, 0.044715
        %v8249 = vmul.f32 %v8121, 0.044715
        %v8250 = vmul.f32 %v8122, 0.044715
        %v8251 = vmul.f32 %v8123, 0.044715
        %v8252 = vmul.f32 %v8124, 0.044715
        %v8253 = vmul.f32 %v8125, 0.044715
        %v8254 = vmul.f32 %v8126, 0.044715
        %v8255 = vmul.f32 %v8127, 0.044715
        %v8256 = vmul.f32 %v8128, 0.044715
        %v8257 = vmul.f32 %v8129, 0.044715
        %v8258 = vmul.f32 %v8130, 0.044715
        %v8259 = vmul.f32 %v8131, 0.044715
        %v8260 = vmul.f32 %v8132, 0.044715
        %v8261 = vmul.f32 %v8133, 0.044715
        %v8262 = vmul.f32 %v8134, 0.044715
        %v8263 = vmul.f32 %v8135, 0.044715
        %v8264 = vmul.f32 %v8136, 0.044715
        %v8265 = vmul.f32 %v8137, 0.044715
        %v8266 = vmul.f32 %v8138, 0.044715
        %v8267 = vmul.f32 %v8139, 0.044715
        %v8268 = vmul.f32 %v8140, 0.044715
        %v8269 = vmul.f32 %v8141, 0.044715
        %v8270 = vmul.f32 %v8142, 0.044715
        %v8271 = vmul.f32 %v8143, 0.044715
        %v8272 = vmul.f32 %v8144, 0.044715
        %v8273 = vmul.f32 %v8145, 0.044715
        %v8274 = vmul.f32 %v8146, 0.044715
        %v8275 = vmul.f32 %v8147, 0.044715
        %v8276 = vmul.f32 %v8148, 0.044715
        %v8277 = vmul.f32 %v8149, 0.044715
        %v8278 = vmul.f32 %v8150, 0.044715
        %v8279 = vmul.f32 %v8151, 0.044715
        %v8280 = vmul.f32 %v8152, 0.044715
        %v8281 = vadd.f32 %v7546, %v8153
        %v8282 = vadd.f32 %v7548, %v8154
        %v8283 = vadd.f32 %v7739, %v8155
        %v8284 = vadd.f32 %v7741, %v8156
        %v8285 = vadd.f32 %v7550, %v8157
        %v8286 = vadd.f32 %v7552, %v8158
        %v8287 = vadd.f32 %v7743, %v8159
        %v8288 = vadd.f32 %v7745, %v8160
        %v8289 = vadd.f32 %v7556, %v8161
        %v8290 = vadd.f32 %v7558, %v8162
        %v8291 = vadd.f32 %v7749, %v8163
        %v8292 = vadd.f32 %v7751, %v8164
        %v8293 = vadd.f32 %v7560, %v8165
        %v8294 = vadd.f32 %v7562, %v8166
        %v8295 = vadd.f32 %v7753, %v8167
        %v8296 = vadd.f32 %v7755, %v8168
        %v8297 = vadd.f32 %v7566, %v8169
        %v8298 = vadd.f32 %v7568, %v8170
        %v8299 = vadd.f32 %v7759, %v8171
        %v8300 = vadd.f32 %v7761, %v8172
        %v8301 = vadd.f32 %v7570, %v8173
        %v8302 = vadd.f32 %v7572, %v8174
        %v8303 = vadd.f32 %v7763, %v8175
        %v8304 = vadd.f32 %v7765, %v8176
        %v8305 = vadd.f32 %v7576, %v8177
        %v8306 = vadd.f32 %v7578, %v8178
        %v8307 = vadd.f32 %v7769, %v8179
        %v8308 = vadd.f32 %v7771, %v8180
        %v8309 = vadd.f32 %v7580, %v8181
        %v8310 = vadd.f32 %v7582, %v8182
        %v8311 = vadd.f32 %v7773, %v8183
        %v8312 = vadd.f32 %v7775, %v8184
        %v8313 = vadd.f32 %v7586, %v8185
        %v8314 = vadd.f32 %v7588, %v8186
        %v8315 = vadd.f32 %v7779, %v8187
        %v8316 = vadd.f32 %v7781, %v8188
        %v8317 = vadd.f32 %v7590, %v8189
        %v8318 = vadd.f32 %v7592, %v8190
        %v8319 = vadd.f32 %v7783, %v8191
        %v8320 = vadd.f32 %v7785, %v8192
        %v8321 = vadd.f32 %v7596, %v8193
        %v8322 = vadd.f32 %v7598, %v8194
        %v8323 = vadd.f32 %v7789, %v8195
        %v8324 = vadd.f32 %v7791, %v8196
        %v8325 = vadd.f32 %v7600, %v8197
        %v8326 = vadd.f32 %v7602, %v8198
        %v8327 = vadd.f32 %v7793, %v8199
        %v8328 = vadd.f32 %v7795, %v8200
        %v8329 = vadd.f32 %v7606, %v8201
        %v8330 = vadd.f32 %v7608, %v8202
        %v8331 = vadd.f32 %v7799, %v8203
        %v8332 = vadd.f32 %v7801, %v8204
        %v8333 = vadd.f32 %v7610, %v8205
        %v8334 = vadd.f32 %v7612, %v8206
        %v8335 = vadd.f32 %v7803, %v8207
        %v8336 = vadd.f32 %v7805, %v8208
        %v8337 = vadd.f32 %v7616, %v8209
        %v8338 = vadd.f32 %v7618, %v8210
        %v8339 = vadd.f32 %v7809, %v8211
        %v8340 = vadd.f32 %v7811, %v8212
        %v8341 = vadd.f32 %v7620, %v8213
        %v8342 = vadd.f32 %v7622, %v8214
        %v8343 = vadd.f32 %v7813, %v8215
        %v8344 = vadd.f32 %v7815, %v8216
        %v8345 = vadd.f32 %v7626, %v8217
        %v8346 = vadd.f32 %v7628, %v8218
        %v8347 = vadd.f32 %v7819, %v8219
        %v8348 = vadd.f32 %v7821, %v8220
        %v8349 = vadd.f32 %v7630, %v8221
        %v8350 = vadd.f32 %v7632, %v8222
        %v8351 = vadd.f32 %v7823, %v8223
        %v8352 = vadd.f32 %v7825, %v8224
        %v8353 = vadd.f32 %v7636, %v8225
        %v8354 = vadd.f32 %v7638, %v8226
        %v8355 = vadd.f32 %v7829, %v8227
        %v8356 = vadd.f32 %v7831, %v8228
        %v8357 = vadd.f32 %v7640, %v8229
        %v8358 = vadd.f32 %v7642, %v8230
        %v8359 = vadd.f32 %v7833, %v8231
        %v8360 = vadd.f32 %v7835, %v8232
        %v8361 = vadd.f32 %v7646, %v8233
        %v8362 = vadd.f32 %v7648, %v8234
        %v8363 = vadd.f32 %v7839, %v8235
        %v8364 = vadd.f32 %v7841, %v8236
        %v8365 = vadd.f32 %v7650, %v8237
        %v8366 = vadd.f32 %v7652, %v8238
        %v8367 = vadd.f32 %v7843, %v8239
        %v8368 = vadd.f32 %v7845, %v8240
        %v8369 = vadd.f32 %v7656, %v8241
        %v8370 = vadd.f32 %v7658, %v8242
        %v8371 = vadd.f32 %v7849, %v8243
        %v8372 = vadd.f32 %v7851, %v8244
        %v8373 = vadd.f32 %v7660, %v8245
        %v8374 = vadd.f32 %v7662, %v8246
        %v8375 = vadd.f32 %v7853, %v8247
        %v8376 = vadd.f32 %v7855, %v8248
        %v8377 = vadd.f32 %v7666, %v8249
        %v8378 = vadd.f32 %v7668, %v8250
        %v8379 = vadd.f32 %v7859, %v8251
        %v8380 = vadd.f32 %v7861, %v8252
        %v8381 = vadd.f32 %v7670, %v8253
        %v8382 = vadd.f32 %v7672, %v8254
        %v8383 = vadd.f32 %v7863, %v8255
        %v8384 = vadd.f32 %v7865, %v8256
        %v8385 = vadd.f32 %v7676, %v8257
        %v8386 = vadd.f32 %v7678, %v8258
        %v8387 = vadd.f32 %v7869, %v8259
        %v8388 = vadd.f32 %v7871, %v8260
        %v8389 = vadd.f32 %v7680, %v8261
        %v8390 = vadd.f32 %v7682, %v8262
        %v8391 = vadd.f32 %v7873, %v8263
        %v8392 = vadd.f32 %v7875, %v8264
        %v8393 = vadd.f32 %v7686, %v8265
        %v8394 = vadd.f32 %v7688, %v8266
        %v8395 = vadd.f32 %v7879, %v8267
        %v8396 = vadd.f32 %v7881, %v8268
        %v8397 = vadd.f32 %v7690, %v8269
        %v8398 = vadd.f32 %v7692, %v8270
        %v8399 = vadd.f32 %v7883, %v8271
        %v8400 = vadd.f32 %v7885, %v8272
        %v8401 = vadd.f32 %v7696, %v8273
        %v8402 = vadd.f32 %v7698, %v8274
        %v8403 = vadd.f32 %v7889, %v8275
        %v8404 = vadd.f32 %v7891, %v8276
        %v8405 = vadd.f32 %v7700, %v8277
        %v8406 = vadd.f32 %v7702, %v8278
        %v8407 = vadd.f32 %v7893, %v8279
        %v8408 = vadd.f32 %v7895, %v8280
        %v8409 = vmul.f32 %v8281, 0.7978846
        %v8410 = vmul.f32 %v8282, 0.7978846
        %v8411 = vmul.f32 %v8283, 0.7978846
        %v8412 = vmul.f32 %v8284, 0.7978846
        %v8413 = vmul.f32 %v8285, 0.7978846
        %v8414 = vmul.f32 %v8286, 0.7978846
        %v8415 = vmul.f32 %v8287, 0.7978846
        %v8416 = vmul.f32 %v8288, 0.7978846
        %v8417 = vmul.f32 %v8289, 0.7978846
        %v8418 = vmul.f32 %v8290, 0.7978846
        %v8419 = vmul.f32 %v8291, 0.7978846
        %v8420 = vmul.f32 %v8292, 0.7978846
        %v8421 = vmul.f32 %v8293, 0.7978846
        %v8422 = vmul.f32 %v8294, 0.7978846
        %v8423 = vmul.f32 %v8295, 0.7978846
        %v8424 = vmul.f32 %v8296, 0.7978846
        %v8425 = vmul.f32 %v8297, 0.7978846
        %v8426 = vmul.f32 %v8298, 0.7978846
        %v8427 = vmul.f32 %v8299, 0.7978846
        %v8428 = vmul.f32 %v8300, 0.7978846
        %v8429 = vmul.f32 %v8301, 0.7978846
        %v8430 = vmul.f32 %v8302, 0.7978846
        %v8431 = vmul.f32 %v8303, 0.7978846
        %v8432 = vmul.f32 %v8304, 0.7978846
        %v8433 = vmul.f32 %v8305, 0.7978846
        %v8434 = vmul.f32 %v8306, 0.7978846
        %v8435 = vmul.f32 %v8307, 0.7978846
        %v8436 = vmul.f32 %v8308, 0.7978846
        %v8437 = vmul.f32 %v8309, 0.7978846
        %v8438 = vmul.f32 %v8310, 0.7978846
        %v8439 = vmul.f32 %v8311, 0.7978846
        %v8440 = vmul.f32 %v8312, 0.7978846
        %v8441 = vmul.f32 %v8313, 0.7978846
        %v8442 = vmul.f32 %v8314, 0.7978846
        %v8443 = vmul.f32 %v8315, 0.7978846
        %v8444 = vmul.f32 %v8316, 0.7978846
        %v8445 = vmul.f32 %v8317, 0.7978846
        %v8446 = vmul.f32 %v8318, 0.7978846
        %v8447 = vmul.f32 %v8319, 0.7978846
        %v8448 = vmul.f32 %v8320, 0.7978846
        %v8449 = vmul.f32 %v8321, 0.7978846
        %v8450 = vmul.f32 %v8322, 0.7978846
        %v8451 = vmul.f32 %v8323, 0.7978846
        %v8452 = vmul.f32 %v8324, 0.7978846
        %v8453 = vmul.f32 %v8325, 0.7978846
        %v8454 = vmul.f32 %v8326, 0.7978846
        %v8455 = vmul.f32 %v8327, 0.7978846
        %v8456 = vmul.f32 %v8328, 0.7978846
        %v8457 = vmul.f32 %v8329, 0.7978846
        %v8458 = vmul.f32 %v8330, 0.7978846
        %v8459 = vmul.f32 %v8331, 0.7978846
        %v8460 = vmul.f32 %v8332, 0.7978846
        %v8461 = vmul.f32 %v8333, 0.7978846
        %v8462 = vmul.f32 %v8334, 0.7978846
        %v8463 = vmul.f32 %v8335, 0.7978846
        %v8464 = vmul.f32 %v8336, 0.7978846
        %v8465 = vmul.f32 %v8337, 0.7978846
        %v8466 = vmul.f32 %v8338, 0.7978846
        %v8467 = vmul.f32 %v8339, 0.7978846
        %v8468 = vmul.f32 %v8340, 0.7978846
        %v8469 = vmul.f32 %v8341, 0.7978846
        %v8470 = vmul.f32 %v8342, 0.7978846
        %v8471 = vmul.f32 %v8343, 0.7978846
        %v8472 = vmul.f32 %v8344, 0.7978846
        %v8473 = vmul.f32 %v8345, 0.7978846
        %v8474 = vmul.f32 %v8346, 0.7978846
        %v8475 = vmul.f32 %v8347, 0.7978846
        %v8476 = vmul.f32 %v8348, 0.7978846
        %v8477 = vmul.f32 %v8349, 0.7978846
        %v8478 = vmul.f32 %v8350, 0.7978846
        %v8479 = vmul.f32 %v8351, 0.7978846
        %v8480 = vmul.f32 %v8352, 0.7978846
        %v8481 = vmul.f32 %v8353, 0.7978846
        %v8482 = vmul.f32 %v8354, 0.7978846
        %v8483 = vmul.f32 %v8355, 0.7978846
        %v8484 = vmul.f32 %v8356, 0.7978846
        %v8485 = vmul.f32 %v8357, 0.7978846
        %v8486 = vmul.f32 %v8358, 0.7978846
        %v8487 = vmul.f32 %v8359, 0.7978846
        %v8488 = vmul.f32 %v8360, 0.7978846
        %v8489 = vmul.f32 %v8361, 0.7978846
        %v8490 = vmul.f32 %v8362, 0.7978846
        %v8491 = vmul.f32 %v8363, 0.7978846
        %v8492 = vmul.f32 %v8364, 0.7978846
        %v8493 = vmul.f32 %v8365, 0.7978846
        %v8494 = vmul.f32 %v8366, 0.7978846
        %v8495 = vmul.f32 %v8367, 0.7978846
        %v8496 = vmul.f32 %v8368, 0.7978846
        %v8497 = vmul.f32 %v8369, 0.7978846
        %v8498 = vmul.f32 %v8370, 0.7978846
        %v8499 = vmul.f32 %v8371, 0.7978846
        %v8500 = vmul.f32 %v8372, 0.7978846
        %v8501 = vmul.f32 %v8373, 0.7978846
        %v8502 = vmul.f32 %v8374, 0.7978846
        %v8503 = vmul.f32 %v8375, 0.7978846
        %v8504 = vmul.f32 %v8376, 0.7978846
        %v8505 = vmul.f32 %v8377, 0.7978846
        %v8506 = vmul.f32 %v8378, 0.7978846
        %v8507 = vmul.f32 %v8379, 0.7978846
        %v8508 = vmul.f32 %v8380, 0.7978846
        %v8509 = vmul.f32 %v8381, 0.7978846
        %v8510 = vmul.f32 %v8382, 0.7978846
        %v8511 = vmul.f32 %v8383, 0.7978846
        %v8512 = vmul.f32 %v8384, 0.7978846
        %v8513 = vmul.f32 %v8385, 0.7978846
        %v8514 = vmul.f32 %v8386, 0.7978846
        %v8515 = vmul.f32 %v8387, 0.7978846
        %v8516 = vmul.f32 %v8388, 0.7978846
        %v8517 = vmul.f32 %v8389, 0.7978846
        %v8518 = vmul.f32 %v8390, 0.7978846
        %v8519 = vmul.f32 %v8391, 0.7978846
        %v8520 = vmul.f32 %v8392, 0.7978846
        %v8521 = vmul.f32 %v8393, 0.7978846
        %v8522 = vmul.f32 %v8394, 0.7978846
        %v8523 = vmul.f32 %v8395, 0.7978846
        %v8524 = vmul.f32 %v8396, 0.7978846
        %v8525 = vmul.f32 %v8397, 0.7978846
        %v8526 = vmul.f32 %v8398, 0.7978846
        %v8527 = vmul.f32 %v8399, 0.7978846
        %v8528 = vmul.f32 %v8400, 0.7978846
        %v8529 = vmul.f32 %v8401, 0.7978846
        %v8530 = vmul.f32 %v8402, 0.7978846
        %v8531 = vmul.f32 %v8403, 0.7978846
        %v8532 = vmul.f32 %v8404, 0.7978846
        %v8533 = vmul.f32 %v8405, 0.7978846
        %v8534 = vmul.f32 %v8406, 0.7978846
        %v8535 = vmul.f32 %v8407, 0.7978846
        %v8536 = vmul.f32 %v8408, 0.7978846
        %v8537 = vtanh.pop %v8409
        %v8538 = vtanh.pop %v8410
        %v8539 = vtanh.pop %v8411
        %v8540 = vtanh.pop %v8412
        %v8541 = vtanh.pop %v8413
        %v8542 = vtanh.pop %v8414
        %v8543 = vtanh.pop %v8415
        %v8544 = vtanh.pop %v8416
        %v8545 = vtanh.pop %v8417
        %v8546 = vtanh.pop %v8418
        %v8547 = vtanh.pop %v8419
        %v8548 = vtanh.pop %v8420
        %v8549 = vtanh.pop %v8421
        %v8550 = vtanh.pop %v8422
        %v8551 = vtanh.pop %v8423
        %v8552 = vtanh.pop %v8424
        %v8553 = vtanh.pop %v8425
        %v8554 = vtanh.pop %v8426
        %v8555 = vtanh.pop %v8427
        %v8556 = vtanh.pop %v8428
        %v8557 = vtanh.pop %v8429
        %v8558 = vtanh.pop %v8430
        %v8559 = vtanh.pop %v8431
        %v8560 = vtanh.pop %v8432
        %v8561 = vtanh.pop %v8433
        %v8562 = vtanh.pop %v8434
        %v8563 = vtanh.pop %v8435
        %v8564 = vtanh.pop %v8436
        %v8565 = vtanh.pop %v8437
        %v8566 = vtanh.pop %v8438
        %v8567 = vtanh.pop %v8439
        %v8568 = vtanh.pop %v8440
        %v8569 = vtanh.pop %v8441
        %v8570 = vtanh.pop %v8442
        %v8571 = vtanh.pop %v8443
        %v8572 = vtanh.pop %v8444
        %v8573 = vtanh.pop %v8445
        %v8574 = vtanh.pop %v8446
        %v8575 = vtanh.pop %v8447
        %v8576 = vtanh.pop %v8448
        %v8577 = vtanh.pop %v8449
        %v8578 = vtanh.pop %v8450
        %v8579 = vtanh.pop %v8451
        %v8580 = vtanh.pop %v8452
        %v8581 = vtanh.pop %v8453
        %v8582 = vtanh.pop %v8454
        %v8583 = vtanh.pop %v8455
        %v8584 = vtanh.pop %v8456
        %v8585 = vtanh.pop %v8457
        %v8586 = vtanh.pop %v8458
        %v8587 = vtanh.pop %v8459
        %v8588 = vtanh.pop %v8460
        %v8589 = vtanh.pop %v8461
        %v8590 = vtanh.pop %v8462
        %v8591 = vtanh.pop %v8463
        %v8592 = vtanh.pop %v8464
        %v8593 = vtanh.pop %v8465
        %v8594 = vtanh.pop %v8466
        %v8595 = vtanh.pop %v8467
        %v8596 = vtanh.pop %v8468
        %v8597 = vtanh.pop %v8469
        %v8598 = vtanh.pop %v8470
        %v8599 = vtanh.pop %v8471
        %v8600 = vtanh.pop %v8472
        %v8601 = vtanh.pop %v8473
        %v8602 = vtanh.pop %v8474
        %v8603 = vtanh.pop %v8475
        %v8604 = vtanh.pop %v8476
        %v8605 = vtanh.pop %v8477
        %v8606 = vtanh.pop %v8478
        %v8607 = vtanh.pop %v8479
        %v8608 = vtanh.pop %v8480
        %v8609 = vtanh.pop %v8481
        %v8610 = vtanh.pop %v8482
        %v8611 = vtanh.pop %v8483
        %v8612 = vtanh.pop %v8484
        %v8613 = vtanh.pop %v8485
        %v8614 = vtanh.pop %v8486
        %v8615 = vtanh.pop %v8487
        %v8616 = vtanh.pop %v8488
        %v8617 = vtanh.pop %v8489
        %v8618 = vtanh.pop %v8490
        %v8619 = vtanh.pop %v8491
        %v8620 = vtanh.pop %v8492
        %v8621 = vtanh.pop %v8493
        %v8622 = vtanh.pop %v8494
        %v8623 = vtanh.pop %v8495
        %v8624 = vtanh.pop %v8496
        %v8625 = vtanh.pop %v8497
        %v8626 = vtanh.pop %v8498
        %v8627 = vtanh.pop %v8499
        %v8628 = vtanh.pop %v8500
        %v8629 = vtanh.pop %v8501
        %v8630 = vtanh.pop %v8502
        %v8631 = vtanh.pop %v8503
        %v8632 = vtanh.pop %v8504
        %v8633 = vtanh.pop %v8505
        %v8634 = vtanh.pop %v8506
        %v8635 = vtanh.pop %v8507
        %v8636 = vtanh.pop %v8508
        %v8637 = vtanh.pop %v8509
        %v8638 = vtanh.pop %v8510
        %v8639 = vtanh.pop %v8511
        %v8640 = vtanh.pop %v8512
        %v8641 = vtanh.pop %v8513
        %v8642 = vtanh.pop %v8514
        %v8643 = vtanh.pop %v8515
        %v8644 = vtanh.pop %v8516
        %v8645 = vtanh.pop %v8517
        %v8646 = vtanh.pop %v8518
        %v8647 = vtanh.pop %v8519
        %v8648 = vtanh.pop %v8520
        %v8649 = vtanh.pop %v8521
        %v8650 = vtanh.pop %v8522
        %v8651 = vtanh.pop %v8523
        %v8652 = vtanh.pop %v8524
        %v8653 = vtanh.pop %v8525
        %v8654 = vtanh.pop %v8526
        %v8655 = vtanh.pop %v8527
        %v8656 = vtanh.pop %v8528
        %v8657 = vtanh.pop %v8529
        %v8658 = vtanh.pop %v8530
        %v8659 = vtanh.pop %v8531
        %v8660 = vtanh.pop %v8532
        %v8661 = vtanh.pop %v8533
        %v8662 = vtanh.pop %v8534
        %v8663 = vtanh.pop %v8535
        %v8664 = vtanh.pop %v8536
        %v8665 = vadd.f32 %v8537, 1.0
        %v8666 = vadd.f32 %v8538, 1.0
        %v8667 = vadd.f32 %v8539, 1.0
        %v8668 = vadd.f32 %v8540, 1.0
        %v8669 = vadd.f32 %v8541, 1.0
        %v8670 = vadd.f32 %v8542, 1.0
        %v8671 = vadd.f32 %v8543, 1.0
        %v8672 = vadd.f32 %v8544, 1.0
        %v8673 = vadd.f32 %v8545, 1.0
        %v8674 = vadd.f32 %v8546, 1.0
        %v8675 = vadd.f32 %v8547, 1.0
        %v8676 = vadd.f32 %v8548, 1.0
        %v8677 = vadd.f32 %v8549, 1.0
        %v8678 = vadd.f32 %v8550, 1.0
        %v8679 = vadd.f32 %v8551, 1.0
        %v8680 = vadd.f32 %v8552, 1.0
        %v8681 = vadd.f32 %v8553, 1.0
        %v8682 = vadd.f32 %v8554, 1.0
        %v8683 = vadd.f32 %v8555, 1.0
        %v8684 = vadd.f32 %v8556, 1.0
        %v8685 = vadd.f32 %v8557, 1.0
        %v8686 = vadd.f32 %v8558, 1.0
        %v8687 = vadd.f32 %v8559, 1.0
        %v8688 = vadd.f32 %v8560, 1.0
        %v8689 = vadd.f32 %v8561, 1.0
        %v8690 = vadd.f32 %v8562, 1.0
        %v8691 = vadd.f32 %v8563, 1.0
        %v8692 = vadd.f32 %v8564, 1.0
        %v8693 = vadd.f32 %v8565, 1.0
        %v8694 = vadd.f32 %v8566, 1.0
        %v8695 = vadd.f32 %v8567, 1.0
        %v8696 = vadd.f32 %v8568, 1.0
        %v8697 = vadd.f32 %v8569, 1.0
        %v8698 = vadd.f32 %v8570, 1.0
        %v8699 = vadd.f32 %v8571, 1.0
        %v8700 = vadd.f32 %v8572, 1.0
        %v8701 = vadd.f32 %v8573, 1.0
        %v8702 = vadd.f32 %v8574, 1.0
        %v8703 = vadd.f32 %v8575, 1.0
        %v8704 = vadd.f32 %v8576, 1.0
        %v8705 = vadd.f32 %v8577, 1.0
        %v8706 = vadd.f32 %v8578, 1.0
        %v8707 = vadd.f32 %v8579, 1.0
        %v8708 = vadd.f32 %v8580, 1.0
        %v8709 = vadd.f32 %v8581, 1.0
        %v8710 = vadd.f32 %v8582, 1.0
        %v8711 = vadd.f32 %v8583, 1.0
        %v8712 = vadd.f32 %v8584, 1.0
        %v8713 = vadd.f32 %v8585, 1.0
        %v8714 = vadd.f32 %v8586, 1.0
        %v8715 = vadd.f32 %v8587, 1.0
        %v8716 = vadd.f32 %v8588, 1.0
        %v8717 = vadd.f32 %v8589, 1.0
        %v8718 = vadd.f32 %v8590, 1.0
        %v8719 = vadd.f32 %v8591, 1.0
        %v8720 = vadd.f32 %v8592, 1.0
        %v8721 = vadd.f32 %v8593, 1.0
        %v8722 = vadd.f32 %v8594, 1.0
        %v8723 = vadd.f32 %v8595, 1.0
        %v8724 = vadd.f32 %v8596, 1.0
        %v8725 = vadd.f32 %v8597, 1.0
        %v8726 = vadd.f32 %v8598, 1.0
        %v8727 = vadd.f32 %v8599, 1.0
        %v8728 = vadd.f32 %v8600, 1.0
        %v8729 = vadd.f32 %v8601, 1.0
        %v8730 = vadd.f32 %v8602, 1.0
        %v8731 = vadd.f32 %v8603, 1.0
        %v8732 = vadd.f32 %v8604, 1.0
        %v8733 = vadd.f32 %v8605, 1.0
        %v8734 = vadd.f32 %v8606, 1.0
        %v8735 = vadd.f32 %v8607, 1.0
        %v8736 = vadd.f32 %v8608, 1.0
        %v8737 = vadd.f32 %v8609, 1.0
        %v8738 = vadd.f32 %v8610, 1.0
        %v8739 = vadd.f32 %v8611, 1.0
        %v8740 = vadd.f32 %v8612, 1.0
        %v8741 = vadd.f32 %v8613, 1.0
        %v8742 = vadd.f32 %v8614, 1.0
        %v8743 = vadd.f32 %v8615, 1.0
        %v8744 = vadd.f32 %v8616, 1.0
        %v8745 = vadd.f32 %v8617, 1.0
        %v8746 = vadd.f32 %v8618, 1.0
        %v8747 = vadd.f32 %v8619, 1.0
        %v8748 = vadd.f32 %v8620, 1.0
        %v8749 = vadd.f32 %v8621, 1.0
        %v8750 = vadd.f32 %v8622, 1.0
        %v8751 = vadd.f32 %v8623, 1.0
        %v8752 = vadd.f32 %v8624, 1.0
        %v8753 = vadd.f32 %v8625, 1.0
        %v8754 = vadd.f32 %v8626, 1.0
        %v8755 = vadd.f32 %v8627, 1.0
        %v8756 = vadd.f32 %v8628, 1.0
        %v8757 = vadd.f32 %v8629, 1.0
        %v8758 = vadd.f32 %v8630, 1.0
        %v8759 = vadd.f32 %v8631, 1.0
        %v8760 = vadd.f32 %v8632, 1.0
        %v8761 = vadd.f32 %v8633, 1.0
        %v8762 = vadd.f32 %v8634, 1.0
        %v8763 = vadd.f32 %v8635, 1.0
        %v8764 = vadd.f32 %v8636, 1.0
        %v8765 = vadd.f32 %v8637, 1.0
        %v8766 = vadd.f32 %v8638, 1.0
        %v8767 = vadd.f32 %v8639, 1.0
        %v8768 = vadd.f32 %v8640, 1.0
        %v8769 = vadd.f32 %v8641, 1.0
        %v8770 = vadd.f32 %v8642, 1.0
        %v8771 = vadd.f32 %v8643, 1.0
        %v8772 = vadd.f32 %v8644, 1.0
        %v8773 = vadd.f32 %v8645, 1.0
        %v8774 = vadd.f32 %v8646, 1.0
        %v8775 = vadd.f32 %v8647, 1.0
        %v8776 = vadd.f32 %v8648, 1.0
        %v8777 = vadd.f32 %v8649, 1.0
        %v8778 = vadd.f32 %v8650, 1.0
        %v8779 = vadd.f32 %v8651, 1.0
        %v8780 = vadd.f32 %v8652, 1.0
        %v8781 = vadd.f32 %v8653, 1.0
        %v8782 = vadd.f32 %v8654, 1.0
        %v8783 = vadd.f32 %v8655, 1.0
        %v8784 = vadd.f32 %v8656, 1.0
        %v8785 = vadd.f32 %v8657, 1.0
        %v8786 = vadd.f32 %v8658, 1.0
        %v8787 = vadd.f32 %v8659, 1.0
        %v8788 = vadd.f32 %v8660, 1.0
        %v8789 = vadd.f32 %v8661, 1.0
        %v8790 = vadd.f32 %v8662, 1.0
        %v8791 = vadd.f32 %v8663, 1.0
        %v8792 = vadd.f32 %v8664, 1.0
        %v8793 = vmul.f32 %v8665, 0.5
        %v8794 = vmul.f32 %v8666, 0.5
        %v8795 = vmul.f32 %v8667, 0.5
        %v8796 = vmul.f32 %v8668, 0.5
        %v8797 = vmul.f32 %v8669, 0.5
        %v8798 = vmul.f32 %v8670, 0.5
        %v8799 = vmul.f32 %v8671, 0.5
        %v8800 = vmul.f32 %v8672, 0.5
        %v8801 = vmul.f32 %v8673, 0.5
        %v8802 = vmul.f32 %v8674, 0.5
        %v8803 = vmul.f32 %v8675, 0.5
        %v8804 = vmul.f32 %v8676, 0.5
        %v8805 = vmul.f32 %v8677, 0.5
        %v8806 = vmul.f32 %v8678, 0.5
        %v8807 = vmul.f32 %v8679, 0.5
        %v8808 = vmul.f32 %v8680, 0.5
        %v8809 = vmul.f32 %v8681, 0.5
        %v8810 = vmul.f32 %v8682, 0.5
        %v8811 = vmul.f32 %v8683, 0.5
        %v8812 = vmul.f32 %v8684, 0.5
        %v8813 = vmul.f32 %v8685, 0.5
        %v8814 = vmul.f32 %v8686, 0.5
        %v8815 = vmul.f32 %v8687, 0.5
        %v8816 = vmul.f32 %v8688, 0.5
        %v8817 = vmul.f32 %v8689, 0.5
        %v8818 = vmul.f32 %v8690, 0.5
        %v8819 = vmul.f32 %v8691, 0.5
        %v8820 = vmul.f32 %v8692, 0.5
        %v8821 = vmul.f32 %v8693, 0.5
        %v8822 = vmul.f32 %v8694, 0.5
        %v8823 = vmul.f32 %v8695, 0.5
        %v8824 = vmul.f32 %v8696, 0.5
        %v8825 = vmul.f32 %v8697, 0.5
        %v8826 = vmul.f32 %v8698, 0.5
        %v8827 = vmul.f32 %v8699, 0.5
        %v8828 = vmul.f32 %v8700, 0.5
        %v8829 = vmul.f32 %v8701, 0.5
        %v8830 = vmul.f32 %v8702, 0.5
        %v8831 = vmul.f32 %v8703, 0.5
        %v8832 = vmul.f32 %v8704, 0.5
        %v8833 = vmul.f32 %v8705, 0.5
        %v8834 = vmul.f32 %v8706, 0.5
        %v8835 = vmul.f32 %v8707, 0.5
        %v8836 = vmul.f32 %v8708, 0.5
        %v8837 = vmul.f32 %v8709, 0.5
        %v8838 = vmul.f32 %v8710, 0.5
        %v8839 = vmul.f32 %v8711, 0.5
        %v8840 = vmul.f32 %v8712, 0.5
        %v8841 = vmul.f32 %v8713, 0.5
        %v8842 = vmul.f32 %v8714, 0.5
        %v8843 = vmul.f32 %v8715, 0.5
        %v8844 = vmul.f32 %v8716, 0.5
        %v8845 = vmul.f32 %v8717, 0.5
        %v8846 = vmul.f32 %v8718, 0.5
        %v8847 = vmul.f32 %v8719, 0.5
        %v8848 = vmul.f32 %v8720, 0.5
        %v8849 = vmul.f32 %v8721, 0.5
        %v8850 = vmul.f32 %v8722, 0.5
        %v8851 = vmul.f32 %v8723, 0.5
        %v8852 = vmul.f32 %v8724, 0.5
        %v8853 = vmul.f32 %v8725, 0.5
        %v8854 = vmul.f32 %v8726, 0.5
        %v8855 = vmul.f32 %v8727, 0.5
        %v8856 = vmul.f32 %v8728, 0.5
        %v8857 = vmul.f32 %v8729, 0.5
        %v8858 = vmul.f32 %v8730, 0.5
        %v8859 = vmul.f32 %v8731, 0.5
        %v8860 = vmul.f32 %v8732, 0.5
        %v8861 = vmul.f32 %v8733, 0.5
        %v8862 = vmul.f32 %v8734, 0.5
        %v8863 = vmul.f32 %v8735, 0.5
        %v8864 = vmul.f32 %v8736, 0.5
        %v8865 = vmul.f32 %v8737, 0.5
        %v8866 = vmul.f32 %v8738, 0.5
        %v8867 = vmul.f32 %v8739, 0.5
        %v8868 = vmul.f32 %v8740, 0.5
        %v8869 = vmul.f32 %v8741, 0.5
        %v8870 = vmul.f32 %v8742, 0.5
        %v8871 = vmul.f32 %v8743, 0.5
        %v8872 = vmul.f32 %v8744, 0.5
        %v8873 = vmul.f32 %v8745, 0.5
        %v8874 = vmul.f32 %v8746, 0.5
        %v8875 = vmul.f32 %v8747, 0.5
        %v8876 = vmul.f32 %v8748, 0.5
        %v8877 = vmul.f32 %v8749, 0.5
        %v8878 = vmul.f32 %v8750, 0.5
        %v8879 = vmul.f32 %v8751, 0.5
        %v8880 = vmul.f32 %v8752, 0.5
        %v8881 = vmul.f32 %v8753, 0.5
        %v8882 = vmul.f32 %v8754, 0.5
        %v8883 = vmul.f32 %v8755, 0.5
        %v8884 = vmul.f32 %v8756, 0.5
        %v8885 = vmul.f32 %v8757, 0.5
        %v8886 = vmul.f32 %v8758, 0.5
        %v8887 = vmul.f32 %v8759, 0.5
        %v8888 = vmul.f32 %v8760, 0.5
        %v8889 = vmul.f32 %v8761, 0.5
        %v8890 = vmul.f32 %v8762, 0.5
        %v8891 = vmul.f32 %v8763, 0.5
        %v8892 = vmul.f32 %v8764, 0.5
        %v8893 = vmul.f32 %v8765, 0.5
        %v8894 = vmul.f32 %v8766, 0.5
        %v8895 = vmul.f32 %v8767, 0.5
        %v8896 = vmul.f32 %v8768, 0.5
        %v8897 = vmul.f32 %v8769, 0.5
        %v8898 = vmul.f32 %v8770, 0.5
        %v8899 = vmul.f32 %v8771, 0.5
        %v8900 = vmul.f32 %v8772, 0.5
        %v8901 = vmul.f32 %v8773, 0.5
        %v8902 = vmul.f32 %v8774, 0.5
        %v8903 = vmul.f32 %v8775, 0.5
        %v8904 = vmul.f32 %v8776, 0.5
        %v8905 = vmul.f32 %v8777, 0.5
        %v8906 = vmul.f32 %v8778, 0.5
        %v8907 = vmul.f32 %v8779, 0.5
        %v8908 = vmul.f32 %v8780, 0.5
        %v8909 = vmul.f32 %v8781, 0.5
        %v8910 = vmul.f32 %v8782, 0.5
        %v8911 = vmul.f32 %v8783, 0.5
        %v8912 = vmul.f32 %v8784, 0.5
        %v8913 = vmul.f32 %v8785, 0.5
        %v8914 = vmul.f32 %v8786, 0.5
        %v8915 = vmul.f32 %v8787, 0.5
        %v8916 = vmul.f32 %v8788, 0.5
        %v8917 = vmul.f32 %v8789, 0.5
        %v8918 = vmul.f32 %v8790, 0.5
        %v8919 = vmul.f32 %v8791, 0.5
        %v8920 = vmul.f32 %v8792, 0.5
        %v8921 = vmul.f32 %v7546, %v8793
        %v8922 = vmul.f32 %v7548, %v8794
        %v8923 = vmul.f32 %v7739, %v8795
        %v8924 = vmul.f32 %v7741, %v8796
        %v8925 = vmul.f32 %v7550, %v8797
        %v8926 = vmul.f32 %v7552, %v8798
        %v8927 = vmul.f32 %v7743, %v8799
        %v8928 = vmul.f32 %v7745, %v8800
        %v8929 = vmul.f32 %v7556, %v8801
        %v8930 = vmul.f32 %v7558, %v8802
        %v8931 = vmul.f32 %v7749, %v8803
        %v8932 = vmul.f32 %v7751, %v8804
        %v8933 = vmul.f32 %v7560, %v8805
        %v8934 = vmul.f32 %v7562, %v8806
        %v8935 = vmul.f32 %v7753, %v8807
        %v8936 = vmul.f32 %v7755, %v8808
        %v8937 = vmul.f32 %v7566, %v8809
        %v8938 = vmul.f32 %v7568, %v8810
        %v8939 = vmul.f32 %v7759, %v8811
        %v8940 = vmul.f32 %v7761, %v8812
        %v8941 = vmul.f32 %v7570, %v8813
        %v8942 = vmul.f32 %v7572, %v8814
        %v8943 = vmul.f32 %v7763, %v8815
        %v8944 = vmul.f32 %v7765, %v8816
        %v8945 = vmul.f32 %v7576, %v8817
        %v8946 = vmul.f32 %v7578, %v8818
        %v8947 = vmul.f32 %v7769, %v8819
        %v8948 = vmul.f32 %v7771, %v8820
        %v8949 = vmul.f32 %v7580, %v8821
        %v8950 = vmul.f32 %v7582, %v8822
        %v8951 = vmul.f32 %v7773, %v8823
        %v8952 = vmul.f32 %v7775, %v8824
        %v8953 = vmul.f32 %v7586, %v8825
        %v8954 = vmul.f32 %v7588, %v8826
        %v8955 = vmul.f32 %v7779, %v8827
        %v8956 = vmul.f32 %v7781, %v8828
        %v8957 = vmul.f32 %v7590, %v8829
        %v8958 = vmul.f32 %v7592, %v8830
        %v8959 = vmul.f32 %v7783, %v8831
        %v8960 = vmul.f32 %v7785, %v8832
        %v8961 = vmul.f32 %v7596, %v8833
        %v8962 = vmul.f32 %v7598, %v8834
        %v8963 = vmul.f32 %v7789, %v8835
        %v8964 = vmul.f32 %v7791, %v8836
        %v8965 = vmul.f32 %v7600, %v8837
        %v8966 = vmul.f32 %v7602, %v8838
        %v8967 = vmul.f32 %v7793, %v8839
        %v8968 = vmul.f32 %v7795, %v8840
        %v8969 = vmul.f32 %v7606, %v8841
        %v8970 = vmul.f32 %v7608, %v8842
        %v8971 = vmul.f32 %v7799, %v8843
        %v8972 = vmul.f32 %v7801, %v8844
        %v8973 = vmul.f32 %v7610, %v8845
        %v8974 = vmul.f32 %v7612, %v8846
        %v8975 = vmul.f32 %v7803, %v8847
        %v8976 = vmul.f32 %v7805, %v8848
        %v8977 = vmul.f32 %v7616, %v8849
        %v8978 = vmul.f32 %v7618, %v8850
        %v8979 = vmul.f32 %v7809, %v8851
        %v8980 = vmul.f32 %v7811, %v8852
        %v8981 = vmul.f32 %v7620, %v8853
        %v8982 = vmul.f32 %v7622, %v8854
        %v8983 = vmul.f32 %v7813, %v8855
        %v8984 = vmul.f32 %v7815, %v8856
        %v8985 = vmul.f32 %v7626, %v8857
        %v8986 = vmul.f32 %v7628, %v8858
        %v8987 = vmul.f32 %v7819, %v8859
        %v8988 = vmul.f32 %v7821, %v8860
        %v8989 = vmul.f32 %v7630, %v8861
        %v8990 = vmul.f32 %v7632, %v8862
        %v8991 = vmul.f32 %v7823, %v8863
        %v8992 = vmul.f32 %v7825, %v8864
        %v8993 = vmul.f32 %v7636, %v8865
        %v8994 = vmul.f32 %v7638, %v8866
        %v8995 = vmul.f32 %v7829, %v8867
        %v8996 = vmul.f32 %v7831, %v8868
        %v8997 = vmul.f32 %v7640, %v8869
        %v8998 = vmul.f32 %v7642, %v8870
        %v8999 = vmul.f32 %v7833, %v8871
        %v9000 = vmul.f32 %v7835, %v8872
        %v9001 = vmul.f32 %v7646, %v8873
        %v9002 = vmul.f32 %v7648, %v8874
        %v9003 = vmul.f32 %v7839, %v8875
        %v9004 = vmul.f32 %v7841, %v8876
        %v9005 = vmul.f32 %v7650, %v8877
        %v9006 = vmul.f32 %v7652, %v8878
        %v9007 = vmul.f32 %v7843, %v8879
        %v9008 = vmul.f32 %v7845, %v8880
        %v9009 = vmul.f32 %v7656, %v8881
        %v9010 = vmul.f32 %v7658, %v8882
        %v9011 = vmul.f32 %v7849, %v8883
        %v9012 = vmul.f32 %v7851, %v8884
        %v9013 = vmul.f32 %v7660, %v8885
        %v9014 = vmul.f32 %v7662, %v8886
        %v9015 = vmul.f32 %v7853, %v8887
        %v9016 = vmul.f32 %v7855, %v8888
        %v9017 = vmul.f32 %v7666, %v8889
        %v9018 = vmul.f32 %v7668, %v8890
        %v9019 = vmul.f32 %v7859, %v8891
        %v9020 = vmul.f32 %v7861, %v8892
        %v9021 = vmul.f32 %v7670, %v8893
        %v9022 = vmul.f32 %v7672, %v8894
        %v9023 = vmul.f32 %v7863, %v8895
        %v9024 = vmul.f32 %v7865, %v8896
        %v9025 = vmul.f32 %v7676, %v8897
        %v9026 = vmul.f32 %v7678, %v8898
        %v9027 = vmul.f32 %v7869, %v8899
        %v9028 = vmul.f32 %v7871, %v8900
        %v9029 = vmul.f32 %v7680, %v8901
        %v9030 = vmul.f32 %v7682, %v8902
        %v9031 = vmul.f32 %v7873, %v8903
        %v9032 = vmul.f32 %v7875, %v8904
        %v9033 = vmul.f32 %v7686, %v8905
        %v9034 = vmul.f32 %v7688, %v8906
        %v9035 = vmul.f32 %v7879, %v8907
        %v9036 = vmul.f32 %v7881, %v8908
        %v9037 = vmul.f32 %v7690, %v8909
        %v9038 = vmul.f32 %v7692, %v8910
        %v9039 = vmul.f32 %v7883, %v8911
        %v9040 = vmul.f32 %v7885, %v8912
        %v9041 = vmul.f32 %v7696, %v8913
        %v9042 = vmul.f32 %v7698, %v8914
        %v9043 = vmul.f32 %v7889, %v8915
        %v9044 = vmul.f32 %v7891, %v8916
        %v9045 = vmul.f32 %v7700, %v8917
        %v9046 = vmul.f32 %v7702, %v8918
        %v9047 = vmul.f32 %v7893, %v8919
        %v9048 = vmul.f32 %v7895, %v8920
        %v9049 = vpack.c.bf16 %v8925, %v8921
        %v9050 = vpack.c.bf16 %v8926, %v8922
        %v9051 = vpack.c.bf16 %v8927, %v8923
        %v9052 = vpack.c.bf16 %v8928, %v8924
        %v9053 = vpack.c.bf16 %v8933, %v8929
        %v9054 = vpack.c.bf16 %v8934, %v8930
        %v9055 = vpack.c.bf16 %v8935, %v8931
        %v9056 = vpack.c.bf16 %v8936, %v8932
        %v9057 = vpack.c.bf16 %v8941, %v8937
        %v9058 = vpack.c.bf16 %v8942, %v8938
        %v9059 = vpack.c.bf16 %v8943, %v8939
        %v9060 = vpack.c.bf16 %v8944, %v8940
        %v9061 = vpack.c.bf16 %v8949, %v8945
        %v9062 = vpack.c.bf16 %v8950, %v8946
        %v9063 = vpack.c.bf16 %v8951, %v8947
        %v9064 = vpack.c.bf16 %v8952, %v8948
        %v9065 = vpack.c.bf16 %v8957, %v8953
        %v9066 = vpack.c.bf16 %v8958, %v8954
        %v9067 = vpack.c.bf16 %v8959, %v8955
        %v9068 = vpack.c.bf16 %v8960, %v8956
        %v9069 = vpack.c.bf16 %v8965, %v8961
        %v9070 = vpack.c.bf16 %v8966, %v8962
        %v9071 = vpack.c.bf16 %v8967, %v8963
        %v9072 = vpack.c.bf16 %v8968, %v8964
        %v9073 = vpack.c.bf16 %v8973, %v8969
        %v9074 = vpack.c.bf16 %v8974, %v8970
        %v9075 = vpack.c.bf16 %v8975, %v8971
        %v9076 = vpack.c.bf16 %v8976, %v8972
        %v9077 = vpack.c.bf16 %v8981, %v8977
        %v9078 = vpack.c.bf16 %v8982, %v8978
        %v9079 = vpack.c.bf16 %v8983, %v8979
        %v9080 = vpack.c.bf16 %v8984, %v8980
        %v9081 = vpack.c.bf16 %v8989, %v8985
        %v9082 = vpack.c.bf16 %v8990, %v8986
        %v9083 = vpack.c.bf16 %v8991, %v8987
        %v9084 = vpack.c.bf16 %v8992, %v8988
        %v9085 = vpack.c.bf16 %v8997, %v8993
        %v9086 = vpack.c.bf16 %v8998, %v8994
        %v9087 = vpack.c.bf16 %v8999, %v8995
        %v9088 = vpack.c.bf16 %v9000, %v8996
        %v9089 = vpack.c.bf16 %v9005, %v9001
        %v9090 = vpack.c.bf16 %v9006, %v9002
        %v9091 = vpack.c.bf16 %v9007, %v9003
        %v9092 = vpack.c.bf16 %v9008, %v9004
        %v9093 = vpack.c.bf16 %v9013, %v9009
        %v9094 = vpack.c.bf16 %v9014, %v9010
        %v9095 = vpack.c.bf16 %v9015, %v9011
        %v9096 = vpack.c.bf16 %v9016, %v9012
        %v9097 = vpack.c.bf16 %v9021, %v9017
        %v9098 = vpack.c.bf16 %v9022, %v9018
        %v9099 = vpack.c.bf16 %v9023, %v9019
        %v9100 = vpack.c.bf16 %v9024, %v9020
        %v9101 = vpack.c.bf16 %v9029, %v9025
        %v9102 = vpack.c.bf16 %v9030, %v9026
        %v9103 = vpack.c.bf16 %v9031, %v9027
        %v9104 = vpack.c.bf16 %v9032, %v9028
        %v9105 = vpack.c.bf16 %v9037, %v9033
        %v9106 = vpack.c.bf16 %v9038, %v9034
        %v9107 = vpack.c.bf16 %v9039, %v9035
        %v9108 = vpack.c.bf16 %v9040, %v9036
        %v9109 = vpack.c.bf16 %v9045, %v9041
        %v9110 = vpack.c.bf16 %v9046, %v9042
        %v9111 = vpack.c.bf16 %v9047, %v9043
        %v9112 = vpack.c.bf16 %v9048, %v9044
        %v9113 = vld [vmem:[#allocation15] sm:$0xf]
        %v9114 = vld [vmem:[#allocation15 + $0x4] sm:$0xf]
        %v9115 = vld [vmem:[#allocation15 + $0x8] sm:$0xf]
        %v9116 = vld [vmem:[#allocation15 + $0xc] sm:$0xf]
        %v9117 = vld [vmem:[#allocation15 + $0x10] sm:$0xf]
        %v9118 = vld [vmem:[#allocation15 + $0x14] sm:$0xf]
        %v9119 = vld [vmem:[#allocation15 + $0x18] sm:$0xf]
        %v9120 = vld [vmem:[#allocation15 + $0x1c] sm:$0xf]
        %v9121 = vld [vmem:[#allocation15 + $0x20] sm:$0xf]
        %v9122 = vld [vmem:[#allocation15 + $0x24] sm:$0xf]
        %v9123 = vld [vmem:[#allocation15 + $0x28] sm:$0xf]
        %v9124 = vld [vmem:[#allocation15 + $0x2c] sm:$0xf]
        %v9125 = vld [vmem:[#allocation15 + $0x30] sm:$0xf]
        %v9126 = vld [vmem:[#allocation15 + $0x34] sm:$0xf]
        %v9127 = vld [vmem:[#allocation15 + $0x38] sm:$0xf]
        %v9128 = vld [vmem:[#allocation15 + $0x3c] sm:$0xf]
        %v9129 = vld [vmem:[#allocation15 + $0x40] sm:$0xf]
        %v9130 = vld [vmem:[#allocation15 + $0x44] sm:$0xf]
        %v9131 = vld [vmem:[#allocation15 + $0x48] sm:$0xf]
        %v9132 = vld [vmem:[#allocation15 + $0x4c] sm:$0xf]
        %v9133 = vld [vmem:[#allocation15 + $0x50] sm:$0xf]
        %v9134 = vld [vmem:[#allocation15 + $0x54] sm:$0xf]
        %v9135 = vld [vmem:[#allocation15 + $0x58] sm:$0xf]
        %v9136 = vld [vmem:[#allocation15 + $0x5c] sm:$0xf]
        %v9137 = vld [vmem:[#allocation15 + $0x60] sm:$0xf]
        %v9138 = vld [vmem:[#allocation15 + $0x64] sm:$0xf]
        %v9139 = vld [vmem:[#allocation15 + $0x68] sm:$0xf]
        %v9140 = vld [vmem:[#allocation15 + $0x6c] sm:$0xf]
        %v9141 = vld [vmem:[#allocation15 + $0x70] sm:$0xf]
        %v9142 = vld [vmem:[#allocation15 + $0x74] sm:$0xf]
        %v9143 = vld [vmem:[#allocation15 + $0x78] sm:$0xf]
        %v9144 = vld [vmem:[#allocation15 + $0x7c] sm:$0xf]
        %v9145 = vld [vmem:[#allocation15 + $0x80] sm:$0xf]
        %v9146 = vld [vmem:[#allocation15 + $0x84] sm:$0xf]
        %v9147 = vld [vmem:[#allocation15 + $0x88] sm:$0xf]
        %v9148 = vld [vmem:[#allocation15 + $0x8c] sm:$0xf]
        %v9149 = vld [vmem:[#allocation15 + $0x90] sm:$0xf]
        %v9150 = vld [vmem:[#allocation15 + $0x94] sm:$0xf]
        %v9151 = vld [vmem:[#allocation15 + $0x98] sm:$0xf]
        %v9152 = vld [vmem:[#allocation15 + $0x9c] sm:$0xf]
        %v9153 = vld [vmem:[#allocation15 + $0xa0] sm:$0xf]
        %v9154 = vld [vmem:[#allocation15 + $0xa4] sm:$0xf]
        %v9155 = vld [vmem:[#allocation15 + $0xa8] sm:$0xf]
        %v9156 = vld [vmem:[#allocation15 + $0xac] sm:$0xf]
        %v9157 = vld [vmem:[#allocation15 + $0xb0] sm:$0xf]
        %v9158 = vld [vmem:[#allocation15 + $0xb4] sm:$0xf]
        %v9159 = vld [vmem:[#allocation15 + $0xb8] sm:$0xf]
        %v9160 = vld [vmem:[#allocation15 + $0xbc] sm:$0xf]
        %v9161 = vld [vmem:[#allocation15 + $0xc0] sm:$0xf]
        %v9162 = vld [vmem:[#allocation15 + $0xc4] sm:$0xf]
        %v9163 = vld [vmem:[#allocation15 + $0xc8] sm:$0xf]
        %v9164 = vld [vmem:[#allocation15 + $0xcc] sm:$0xf]
        %v9165 = vld [vmem:[#allocation15 + $0xd0] sm:$0xf]
        %v9166 = vld [vmem:[#allocation15 + $0xd4] sm:$0xf]
        %v9167 = vld [vmem:[#allocation15 + $0xd8] sm:$0xf]
        %v9168 = vld [vmem:[#allocation15 + $0xdc] sm:$0xf]
        %v9169 = vld [vmem:[#allocation15 + $0xe0] sm:$0xf]
        %v9170 = vld [vmem:[#allocation15 + $0xe4] sm:$0xf]
        %v9171 = vld [vmem:[#allocation15 + $0xe8] sm:$0xf]
        %v9172 = vld [vmem:[#allocation15 + $0xec] sm:$0xf]
        %v9173 = vld [vmem:[#allocation15 + $0xf0] sm:$0xf]
        %v9174 = vld [vmem:[#allocation15 + $0xf4] sm:$0xf]
        %v9175 = vld [vmem:[#allocation15 + $0xf8] sm:$0xf]
        %v9176 = vld [vmem:[#allocation15 + $0xfc] sm:$0xf]
        %v9177 = vld [vmem:[%s12] sm:$0x1]
        %v9179 = vlaneseq
        %v9180 = vshrl.u32 %v9179, 7
        %v9181 = vsub.s32 0, %v9180
        %v9182 = vrot.slane %v9177, %v9181
        %v9248 = vunpack.c.l.b16 %v9113
        %v9249 = vunpack.c.l.b16 %v9114
        %v9250 = vunpack.c.l.b16 %v9115
        %v9251 = vunpack.c.l.b16 %v9116
        %v9252 = vunpack.c.l.b16 %v9117
        %v9253 = vunpack.c.l.b16 %v9118
        %v9254 = vunpack.c.l.b16 %v9119
        %v9255 = vunpack.c.l.b16 %v9120
        %v9256 = vunpack.c.l.b16 %v9121
        %v9257 = vunpack.c.l.b16 %v9122
        %v9258 = vunpack.c.l.b16 %v9123
        %v9259 = vunpack.c.l.b16 %v9124
        %v9260 = vunpack.c.l.b16 %v9125
        %v9261 = vunpack.c.l.b16 %v9126
        %v9262 = vunpack.c.l.b16 %v9127
        %v9263 = vunpack.c.l.b16 %v9128
        %v9264 = vunpack.c.l.b16 %v9129
        %v9265 = vunpack.c.l.b16 %v9130
        %v9266 = vunpack.c.l.b16 %v9131
        %v9267 = vunpack.c.l.b16 %v9132
        %v9268 = vunpack.c.l.b16 %v9133
        %v9269 = vunpack.c.l.b16 %v9134
        %v9270 = vunpack.c.l.b16 %v9135
        %v9271 = vunpack.c.l.b16 %v9136
        %v9272 = vunpack.c.l.b16 %v9137
        %v9273 = vunpack.c.l.b16 %v9138
        %v9274 = vunpack.c.l.b16 %v9139
        %v9275 = vunpack.c.l.b16 %v9140
        %v9276 = vunpack.c.l.b16 %v9141
        %v9277 = vunpack.c.l.b16 %v9142
        %v9278 = vunpack.c.l.b16 %v9143
        %v9279 = vunpack.c.l.b16 %v9144
        %v9280 = vunpack.c.l.b16 %v9145
        %v9281 = vunpack.c.l.b16 %v9146
        %v9282 = vunpack.c.l.b16 %v9147
        %v9283 = vunpack.c.l.b16 %v9148
        %v9284 = vunpack.c.l.b16 %v9149
        %v9285 = vunpack.c.l.b16 %v9150
        %v9286 = vunpack.c.l.b16 %v9151
        %v9287 = vunpack.c.l.b16 %v9152
        %v9288 = vunpack.c.l.b16 %v9153
        %v9289 = vunpack.c.l.b16 %v9154
        %v9290 = vunpack.c.l.b16 %v9155
        %v9291 = vunpack.c.l.b16 %v9156
        %v9292 = vunpack.c.l.b16 %v9157
        %v9293 = vunpack.c.l.b16 %v9158
        %v9294 = vunpack.c.l.b16 %v9159
        %v9295 = vunpack.c.l.b16 %v9160
        %v9296 = vunpack.c.l.b16 %v9161
        %v9297 = vunpack.c.l.b16 %v9162
        %v9298 = vunpack.c.l.b16 %v9163
        %v9299 = vunpack.c.l.b16 %v9164
        %v9300 = vunpack.c.l.b16 %v9165
        %v9301 = vunpack.c.l.b16 %v9166
        %v9302 = vunpack.c.l.b16 %v9167
        %v9303 = vunpack.c.l.b16 %v9168
        %v9304 = vunpack.c.l.b16 %v9169
        %v9305 = vunpack.c.l.b16 %v9170
        %v9306 = vunpack.c.l.b16 %v9171
        %v9307 = vunpack.c.l.b16 %v9172
        %v9308 = vunpack.c.l.b16 %v9173
        %v9309 = vunpack.c.l.b16 %v9174
        %v9310 = vunpack.c.l.b16 %v9175
        %v9311 = vunpack.c.l.b16 %v9176
        %v9312 = vpack.c.b16 %v9249, %v9248
        %v9313 = vpack.c.b16 %v9251, %v9250
        %v9314 = vpack.c.b16 %v9253, %v9252
        %v9315 = vpack.c.b16 %v9255, %v9254
        %v9316 = vpack.c.b16 %v9257, %v9256
        %v9317 = vpack.c.b16 %v9259, %v9258
        %v9318 = vpack.c.b16 %v9261, %v9260
        %v9319 = vpack.c.b16 %v9263, %v9262
        %v9320 = vpack.c.b16 %v9265, %v9264
        %v9321 = vpack.c.b16 %v9267, %v9266
        %v9322 = vpack.c.b16 %v9269, %v9268
        %v9323 = vpack.c.b16 %v9271, %v9270
        %v9324 = vpack.c.b16 %v9273, %v9272
        %v9325 = vpack.c.b16 %v9275, %v9274
        %v9326 = vpack.c.b16 %v9277, %v9276
        %v9327 = vpack.c.b16 %v9279, %v9278
        %v9328 = vpack.c.b16 %v9281, %v9280
        %v9329 = vpack.c.b16 %v9283, %v9282
        %v9330 = vpack.c.b16 %v9285, %v9284
        %v9331 = vpack.c.b16 %v9287, %v9286
        %v9332 = vpack.c.b16 %v9289, %v9288
        %v9333 = vpack.c.b16 %v9291, %v9290
        %v9334 = vpack.c.b16 %v9293, %v9292
        %v9335 = vpack.c.b16 %v9295, %v9294
        %v9336 = vpack.c.b16 %v9297, %v9296
        %v9337 = vpack.c.b16 %v9299, %v9298
        %v9338 = vpack.c.b16 %v9301, %v9300
        %v9339 = vpack.c.b16 %v9303, %v9302
        %v9340 = vpack.c.b16 %v9305, %v9304
        %v9341 = vpack.c.b16 %v9307, %v9306
        %v9342 = vpack.c.b16 %v9309, %v9308
        %v9343 = vpack.c.b16 %v9311, %v9310
        %9376 = vmatprep.subr.bf16.mxu0 0
        %9377 = vmatpush1.bf16.msra.mxu0 %v9312
        %9378 = vmatprep.subr.bf16.mxu0 0
        %9379 = vmatpush1.bf16.msra.mxu0 %v9313
        %9380 = vmatprep.subr.bf16.mxu0 0
        %9381 = vmatpush1.bf16.msra.mxu0 %v9314
        %9382 = vmatprep.subr.bf16.mxu0 0
        %9383 = vmatpush1.bf16.msra.mxu0 %v9315
        %9384 = vmatprep.subr.bf16.mxu0 0
        %9385 = vmatpush1.bf16.msra.mxu0 %v9316
        %9386 = vmatprep.subr.bf16.mxu0 0
        %9387 = vmatpush1.bf16.msra.mxu0 %v9317
        %9388 = vmatprep.subr.bf16.mxu0 0
        %9389 = vmatpush1.bf16.msra.mxu0 %v9318
        %9390 = vmatprep.subr.bf16.mxu0 0
        %9391 = vmatpush1.bf16.msra.mxu0 %v9319
        %9392 = vmatprep.subr.bf16.mxu0 0
        %9393 = vmatpush1.bf16.msra.mxu0 %v9320
        %9394 = vmatprep.subr.bf16.mxu0 0
        %9395 = vmatpush1.bf16.msra.mxu0 %v9321
        %9396 = vmatprep.subr.bf16.mxu0 0
        %9397 = vmatpush1.bf16.msra.mxu0 %v9322
        %9398 = vmatprep.subr.bf16.mxu0 0
        %9399 = vmatpush1.bf16.msra.mxu0 %v9323
        %9400 = vmatprep.subr.bf16.mxu0 0
        %9401 = vmatpush1.bf16.msra.mxu0 %v9324
        %9402 = vmatprep.subr.bf16.mxu0 0
        %9403 = vmatpush1.bf16.msra.mxu0 %v9325
        %9404 = vmatprep.subr.bf16.mxu0 0
        %9405 = vmatpush1.bf16.msra.mxu0 %v9326
        %9406 = vmatprep.subr.bf16.mxu0 0
        %9407 = vmatpush1.bf16.msra.mxu0 %v9327
        %9408 = vmatprep.mubr.bf16.mxu0 %v9050
        %9409 = vmatmul.mubr.bf16.gmra.mrb[0].mxu0 %v9049
        %v9410 = vpop.f32.mrb[0].mxu0
        %v9411 = vadd.f32 %v9182, %v9410
        %v9412 = vpop.f32.mrb[0].mxu0
        %v9413 = vpop.f32.mrb[0].mxu0
        %v9414 = vadd.f32 %v9182, %v9413
        %v9415 = vpop.f32.mrb[0].mxu0
        %9416 = vmatprep.mubr.bf16.mxu0 %v9054
        %9417 = vmatmul.mubr.bf16.gmra.mrb[0].mxu0 %v9053
        %v9418 = vpop.f32.mrb[0].mxu0
        %v9419 = vadd.f32 %v9182, %v9418
        %v9420 = vpop.f32.mrb[0].mxu0
        %v9421 = vpop.f32.mrb[0].mxu0
        %v9422 = vadd.f32 %v9182, %v9421
        %v9423 = vpop.f32.mrb[0].mxu0
        %9424 = vmatprep.mubr.bf16.mxu0 %v9058
        %9425 = vmatmul.mubr.bf16.gmra.mrb[0].mxu0 %v9057
        %v9426 = vpop.f32.mrb[0].mxu0
        %v9427 = vadd.f32 %v9182, %v9426
        %v9428 = vpop.f32.mrb[0].mxu0
        %v9429 = vpop.f32.mrb[0].mxu0
        %v9430 = vadd.f32 %v9182, %v9429
        %v9431 = vpop.f32.mrb[0].mxu0
        %9432 = vmatprep.mubr.bf16.mxu0 %v9062
        %9433 = vmatmul.mubr.bf16.gmra.mrb[0].mxu0 %v9061
        %v9434 = vpop.f32.mrb[0].mxu0
        %v9435 = vadd.f32 %v9182, %v9434
        %v9436 = vpop.f32.mrb[0].mxu0
        %v9437 = vpop.f32.mrb[0].mxu0
        %v9438 = vadd.f32 %v9182, %v9437
        %v9439 = vpop.f32.mrb[0].mxu0
        %9440 = vmatprep.mubr.bf16.mxu0 %v9066
        %9441 = vmatmul.mubr.bf16.gmra.mrb[0].mxu0 %v9065
        %v9442 = vpop.f32.mrb[0].mxu0
        %v9443 = vadd.f32 %v9182, %v9442
        %v9444 = vpop.f32.mrb[0].mxu0
        %v9445 = vpop.f32.mrb[0].mxu0
        %v9446 = vadd.f32 %v9182, %v9445
        %v9447 = vpop.f32.mrb[0].mxu0
        %9448 = vmatprep.mubr.bf16.mxu0 %v9070
        %9449 = vmatmul.mubr.bf16.gmra.mrb[0].mxu0 %v9069
        %v9450 = vpop.f32.mrb[0].mxu0
        %v9451 = vadd.f32 %v9182, %v9450
        %v9452 = vpop.f32.mrb[0].mxu0
        %v9453 = vpop.f32.mrb[0].mxu0
        %v9454 = vadd.f32 %v9182, %v9453
        %v9455 = vpop.f32.mrb[0].mxu0
        %9456 = vmatprep.mubr.bf16.mxu0 %v9074
        %9457 = vmatmul.mubr.bf16.gmra.mrb[0].mxu0 %v9073
        %v9458 = vpop.f32.mrb[0].mxu0
        %v9459 = vadd.f32 %v9182, %v9458
        %v9460 = vpop.f32.mrb[0].mxu0
        %v9461 = vpop.f32.mrb[0].mxu0
        %v9462 = vadd.f32 %v9182, %v9461
        %v9463 = vpop.f32.mrb[0].mxu0
        %9464 = vmatprep.mubr.bf16.mxu0 %v9078
        %9465 = vmatmul.mubr.bf16.gmra.mrb[0].mxu0 %v9077
        %v9466 = vpop.f32.mrb[0].mxu0
        %v9467 = vadd.f32 %v9182, %v9466
        %v9468 = vpop.f32.mrb[0].mxu0
        %v9469 = vpop.f32.mrb[0].mxu0
        %v9470 = vadd.f32 %v9182, %v9469
        %v9471 = vpop.f32.mrb[0].mxu0
        %9472 = vmatprep.mubr.bf16.mxu0 %v9082
        %9473 = vmatmul.mubr.bf16.gmra.mrb[0].mxu0 %v9081
        %v9474 = vpop.f32.mrb[0].mxu0
        %v9475 = vadd.f32 %v9182, %v9474
        %v9476 = vpop.f32.mrb[0].mxu0
        %v9477 = vpop.f32.mrb[0].mxu0
        %v9478 = vadd.f32 %v9182, %v9477
        %v9479 = vpop.f32.mrb[0].mxu0
        %9480 = vmatprep.mubr.bf16.mxu0 %v9086
        %9481 = vmatmul.mubr.bf16.gmra.mrb[0].mxu0 %v9085
        %v9482 = vpop.f32.mrb[0].mxu0
        %v9483 = vadd.f32 %v9182, %v9482
        %v9484 = vpop.f32.mrb[0].mxu0
        %v9485 = vpop.f32.mrb[0].mxu0
        %v9486 = vadd.f32 %v9182, %v9485
        %v9487 = vpop.f32.mrb[0].mxu0
        %9488 = vmatprep.mubr.bf16.mxu0 %v9090
        %9489 = vmatmul.mubr.bf16.gmra.mrb[0].mxu0 %v9089
        %v9490 = vpop.f32.mrb[0].mxu0
        %v9491 = vadd.f32 %v9182, %v9490
        %v9492 = vpop.f32.mrb[0].mxu0
        %v9493 = vpop.f32.mrb[0].mxu0
        %v9494 = vadd.f32 %v9182, %v9493
        %v9495 = vpop.f32.mrb[0].mxu0
        %9496 = vmatprep.mubr.bf16.mxu0 %v9094
        %9497 = vmatmul.mubr.bf16.gmra.mrb[0].mxu0 %v9093
        %v9498 = vpop.f32.mrb[0].mxu0
        %v9499 = vadd.f32 %v9182, %v9498
        %v9500 = vpop.f32.mrb[0].mxu0
        %v9501 = vpop.f32.mrb[0].mxu0
        %v9502 = vadd.f32 %v9182, %v9501
        %v9503 = vpop.f32.mrb[0].mxu0
        %9504 = vmatprep.mubr.bf16.mxu0 %v9098
        %9505 = vmatmul.mubr.bf16.gmra.mrb[0].mxu0 %v9097
        %v9506 = vpop.f32.mrb[0].mxu0
        %v9507 = vadd.f32 %v9182, %v9506
        %v9508 = vpop.f32.mrb[0].mxu0
        %v9509 = vpop.f32.mrb[0].mxu0
        %v9510 = vadd.f32 %v9182, %v9509
        %v9511 = vpop.f32.mrb[0].mxu0
        %9512 = vmatprep.mubr.bf16.mxu0 %v9102
        %9513 = vmatmul.mubr.bf16.gmra.mrb[0].mxu0 %v9101
        %v9514 = vpop.f32.mrb[0].mxu0
        %v9515 = vadd.f32 %v9182, %v9514
        %v9516 = vpop.f32.mrb[0].mxu0
        %v9517 = vpop.f32.mrb[0].mxu0
        %v9518 = vadd.f32 %v9182, %v9517
        %v9519 = vpop.f32.mrb[0].mxu0
        %9520 = vmatprep.mubr.bf16.mxu0 %v9106
        %9521 = vmatmul.mubr.bf16.gmra.mrb[0].mxu0 %v9105
        %v9522 = vpop.f32.mrb[0].mxu0
        %v9523 = vadd.f32 %v9182, %v9522
        %v9524 = vpop.f32.mrb[0].mxu0
        %v9525 = vpop.f32.mrb[0].mxu0
        %v9526 = vadd.f32 %v9182, %v9525
        %v9527 = vpop.f32.mrb[0].mxu0
        %9528 = vmatprep.mubr.bf16.mxu0 %v9110
        %9529 = vmatmul.mubr.bf16.gmra.mrb[0].mxu0 %v9109
        %v9530 = vpop.f32.mrb[0].mxu0
        %v9531 = vadd.f32 %v9182, %v9530
        %v9532 = vpop.f32.mrb[0].mxu0
        %v9533 = vpop.f32.mrb[0].mxu0
        %v9534 = vadd.f32 %v9182, %v9533
        %v9535 = vpop.f32.mrb[0].mxu0
        %9536 = vdwg.mxu0
        %9537 = vmatprep.subr.bf16.mxu0 0
        %9538 = vmatpush1.bf16.msra.mxu0 %v9328
        %9539 = vmatprep.subr.bf16.mxu0 0
        %9540 = vmatpush1.bf16.msra.mxu0 %v9329
        %9541 = vmatprep.subr.bf16.mxu0 0
        %9542 = vmatpush1.bf16.msra.mxu0 %v9330
        %9543 = vmatprep.subr.bf16.mxu0 0
        %9544 = vmatpush1.bf16.msra.mxu0 %v9331
        %9545 = vmatprep.subr.bf16.mxu0 0
        %9546 = vmatpush1.bf16.msra.mxu0 %v9332
        %9547 = vmatprep.subr.bf16.mxu0 0
        %9548 = vmatpush1.bf16.msra.mxu0 %v9333
        %9549 = vmatprep.subr.bf16.mxu0 0
        %9550 = vmatpush1.bf16.msra.mxu0 %v9334
        %9551 = vmatprep.subr.bf16.mxu0 0
        %9552 = vmatpush1.bf16.msra.mxu0 %v9335
        %9553 = vmatprep.subr.bf16.mxu0 0
        %9554 = vmatpush1.bf16.msra.mxu0 %v9336
        %9555 = vmatprep.subr.bf16.mxu0 0
        %9556 = vmatpush1.bf16.msra.mxu0 %v9337
        %9557 = vmatprep.subr.bf16.mxu0 0
        %9558 = vmatpush1.bf16.msra.mxu0 %v9338
        %9559 = vmatprep.subr.bf16.mxu0 0
        %9560 = vmatpush1.bf16.msra.mxu0 %v9339
        %9561 = vmatprep.subr.bf16.mxu0 0
        %9562 = vmatpush1.bf16.msra.mxu0 %v9340
        %9563 = vmatprep.subr.bf16.mxu0 0
        %9564 = vmatpush1.bf16.msra.mxu0 %v9341
        %9565 = vmatprep.subr.bf16.mxu0 0
        %9566 = vmatpush1.bf16.msra.mxu0 %v9342
        %9567 = vmatprep.subr.bf16.mxu0 0
        %9568 = vmatpush1.bf16.msra.mxu0 %v9343
        %9569 = vmatprep.mubr.bf16.mxu0 %v9052
        %9570 = vmatmul.mubr.bf16.gmra.mrb[0].mxu0 %v9051
        %v9571 = vpop.f32.mrb[0].mxu0
        %v9572 = vadd.f32 %v9411, %v9571
        %v9573 = vpop.f32.mrb[0].mxu0
        %v9574 = vpop.f32.mrb[0].mxu0
        %v9575 = vadd.f32 %v9414, %v9574
        %v9576 = vpop.f32.mrb[0].mxu0
        %9577 = vmatprep.mubr.bf16.mxu0 %v9056
        %9578 = vmatmul.mubr.bf16.gmra.mrb[0].mxu0 %v9055
        %v9579 = vpop.f32.mrb[0].mxu0
        %v9580 = vadd.f32 %v9419, %v9579
        %v9581 = vpop.f32.mrb[0].mxu0
        %v9582 = vpop.f32.mrb[0].mxu0
        %v9583 = vadd.f32 %v9422, %v9582
        %v9584 = vpop.f32.mrb[0].mxu0
        %9585 = vmatprep.mubr.bf16.mxu0 %v9060
        %9586 = vmatmul.mubr.bf16.gmra.mrb[0].mxu0 %v9059
        %v9587 = vpop.f32.mrb[0].mxu0
        %v9588 = vadd.f32 %v9427, %v9587
        %v9589 = vpop.f32.mrb[0].mxu0
        %v9590 = vpop.f32.mrb[0].mxu0
        %v9591 = vadd.f32 %v9430, %v9590
        %v9592 = vpop.f32.mrb[0].mxu0
        %9593 = vmatprep.mubr.bf16.mxu0 %v9064
        %9594 = vmatmul.mubr.bf16.gmra.mrb[0].mxu0 %v9063
        %v9595 = vpop.f32.mrb[0].mxu0
        %v9596 = vadd.f32 %v9435, %v9595
        %v9597 = vpop.f32.mrb[0].mxu0
        %v9598 = vpop.f32.mrb[0].mxu0
        %v9599 = vadd.f32 %v9438, %v9598
        %v9600 = vpop.f32.mrb[0].mxu0
        %9601 = vmatprep.mubr.bf16.mxu0 %v9068
        %9602 = vmatmul.mubr.bf16.gmra.mrb[0].mxu0 %v9067
        %v9603 = vpop.f32.mrb[0].mxu0
        %v9604 = vadd.f32 %v9443, %v9603
        %v9605 = vpop.f32.mrb[0].mxu0
        %v9606 = vpop.f32.mrb[0].mxu0
        %v9607 = vadd.f32 %v9446, %v9606
        %v9608 = vpop.f32.mrb[0].mxu0
        %9609 = vmatprep.mubr.bf16.mxu0 %v9072
        %9610 = vmatmul.mubr.bf16.gmra.mrb[0].mxu0 %v9071
        %v9611 = vpop.f32.mrb[0].mxu0
        %v9612 = vadd.f32 %v9451, %v9611
        %v9613 = vpop.f32.mrb[0].mxu0
        %v9614 = vpop.f32.mrb[0].mxu0
        %v9615 = vadd.f32 %v9454, %v9614
        %v9616 = vpop.f32.mrb[0].mxu0
        %9617 = vmatprep.mubr.bf16.mxu0 %v9076
        %9618 = vmatmul.mubr.bf16.gmra.mrb[0].mxu0 %v9075
        %v9619 = vpop.f32.mrb[0].mxu0
        %v9620 = vadd.f32 %v9459, %v9619
        %v9621 = vpop.f32.mrb[0].mxu0
        %v9622 = vpop.f32.mrb[0].mxu0
        %v9623 = vadd.f32 %v9462, %v9622
        %v9624 = vpop.f32.mrb[0].mxu0
        %9625 = vmatprep.mubr.bf16.mxu0 %v9080
        %9626 = vmatmul.mubr.bf16.gmra.mrb[0].mxu0 %v9079
        %v9627 = vpop.f32.mrb[0].mxu0
        %v9628 = vadd.f32 %v9467, %v9627
        %v9629 = vpop.f32.mrb[0].mxu0
        %v9630 = vpop.f32.mrb[0].mxu0
        %v9631 = vadd.f32 %v9470, %v9630
        %v9632 = vpop.f32.mrb[0].mxu0
        %9633 = vmatprep.mubr.bf16.mxu0 %v9084
        %9634 = vmatmul.mubr.bf16.gmra.mrb[0].mxu0 %v9083
        %v9635 = vpop.f32.mrb[0].mxu0
        %v9636 = vadd.f32 %v9475, %v9635
        %v9637 = vpop.f32.mrb[0].mxu0
        %v9638 = vpop.f32.mrb[0].mxu0
        %v9639 = vadd.f32 %v9478, %v9638
        %v9640 = vpop.f32.mrb[0].mxu0
        %9641 = vmatprep.mubr.bf16.mxu0 %v9088
        %9642 = vmatmul.mubr.bf16.gmra.mrb[0].mxu0 %v9087
        %v9643 = vpop.f32.mrb[0].mxu0
        %v9644 = vadd.f32 %v9483, %v9643
        %v9645 = vpop.f32.mrb[0].mxu0
        %v9646 = vpop.f32.mrb[0].mxu0
        %v9647 = vadd.f32 %v9486, %v9646
        %v9648 = vpop.f32.mrb[0].mxu0
        %9649 = vmatprep.mubr.bf16.mxu0 %v9092
        %9650 = vmatmul.mubr.bf16.gmra.mrb[0].mxu0 %v9091
        %v9651 = vpop.f32.mrb[0].mxu0
        %v9652 = vadd.f32 %v9491, %v9651
        %v9653 = vpop.f32.mrb[0].mxu0
        %v9654 = vpop.f32.mrb[0].mxu0
        %v9655 = vadd.f32 %v9494, %v9654
        %v9656 = vpop.f32.mrb[0].mxu0
        %9657 = vmatprep.mubr.bf16.mxu0 %v9096
        %9658 = vmatmul.mubr.bf16.gmra.mrb[0].mxu0 %v9095
        %v9659 = vpop.f32.mrb[0].mxu0
        %v9660 = vadd.f32 %v9499, %v9659
        %v9661 = vpop.f32.mrb[0].mxu0
        %v9662 = vpop.f32.mrb[0].mxu0
        %v9663 = vadd.f32 %v9502, %v9662
        %v9664 = vpop.f32.mrb[0].mxu0
        %9665 = vmatprep.mubr.bf16.mxu0 %v9100
        %9666 = vmatmul.mubr.bf16.gmra.mrb[0].mxu0 %v9099
        %v9667 = vpop.f32.mrb[0].mxu0
        %v9668 = vadd.f32 %v9507, %v9667
        %v9669 = vpop.f32.mrb[0].mxu0
        %v9670 = vpop.f32.mrb[0].mxu0
        %v9671 = vadd.f32 %v9510, %v9670
        %v9672 = vpop.f32.mrb[0].mxu0
        %9673 = vmatprep.mubr.bf16.mxu0 %v9104
        %9674 = vmatmul.mubr.bf16.gmra.mrb[0].mxu0 %v9103
        %v9675 = vpop.f32.mrb[0].mxu0
        %v9676 = vadd.f32 %v9515, %v9675
        %v9677 = vpop.f32.mrb[0].mxu0
        %v9678 = vpop.f32.mrb[0].mxu0
        %v9679 = vadd.f32 %v9518, %v9678
        %v9680 = vpop.f32.mrb[0].mxu0
        %9681 = vmatprep.mubr.bf16.mxu0 %v9108
        %9682 = vmatmul.mubr.bf16.gmra.mrb[0].mxu0 %v9107
        %v9683 = vpop.f32.mrb[0].mxu0
        %v9684 = vadd.f32 %v9523, %v9683
        %v9685 = vpop.f32.mrb[0].mxu0
        %v9686 = vpop.f32.mrb[0].mxu0
        %v9687 = vadd.f32 %v9526, %v9686
        %v9688 = vpop.f32.mrb[0].mxu0
        %9689 = vmatprep.mubr.bf16.mxu0 %v9112
        %9690 = vmatmul.mubr.bf16.gmra.mrb[0].mxu0 %v9111
        %v9691 = vpop.f32.mrb[0].mxu0
        %v9692 = vadd.f32 %v9531, %v9691
        %v9693 = vpop.f32.mrb[0].mxu0
        %v9694 = vpop.f32.mrb[0].mxu0
        %v9695 = vadd.f32 %v9534, %v9694
        %v9696 = vpop.f32.mrb[0].mxu0
        %9697 = vdwg.mxu0
        %v9698 = vadd.f32 %v6819, %v9572
        %v9699 = vadd.f32 %v6820, %v9575
        %v9700 = vadd.f32 %v6821, %v9580
        %v9701 = vadd.f32 %v6822, %v9583
        %v9702 = vadd.f32 %v6823, %v9588
        %v9703 = vadd.f32 %v6824, %v9591
        %v9704 = vadd.f32 %v6825, %v9596
        %v9705 = vadd.f32 %v6826, %v9599
        %v9706 = vadd.f32 %v6827, %v9604
        %v9707 = vadd.f32 %v6828, %v9607
        %v9708 = vadd.f32 %v6829, %v9612
        %v9709 = vadd.f32 %v6830, %v9615
        %v9710 = vadd.f32 %v6831, %v9620
        %v9711 = vadd.f32 %v6832, %v9623
        %v9712 = vadd.f32 %v6833, %v9628
        %v9713 = vadd.f32 %v6834, %v9631
        %v9714 = vadd.f32 %v6835, %v9636
        %v9715 = vadd.f32 %v6836, %v9639
        %v9716 = vadd.f32 %v6837, %v9644
        %v9717 = vadd.f32 %v6838, %v9647
        %v9718 = vadd.f32 %v6839, %v9652
        %v9719 = vadd.f32 %v6840, %v9655
        %v9720 = vadd.f32 %v6841, %v9660
        %v9721 = vadd.f32 %v6842, %v9663
        %v9722 = vadd.f32 %v6843, %v9668
        %v9723 = vadd.f32 %v6844, %v9671
        %v9724 = vadd.f32 %v6845, %v9676
        %v9725 = vadd.f32 %v6846, %v9679
        %v9726 = vadd.f32 %v6847, %v9684
        %v9727 = vadd.f32 %v6848, %v9687
        %v9728 = vadd.f32 %v6849, %v9692
        %v9729 = vadd.f32 %v6850, %v9695
        %9730 = vst [vmem:[%s542] sm:$0xff] %v9698
        %9731 = vst [vmem:[%s542 + $0x8] sm:$0xff] %v9699
        %9732 = vst [vmem:[%s542 + $0x10] sm:$0xff] %v9700
        %9733 = vst [vmem:[%s542 + $0x18] sm:$0xff] %v9701
        %9734 = vst [vmem:[%s542 + $0x20] sm:$0xff] %v9702
        %9735 = vst [vmem:[%s542 + $0x28] sm:$0xff] %v9703
        %9736 = vst [vmem:[%s542 + $0x30] sm:$0xff] %v9704
        %9737 = vst [vmem:[%s542 + $0x38] sm:$0xff] %v9705
        %9738 = vst [vmem:[%s542 + $0x40] sm:$0xff] %v9706
        %9739 = vst [vmem:[%s542 + $0x48] sm:$0xff] %v9707
        %9740 = vst [vmem:[%s542 + $0x50] sm:$0xff] %v9708
        %9741 = vst [vmem:[%s542 + $0x58] sm:$0xff] %v9709
        %9742 = vst [vmem:[%s542 + $0x60] sm:$0xff] %v9710
        %9743 = vst [vmem:[%s542 + $0x68] sm:$0xff] %v9711
        %9744 = vst [vmem:[%s542 + $0x70] sm:$0xff] %v9712
        %9745 = vst [vmem:[%s542 + $0x78] sm:$0xff] %v9713
        %9746 = vst [vmem:[%s542 + $0x80] sm:$0xff] %v9714
        %9747 = vst [vmem:[%s542 + $0x88] sm:$0xff] %v9715
        %9748 = vst [vmem:[%s542 + $0x90] sm:$0xff] %v9716
        %9749 = vst [vmem:[%s542 + $0x98] sm:$0xff] %v9717
        %9750 = vst [vmem:[%s542 + $0xa0] sm:$0xff] %v9718
        %9751 = vst [vmem:[%s542 + $0xa8] sm:$0xff] %v9719
        %9752 = vst [vmem:[%s542 + $0xb0] sm:$0xff] %v9720
        %9753 = vst [vmem:[%s542 + $0xb8] sm:$0xff] %v9721
        %9754 = vst [vmem:[%s542 + $0xc0] sm:$0xff] %v9722
        %9755 = vst [vmem:[%s542 + $0xc8] sm:$0xff] %v9723
        %9756 = vst [vmem:[%s542 + $0xd0] sm:$0xff] %v9724
        %9757 = vst [vmem:[%s542 + $0xd8] sm:$0xff] %v9725
        %9758 = vst [vmem:[%s542 + $0xe0] sm:$0xff] %v9726
        %9759 = vst [vmem:[%s542 + $0xe8] sm:$0xff] %v9727
        %9760 = vst [vmem:[%s542 + $0xf0] sm:$0xff] %v9728
        %9761 = vst [vmem:[%s542 + $0xf8] sm:$0xff] %v9729
        %s9762 = sand.u32 %s319, 1
        %s9763 = scalar_lea.sflag [#allocation6], %s9762
        %s9764 = sand.u32 %s319, 1
        %s9765 = smul.addr %s9764, 256
        %s9766 = scalar_lea.vmem [#allocation16], %s9765
        // Predicated region
        $region101: #{tpu_custom_call.1} parent=71 // pred_check
          %p9767 = pneg %p329
        $region102: #{tpu_custom_call.1} parent=71 // pred_check_branch
          %9769 = sbr.rel (%p9767) target = $region104
        $region103: #{tpu_custom_call.1} parent=71 // pred_region
          %s9770 = smul.u32 2, %s33
          %s9772 = ssub.s32 4096, 4096
          %9773 = vsyncadd %s9763, %s9772
          %s9774 = smul.addr %s9770, 16
          %s9775 = smul.addr %s9774, 128
          %s9776 = scalar_lea.hbm %s13, %s9775
          %s9777 = sshll.u32 %s9766, 4
          %s9778 = int_to_ptr.vmem [resolvable:$true] %s9777
          %9783 = dma.vmem_to_hbm [thread:$0]  %s9778, 4096, %s9776, %s9763, 128, 128, 8
        $region104: #{tpu_custom_call.1} parent=71 // pred_fallthru
          _
      $region72: #{tpu_custom_call.1} parent=5 // pred_fallthru
        _
      %p9784 = scmp.le.s32.totalorder 2, %s28
      // Predicated region
      $region105: #{tpu_custom_call.1} parent=5 // pred_check
        %p9785 = pneg %p9784
      $region106: #{tpu_custom_call.1} parent=5 // pred_check_branch
        %9787 = sbr.rel (%p9785) target = $region108
      $region107: #{tpu_custom_call.1} parent=5 // pred_region
        %s9788 = ssub.s32 %s28, 2
        // Predicated region
        $region109: #{tpu_custom_call.1} parent=107 // pred_check
          %p9789 = pneg %p335
        $region110: #{tpu_custom_call.1} parent=107 // pred_check_branch
          %9791 = sbr.rel (%p9789) target = $region112
        $region111: #{tpu_custom_call.1} parent=107 // pred_region
          %s9792 = sand.u32 %s320, 1
          %s9793 = scalar_lea.sflag [#allocation6], %s9792
          %s9794 = sand.u32 %s320, 1
          %s9795 = smul.addr %s9794, 256
          %s9796 = scalar_lea.vmem [#allocation16], %s9795
          %9797 = dma.done %s9793, 4096
        $region112: #{tpu_custom_call.1} parent=107 // pred_fallthru
          _
      $region108: #{tpu_custom_call.1} parent=5 // pred_fallthru
        _
    $region6: #{tpu_custom_call.1} parent=1 // loop_footer
      %s32 = sadd.s32 1, %s28
    $region7: #{tpu_custom_call.1} parent=1 // loop_footer_branch
      %27 = sbr.rel target = $region3
    $region8: #{tpu_custom_call.1} parent=1 // loop_exit
      _
    %9798 = vsyncpa [#allocation5], 1
    %s9799 = scalar_lea.sflag [#allocation5], 1
    %9800 = vsyncpa %s9799, 1
    %9801 = vsyncpa [#allocation8], 1
    %9802 = vsyncpa [#allocation11], 1
    %9803 = vsyncpa [#allocation14], 1
    %9804 = vsyncpa [#allocation6], 1
    %s9805 = scalar_lea.sflag [#allocation6], 1
    %9806 = vsyncpa %s9805, 1

</llo_original>
